<compile_context>
chip_gen: v6e
topology: v6e:2x2x1
jax: 0.10.0
libtpu: 0.0.40
codegen_flags: <defaults>
</compile_context>

<pallas_src>
import functools

import jax
import jax.numpy as jnp
from jax.experimental import pallas as pl
from jax.experimental.pallas import tpu as pltpu


def _conv_bn_kernel(x_ref, w_ref, m_ref, g_ref, b_ref, o_ref, *,
                    eps, inv_count, tap_offsets, rows_out):
    # 3x3 conv == 9 row-shifted matmuls on the MXU, f32 accumulation.
    acc = None
    for t, off in enumerate(tap_offsets):
        part = jnp.dot(x_ref[pl.ds(off, rows_out), :], w_ref[t],
                       preferred_element_type=jnp.float32)
        acc = part if acc is None else acc + part

    mask = m_ref[...]                                     # (rows_out, 1), 1.0 on valid rows
    # Training-mode BN statistics over the valid N*H*W rows (two-pass, masked).
    mean = jnp.sum(acc * mask, axis=0, keepdims=True) * inv_count
    centered = (acc - mean) * mask
    var = jnp.sum(centered * centered, axis=0, keepdims=True) * inv_count
    scale = jax.lax.rsqrt(var + eps) * g_ref[...]         # (1, TN)
    shift = b_ref[...] - mean * scale
    o_ref[...] = acc * scale + shift


@functools.lru_cache(maxsize=None)
def _cout_block_width():
    # 256-wide channel blocks fill the 256-lane MXU on v6e/v7x (and give the two v7x
    # TensorCores one block each); 128 is the right width on the older 128-wide MXUs.
    try:
        kind = jax.devices()[0].device_kind.lower()
    except Exception:
        return 256
    if any(v in kind for v in ("v2", "v3", "v4", "v5")):
        return 128
    return 256


def _conv2d_bn_impl(x_nchw, w_oihw, gamma, beta, eps, tn):
    N, Cin, H, W = x_nchw.shape
    Cout, Cin_w, KH, KW = w_oihw.shape
    assert Cin == Cin_w
    PH, PW = KH // 2, KW // 2                 # "same" padding, stride 1 (module spec)
    Hp, Wp = H + 2 * PH, W + 2 * PW
    rows_out = N * Hp * Wp                    # 256 for the module's (1,160,14,14) input
    n_valid = N * H * W                       # 196
    CoutP = ((Cout + tn - 1) // tn) * tn      # 512 (2x256) on v6e/v7x, 384 (3x128) on v5e

    # ---- layout glue (cheap: ~100 KB, no im2col materialization) ----
    x_nhwc = jnp.transpose(x_nchw, (0, 2, 3, 1)).astype(jnp.bfloat16)     # (N,H,W,Cin)
    xp = jnp.pad(x_nhwc, ((0, 0), (PH, PH), (PW, PW), (0, 0)))            # (N,Hp,Wp,Cin)
    x_flat = xp.reshape(rows_out, Cin)
    # Extra row padding so every tap-shifted window of `rows_out` rows stays in bounds.
    max_shift = PH * Wp + PW
    front = ((max_shift + 15) // 16) * 16          # bf16-sublane-aligned front pad
    x_big = jnp.pad(x_flat, ((front, front), (0, 0)))                      # (R, Cin) bf16

    # Per-tap weights: w_taps[t = dh*KW+dw] = W[:, :, dh, dw].T  -> (KH*KW, Cin, CoutP)
    w_taps = jnp.transpose(w_oihw, (2, 3, 1, 0)).reshape(KH * KW, Cin, Cout)
    w_taps = jnp.pad(w_taps, ((0, 0), (0, 0), (0, CoutP - Cout))).astype(jnp.bfloat16)

    g2 = jnp.pad(gamma.astype(jnp.float32), (0, CoutP - Cout)).reshape(1, CoutP)
    b2 = jnp.pad(beta.astype(jnp.float32), (0, CoutP - Cout)).reshape(1, CoutP)

    # 0/1 mask over padded-grid rows -> exact statistics over the n_valid positions.
    jj = jnp.arange(Hp * Wp)
    hp, wp = jj // Wp, jj % Wp
    valid = ((hp >= PH) & (hp < PH + H) & (wp >= PW) & (wp < PW + W))
    mask = jnp.tile(valid.astype(jnp.float32), N).reshape(rows_out, 1)

    tap_offsets = tuple(front + (dh - PH) * Wp + (dw - PW)
                        for dh in range(KH) for dw in range(KW))

    kernel = functools.partial(_conv_bn_kernel, eps=float(eps),
                               inv_count=1.0 / n_valid,
                               tap_offsets=tap_offsets, rows_out=rows_out)

    cost = pl.CostEstimate(
        flops=2 * rows_out * (KH * KW * Cin) * CoutP,
        transcendentals=CoutP,
        bytes_accessed=(x_big.size * 2 + w_taps.size * 2
                        + rows_out * CoutP * 4 + 3 * CoutP * 4))

    y = pl.pallas_call(
        kernel,
        out_shape=jax.ShapeDtypeStruct((rows_out, CoutP), jnp.float32),
        grid=(CoutP // tn,),
        in_specs=[
            pl.BlockSpec((x_big.shape[0], Cin), lambda j: (0, 0)),   # resident input slab
            pl.BlockSpec((KH * KW, Cin, tn), lambda j: (0, 0, j)),   # per-block tap weights
            pl.BlockSpec((rows_out, 1), lambda j: (0, 0)),           # resident row mask
            pl.BlockSpec((1, tn), lambda j: (0, j)),                 # gamma
            pl.BlockSpec((1, tn), lambda j: (0, j)),                 # beta
        ],
        out_specs=pl.BlockSpec((rows_out, tn), lambda j: (0, j)),
        compiler_params=pltpu.CompilerParams(dimension_semantics=("parallel",)),
        cost_estimate=cost,
    )(x_big, w_taps, mask, g2, b2)

    # Drop padded channels and the padded border rows, back to NCHW.
    y = y.reshape(N, Hp, Wp, CoutP)[:, PH:PH + H, PW:PW + W, :Cout]
    return jnp.transpose(y, (0, 3, 1, 2))


_conv2d_bn_jit = jax.jit(_conv2d_bn_impl, static_argnums=(4, 5))


def conv2d_batchnorm(x_nchw, w_oihw, gamma, beta, *, eps=1e-3):
    # TODO(synk): PyTorch training-mode BatchNorm also updates running_mean/running_var
    # (unbiased variance, momentum=0.1); only the forward activation is produced here.
    return _conv2d_bn_jit(x_nchw, w_oihw, gamma, beta, float(eps), _cout_block_width())


if __name__ == "__main__":
    key = jax.random.PRNGKey(0)
    k1, k2, k3, k4 = jax.random.split(key, 4)

    # Shapes implied by the module: x151 = (1, 160, 14, 14)
    x = jax.random.normal(k1, (1, 160, 14, 14), jnp.float32)
    w = jax.random.normal(k2, (320, 160, 3, 3), jnp.float32) * 0.05
    gamma = 1.0 + 0.1 * jax.random.normal(k3, (320,), jnp.float32)
    beta = 0.1 * jax.random.normal(k4, (320,), jnp.float32)

    y = conv2d_batchnorm(x, w, gamma, beta, eps=1e-3)
    y = jax.block_until_ready(y)

    def bn_train(conv, g, b, eps):
        mean = conv.mean(axis=(0, 2, 3), keepdims=True)
        var = ((conv - mean) ** 2).mean(axis=(0, 2, 3), keepdims=True)
        return (conv - mean) * jax.lax.rsqrt(var + eps) * g.reshape(1, -1, 1, 1) \
               + b.reshape(1, -1, 1, 1)

    # Reference 1: identical math (bf16-rounded conv inputs, f32 accumulation) -> tight check.
    xb = x.astype(jnp.bfloat16).astype(jnp.float32)
    wb = w.astype(jnp.bfloat16).astype(jnp.float32)
    conv_b = jax.lax.conv_general_dilated(
        xb, wb, window_strides=(1, 1), padding=((1, 1), (1, 1)),
        dimension_numbers=("NCHW", "OIHW", "NCHW"))
    ref_b = bn_train(conv_b, gamma, beta, 1e-3)
    err_b = float(jnp.max(jnp.abs(y - ref_b)))
    assert jnp.allclose(y, ref_b, atol=3e-3, rtol=3e-3), f"bf16-matched max abs err = {err_b}"

    # Reference 2: full-f32 module semantics -> bf16-level tolerance.
    conv_f = jax.lax.conv_general_dilated(
        x, w, window_strides=(1, 1), padding=((1, 1), (1, 1)),
        dimension_numbers=("NCHW", "OIHW", "NCHW"))
    ref_f = bn_train(conv_f, gamma, beta, 1e-3)
    err_f = float(jnp.max(jnp.abs(y - ref_f)))
    assert jnp.allclose(y, ref_f, atol=3e-2, rtol=3e-2), f"f32-reference max abs err = {err_f}"

    print("KERNEL_OK")
</pallas_src>

<mosaic_0001>
module attributes {stable_mosaic.version = 11 : i64} {
  func.func @_conv_bn_kernel(%arg0: i32, %arg1: memref<320x160xbf16, #tpu.memory_space<vmem>>, %arg2: memref<9x160x256xbf16, #tpu.memory_space<vmem>>, %arg3: memref<256x1xf32, #tpu.memory_space<vmem>>, %arg4: memref<1x256xf32, #tpu.memory_space<vmem>>, %arg5: memref<1x256xf32, #tpu.memory_space<vmem>>, %arg6: memref<256x256xf32, #tpu.memory_space<vmem>>) attributes {dimension_semantics = [#tpu.dimension_semantics<parallel>], iteration_bounds = array<i64: 2>, scalar_prefetch = 0 : i64, scratch_operands = 0 : i64, tpu.core_type = #tpu.core_type<tc>, window_params = [{pipeline_mode = #tpu.pipeline_mode<synchronous>, transform_indices = @transform_0, window_bounds = array<i64: 320, 160>}, {transform_indices = @transform_1, window_bounds = array<i64: 9, 160, 256>}, {pipeline_mode = #tpu.pipeline_mode<synchronous>, transform_indices = @transform_2, window_bounds = array<i64: 256, 1>}, {transform_indices = @transform_3, window_bounds = array<i64: 1, 256>}, {transform_indices = @transform_4, window_bounds = array<i64: 1, 256>}, {transform_indices = @transform_5, window_bounds = array<i64: 256, 256>}]} {
    %c15 = arith.constant 15 : index
    %c0 = arith.constant 0 : index
    %0 = vector.load %arg1[%c15, %c0] : memref<320x160xbf16, #tpu.memory_space<vmem>>, vector<256x160xbf16>
    %c0_0 = arith.constant 0 : index
    %c0_1 = arith.constant 0 : index
    %c0_2 = arith.constant 0 : index
    %1 = vector.load %arg2[%c0_0, %c0_1, %c0_2] : memref<9x160x256xbf16, #tpu.memory_space<vmem>>, vector<1x160x256xbf16>
    %2 = vector.shape_cast %1 : vector<1x160x256xbf16> to vector<160x256xbf16>
    %cst = arith.constant dense<0.000000e+00> : vector<256x256xf32>
    %3 = tpu.matmul %0, %2, %cst {dimension_numbers = #tpu.dot_dimension_numbers<[1], [0], [0], [1], [0, 0, 1, 1], [], []>} : vector<256x160xbf16>, vector<160x256xbf16>, vector<256x256xf32> -> vector<256x256xf32>
    %c16 = arith.constant 16 : index
    %c0_3 = arith.constant 0 : index
    %4 = vector.load %arg1[%c16, %c0_3] : memref<320x160xbf16, #tpu.memory_space<vmem>>, vector<256x160xbf16>
    %c1 = arith.constant 1 : index
    %c0_4 = arith.constant 0 : index
    %c0_5 = arith.constant 0 : index
    %5 = vector.load %arg2[%c1, %c0_4, %c0_5] : memref<9x160x256xbf16, #tpu.memory_space<vmem>>, vector<1x160x256xbf16>
    %6 = vector.shape_cast %5 : vector<1x160x256xbf16> to vector<160x256xbf16>
    %cst_6 = arith.constant dense<0.000000e+00> : vector<256x256xf32>
    %7 = tpu.matmul %4, %6, %cst_6 {dimension_numbers = #tpu.dot_dimension_numbers<[1], [0], [0], [1], [0, 0, 1, 1], [], []>} : vector<256x160xbf16>, vector<160x256xbf16>, vector<256x256xf32> -> vector<256x256xf32>
    %8 = arith.addf %3, %7 : vector<256x256xf32>
    %c17 = arith.constant 17 : index
    %c0_7 = arith.constant 0 : index
    %9 = vector.load %arg1[%c17, %c0_7] : memref<320x160xbf16, #tpu.memory_space<vmem>>, vector<256x160xbf16>
    %c2 = arith.constant 2 : index
    %c0_8 = arith.constant 0 : index
    %c0_9 = arith.constant 0 : index
    %10 = vector.load %arg2[%c2, %c0_8, %c0_9] : memref<9x160x256xbf16, #tpu.memory_space<vmem>>, vector<1x160x256xbf16>
    %11 = vector.shape_cast %10 : vector<1x160x256xbf16> to vector<160x256xbf16>
    %cst_10 = arith.constant dense<0.000000e+00> : vector<256x256xf32>
    %12 = tpu.matmul %9, %11, %cst_10 {dimension_numbers = #tpu.dot_dimension_numbers<[1], [0], [0], [1], [0, 0, 1, 1], [], []>} : vector<256x160xbf16>, vector<160x256xbf16>, vector<256x256xf32> -> vector<256x256xf32>
    %13 = arith.addf %8, %12 : vector<256x256xf32>
    %c31 = arith.constant 31 : index
    %c0_11 = arith.constant 0 : index
    %14 = vector.load %arg1[%c31, %c0_11] : memref<320x160xbf16, #tpu.memory_space<vmem>>, vector<256x160xbf16>
    %c3 = arith.constant 3 : index
    %c0_12 = arith.constant 0 : index
    %c0_13 = arith.constant 0 : index
    %15 = vector.load %arg2[%c3, %c0_12, %c0_13] : memref<9x160x256xbf16, #tpu.memory_space<vmem>>, vector<1x160x256xbf16>
    %16 = vector.shape_cast %15 : vector<1x160x256xbf16> to vector<160x256xbf16>
    %cst_14 = arith.constant dense<0.000000e+00> : vector<256x256xf32>
    %17 = tpu.matmul %14, %16, %cst_14 {dimension_numbers = #tpu.dot_dimension_numbers<[1], [0], [0], [1], [0, 0, 1, 1], [], []>} : vector<256x160xbf16>, vector<160x256xbf16>, vector<256x256xf32> -> vector<256x256xf32>
    %18 = arith.addf %13, %17 : vector<256x256xf32>
    %c32 = arith.constant 32 : index
    %c0_15 = arith.constant 0 : index
    %19 = vector.load %arg1[%c32, %c0_15] : memref<320x160xbf16, #tpu.memory_space<vmem>>, vector<256x160xbf16>
    %c4 = arith.constant 4 : index
    %c0_16 = arith.constant 0 : index
    %c0_17 = arith.constant 0 : index
    %20 = vector.load %arg2[%c4, %c0_16, %c0_17] : memref<9x160x256xbf16, #tpu.memory_space<vmem>>, vector<1x160x256xbf16>
    %21 = vector.shape_cast %20 : vector<1x160x256xbf16> to vector<160x256xbf16>
    %cst_18 = arith.constant dense<0.000000e+00> : vector<256x256xf32>
    %22 = tpu.matmul %19, %21, %cst_18 {dimension_numbers = #tpu.dot_dimension_numbers<[1], [0], [0], [1], [0, 0, 1, 1], [], []>} : vector<256x160xbf16>, vector<160x256xbf16>, vector<256x256xf32> -> vector<256x256xf32>
    %23 = arith.addf %18, %22 : vector<256x256xf32>
    %c33 = arith.constant 33 : index
    %c0_19 = arith.constant 0 : index
    %24 = vector.load %arg1[%c33, %c0_19] : memref<320x160xbf16, #tpu.memory_space<vmem>>, vector<256x160xbf16>
    %c5 = arith.constant 5 : index
    %c0_20 = arith.constant 0 : index
    %c0_21 = arith.constant 0 : index
    %25 = vector.load %arg2[%c5, %c0_20, %c0_21] : memref<9x160x256xbf16, #tpu.memory_space<vmem>>, vector<1x160x256xbf16>
    %26 = vector.shape_cast %25 : vector<1x160x256xbf16> to vector<160x256xbf16>
    %cst_22 = arith.constant dense<0.000000e+00> : vector<256x256xf32>
    %27 = tpu.matmul %24, %26, %cst_22 {dimension_numbers = #tpu.dot_dimension_numbers<[1], [0], [0], [1], [0, 0, 1, 1], [], []>} : vector<256x160xbf16>, vector<160x256xbf16>, vector<256x256xf32> -> vector<256x256xf32>
    %28 = arith.addf %23, %27 : vector<256x256xf32>
    %c47 = arith.constant 47 : index
    %c0_23 = arith.constant 0 : index
    %29 = vector.load %arg1[%c47, %c0_23] : memref<320x160xbf16, #tpu.memory_space<vmem>>, vector<256x160xbf16>
    %c6 = arith.constant 6 : index
    %c0_24 = arith.constant 0 : index
    %c0_25 = arith.constant 0 : index
    %30 = vector.load %arg2[%c6, %c0_24, %c0_25] : memref<9x160x256xbf16, #tpu.memory_space<vmem>>, vector<1x160x256xbf16>
    %31 = vector.shape_cast %30 : vector<1x160x256xbf16> to vector<160x256xbf16>
    %cst_26 = arith.constant dense<0.000000e+00> : vector<256x256xf32>
    %32 = tpu.matmul %29, %31, %cst_26 {dimension_numbers = #tpu.dot_dimension_numbers<[1], [0], [0], [1], [0, 0, 1, 1], [], []>} : vector<256x160xbf16>, vector<160x256xbf16>, vector<256x256xf32> -> vector<256x256xf32>
    %33 = arith.addf %28, %32 : vector<256x256xf32>
    %c48 = arith.constant 48 : index
    %c0_27 = arith.constant 0 : index
    %34 = vector.load %arg1[%c48, %c0_27] : memref<320x160xbf16, #tpu.memory_space<vmem>>, vector<256x160xbf16>
    %c7 = arith.constant 7 : index
    %c0_28 = arith.constant 0 : index
    %c0_29 = arith.constant 0 : index
    %35 = vector.load %arg2[%c7, %c0_28, %c0_29] : memref<9x160x256xbf16, #tpu.memory_space<vmem>>, vector<1x160x256xbf16>
    %36 = vector.shape_cast %35 : vector<1x160x256xbf16> to vector<160x256xbf16>
    %cst_30 = arith.constant dense<0.000000e+00> : vector<256x256xf32>
    %37 = tpu.matmul %34, %36, %cst_30 {dimension_numbers = #tpu.dot_dimension_numbers<[1], [0], [0], [1], [0, 0, 1, 1], [], []>} : vector<256x160xbf16>, vector<160x256xbf16>, vector<256x256xf32> -> vector<256x256xf32>
    %38 = arith.addf %33, %37 : vector<256x256xf32>
    %c49 = arith.constant 49 : index
    %c0_31 = arith.constant 0 : index
    %39 = vector.load %arg1[%c49, %c0_31] : memref<320x160xbf16, #tpu.memory_space<vmem>>, vector<256x160xbf16>
    %c8 = arith.constant 8 : index
    %c0_32 = arith.constant 0 : index
    %c0_33 = arith.constant 0 : index
    %40 = vector.load %arg2[%c8, %c0_32, %c0_33] : memref<9x160x256xbf16, #tpu.memory_space<vmem>>, vector<1x160x256xbf16>
    %41 = vector.shape_cast %40 : vector<1x160x256xbf16> to vector<160x256xbf16>
    %cst_34 = arith.constant dense<0.000000e+00> : vector<256x256xf32>
    %42 = tpu.matmul %39, %41, %cst_34 {dimension_numbers = #tpu.dot_dimension_numbers<[1], [0], [0], [1], [0, 0, 1, 1], [], []>} : vector<256x160xbf16>, vector<160x256xbf16>, vector<256x256xf32> -> vector<256x256xf32>
    %43 = arith.addf %38, %42 : vector<256x256xf32>
    %c0_35 = arith.constant 0 : index
    %c0_36 = arith.constant 0 : index
    %44 = vector.load %arg3[%c0_35, %c0_36] : memref<256x1xf32, #tpu.memory_space<vmem>>, vector<256x1xf32>
    %45 = vector.broadcast %44 : vector<256x1xf32> to vector<256x256xf32>
    %46 = arith.mulf %43, %45 : vector<256x256xf32>
    %cst_37 = arith.constant dense<0.000000e+00> : vector<256xf32>
    %47 = vector.multi_reduction <add>, %46, %cst_37 [0] : vector<256x256xf32> to vector<256xf32>
    %48 = vector.shape_cast %47 : vector<256xf32> to vector<1x256xf32>
    %cst_38 = arith.constant 0.00510204071 : f32
    %49 = vector.broadcast %cst_38 : f32 to vector<1x256xf32>
    %50 = arith.mulf %48, %49 : vector<1x256xf32>
    %51 = vector.broadcast %50 : vector<1x256xf32> to vector<256x256xf32>
    %52 = arith.subf %43, %51 : vector<256x256xf32>
    %53 = vector.broadcast %44 : vector<256x1xf32> to vector<256x256xf32>
    %54 = arith.mulf %52, %53 : vector<256x256xf32>
    %55 = arith.mulf %54, %54 : vector<256x256xf32>
    %cst_39 = arith.constant dense<0.000000e+00> : vector<256xf32>
    %56 = vector.multi_reduction <add>, %55, %cst_39 [0] : vector<256x256xf32> to vector<256xf32>
    %57 = vector.shape_cast %56 : vector<256xf32> to vector<1x256xf32>
    %cst_40 = arith.constant 0.00510204071 : f32
    %58 = vector.broadcast %cst_40 : f32 to vector<1x256xf32>
    %59 = arith.mulf %57, %58 : vector<1x256xf32>
    %cst_41 = arith.constant 1.000000e-03 : f32
    %60 = vector.broadcast %cst_41 : f32 to vector<1x256xf32>
    %61 = arith.addf %59, %60 : vector<1x256xf32>
    %62 = math.rsqrt %61 : vector<1x256xf32>
    %c0_42 = arith.constant 0 : index
    %c0_43 = arith.constant 0 : index
    %63 = vector.load %arg4[%c0_42, %c0_43] : memref<1x256xf32, #tpu.memory_space<vmem>>, vector<1x256xf32>
    %64 = arith.mulf %62, %63 : vector<1x256xf32>
    %c0_44 = arith.constant 0 : index
    %c0_45 = arith.constant 0 : index
    %65 = vector.load %arg5[%c0_44, %c0_45] : memref<1x256xf32, #tpu.memory_space<vmem>>, vector<1x256xf32>
    %66 = arith.mulf %50, %64 : vector<1x256xf32>
    %67 = arith.subf %65, %66 : vector<1x256xf32>
    %68 = vector.broadcast %64 : vector<1x256xf32> to vector<256x256xf32>
    %69 = arith.mulf %43, %68 : vector<256x256xf32>
    %70 = vector.broadcast %67 : vector<1x256xf32> to vector<256x256xf32>
    %71 = arith.addf %69, %70 : vector<256x256xf32>
    %c0_46 = arith.constant 0 : index
    %c0_47 = arith.constant 0 : index
    %72 = vector.load %arg6[%c0_46, %c0_47] : memref<256x256xf32, #tpu.memory_space<vmem>>, vector<256x256xf32>
    tpu.vector_store %arg6[%c0_46, %c0_47], %71 {strides = array<i32>} : memref<256x256xf32, #tpu.memory_space<vmem>>, vector<256x256xf32>,
    return
  }
  func.func @transform_0(%arg0: i32) -> (i32, i32) {
    %c0_i32 = arith.constant 0 : i32
    %c0_i32_0 = arith.constant 0 : i32
    %c0_i32_1 = arith.constant 0 : i32
    return %c0_i32, %c0_i32_0 : i32, i32
  }
  func.func @transform_1(%arg0: i32) -> (i32, i32, i32) {
    %c0_i32 = arith.constant 0 : i32
    %c0_i32_0 = arith.constant 0 : i32
    %c0_i32_1 = arith.constant 0 : i32
    return %c0_i32, %c0_i32_0, %arg0 : i32, i32, i32
  }
  func.func @transform_2(%arg0: i32) -> (i32, i32) {
    %c0_i32 = arith.constant 0 : i32
    %c0_i32_0 = arith.constant 0 : i32
    %c0_i32_1 = arith.constant 0 : i32
    return %c0_i32, %c0_i32_0 : i32, i32
  }
  func.func @transform_3(%arg0: i32) -> (i32, i32) {
    %c0_i32 = arith.constant 0 : i32
    %c0_i32_0 = arith.constant 0 : i32
    return %c0_i32, %arg0 : i32, i32
  }
  func.func @transform_4(%arg0: i32) -> (i32, i32) {
    %c0_i32 = arith.constant 0 : i32
    %c0_i32_0 = arith.constant 0 : i32
    return %c0_i32, %arg0 : i32, i32
  }
  func.func @transform_5(%arg0: i32) -> (i32, i32) {
    %c0_i32 = arith.constant 0 : i32
    %c0_i32_0 = arith.constant 0 : i32
    return %c0_i32, %arg0 : i32, i32
  }
}

</mosaic_0001>

<llo_original>
// kernel: _conv2d_bn_impl.1
$region0: #{_conv2d_bn_impl.1}
  #allocation0 [shape = 'u32[]', space=smem, size = 0x4, offset = 0x4, fixed_abs, tag = 'smem constant byte address 0x4 - core index']
  #allocation1 [shape = 'u32[144,128]{1,0:T(1,128)}', space=vmem, size = 0x12000, scoped, tag = 'internal scratch']
  %s0 = inlined_call_operand.vmem [shape: bf16[320,160], index: 0, kind: input, shape index: {}]
  %s1 = inlined_call_operand.vmem [shape: bf16[9,160,512], index: 1, kind: input, shape index: {}]
  %s2 = inlined_call_operand.vmem [shape: f32[256,1], index: 2, kind: input, shape index: {}]
  %s3 = inlined_call_operand.vmem [shape: f32[1,512], index: 3, kind: input, shape index: {}]
  %s4 = inlined_call_operand.vmem [shape: f32[1,512], index: 4, kind: input, shape index: {}]
  %s5 = inlined_call_operand.vmem [shape: f32[256,512], index: 5, kind: output, shape index: {}]
  %s6 = sld [smem:[#allocation0]]
  $region110: #{_conv2d_bn_impl.1} parent=0
    _
  %s8 = ssub.s32 1, %s6
  %s9 = scalar_select 0, %s8, %s6
  $region1: #{_conv2d_bn_impl.1} parent=0
    #allocation2 [shape = 'u8[1474560]{0}', space=vmem, size = 0x168000, scoped, tag = 'input window, operand 1']
    #allocation3 [shape = 'u8[524288]{0}', space=vmem, size = 0x80000, scoped, tag = 'output window, operand 0']
    loop: start=0, step=1, limit=4
    $region2: #{_conv2d_bn_impl.1} parent=1 // loop_pre_header
      _
    $region3: #{_conv2d_bn_impl.1} parent=1 // loop_header
      %s11 = sphi 0, %s15
      %p12 = scmp.ge.s32.totalorder %s11, 4
      %s19 = sphi 0, %s19
      %s21 = sphi 0, %s19
      %s22 = sphi 0, %s21
      %s36 = sphi 0, %s22
      %s42 = sphi 0, %s44
      %s45 = sphi 0, %s42
      %s46 = sphi 0, %s45
      %s62 = sphi 0, %s46
      %s66 = sphi 0, %s66
      %s68 = sphi 0, %s66
      %s69 = sphi 0, %s68
      %s83 = sphi 0, %s69
      %s89 = sphi 0, %s91
      %s92 = sphi 0, %s89
      %s93 = sphi 0, %s92
      %s109 = sphi 0, %s93
      %s115 = sphi 0, %s117
      %s118 = sphi 0, %s115
      %s119 = sphi 0, %s118
      %s135 = sphi 0, %s119
      %s141 = sphi 0, %s143
      %s144 = sphi 0, %s141
      %s145 = sphi 0, %s144
      %s161 = sphi 0, %s145
    $region4: #{_conv2d_bn_impl.1} parent=1 // loop_header_branch
      %14 = sbr.rel (%p12) target = $region8
    $region5: #{_conv2d_bn_impl.1} parent=1 // loop_body
      %s16 = ssub.s32 %s11, 1
      %s17 = ssub.s32 %s11, 2
      %s18 = sadd.s32 %s11, 1
      %s20 = sadd.s32 %s19, 1
      %p23 = scmp.eq.s32.totalorder %s11, 1
      %p24 = scmp.ne.s32.totalorder %s19, %s21
      %p25 = scmp.eq.s32.totalorder %s11, 0
      %p26 = por %p24, %p25
      %p27 = scmp.ne.s32.totalorder %s19, %s21
      %p28 = scmp.eq.s32.totalorder %s16, 1
      %p29 = por %p27, %p28
      %p30 = scmp.ne.s32.totalorder %s21, %s22
      %p31 = scmp.eq.s32.totalorder %s16, 0
      %p32 = por %p30, %p31
      %p33 = scmp.ne.s32.totalorder %s21, %s22
      %p34 = scmp.eq.s32.totalorder %s17, 1
      %p35 = por %p33, %p34
      %p37 = scmp.ne.s32.totalorder %s22, %s36
      %p38 = scmp.eq.s32.totalorder %s17, 0
      %p39 = por %p37, %p38
      %s40 = ssub.s32 %s11, %s18
      %p41 = scmp.eq.s32.totalorder %s40, 0
      %s43 = sadd.s32 %s42, 1
      %s44 = scalar_select %p41, %s42, %s43
      %p47 = pneg %p41
      %p48 = scmp.eq.s32.totalorder %s11, 1
      %p49 = por %p47, %p48
      %p50 = scmp.ne.s32.totalorder %s42, %s45
      %p51 = scmp.eq.s32.totalorder %s11, 0
      %p52 = por %p50, %p51
      %p53 = scmp.ne.s32.totalorder %s42, %s45
      %p54 = scmp.eq.s32.totalorder %s16, 1
      %p55 = por %p53, %p54
      %p56 = scmp.ne.s32.totalorder %s45, %s46
      %p57 = scmp.eq.s32.totalorder %s16, 0
      %p58 = por %p56, %p57
      %p59 = scmp.ne.s32.totalorder %s45, %s46
      %p60 = scmp.eq.s32.totalorder %s17, 1
      %p61 = por %p59, %p60
      %p63 = scmp.ne.s32.totalorder %s46, %s62
      %p64 = scmp.eq.s32.totalorder %s17, 0
      %p65 = por %p63, %p64
      %s67 = sadd.s32 %s66, 1
      %p70 = scmp.eq.s32.totalorder %s11, 1
      %p71 = scmp.ne.s32.totalorder %s66, %s68
      %p72 = scmp.eq.s32.totalorder %s11, 0
      %p73 = por %p71, %p72
      %p74 = scmp.ne.s32.totalorder %s66, %s68
      %p75 = scmp.eq.s32.totalorder %s16, 1
      %p76 = por %p74, %p75
      %p77 = scmp.ne.s32.totalorder %s68, %s69
      %p78 = scmp.eq.s32.totalorder %s16, 0
      %p79 = por %p77, %p78
      %p80 = scmp.ne.s32.totalorder %s68, %s69
      %p81 = scmp.eq.s32.totalorder %s17, 1
      %p82 = por %p80, %p81
      %p84 = scmp.ne.s32.totalorder %s69, %s83
      %p85 = scmp.eq.s32.totalorder %s17, 0
      %p86 = por %p84, %p85
      %s87 = ssub.s32 %s11, %s18
      %p88 = scmp.eq.s32.totalorder %s87, 0
      %s90 = sadd.s32 %s89, 1
      %s91 = scalar_select %p88, %s89, %s90
      %p94 = pneg %p88
      %p95 = scmp.eq.s32.totalorder %s11, 1
      %p96 = por %p94, %p95
      %p97 = scmp.ne.s32.totalorder %s89, %s92
      %p98 = scmp.eq.s32.totalorder %s11, 0
      %p99 = por %p97, %p98
      %p100 = scmp.ne.s32.totalorder %s89, %s92
      %p101 = scmp.eq.s32.totalorder %s16, 1
      %p102 = por %p100, %p101
      %p103 = scmp.ne.s32.totalorder %s92, %s93
      %p104 = scmp.eq.s32.totalorder %s16, 0
      %p105 = por %p103, %p104
      %p106 = scmp.ne.s32.totalorder %s92, %s93
      %p107 = scmp.eq.s32.totalorder %s17, 1
      %p108 = por %p106, %p107
      %p110 = scmp.ne.s32.totalorder %s93, %s109
      %p111 = scmp.eq.s32.totalorder %s17, 0
      %p112 = por %p110, %p111
      %s113 = ssub.s32 %s11, %s18
      %p114 = scmp.eq.s32.totalorder %s113, 0
      %s116 = sadd.s32 %s115, 1
      %s117 = scalar_select %p114, %s115, %s116
      %p120 = pneg %p114
      %p121 = scmp.eq.s32.totalorder %s11, 1
      %p122 = por %p120, %p121
      %p123 = scmp.ne.s32.totalorder %s115, %s118
      %p124 = scmp.eq.s32.totalorder %s11, 0
      %p125 = por %p123, %p124
      %p126 = scmp.ne.s32.totalorder %s115, %s118
      %p127 = scmp.eq.s32.totalorder %s16, 1
      %p128 = por %p126, %p127
      %p129 = scmp.ne.s32.totalorder %s118, %s119
      %p130 = scmp.eq.s32.totalorder %s16, 0
      %p131 = por %p129, %p130
      %p132 = scmp.ne.s32.totalorder %s118, %s119
      %p133 = scmp.eq.s32.totalorder %s17, 1
      %p134 = por %p132, %p133
      %p136 = scmp.ne.s32.totalorder %s119, %s135
      %p137 = scmp.eq.s32.totalorder %s17, 0
      %p138 = por %p136, %p137
      %s139 = ssub.s32 %s11, %s18
      %p140 = scmp.eq.s32.totalorder %s139, 0
      %s142 = sadd.s32 %s141, 1
      %s143 = scalar_select %p140, %s141, %s142
      %p146 = pneg %p140
      %p147 = scmp.eq.s32.totalorder %s11, 1
      %p148 = por %p146, %p147
      %p149 = scmp.ne.s32.totalorder %s141, %s144
      %p150 = scmp.eq.s32.totalorder %s11, 0
      %p151 = por %p149, %p150
      %p152 = scmp.ne.s32.totalorder %s141, %s144
      %p153 = scmp.eq.s32.totalorder %s16, 1
      %p154 = por %p152, %p153
      %p155 = scmp.ne.s32.totalorder %s144, %s145
      %p156 = scmp.eq.s32.totalorder %s16, 0
      %p157 = por %p155, %p156
      %p158 = scmp.ne.s32.totalorder %s144, %s145
      %p159 = scmp.eq.s32.totalorder %s17, 1
      %p160 = por %p158, %p159
      %p162 = scmp.ne.s32.totalorder %s145, %s161
      %p163 = scmp.eq.s32.totalorder %s17, 0
      %p164 = por %p162, %p163
      %p165 = scmp.le.s32.totalorder 1, %s11
      %p166 = scmp.lt.s32.totalorder %s11, 3
      %p167 = pnand %p165, %p166
      %p168 = pneg %p167
      // Predicated region
      $region9: #{_conv2d_bn_impl.1} parent=5 // pred_check
        _
      $region10: #{_conv2d_bn_impl.1} parent=5 // pred_check_branch
        %170 = sbr.rel (%p167) target = $region12
      $region11: #{_conv2d_bn_impl.1} parent=5 // pred_region
        %s171 = ssub.s32 %s11, 1
        // Predicated region
        $region13: #{_conv2d_bn_impl.1} parent=11 // pred_check
          %p172 = pneg %p32
        $region14: #{_conv2d_bn_impl.1} parent=11 // pred_check_branch
          %174 = sbr.rel (%p172) target = $region16
        $region15: #{_conv2d_bn_impl.1} parent=11 // pred_region
          _
        $region16: #{_conv2d_bn_impl.1} parent=11 // pred_fallthru
          _
        // Predicated region
        $region17: #{_conv2d_bn_impl.1} parent=11 // pred_check
          %p175 = pneg %p79
        $region18: #{_conv2d_bn_impl.1} parent=11 // pred_check_branch
          %177 = sbr.rel (%p175) target = $region20
        $region19: #{_conv2d_bn_impl.1} parent=11 // pred_region
          _
        $region20: #{_conv2d_bn_impl.1} parent=11 // pred_fallthru
          _
      $region12: #{_conv2d_bn_impl.1} parent=5 // pred_fallthru
        _
      %p178 = scmp.lt.s32.totalorder %s11, 2
      // Predicated region
      $region21: #{_conv2d_bn_impl.1} parent=5 // pred_check
        %p179 = pneg %p178
      $region22: #{_conv2d_bn_impl.1} parent=5 // pred_check_branch
        %181 = sbr.rel (%p179) target = $region24
      $region23: #{_conv2d_bn_impl.1} parent=5 // pred_region
        // Predicated region
        $region25: #{_conv2d_bn_impl.1} parent=23 // pred_check
          %p182 = pneg %p52
        $region26: #{_conv2d_bn_impl.1} parent=23 // pred_check_branch
          %184 = sbr.rel (%p182) target = $region28
        $region27: #{_conv2d_bn_impl.1} parent=23 // pred_region
          %s185 = sand.u32 %s42, 1
          %s186 = sand.u32 %s42, 1
          %s187 = smul.addr %s186, 1440
          %s188 = scalar_lea.vmem [#allocation2], %s187
          %s189 = smul.u32 2, %s11
          %s190 = smul.addr %s189, 4
          %s191 = scalar_lea.vmem %s1, %s190
          // Predicated region
          $region29: #{_conv2d_bn_impl.1} parent=27 // pred_check
            _
          $region30: #{_conv2d_bn_impl.1} parent=27 // pred_check_branch
            %193 = sbr.rel (0) target = $region32
          $region31: #{_conv2d_bn_impl.1} parent=27 // pred_region
            // Predicated region
            $region33: #{_conv2d_bn_impl.1} parent=31 // pred_check
              _
            $region34: #{_conv2d_bn_impl.1} parent=31 // pred_check_branch
              %195 = sbr.rel (0) target = $region36
            $region35: #{_conv2d_bn_impl.1} parent=31 // pred_region
              // Predicated region
              $region48: #{_conv2d_bn_impl.1} parent=35 // pred_check
                _
              $region49: #{_conv2d_bn_impl.1} parent=35 // pred_check_branch
                %569 = sbr.rel (0) target = $region51
              $region50: #{_conv2d_bn_impl.1} parent=35 // pred_region
                loop: start=0, step=1, limit=1
                $region52: #{_conv2d_bn_impl.1} parent=50 // loop_pre_header
                  _
                $region53: #{_conv2d_bn_impl.1} parent=50 // loop_header
                  %s571 = sphi 0, %s575
                  %p572 = scmp.ge.s32.totalorder %s571, 1
                  %s576 = sphi %s191, %s191
                  %s577 = sphi %s188, %s188
                $region54: #{_conv2d_bn_impl.1} parent=50 // loop_header_branch
                  %574 = sbr.rel (%p572) target = $region58
                $region55: #{_conv2d_bn_impl.1} parent=50 // loop_body
                  %v578 = vld [vmem:[%s576] sm:$0xff]
                  %579 = vst [vmem:[%s577] sm:$0xff] %v578
                  %v580 = vld [vmem:[%s576 + $0x10] sm:$0xff]
                  %581 = vst [vmem:[%s577 + $0x8] sm:$0xff] %v580
                  %v582 = vld [vmem:[%s576 + $0x20] sm:$0xff]
                  %583 = vst [vmem:[%s577 + $0x10] sm:$0xff] %v582
                  %v584 = vld [vmem:[%s576 + $0x30] sm:$0xff]
                  %585 = vst [vmem:[%s577 + $0x18] sm:$0xff] %v584
                  %v586 = vld [vmem:[%s576 + $0x40] sm:$0xff]
                  %587 = vst [vmem:[%s577 + $0x20] sm:$0xff] %v586
                  %v588 = vld [vmem:[%s576 + $0x50] sm:$0xff]
                  %589 = vst [vmem:[%s577 + $0x28] sm:$0xff] %v588
                  %v590 = vld [vmem:[%s576 + $0x60] sm:$0xff]
                  %591 = vst [vmem:[%s577 + $0x30] sm:$0xff] %v590
                  %v592 = vld [vmem:[%s576 + $0x70] sm:$0xff]
                  %593 = vst [vmem:[%s577 + $0x38] sm:$0xff] %v592
                  %v594 = vld [vmem:[%s576 + $0x80] sm:$0xff]
                  %595 = vst [vmem:[%s577 + $0x40] sm:$0xff] %v594
                  %v596 = vld [vmem:[%s576 + $0x90] sm:$0xff]
                  %597 = vst [vmem:[%s577 + $0x48] sm:$0xff] %v596
                  %v598 = vld [vmem:[%s576 + $0xa0] sm:$0xff]
                  %599 = vst [vmem:[%s577 + $0x50] sm:$0xff] %v598
                  %v600 = vld [vmem:[%s576 + $0xb0] sm:$0xff]
                  %601 = vst [vmem:[%s577 + $0x58] sm:$0xff] %v600
                  %v602 = vld [vmem:[%s576 + $0xc0] sm:$0xff]
                  %603 = vst [vmem:[%s577 + $0x60] sm:$0xff] %v602
                  %v604 = vld [vmem:[%s576 + $0xd0] sm:$0xff]
                  %605 = vst [vmem:[%s577 + $0x68] sm:$0xff] %v604
                  %v606 = vld [vmem:[%s576 + $0xe0] sm:$0xff]
                  %607 = vst [vmem:[%s577 + $0x70] sm:$0xff] %v606
                  %v608 = vld [vmem:[%s576 + $0xf0] sm:$0xff]
                  %609 = vst [vmem:[%s577 + $0x78] sm:$0xff] %v608
                  %v610 = vld [vmem:[%s576 + $0x100] sm:$0xff]
                  %611 = vst [vmem:[%s577 + $0x80] sm:$0xff] %v610
                  %v612 = vld [vmem:[%s576 + $0x110] sm:$0xff]
                  %613 = vst [vmem:[%s577 + $0x88] sm:$0xff] %v612
                  %v614 = vld [vmem:[%s576 + $0x120] sm:$0xff]
                  %615 = vst [vmem:[%s577 + $0x90] sm:$0xff] %v614
                  %v616 = vld [vmem:[%s576 + $0x130] sm:$0xff]
                  %617 = vst [vmem:[%s577 + $0x98] sm:$0xff] %v616
                  %v618 = vld [vmem:[%s576 + $0x140] sm:$0xff]
                  %619 = vst [vmem:[%s577 + $0xa0] sm:$0xff] %v618
                  %v620 = vld [vmem:[%s576 + $0x150] sm:$0xff]
                  %621 = vst [vmem:[%s577 + $0xa8] sm:$0xff] %v620
                  %v622 = vld [vmem:[%s576 + $0x160] sm:$0xff]
                  %623 = vst [vmem:[%s577 + $0xb0] sm:$0xff] %v622
                  %v624 = vld [vmem:[%s576 + $0x170] sm:$0xff]
                  %625 = vst [vmem:[%s577 + $0xb8] sm:$0xff] %v624
                  %v626 = vld [vmem:[%s576 + $0x180] sm:$0xff]
                  %627 = vst [vmem:[%s577 + $0xc0] sm:$0xff] %v626
                  %v628 = vld [vmem:[%s576 + $0x190] sm:$0xff]
                  %629 = vst [vmem:[%s577 + $0xc8] sm:$0xff] %v628
                  %v630 = vld [vmem:[%s576 + $0x1a0] sm:$0xff]
                  %631 = vst [vmem:[%s577 + $0xd0] sm:$0xff] %v630
                  %v632 = vld [vmem:[%s576 + $0x1b0] sm:$0xff]
                  %633 = vst [vmem:[%s577 + $0xd8] sm:$0xff] %v632
                  %v634 = vld [vmem:[%s576 + $0x1c0] sm:$0xff]
                  %635 = vst [vmem:[%s577 + $0xe0] sm:$0xff] %v634
                  %v636 = vld [vmem:[%s576 + $0x1d0] sm:$0xff]
                  %637 = vst [vmem:[%s577 + $0xe8] sm:$0xff] %v636
                  %v638 = vld [vmem:[%s576 + $0x1e0] sm:$0xff]
                  %639 = vst [vmem:[%s577 + $0xf0] sm:$0xff] %v638
                  %v640 = vld [vmem:[%s576 + $0x1f0] sm:$0xff]
                  %641 = vst [vmem:[%s577 + $0xf8] sm:$0xff] %v640
                  %v642 = vld [vmem:[%s576 + $0x200] sm:$0xff]
                  %643 = vst [vmem:[%s577 + $0x100] sm:$0xff] %v642
                  %v644 = vld [vmem:[%s576 + $0x210] sm:$0xff]
                  %645 = vst [vmem:[%s577 + $0x108] sm:$0xff] %v644
                  %v646 = vld [vmem:[%s576 + $0x220] sm:$0xff]
                  %647 = vst [vmem:[%s577 + $0x110] sm:$0xff] %v646
                  %v648 = vld [vmem:[%s576 + $0x230] sm:$0xff]
                  %649 = vst [vmem:[%s577 + $0x118] sm:$0xff] %v648
                  %v650 = vld [vmem:[%s576 + $0x240] sm:$0xff]
                  %651 = vst [vmem:[%s577 + $0x120] sm:$0xff] %v650
                  %v652 = vld [vmem:[%s576 + $0x250] sm:$0xff]
                  %653 = vst [vmem:[%s577 + $0x128] sm:$0xff] %v652
                  %v654 = vld [vmem:[%s576 + $0x260] sm:$0xff]
                  %655 = vst [vmem:[%s577 + $0x130] sm:$0xff] %v654
                  %v656 = vld [vmem:[%s576 + $0x270] sm:$0xff]
                  %657 = vst [vmem:[%s577 + $0x138] sm:$0xff] %v656
                  %v658 = vld [vmem:[%s576 + $0x280] sm:$0xff]
                  %659 = vst [vmem:[%s577 + $0x140] sm:$0xff] %v658
                  %v660 = vld [vmem:[%s576 + $0x290] sm:$0xff]
                  %661 = vst [vmem:[%s577 + $0x148] sm:$0xff] %v660
                  %v662 = vld [vmem:[%s576 + $0x2a0] sm:$0xff]
                  %663 = vst [vmem:[%s577 + $0x150] sm:$0xff] %v662
                  %v664 = vld [vmem:[%s576 + $0x2b0] sm:$0xff]
                  %665 = vst [vmem:[%s577 + $0x158] sm:$0xff] %v664
                  %v666 = vld [vmem:[%s576 + $0x2c0] sm:$0xff]
                  %667 = vst [vmem:[%s577 + $0x160] sm:$0xff] %v666
                  %v668 = vld [vmem:[%s576 + $0x2d0] sm:$0xff]
                  %669 = vst [vmem:[%s577 + $0x168] sm:$0xff] %v668
                  %v670 = vld [vmem:[%s576 + $0x2e0] sm:$0xff]
                  %671 = vst [vmem:[%s577 + $0x170] sm:$0xff] %v670
                  %v672 = vld [vmem:[%s576 + $0x2f0] sm:$0xff]
                  %673 = vst [vmem:[%s577 + $0x178] sm:$0xff] %v672
                  %v674 = vld [vmem:[%s576 + $0x300] sm:$0xff]
                  %675 = vst [vmem:[%s577 + $0x180] sm:$0xff] %v674
                  %v676 = vld [vmem:[%s576 + $0x310] sm:$0xff]
                  %677 = vst [vmem:[%s577 + $0x188] sm:$0xff] %v676
                  %v678 = vld [vmem:[%s576 + $0x320] sm:$0xff]
                  %679 = vst [vmem:[%s577 + $0x190] sm:$0xff] %v678
                  %v680 = vld [vmem:[%s576 + $0x330] sm:$0xff]
                  %681 = vst [vmem:[%s577 + $0x198] sm:$0xff] %v680
                  %v682 = vld [vmem:[%s576 + $0x340] sm:$0xff]
                  %683 = vst [vmem:[%s577 + $0x1a0] sm:$0xff] %v682
                  %v684 = vld [vmem:[%s576 + $0x350] sm:$0xff]
                  %685 = vst [vmem:[%s577 + $0x1a8] sm:$0xff] %v684
                  %v686 = vld [vmem:[%s576 + $0x360] sm:$0xff]
                  %687 = vst [vmem:[%s577 + $0x1b0] sm:$0xff] %v686
                  %v688 = vld [vmem:[%s576 + $0x370] sm:$0xff]
                  %689 = vst [vmem:[%s577 + $0x1b8] sm:$0xff] %v688
                  %v690 = vld [vmem:[%s576 + $0x380] sm:$0xff]
                  %691 = vst [vmem:[%s577 + $0x1c0] sm:$0xff] %v690
                  %v692 = vld [vmem:[%s576 + $0x390] sm:$0xff]
                  %693 = vst [vmem:[%s577 + $0x1c8] sm:$0xff] %v692
                  %v694 = vld [vmem:[%s576 + $0x3a0] sm:$0xff]
                  %695 = vst [vmem:[%s577 + $0x1d0] sm:$0xff] %v694
                  %v696 = vld [vmem:[%s576 + $0x3b0] sm:$0xff]
                  %697 = vst [vmem:[%s577 + $0x1d8] sm:$0xff] %v696
                  %v698 = vld [vmem:[%s576 + $0x3c0] sm:$0xff]
                  %699 = vst [vmem:[%s577 + $0x1e0] sm:$0xff] %v698
                  %v700 = vld [vmem:[%s576 + $0x3d0] sm:$0xff]
                  %701 = vst [vmem:[%s577 + $0x1e8] sm:$0xff] %v700
                  %v702 = vld [vmem:[%s576 + $0x3e0] sm:$0xff]
                  %703 = vst [vmem:[%s577 + $0x1f0] sm:$0xff] %v702
                  %v704 = vld [vmem:[%s576 + $0x3f0] sm:$0xff]
                  %705 = vst [vmem:[%s577 + $0x1f8] sm:$0xff] %v704
                  %v706 = vld [vmem:[%s576 + $0x400] sm:$0xff]
                  %707 = vst [vmem:[%s577 + $0x200] sm:$0xff] %v706
                  %v708 = vld [vmem:[%s576 + $0x410] sm:$0xff]
                  %709 = vst [vmem:[%s577 + $0x208] sm:$0xff] %v708
                  %v710 = vld [vmem:[%s576 + $0x420] sm:$0xff]
                  %711 = vst [vmem:[%s577 + $0x210] sm:$0xff] %v710
                  %v712 = vld [vmem:[%s576 + $0x430] sm:$0xff]
                  %713 = vst [vmem:[%s577 + $0x218] sm:$0xff] %v712
                  %v714 = vld [vmem:[%s576 + $0x440] sm:$0xff]
                  %715 = vst [vmem:[%s577 + $0x220] sm:$0xff] %v714
                  %v716 = vld [vmem:[%s576 + $0x450] sm:$0xff]
                  %717 = vst [vmem:[%s577 + $0x228] sm:$0xff] %v716
                  %v718 = vld [vmem:[%s576 + $0x460] sm:$0xff]
                  %719 = vst [vmem:[%s577 + $0x230] sm:$0xff] %v718
                  %v720 = vld [vmem:[%s576 + $0x470] sm:$0xff]
                  %721 = vst [vmem:[%s577 + $0x238] sm:$0xff] %v720
                  %v722 = vld [vmem:[%s576 + $0x480] sm:$0xff]
                  %723 = vst [vmem:[%s577 + $0x240] sm:$0xff] %v722
                  %v724 = vld [vmem:[%s576 + $0x490] sm:$0xff]
                  %725 = vst [vmem:[%s577 + $0x248] sm:$0xff] %v724
                  %v726 = vld [vmem:[%s576 + $0x4a0] sm:$0xff]
                  %727 = vst [vmem:[%s577 + $0x250] sm:$0xff] %v726
                  %v728 = vld [vmem:[%s576 + $0x4b0] sm:$0xff]
                  %729 = vst [vmem:[%s577 + $0x258] sm:$0xff] %v728
                  %v730 = vld [vmem:[%s576 + $0x4c0] sm:$0xff]
                  %731 = vst [vmem:[%s577 + $0x260] sm:$0xff] %v730
                  %v732 = vld [vmem:[%s576 + $0x4d0] sm:$0xff]
                  %733 = vst [vmem:[%s577 + $0x268] sm:$0xff] %v732
                  %v734 = vld [vmem:[%s576 + $0x4e0] sm:$0xff]
                  %735 = vst [vmem:[%s577 + $0x270] sm:$0xff] %v734
                  %v736 = vld [vmem:[%s576 + $0x4f0] sm:$0xff]
                  %737 = vst [vmem:[%s577 + $0x278] sm:$0xff] %v736
                  %v738 = vld [vmem:[%s576 + $0x500] sm:$0xff]
                  %739 = vst [vmem:[%s577 + $0x280] sm:$0xff] %v738
                  %v740 = vld [vmem:[%s576 + $0x510] sm:$0xff]
                  %741 = vst [vmem:[%s577 + $0x288] sm:$0xff] %v740
                  %v742 = vld [vmem:[%s576 + $0x520] sm:$0xff]
                  %743 = vst [vmem:[%s577 + $0x290] sm:$0xff] %v742
                  %v744 = vld [vmem:[%s576 + $0x530] sm:$0xff]
                  %745 = vst [vmem:[%s577 + $0x298] sm:$0xff] %v744
                  %v746 = vld [vmem:[%s576 + $0x540] sm:$0xff]
                  %747 = vst [vmem:[%s577 + $0x2a0] sm:$0xff] %v746
                  %v748 = vld [vmem:[%s576 + $0x550] sm:$0xff]
                  %749 = vst [vmem:[%s577 + $0x2a8] sm:$0xff] %v748
                  %v750 = vld [vmem:[%s576 + $0x560] sm:$0xff]
                  %751 = vst [vmem:[%s577 + $0x2b0] sm:$0xff] %v750
                  %v752 = vld [vmem:[%s576 + $0x570] sm:$0xff]
                  %753 = vst [vmem:[%s577 + $0x2b8] sm:$0xff] %v752
                  %v754 = vld [vmem:[%s576 + $0x580] sm:$0xff]
                  %755 = vst [vmem:[%s577 + $0x2c0] sm:$0xff] %v754
                  %v756 = vld [vmem:[%s576 + $0x590] sm:$0xff]
                  %757 = vst [vmem:[%s577 + $0x2c8] sm:$0xff] %v756
                  %v758 = vld [vmem:[%s576 + $0x5a0] sm:$0xff]
                  %759 = vst [vmem:[%s577 + $0x2d0] sm:$0xff] %v758
                  %v760 = vld [vmem:[%s576 + $0x5b0] sm:$0xff]
                  %761 = vst [vmem:[%s577 + $0x2d8] sm:$0xff] %v760
                  %v762 = vld [vmem:[%s576 + $0x5c0] sm:$0xff]
                  %763 = vst [vmem:[%s577 + $0x2e0] sm:$0xff] %v762
                  %v764 = vld [vmem:[%s576 + $0x5d0] sm:$0xff]
                  %765 = vst [vmem:[%s577 + $0x2e8] sm:$0xff] %v764
                  %v766 = vld [vmem:[%s576 + $0x5e0] sm:$0xff]
                  %767 = vst [vmem:[%s577 + $0x2f0] sm:$0xff] %v766
                  %v768 = vld [vmem:[%s576 + $0x5f0] sm:$0xff]
                  %769 = vst [vmem:[%s577 + $0x2f8] sm:$0xff] %v768
                  %v770 = vld [vmem:[%s576 + $0x600] sm:$0xff]
                  %771 = vst [vmem:[%s577 + $0x300] sm:$0xff] %v770
                  %v772 = vld [vmem:[%s576 + $0x610] sm:$0xff]
                  %773 = vst [vmem:[%s577 + $0x308] sm:$0xff] %v772
                  %v774 = vld [vmem:[%s576 + $0x620] sm:$0xff]
                  %775 = vst [vmem:[%s577 + $0x310] sm:$0xff] %v774
                  %v776 = vld [vmem:[%s576 + $0x630] sm:$0xff]
                  %777 = vst [vmem:[%s577 + $0x318] sm:$0xff] %v776
                  %v778 = vld [vmem:[%s576 + $0x640] sm:$0xff]
                  %779 = vst [vmem:[%s577 + $0x320] sm:$0xff] %v778
                  %v780 = vld [vmem:[%s576 + $0x650] sm:$0xff]
                  %781 = vst [vmem:[%s577 + $0x328] sm:$0xff] %v780
                  %v782 = vld [vmem:[%s576 + $0x660] sm:$0xff]
                  %783 = vst [vmem:[%s577 + $0x330] sm:$0xff] %v782
                  %v784 = vld [vmem:[%s576 + $0x670] sm:$0xff]
                  %785 = vst [vmem:[%s577 + $0x338] sm:$0xff] %v784
                  %v786 = vld [vmem:[%s576 + $0x680] sm:$0xff]
                  %787 = vst [vmem:[%s577 + $0x340] sm:$0xff] %v786
                  %v788 = vld [vmem:[%s576 + $0x690] sm:$0xff]
                  %789 = vst [vmem:[%s577 + $0x348] sm:$0xff] %v788
                  %v790 = vld [vmem:[%s576 + $0x6a0] sm:$0xff]
                  %791 = vst [vmem:[%s577 + $0x350] sm:$0xff] %v790
                  %v792 = vld [vmem:[%s576 + $0x6b0] sm:$0xff]
                  %793 = vst [vmem:[%s577 + $0x358] sm:$0xff] %v792
                  %v794 = vld [vmem:[%s576 + $0x6c0] sm:$0xff]
                  %795 = vst [vmem:[%s577 + $0x360] sm:$0xff] %v794
                  %v796 = vld [vmem:[%s576 + $0x6d0] sm:$0xff]
                  %797 = vst [vmem:[%s577 + $0x368] sm:$0xff] %v796
                  %v798 = vld [vmem:[%s576 + $0x6e0] sm:$0xff]
                  %799 = vst [vmem:[%s577 + $0x370] sm:$0xff] %v798
                  %v800 = vld [vmem:[%s576 + $0x6f0] sm:$0xff]
                  %801 = vst [vmem:[%s577 + $0x378] sm:$0xff] %v800
                  %v802 = vld [vmem:[%s576 + $0x700] sm:$0xff]
                  %803 = vst [vmem:[%s577 + $0x380] sm:$0xff] %v802
                  %v804 = vld [vmem:[%s576 + $0x710] sm:$0xff]
                  %805 = vst [vmem:[%s577 + $0x388] sm:$0xff] %v804
                  %v806 = vld [vmem:[%s576 + $0x720] sm:$0xff]
                  %807 = vst [vmem:[%s577 + $0x390] sm:$0xff] %v806
                  %v808 = vld [vmem:[%s576 + $0x730] sm:$0xff]
                  %809 = vst [vmem:[%s577 + $0x398] sm:$0xff] %v808
                  %v810 = vld [vmem:[%s576 + $0x740] sm:$0xff]
                  %811 = vst [vmem:[%s577 + $0x3a0] sm:$0xff] %v810
                  %v812 = vld [vmem:[%s576 + $0x750] sm:$0xff]
                  %813 = vst [vmem:[%s577 + $0x3a8] sm:$0xff] %v812
                  %v814 = vld [vmem:[%s576 + $0x760] sm:$0xff]
                  %815 = vst [vmem:[%s577 + $0x3b0] sm:$0xff] %v814
                  %v816 = vld [vmem:[%s576 + $0x770] sm:$0xff]
                  %817 = vst [vmem:[%s577 + $0x3b8] sm:$0xff] %v816
                  %v818 = vld [vmem:[%s576 + $0x780] sm:$0xff]
                  %819 = vst [vmem:[%s577 + $0x3c0] sm:$0xff] %v818
                  %v820 = vld [vmem:[%s576 + $0x790] sm:$0xff]
                  %821 = vst [vmem:[%s577 + $0x3c8] sm:$0xff] %v820
                  %v822 = vld [vmem:[%s576 + $0x7a0] sm:$0xff]
                  %823 = vst [vmem:[%s577 + $0x3d0] sm:$0xff] %v822
                  %v824 = vld [vmem:[%s576 + $0x7b0] sm:$0xff]
                  %825 = vst [vmem:[%s577 + $0x3d8] sm:$0xff] %v824
                  %v826 = vld [vmem:[%s576 + $0x7c0] sm:$0xff]
                  %827 = vst [vmem:[%s577 + $0x3e0] sm:$0xff] %v826
                  %v828 = vld [vmem:[%s576 + $0x7d0] sm:$0xff]
                  %829 = vst [vmem:[%s577 + $0x3e8] sm:$0xff] %v828
                  %v830 = vld [vmem:[%s576 + $0x7e0] sm:$0xff]
                  %831 = vst [vmem:[%s577 + $0x3f0] sm:$0xff] %v830
                  %v832 = vld [vmem:[%s576 + $0x7f0] sm:$0xff]
                  %833 = vst [vmem:[%s577 + $0x3f8] sm:$0xff] %v832
                  %v834 = vld [vmem:[%s576 + $0x800] sm:$0xff]
                  %835 = vst [vmem:[%s577 + $0x400] sm:$0xff] %v834
                  %v836 = vld [vmem:[%s576 + $0x810] sm:$0xff]
                  %837 = vst [vmem:[%s577 + $0x408] sm:$0xff] %v836
                  %v838 = vld [vmem:[%s576 + $0x820] sm:$0xff]
                  %839 = vst [vmem:[%s577 + $0x410] sm:$0xff] %v838
                  %v840 = vld [vmem:[%s576 + $0x830] sm:$0xff]
                  %841 = vst [vmem:[%s577 + $0x418] sm:$0xff] %v840
                  %v842 = vld [vmem:[%s576 + $0x840] sm:$0xff]
                  %843 = vst [vmem:[%s577 + $0x420] sm:$0xff] %v842
                  %v844 = vld [vmem:[%s576 + $0x850] sm:$0xff]
                  %845 = vst [vmem:[%s577 + $0x428] sm:$0xff] %v844
                  %v846 = vld [vmem:[%s576 + $0x860] sm:$0xff]
                  %847 = vst [vmem:[%s577 + $0x430] sm:$0xff] %v846
                  %v848 = vld [vmem:[%s576 + $0x870] sm:$0xff]
                  %849 = vst [vmem:[%s577 + $0x438] sm:$0xff] %v848
                  %v850 = vld [vmem:[%s576 + $0x880] sm:$0xff]
                  %851 = vst [vmem:[%s577 + $0x440] sm:$0xff] %v850
                  %v852 = vld [vmem:[%s576 + $0x890] sm:$0xff]
                  %853 = vst [vmem:[%s577 + $0x448] sm:$0xff] %v852
                  %v854 = vld [vmem:[%s576 + $0x8a0] sm:$0xff]
                  %855 = vst [vmem:[%s577 + $0x450] sm:$0xff] %v854
                  %v856 = vld [vmem:[%s576 + $0x8b0] sm:$0xff]
                  %857 = vst [vmem:[%s577 + $0x458] sm:$0xff] %v856
                  %v858 = vld [vmem:[%s576 + $0x8c0] sm:$0xff]
                  %859 = vst [vmem:[%s577 + $0x460] sm:$0xff] %v858
                  %v860 = vld [vmem:[%s576 + $0x8d0] sm:$0xff]
                  %861 = vst [vmem:[%s577 + $0x468] sm:$0xff] %v860
                  %v862 = vld [vmem:[%s576 + $0x8e0] sm:$0xff]
                  %863 = vst [vmem:[%s577 + $0x470] sm:$0xff] %v862
                  %v864 = vld [vmem:[%s576 + $0x8f0] sm:$0xff]
                  %865 = vst [vmem:[%s577 + $0x478] sm:$0xff] %v864
                  %v866 = vld [vmem:[%s576 + $0x900] sm:$0xff]
                  %867 = vst [vmem:[%s577 + $0x480] sm:$0xff] %v866
                  %v868 = vld [vmem:[%s576 + $0x910] sm:$0xff]
                  %869 = vst [vmem:[%s577 + $0x488] sm:$0xff] %v868
                  %v870 = vld [vmem:[%s576 + $0x920] sm:$0xff]
                  %871 = vst [vmem:[%s577 + $0x490] sm:$0xff] %v870
                  %v872 = vld [vmem:[%s576 + $0x930] sm:$0xff]
                  %873 = vst [vmem:[%s577 + $0x498] sm:$0xff] %v872
                  %v874 = vld [vmem:[%s576 + $0x940] sm:$0xff]
                  %875 = vst [vmem:[%s577 + $0x4a0] sm:$0xff] %v874
                  %v876 = vld [vmem:[%s576 + $0x950] sm:$0xff]
                  %877 = vst [vmem:[%s577 + $0x4a8] sm:$0xff] %v876
                  %v878 = vld [vmem:[%s576 + $0x960] sm:$0xff]
                  %879 = vst [vmem:[%s577 + $0x4b0] sm:$0xff] %v878
                  %v880 = vld [vmem:[%s576 + $0x970] sm:$0xff]
                  %881 = vst [vmem:[%s577 + $0x4b8] sm:$0xff] %v880
                  %v882 = vld [vmem:[%s576 + $0x980] sm:$0xff]
                  %883 = vst [vmem:[%s577 + $0x4c0] sm:$0xff] %v882
                  %v884 = vld [vmem:[%s576 + $0x990] sm:$0xff]
                  %885 = vst [vmem:[%s577 + $0x4c8] sm:$0xff] %v884
                  %v886 = vld [vmem:[%s576 + $0x9a0] sm:$0xff]
                  %887 = vst [vmem:[%s577 + $0x4d0] sm:$0xff] %v886
                  %v888 = vld [vmem:[%s576 + $0x9b0] sm:$0xff]
                  %889 = vst [vmem:[%s577 + $0x4d8] sm:$0xff] %v888
                  %v890 = vld [vmem:[%s576 + $0x9c0] sm:$0xff]
                  %891 = vst [vmem:[%s577 + $0x4e0] sm:$0xff] %v890
                  %v892 = vld [vmem:[%s576 + $0x9d0] sm:$0xff]
                  %893 = vst [vmem:[%s577 + $0x4e8] sm:$0xff] %v892
                  %v894 = vld [vmem:[%s576 + $0x9e0] sm:$0xff]
                  %895 = vst [vmem:[%s577 + $0x4f0] sm:$0xff] %v894
                  %v896 = vld [vmem:[%s576 + $0x9f0] sm:$0xff]
                  %897 = vst [vmem:[%s577 + $0x4f8] sm:$0xff] %v896
                  %v898 = vld [vmem:[%s576 + $0xa00] sm:$0xff]
                  %899 = vst [vmem:[%s577 + $0x500] sm:$0xff] %v898
                  %v900 = vld [vmem:[%s576 + $0xa10] sm:$0xff]
                  %901 = vst [vmem:[%s577 + $0x508] sm:$0xff] %v900
                  %v902 = vld [vmem:[%s576 + $0xa20] sm:$0xff]
                  %903 = vst [vmem:[%s577 + $0x510] sm:$0xff] %v902
                  %v904 = vld [vmem:[%s576 + $0xa30] sm:$0xff]
                  %905 = vst [vmem:[%s577 + $0x518] sm:$0xff] %v904
                  %v906 = vld [vmem:[%s576 + $0xa40] sm:$0xff]
                  %907 = vst [vmem:[%s577 + $0x520] sm:$0xff] %v906
                  %v908 = vld [vmem:[%s576 + $0xa50] sm:$0xff]
                  %909 = vst [vmem:[%s577 + $0x528] sm:$0xff] %v908
                  %v910 = vld [vmem:[%s576 + $0xa60] sm:$0xff]
                  %911 = vst [vmem:[%s577 + $0x530] sm:$0xff] %v910
                  %v912 = vld [vmem:[%s576 + $0xa70] sm:$0xff]
                  %913 = vst [vmem:[%s577 + $0x538] sm:$0xff] %v912
                  %v914 = vld [vmem:[%s576 + $0xa80] sm:$0xff]
                  %915 = vst [vmem:[%s577 + $0x540] sm:$0xff] %v914
                  %v916 = vld [vmem:[%s576 + $0xa90] sm:$0xff]
                  %917 = vst [vmem:[%s577 + $0x548] sm:$0xff] %v916
                  %v918 = vld [vmem:[%s576 + $0xaa0] sm:$0xff]
                  %919 = vst [vmem:[%s577 + $0x550] sm:$0xff] %v918
                  %v920 = vld [vmem:[%s576 + $0xab0] sm:$0xff]
                  %921 = vst [vmem:[%s577 + $0x558] sm:$0xff] %v920
                  %v922 = vld [vmem:[%s576 + $0xac0] sm:$0xff]
                  %923 = vst [vmem:[%s577 + $0x560] sm:$0xff] %v922
                  %v924 = vld [vmem:[%s576 + $0xad0] sm:$0xff]
                  %925 = vst [vmem:[%s577 + $0x568] sm:$0xff] %v924
                  %v926 = vld [vmem:[%s576 + $0xae0] sm:$0xff]
                  %927 = vst [vmem:[%s577 + $0x570] sm:$0xff] %v926
                  %v928 = vld [vmem:[%s576 + $0xaf0] sm:$0xff]
                  %929 = vst [vmem:[%s577 + $0x578] sm:$0xff] %v928
                  %v930 = vld [vmem:[%s576 + $0xb00] sm:$0xff]
                  %931 = vst [vmem:[%s577 + $0x580] sm:$0xff] %v930
                  %v932 = vld [vmem:[%s576 + $0xb10] sm:$0xff]
                  %933 = vst [vmem:[%s577 + $0x588] sm:$0xff] %v932
                  %v934 = vld [vmem:[%s576 + $0xb20] sm:$0xff]
                  %935 = vst [vmem:[%s577 + $0x590] sm:$0xff] %v934
                  %v936 = vld [vmem:[%s576 + $0xb30] sm:$0xff]
                  %937 = vst [vmem:[%s577 + $0x598] sm:$0xff] %v936
                $region56: #{_conv2d_bn_impl.1} parent=50 // loop_footer
                  %s575 = sadd.s32 1, %s571
                $region57: #{_conv2d_bn_impl.1} parent=50 // loop_footer_branch
                  %570 = sbr.rel target = $region53
                $region58: #{_conv2d_bn_impl.1} parent=50 // loop_exit
                  _
              $region51: #{_conv2d_bn_impl.1} parent=35 // pred_fallthru
                _
              // Predicated region
              $region59: #{_conv2d_bn_impl.1} parent=35 // pred_check
                _
              $region60: #{_conv2d_bn_impl.1} parent=35 // pred_check_branch
                %939 = sbr.rel target = $region62
              $region61: #{_conv2d_bn_impl.1} parent=35 // pred_region
                _
              $region62: #{_conv2d_bn_impl.1} parent=35 // pred_fallthru
                _
            $region36: #{_conv2d_bn_impl.1} parent=31 // pred_fallthru
              _
            // Predicated region
            $region37: #{_conv2d_bn_impl.1} parent=31 // pred_check
              _
            $region38: #{_conv2d_bn_impl.1} parent=31 // pred_check_branch
              %197 = sbr.rel target = $region40
            $region39: #{_conv2d_bn_impl.1} parent=31 // pred_region
              %s199 = ssub.s32 256, 1
              loop: start=0, step=1, limit=1
              $region41: #{_conv2d_bn_impl.1} parent=39 // loop_pre_header
                _
              $region42: #{_conv2d_bn_impl.1} parent=39 // loop_header
                %s201 = sphi 0, %s205
                %p202 = scmp.ge.s32.totalorder %s201, 1
                %s206 = sphi %s191, %s191
                %s207 = sphi %s188, %s188
              $region43: #{_conv2d_bn_impl.1} parent=39 // loop_header_branch
                %204 = sbr.rel (%p202) target = $region47
              $region44: #{_conv2d_bn_impl.1} parent=39 // loop_body
                %v208 = vld [vmem:[%s206] sm:%s199]
                %209 = vst [vmem:[%s207] sm:%s199] %v208
                %v210 = vld [vmem:[%s206 + $0x10] sm:%s199]
                %211 = vst [vmem:[%s207 + $0x8] sm:%s199] %v210
                %v212 = vld [vmem:[%s206 + $0x20] sm:%s199]
                %213 = vst [vmem:[%s207 + $0x10] sm:%s199] %v212
                %v214 = vld [vmem:[%s206 + $0x30] sm:%s199]
                %215 = vst [vmem:[%s207 + $0x18] sm:%s199] %v214
                %v216 = vld [vmem:[%s206 + $0x40] sm:%s199]
                %217 = vst [vmem:[%s207 + $0x20] sm:%s199] %v216
                %v218 = vld [vmem:[%s206 + $0x50] sm:%s199]
                %219 = vst [vmem:[%s207 + $0x28] sm:%s199] %v218
                %v220 = vld [vmem:[%s206 + $0x60] sm:%s199]
                %221 = vst [vmem:[%s207 + $0x30] sm:%s199] %v220
                %v222 = vld [vmem:[%s206 + $0x70] sm:%s199]
                %223 = vst [vmem:[%s207 + $0x38] sm:%s199] %v222
                %v224 = vld [vmem:[%s206 + $0x80] sm:%s199]
                %225 = vst [vmem:[%s207 + $0x40] sm:%s199] %v224
                %v226 = vld [vmem:[%s206 + $0x90] sm:%s199]
                %227 = vst [vmem:[%s207 + $0x48] sm:%s199] %v226
                %v228 = vld [vmem:[%s206 + $0xa0] sm:%s199]
                %229 = vst [vmem:[%s207 + $0x50] sm:%s199] %v228
                %v230 = vld [vmem:[%s206 + $0xb0] sm:%s199]
                %231 = vst [vmem:[%s207 + $0x58] sm:%s199] %v230
                %v232 = vld [vmem:[%s206 + $0xc0] sm:%s199]
                %233 = vst [vmem:[%s207 + $0x60] sm:%s199] %v232
                %v234 = vld [vmem:[%s206 + $0xd0] sm:%s199]
                %235 = vst [vmem:[%s207 + $0x68] sm:%s199] %v234
                %v236 = vld [vmem:[%s206 + $0xe0] sm:%s199]
                %237 = vst [vmem:[%s207 + $0x70] sm:%s199] %v236
                %v238 = vld [vmem:[%s206 + $0xf0] sm:%s199]
                %239 = vst [vmem:[%s207 + $0x78] sm:%s199] %v238
                %v240 = vld [vmem:[%s206 + $0x100] sm:%s199]
                %241 = vst [vmem:[%s207 + $0x80] sm:%s199] %v240
                %v242 = vld [vmem:[%s206 + $0x110] sm:%s199]
                %243 = vst [vmem:[%s207 + $0x88] sm:%s199] %v242
                %v244 = vld [vmem:[%s206 + $0x120] sm:%s199]
                %245 = vst [vmem:[%s207 + $0x90] sm:%s199] %v244
                %v246 = vld [vmem:[%s206 + $0x130] sm:%s199]
                %247 = vst [vmem:[%s207 + $0x98] sm:%s199] %v246
                %v248 = vld [vmem:[%s206 + $0x140] sm:%s199]
                %249 = vst [vmem:[%s207 + $0xa0] sm:%s199] %v248
                %v250 = vld [vmem:[%s206 + $0x150] sm:%s199]
                %251 = vst [vmem:[%s207 + $0xa8] sm:%s199] %v250
                %v252 = vld [vmem:[%s206 + $0x160] sm:%s199]
                %253 = vst [vmem:[%s207 + $0xb0] sm:%s199] %v252
                %v254 = vld [vmem:[%s206 + $0x170] sm:%s199]
                %255 = vst [vmem:[%s207 + $0xb8] sm:%s199] %v254
                %v256 = vld [vmem:[%s206 + $0x180] sm:%s199]
                %257 = vst [vmem:[%s207 + $0xc0] sm:%s199] %v256
                %v258 = vld [vmem:[%s206 + $0x190] sm:%s199]
                %259 = vst [vmem:[%s207 + $0xc8] sm:%s199] %v258
                %v260 = vld [vmem:[%s206 + $0x1a0] sm:%s199]
                %261 = vst [vmem:[%s207 + $0xd0] sm:%s199] %v260
                %v262 = vld [vmem:[%s206 + $0x1b0] sm:%s199]
                %263 = vst [vmem:[%s207 + $0xd8] sm:%s199] %v262
                %v264 = vld [vmem:[%s206 + $0x1c0] sm:%s199]
                %265 = vst [vmem:[%s207 + $0xe0] sm:%s199] %v264
                %v266 = vld [vmem:[%s206 + $0x1d0] sm:%s199]
                %267 = vst [vmem:[%s207 + $0xe8] sm:%s199] %v266
                %v268 = vld [vmem:[%s206 + $0x1e0] sm:%s199]
                %269 = vst [vmem:[%s207 + $0xf0] sm:%s199] %v268
                %v270 = vld [vmem:[%s206 + $0x1f0] sm:%s199]
                %271 = vst [vmem:[%s207 + $0xf8] sm:%s199] %v270
                %v272 = vld [vmem:[%s206 + $0x200] sm:%s199]
                %273 = vst [vmem:[%s207 + $0x100] sm:%s199] %v272
                %v274 = vld [vmem:[%s206 + $0x210] sm:%s199]
                %275 = vst [vmem:[%s207 + $0x108] sm:%s199] %v274
                %v276 = vld [vmem:[%s206 + $0x220] sm:%s199]
                %277 = vst [vmem:[%s207 + $0x110] sm:%s199] %v276
                %v278 = vld [vmem:[%s206 + $0x230] sm:%s199]
                %279 = vst [vmem:[%s207 + $0x118] sm:%s199] %v278
                %v280 = vld [vmem:[%s206 + $0x240] sm:%s199]
                %281 = vst [vmem:[%s207 + $0x120] sm:%s199] %v280
                %v282 = vld [vmem:[%s206 + $0x250] sm:%s199]
                %283 = vst [vmem:[%s207 + $0x128] sm:%s199] %v282
                %v284 = vld [vmem:[%s206 + $0x260] sm:%s199]
                %285 = vst [vmem:[%s207 + $0x130] sm:%s199] %v284
                %v286 = vld [vmem:[%s206 + $0x270] sm:%s199]
                %287 = vst [vmem:[%s207 + $0x138] sm:%s199] %v286
                %v288 = vld [vmem:[%s206 + $0x280] sm:%s199]
                %289 = vst [vmem:[%s207 + $0x140] sm:%s199] %v288
                %v290 = vld [vmem:[%s206 + $0x290] sm:%s199]
                %291 = vst [vmem:[%s207 + $0x148] sm:%s199] %v290
                %v292 = vld [vmem:[%s206 + $0x2a0] sm:%s199]
                %293 = vst [vmem:[%s207 + $0x150] sm:%s199] %v292
                %v294 = vld [vmem:[%s206 + $0x2b0] sm:%s199]
                %295 = vst [vmem:[%s207 + $0x158] sm:%s199] %v294
                %v296 = vld [vmem:[%s206 + $0x2c0] sm:%s199]
                %297 = vst [vmem:[%s207 + $0x160] sm:%s199] %v296
                %v298 = vld [vmem:[%s206 + $0x2d0] sm:%s199]
                %299 = vst [vmem:[%s207 + $0x168] sm:%s199] %v298
                %v300 = vld [vmem:[%s206 + $0x2e0] sm:%s199]
                %301 = vst [vmem:[%s207 + $0x170] sm:%s199] %v300
                %v302 = vld [vmem:[%s206 + $0x2f0] sm:%s199]
                %303 = vst [vmem:[%s207 + $0x178] sm:%s199] %v302
                %v304 = vld [vmem:[%s206 + $0x300] sm:%s199]
                %305 = vst [vmem:[%s207 + $0x180] sm:%s199] %v304
                %v306 = vld [vmem:[%s206 + $0x310] sm:%s199]
                %307 = vst [vmem:[%s207 + $0x188] sm:%s199] %v306
                %v308 = vld [vmem:[%s206 + $0x320] sm:%s199]
                %309 = vst [vmem:[%s207 + $0x190] sm:%s199] %v308
                %v310 = vld [vmem:[%s206 + $0x330] sm:%s199]
                %311 = vst [vmem:[%s207 + $0x198] sm:%s199] %v310
                %v312 = vld [vmem:[%s206 + $0x340] sm:%s199]
                %313 = vst [vmem:[%s207 + $0x1a0] sm:%s199] %v312
                %v314 = vld [vmem:[%s206 + $0x350] sm:%s199]
                %315 = vst [vmem:[%s207 + $0x1a8] sm:%s199] %v314
                %v316 = vld [vmem:[%s206 + $0x360] sm:%s199]
                %317 = vst [vmem:[%s207 + $0x1b0] sm:%s199] %v316
                %v318 = vld [vmem:[%s206 + $0x370] sm:%s199]
                %319 = vst [vmem:[%s207 + $0x1b8] sm:%s199] %v318
                %v320 = vld [vmem:[%s206 + $0x380] sm:%s199]
                %321 = vst [vmem:[%s207 + $0x1c0] sm:%s199] %v320
                %v322 = vld [vmem:[%s206 + $0x390] sm:%s199]
                %323 = vst [vmem:[%s207 + $0x1c8] sm:%s199] %v322
                %v324 = vld [vmem:[%s206 + $0x3a0] sm:%s199]
                %325 = vst [vmem:[%s207 + $0x1d0] sm:%s199] %v324
                %v326 = vld [vmem:[%s206 + $0x3b0] sm:%s199]
                %327 = vst [vmem:[%s207 + $0x1d8] sm:%s199] %v326
                %v328 = vld [vmem:[%s206 + $0x3c0] sm:%s199]
                %329 = vst [vmem:[%s207 + $0x1e0] sm:%s199] %v328
                %v330 = vld [vmem:[%s206 + $0x3d0] sm:%s199]
                %331 = vst [vmem:[%s207 + $0x1e8] sm:%s199] %v330
                %v332 = vld [vmem:[%s206 + $0x3e0] sm:%s199]
                %333 = vst [vmem:[%s207 + $0x1f0] sm:%s199] %v332
                %v334 = vld [vmem:[%s206 + $0x3f0] sm:%s199]
                %335 = vst [vmem:[%s207 + $0x1f8] sm:%s199] %v334
                %v336 = vld [vmem:[%s206 + $0x400] sm:%s199]
                %337 = vst [vmem:[%s207 + $0x200] sm:%s199] %v336
                %v338 = vld [vmem:[%s206 + $0x410] sm:%s199]
                %339 = vst [vmem:[%s207 + $0x208] sm:%s199] %v338
                %v340 = vld [vmem:[%s206 + $0x420] sm:%s199]
                %341 = vst [vmem:[%s207 + $0x210] sm:%s199] %v340
                %v342 = vld [vmem:[%s206 + $0x430] sm:%s199]
                %343 = vst [vmem:[%s207 + $0x218] sm:%s199] %v342
                %v344 = vld [vmem:[%s206 + $0x440] sm:%s199]
                %345 = vst [vmem:[%s207 + $0x220] sm:%s199] %v344
                %v346 = vld [vmem:[%s206 + $0x450] sm:%s199]
                %347 = vst [vmem:[%s207 + $0x228] sm:%s199] %v346
                %v348 = vld [vmem:[%s206 + $0x460] sm:%s199]
                %349 = vst [vmem:[%s207 + $0x230] sm:%s199] %v348
                %v350 = vld [vmem:[%s206 + $0x470] sm:%s199]
                %351 = vst [vmem:[%s207 + $0x238] sm:%s199] %v350
                %v352 = vld [vmem:[%s206 + $0x480] sm:%s199]
                %353 = vst [vmem:[%s207 + $0x240] sm:%s199] %v352
                %v354 = vld [vmem:[%s206 + $0x490] sm:%s199]
                %355 = vst [vmem:[%s207 + $0x248] sm:%s199] %v354
                %v356 = vld [vmem:[%s206 + $0x4a0] sm:%s199]
                %357 = vst [vmem:[%s207 + $0x250] sm:%s199] %v356
                %v358 = vld [vmem:[%s206 + $0x4b0] sm:%s199]
                %359 = vst [vmem:[%s207 + $0x258] sm:%s199] %v358
                %v360 = vld [vmem:[%s206 + $0x4c0] sm:%s199]
                %361 = vst [vmem:[%s207 + $0x260] sm:%s199] %v360
                %v362 = vld [vmem:[%s206 + $0x4d0] sm:%s199]
                %363 = vst [vmem:[%s207 + $0x268] sm:%s199] %v362
                %v364 = vld [vmem:[%s206 + $0x4e0] sm:%s199]
                %365 = vst [vmem:[%s207 + $0x270] sm:%s199] %v364
                %v366 = vld [vmem:[%s206 + $0x4f0] sm:%s199]
                %367 = vst [vmem:[%s207 + $0x278] sm:%s199] %v366
                %v368 = vld [vmem:[%s206 + $0x500] sm:%s199]
                %369 = vst [vmem:[%s207 + $0x280] sm:%s199] %v368
                %v370 = vld [vmem:[%s206 + $0x510] sm:%s199]
                %371 = vst [vmem:[%s207 + $0x288] sm:%s199] %v370
                %v372 = vld [vmem:[%s206 + $0x520] sm:%s199]
                %373 = vst [vmem:[%s207 + $0x290] sm:%s199] %v372
                %v374 = vld [vmem:[%s206 + $0x530] sm:%s199]
                %375 = vst [vmem:[%s207 + $0x298] sm:%s199] %v374
                %v376 = vld [vmem:[%s206 + $0x540] sm:%s199]
                %377 = vst [vmem:[%s207 + $0x2a0] sm:%s199] %v376
                %v378 = vld [vmem:[%s206 + $0x550] sm:%s199]
                %379 = vst [vmem:[%s207 + $0x2a8] sm:%s199] %v378
                %v380 = vld [vmem:[%s206 + $0x560] sm:%s199]
                %381 = vst [vmem:[%s207 + $0x2b0] sm:%s199] %v380
                %v382 = vld [vmem:[%s206 + $0x570] sm:%s199]
                %383 = vst [vmem:[%s207 + $0x2b8] sm:%s199] %v382
                %v384 = vld [vmem:[%s206 + $0x580] sm:%s199]
                %385 = vst [vmem:[%s207 + $0x2c0] sm:%s199] %v384
                %v386 = vld [vmem:[%s206 + $0x590] sm:%s199]
                %387 = vst [vmem:[%s207 + $0x2c8] sm:%s199] %v386
                %v388 = vld [vmem:[%s206 + $0x5a0] sm:%s199]
                %389 = vst [vmem:[%s207 + $0x2d0] sm:%s199] %v388
                %v390 = vld [vmem:[%s206 + $0x5b0] sm:%s199]
                %391 = vst [vmem:[%s207 + $0x2d8] sm:%s199] %v390
                %v392 = vld [vmem:[%s206 + $0x5c0] sm:%s199]
                %393 = vst [vmem:[%s207 + $0x2e0] sm:%s199] %v392
                %v394 = vld [vmem:[%s206 + $0x5d0] sm:%s199]
                %395 = vst [vmem:[%s207 + $0x2e8] sm:%s199] %v394
                %v396 = vld [vmem:[%s206 + $0x5e0] sm:%s199]
                %397 = vst [vmem:[%s207 + $0x2f0] sm:%s199] %v396
                %v398 = vld [vmem:[%s206 + $0x5f0] sm:%s199]
                %399 = vst [vmem:[%s207 + $0x2f8] sm:%s199] %v398
                %v400 = vld [vmem:[%s206 + $0x600] sm:%s199]
                %401 = vst [vmem:[%s207 + $0x300] sm:%s199] %v400
                %v402 = vld [vmem:[%s206 + $0x610] sm:%s199]
                %403 = vst [vmem:[%s207 + $0x308] sm:%s199] %v402
                %v404 = vld [vmem:[%s206 + $0x620] sm:%s199]
                %405 = vst [vmem:[%s207 + $0x310] sm:%s199] %v404
                %v406 = vld [vmem:[%s206 + $0x630] sm:%s199]
                %407 = vst [vmem:[%s207 + $0x318] sm:%s199] %v406
                %v408 = vld [vmem:[%s206 + $0x640] sm:%s199]
                %409 = vst [vmem:[%s207 + $0x320] sm:%s199] %v408
                %v410 = vld [vmem:[%s206 + $0x650] sm:%s199]
                %411 = vst [vmem:[%s207 + $0x328] sm:%s199] %v410
                %v412 = vld [vmem:[%s206 + $0x660] sm:%s199]
                %413 = vst [vmem:[%s207 + $0x330] sm:%s199] %v412
                %v414 = vld [vmem:[%s206 + $0x670] sm:%s199]
                %415 = vst [vmem:[%s207 + $0x338] sm:%s199] %v414
                %v416 = vld [vmem:[%s206 + $0x680] sm:%s199]
                %417 = vst [vmem:[%s207 + $0x340] sm:%s199] %v416
                %v418 = vld [vmem:[%s206 + $0x690] sm:%s199]
                %419 = vst [vmem:[%s207 + $0x348] sm:%s199] %v418
                %v420 = vld [vmem:[%s206 + $0x6a0] sm:%s199]
                %421 = vst [vmem:[%s207 + $0x350] sm:%s199] %v420
                %v422 = vld [vmem:[%s206 + $0x6b0] sm:%s199]
                %423 = vst [vmem:[%s207 + $0x358] sm:%s199] %v422
                %v424 = vld [vmem:[%s206 + $0x6c0] sm:%s199]
                %425 = vst [vmem:[%s207 + $0x360] sm:%s199] %v424
                %v426 = vld [vmem:[%s206 + $0x6d0] sm:%s199]
                %427 = vst [vmem:[%s207 + $0x368] sm:%s199] %v426
                %v428 = vld [vmem:[%s206 + $0x6e0] sm:%s199]
                %429 = vst [vmem:[%s207 + $0x370] sm:%s199] %v428
                %v430 = vld [vmem:[%s206 + $0x6f0] sm:%s199]
                %431 = vst [vmem:[%s207 + $0x378] sm:%s199] %v430
                %v432 = vld [vmem:[%s206 + $0x700] sm:%s199]
                %433 = vst [vmem:[%s207 + $0x380] sm:%s199] %v432
                %v434 = vld [vmem:[%s206 + $0x710] sm:%s199]
                %435 = vst [vmem:[%s207 + $0x388] sm:%s199] %v434
                %v436 = vld [vmem:[%s206 + $0x720] sm:%s199]
                %437 = vst [vmem:[%s207 + $0x390] sm:%s199] %v436
                %v438 = vld [vmem:[%s206 + $0x730] sm:%s199]
                %439 = vst [vmem:[%s207 + $0x398] sm:%s199] %v438
                %v440 = vld [vmem:[%s206 + $0x740] sm:%s199]
                %441 = vst [vmem:[%s207 + $0x3a0] sm:%s199] %v440
                %v442 = vld [vmem:[%s206 + $0x750] sm:%s199]
                %443 = vst [vmem:[%s207 + $0x3a8] sm:%s199] %v442
                %v444 = vld [vmem:[%s206 + $0x760] sm:%s199]
                %445 = vst [vmem:[%s207 + $0x3b0] sm:%s199] %v444
                %v446 = vld [vmem:[%s206 + $0x770] sm:%s199]
                %447 = vst [vmem:[%s207 + $0x3b8] sm:%s199] %v446
                %v448 = vld [vmem:[%s206 + $0x780] sm:%s199]
                %449 = vst [vmem:[%s207 + $0x3c0] sm:%s199] %v448
                %v450 = vld [vmem:[%s206 + $0x790] sm:%s199]
                %451 = vst [vmem:[%s207 + $0x3c8] sm:%s199] %v450
                %v452 = vld [vmem:[%s206 + $0x7a0] sm:%s199]
                %453 = vst [vmem:[%s207 + $0x3d0] sm:%s199] %v452
                %v454 = vld [vmem:[%s206 + $0x7b0] sm:%s199]
                %455 = vst [vmem:[%s207 + $0x3d8] sm:%s199] %v454
                %v456 = vld [vmem:[%s206 + $0x7c0] sm:%s199]
                %457 = vst [vmem:[%s207 + $0x3e0] sm:%s199] %v456
                %v458 = vld [vmem:[%s206 + $0x7d0] sm:%s199]
                %459 = vst [vmem:[%s207 + $0x3e8] sm:%s199] %v458
                %v460 = vld [vmem:[%s206 + $0x7e0] sm:%s199]
                %461 = vst [vmem:[%s207 + $0x3f0] sm:%s199] %v460
                %v462 = vld [vmem:[%s206 + $0x7f0] sm:%s199]
                %463 = vst [vmem:[%s207 + $0x3f8] sm:%s199] %v462
                %v464 = vld [vmem:[%s206 + $0x800] sm:%s199]
                %465 = vst [vmem:[%s207 + $0x400] sm:%s199] %v464
                %v466 = vld [vmem:[%s206 + $0x810] sm:%s199]
                %467 = vst [vmem:[%s207 + $0x408] sm:%s199] %v466
                %v468 = vld [vmem:[%s206 + $0x820] sm:%s199]
                %469 = vst [vmem:[%s207 + $0x410] sm:%s199] %v468
                %v470 = vld [vmem:[%s206 + $0x830] sm:%s199]
                %471 = vst [vmem:[%s207 + $0x418] sm:%s199] %v470
                %v472 = vld [vmem:[%s206 + $0x840] sm:%s199]
                %473 = vst [vmem:[%s207 + $0x420] sm:%s199] %v472
                %v474 = vld [vmem:[%s206 + $0x850] sm:%s199]
                %475 = vst [vmem:[%s207 + $0x428] sm:%s199] %v474
                %v476 = vld [vmem:[%s206 + $0x860] sm:%s199]
                %477 = vst [vmem:[%s207 + $0x430] sm:%s199] %v476
                %v478 = vld [vmem:[%s206 + $0x870] sm:%s199]
                %479 = vst [vmem:[%s207 + $0x438] sm:%s199] %v478
                %v480 = vld [vmem:[%s206 + $0x880] sm:%s199]
                %481 = vst [vmem:[%s207 + $0x440] sm:%s199] %v480
                %v482 = vld [vmem:[%s206 + $0x890] sm:%s199]
                %483 = vst [vmem:[%s207 + $0x448] sm:%s199] %v482
                %v484 = vld [vmem:[%s206 + $0x8a0] sm:%s199]
                %485 = vst [vmem:[%s207 + $0x450] sm:%s199] %v484
                %v486 = vld [vmem:[%s206 + $0x8b0] sm:%s199]
                %487 = vst [vmem:[%s207 + $0x458] sm:%s199] %v486
                %v488 = vld [vmem:[%s206 + $0x8c0] sm:%s199]
                %489 = vst [vmem:[%s207 + $0x460] sm:%s199] %v488
                %v490 = vld [vmem:[%s206 + $0x8d0] sm:%s199]
                %491 = vst [vmem:[%s207 + $0x468] sm:%s199] %v490
                %v492 = vld [vmem:[%s206 + $0x8e0] sm:%s199]
                %493 = vst [vmem:[%s207 + $0x470] sm:%s199] %v492
                %v494 = vld [vmem:[%s206 + $0x8f0] sm:%s199]
                %495 = vst [vmem:[%s207 + $0x478] sm:%s199] %v494
                %v496 = vld [vmem:[%s206 + $0x900] sm:%s199]
                %497 = vst [vmem:[%s207 + $0x480] sm:%s199] %v496
                %v498 = vld [vmem:[%s206 + $0x910] sm:%s199]
                %499 = vst [vmem:[%s207 + $0x488] sm:%s199] %v498
                %v500 = vld [vmem:[%s206 + $0x920] sm:%s199]
                %501 = vst [vmem:[%s207 + $0x490] sm:%s199] %v500
                %v502 = vld [vmem:[%s206 + $0x930] sm:%s199]
                %503 = vst [vmem:[%s207 + $0x498] sm:%s199] %v502
                %v504 = vld [vmem:[%s206 + $0x940] sm:%s199]
                %505 = vst [vmem:[%s207 + $0x4a0] sm:%s199] %v504
                %v506 = vld [vmem:[%s206 + $0x950] sm:%s199]
                %507 = vst [vmem:[%s207 + $0x4a8] sm:%s199] %v506
                %v508 = vld [vmem:[%s206 + $0x960] sm:%s199]
                %509 = vst [vmem:[%s207 + $0x4b0] sm:%s199] %v508
                %v510 = vld [vmem:[%s206 + $0x970] sm:%s199]
                %511 = vst [vmem:[%s207 + $0x4b8] sm:%s199] %v510
                %v512 = vld [vmem:[%s206 + $0x980] sm:%s199]
                %513 = vst [vmem:[%s207 + $0x4c0] sm:%s199] %v512
                %v514 = vld [vmem:[%s206 + $0x990] sm:%s199]
                %515 = vst [vmem:[%s207 + $0x4c8] sm:%s199] %v514
                %v516 = vld [vmem:[%s206 + $0x9a0] sm:%s199]
                %517 = vst [vmem:[%s207 + $0x4d0] sm:%s199] %v516
                %v518 = vld [vmem:[%s206 + $0x9b0] sm:%s199]
                %519 = vst [vmem:[%s207 + $0x4d8] sm:%s199] %v518
                %v520 = vld [vmem:[%s206 + $0x9c0] sm:%s199]
                %521 = vst [vmem:[%s207 + $0x4e0] sm:%s199] %v520
                %v522 = vld [vmem:[%s206 + $0x9d0] sm:%s199]
                %523 = vst [vmem:[%s207 + $0x4e8] sm:%s199] %v522
                %v524 = vld [vmem:[%s206 + $0x9e0] sm:%s199]
                %525 = vst [vmem:[%s207 + $0x4f0] sm:%s199] %v524
                %v526 = vld [vmem:[%s206 + $0x9f0] sm:%s199]
                %527 = vst [vmem:[%s207 + $0x4f8] sm:%s199] %v526
                %v528 = vld [vmem:[%s206 + $0xa00] sm:%s199]
                %529 = vst [vmem:[%s207 + $0x500] sm:%s199] %v528
                %v530 = vld [vmem:[%s206 + $0xa10] sm:%s199]
                %531 = vst [vmem:[%s207 + $0x508] sm:%s199] %v530
                %v532 = vld [vmem:[%s206 + $0xa20] sm:%s199]
                %533 = vst [vmem:[%s207 + $0x510] sm:%s199] %v532
                %v534 = vld [vmem:[%s206 + $0xa30] sm:%s199]
                %535 = vst [vmem:[%s207 + $0x518] sm:%s199] %v534
                %v536 = vld [vmem:[%s206 + $0xa40] sm:%s199]
                %537 = vst [vmem:[%s207 + $0x520] sm:%s199] %v536
                %v538 = vld [vmem:[%s206 + $0xa50] sm:%s199]
                %539 = vst [vmem:[%s207 + $0x528] sm:%s199] %v538
                %v540 = vld [vmem:[%s206 + $0xa60] sm:%s199]
                %541 = vst [vmem:[%s207 + $0x530] sm:%s199] %v540
                %v542 = vld [vmem:[%s206 + $0xa70] sm:%s199]
                %543 = vst [vmem:[%s207 + $0x538] sm:%s199] %v542
                %v544 = vld [vmem:[%s206 + $0xa80] sm:%s199]
                %545 = vst [vmem:[%s207 + $0x540] sm:%s199] %v544
                %v546 = vld [vmem:[%s206 + $0xa90] sm:%s199]
                %547 = vst [vmem:[%s207 + $0x548] sm:%s199] %v546
                %v548 = vld [vmem:[%s206 + $0xaa0] sm:%s199]
                %549 = vst [vmem:[%s207 + $0x550] sm:%s199] %v548
                %v550 = vld [vmem:[%s206 + $0xab0] sm:%s199]
                %551 = vst [vmem:[%s207 + $0x558] sm:%s199] %v550
                %v552 = vld [vmem:[%s206 + $0xac0] sm:%s199]
                %553 = vst [vmem:[%s207 + $0x560] sm:%s199] %v552
                %v554 = vld [vmem:[%s206 + $0xad0] sm:%s199]
                %555 = vst [vmem:[%s207 + $0x568] sm:%s199] %v554
                %v556 = vld [vmem:[%s206 + $0xae0] sm:%s199]
                %557 = vst [vmem:[%s207 + $0x570] sm:%s199] %v556
                %v558 = vld [vmem:[%s206 + $0xaf0] sm:%s199]
                %559 = vst [vmem:[%s207 + $0x578] sm:%s199] %v558
                %v560 = vld [vmem:[%s206 + $0xb00] sm:%s199]
                %561 = vst [vmem:[%s207 + $0x580] sm:%s199] %v560
                %v562 = vld [vmem:[%s206 + $0xb10] sm:%s199]
                %563 = vst [vmem:[%s207 + $0x588] sm:%s199] %v562
                %v564 = vld [vmem:[%s206 + $0xb20] sm:%s199]
                %565 = vst [vmem:[%s207 + $0x590] sm:%s199] %v564
                %v566 = vld [vmem:[%s206 + $0xb30] sm:%s199]
                %567 = vst [vmem:[%s207 + $0x598] sm:%s199] %v566
              $region45: #{_conv2d_bn_impl.1} parent=39 // loop_footer
                %s205 = sadd.s32 1, %s201
              $region46: #{_conv2d_bn_impl.1} parent=39 // loop_footer_branch
                %200 = sbr.rel target = $region42
              $region47: #{_conv2d_bn_impl.1} parent=39 // loop_exit
                _
            $region40: #{_conv2d_bn_impl.1} parent=31 // pred_fallthru
              _
          $region32: #{_conv2d_bn_impl.1} parent=27 // pred_fallthru
            _
          %940 = vnop
        $region28: #{_conv2d_bn_impl.1} parent=23 // pred_fallthru
          _
        // Predicated region
        $region63: #{_conv2d_bn_impl.1} parent=23 // pred_check
          %p941 = pneg %p99
        $region64: #{_conv2d_bn_impl.1} parent=23 // pred_check_branch
          %943 = sbr.rel (%p941) target = $region66
        $region65: #{_conv2d_bn_impl.1} parent=23 // pred_region
          %s944 = smul.u32 2, %s11
          %p945 = scmp.lt.s32.totalorder %s944, 3
          %s946 = scalar_select %p945, %s944, 3
          %s947 = scalar_lea.vmem %s3, %s946
          %s948 = smul.u32 2, %s11
        $region66: #{_conv2d_bn_impl.1} parent=23 // pred_fallthru
          _
        // Predicated region
        $region67: #{_conv2d_bn_impl.1} parent=23 // pred_check
          %p949 = pneg %p125
        $region68: #{_conv2d_bn_impl.1} parent=23 // pred_check_branch
          %951 = sbr.rel (%p949) target = $region70
        $region69: #{_conv2d_bn_impl.1} parent=23 // pred_region
          %s952 = smul.u32 2, %s11
          %p953 = scmp.lt.s32.totalorder %s952, 3
          %s954 = scalar_select %p953, %s952, 3
          %s955 = scalar_lea.vmem %s4, %s954
          %s956 = smul.u32 2, %s11
        $region70: #{_conv2d_bn_impl.1} parent=23 // pred_fallthru
          _
      $region24: #{_conv2d_bn_impl.1} parent=5 // pred_fallthru
        _
      %p957 = scmp.le.s32.totalorder 1, %s11
      %p958 = scmp.lt.s32.totalorder %s11, 3
      %p959 = pnand %p957, %p958
      %p960 = pneg %p959
      // Predicated region
      $region71: #{_conv2d_bn_impl.1} parent=5 // pred_check
        _
      $region72: #{_conv2d_bn_impl.1} parent=5 // pred_check_branch
        %962 = sbr.rel (%p959) target = $region74
      $region73: #{_conv2d_bn_impl.1} parent=5 // pred_region
        %s963 = ssub.s32 %s11, 1
        %s964 = sand.u32 %s45, 1
        %s965 = sand.u32 %s45, 1
        %s966 = smul.addr %s965, 1440
        %s967 = scalar_lea.vmem [#allocation2], %s966
        // Predicated region
        $region75: #{_conv2d_bn_impl.1} parent=73 // pred_check
          %p968 = pneg %p58
        $region76: #{_conv2d_bn_impl.1} parent=73 // pred_check_branch
          %970 = sbr.rel (%p968) target = $region78
        $region77: #{_conv2d_bn_impl.1} parent=73 // pred_region
          _
        $region78: #{_conv2d_bn_impl.1} parent=73 // pred_fallthru
          _
        %p971 = pneg %p32
        %p972 = pneg %p29
        %s973 = sand.u32 %s45, 1
        %s974 = sand.u32 %s45, 1
        %s975 = smul.addr %s974, 1440
        %s976 = scalar_lea.vmem [#allocation2], %s975
        %p977 = pneg %p58
        %p978 = pneg %p55
        %p979 = pneg %p79
        %p980 = pneg %p76
        %s981 = smul.u32 2, %s16
        %p982 = scmp.lt.s32.totalorder %s981, 3
        %s983 = scalar_select %p982, %s981, 3
        %s984 = scalar_lea.vmem %s3, %s983
        %p985 = pneg %p105
        %p986 = pneg %p102
        %s987 = smul.u32 2, %s16
        %p988 = scmp.lt.s32.totalorder %s987, 3
        %s989 = scalar_select %p988, %s987, 3
        %s990 = scalar_lea.vmem %s4, %s989
        %p991 = pneg %p131
        %p992 = pneg %p128
        %p993 = pneg %p157
        %p994 = pneg %p154
        %s995 = sand.u32 %s144, 1
        %s996 = sand.u32 %s144, 1
        %s997 = smul.addr %s996, 512
        %s998 = scalar_lea.vmem [#allocation3], %s997
        %s999 = smul.u32 2, %s16
        %s1000 = smul.u32 2, %s16
        %p1001 = scmp.lt.s32.totalorder %s1000, 3
        %s1002 = scalar_select %p1001, %s1000, 3
        %s1003 = scalar_lea.vmem %s3, %s1002
        %s1004 = smul.u32 2, %s16
        %s1005 = smul.u32 2, %s16
        %p1006 = scmp.lt.s32.totalorder %s1005, 3
        %s1007 = scalar_select %p1006, %s1005, 3
        %s1008 = scalar_lea.vmem %s4, %s1007
        %s1009 = smul.u32 2, %s16
        %s1010 = smul.u32 2, %s16
        %v1012 = vld [vmem:[%s0 + $0x8] sm:$0x88]
        %v1013 = vld [vmem:[%s0 + $0x10] sm:$0xff]
        %v1014 = vld [vmem:[%s0 + $0x18] sm:$0xff]
        %v1015 = vld [vmem:[%s0 + $0x20] sm:$0xff]
        %v1016 = vld [vmem:[%s0 + $0x28] sm:$0xff]
        %v1017 = vld [vmem:[%s0 + $0x30] sm:$0xff]
        %v1018 = vld [vmem:[%s0 + $0x38] sm:$0xff]
        %v1019 = vld [vmem:[%s0 + $0x40] sm:$0xff]
        %v1020 = vld [vmem:[%s0 + $0x48] sm:$0xff]
        %v1021 = vld [vmem:[%s0 + $0x50] sm:$0xff]
        %v1022 = vld [vmem:[%s0 + $0x58] sm:$0xff]
        %v1023 = vld [vmem:[%s0 + $0x60] sm:$0xff]
        %v1024 = vld [vmem:[%s0 + $0x68] sm:$0xff]
        %v1025 = vld [vmem:[%s0 + $0x70] sm:$0xff]
        %v1026 = vld [vmem:[%s0 + $0x78] sm:$0xff]
        %v1027 = vld [vmem:[%s0 + $0x80] sm:$0xff]
        %v1028 = vld [vmem:[%s0 + $0x88] sm:$0xff]
        %v1029 = vld [vmem:[%s0 + $0x90] sm:$0xff]
        %v1030 = vld [vmem:[%s0 + $0x98] sm:$0xff]
        %v1031 = vld [vmem:[%s0 + $0xa0] sm:$0xff]
        %v1032 = vld [vmem:[%s0 + $0xa8] sm:$0xff]
        %v1033 = vld [vmem:[%s0 + $0xb0] sm:$0xff]
        %v1034 = vld [vmem:[%s0 + $0xb8] sm:$0xff]
        %v1035 = vld [vmem:[%s0 + $0xc0] sm:$0xff]
        %v1036 = vld [vmem:[%s0 + $0xc8] sm:$0xff]
        %v1037 = vld [vmem:[%s0 + $0xd0] sm:$0xff]
        %v1038 = vld [vmem:[%s0 + $0xd8] sm:$0xff]
        %v1039 = vld [vmem:[%s0 + $0xe0] sm:$0xff]
        %v1040 = vld [vmem:[%s0 + $0xe8] sm:$0xff]
        %v1041 = vld [vmem:[%s0 + $0xf0] sm:$0xff]
        %v1042 = vld [vmem:[%s0 + $0xf8] sm:$0xff]
        %v1043 = vld [vmem:[%s0 + $0x100] sm:$0xff]
        %v1044 = vld [vmem:[%s0 + $0x108] sm:$0xff]
        %v1045 = vld [vmem:[%s967] sm:$0xff]
        %v1046 = vld [vmem:[%s967 + $0x8] sm:$0xff]
        %v1047 = vld [vmem:[%s967 + $0x10] sm:$0xff]
        %v1048 = vld [vmem:[%s967 + $0x18] sm:$0xff]
        %v1049 = vld [vmem:[%s967 + $0x20] sm:$0xff]
        %v1050 = vld [vmem:[%s967 + $0x28] sm:$0xff]
        %v1051 = vld [vmem:[%s967 + $0x30] sm:$0xff]
        %v1052 = vld [vmem:[%s967 + $0x38] sm:$0xff]
        %v1053 = vld [vmem:[%s967 + $0x40] sm:$0xff]
        %v1054 = vld [vmem:[%s967 + $0x48] sm:$0xff]
        %v1055 = vld [vmem:[%s967 + $0x50] sm:$0xff]
        %v1056 = vld [vmem:[%s967 + $0x58] sm:$0xff]
        %v1057 = vld [vmem:[%s967 + $0x60] sm:$0xff]
        %v1058 = vld [vmem:[%s967 + $0x68] sm:$0xff]
        %v1059 = vld [vmem:[%s967 + $0x70] sm:$0xff]
        %v1060 = vld [vmem:[%s967 + $0x78] sm:$0xff]
        %v1061 = vld [vmem:[%s967 + $0x80] sm:$0xff]
        %v1062 = vld [vmem:[%s967 + $0x88] sm:$0xff]
        %v1063 = vld [vmem:[%s967 + $0x90] sm:$0xff]
        %v1064 = vld [vmem:[%s967 + $0x98] sm:$0xff]
        %s1065 = scalar_lea.vmem %s967, 160 [#allocation2]
        %v1066 = vld [vmem:[%s1065] sm:$0xff]
        %v1067 = vld [vmem:[%s1065 + $0x8] sm:$0xff]
        %v1068 = vld [vmem:[%s1065 + $0x10] sm:$0xff]
        %v1069 = vld [vmem:[%s1065 + $0x18] sm:$0xff]
        %v1070 = vld [vmem:[%s1065 + $0x20] sm:$0xff]
        %v1071 = vld [vmem:[%s1065 + $0x28] sm:$0xff]
        %v1072 = vld [vmem:[%s1065 + $0x30] sm:$0xff]
        %v1073 = vld [vmem:[%s1065 + $0x38] sm:$0xff]
        %v1074 = vld [vmem:[%s1065 + $0x40] sm:$0xff]
        %v1075 = vld [vmem:[%s1065 + $0x48] sm:$0xff]
        %v1076 = vld [vmem:[%s1065 + $0x50] sm:$0xff]
        %v1077 = vld [vmem:[%s1065 + $0x58] sm:$0xff]
        %v1078 = vld [vmem:[%s1065 + $0x60] sm:$0xff]
        %v1079 = vld [vmem:[%s1065 + $0x68] sm:$0xff]
        %v1080 = vld [vmem:[%s1065 + $0x70] sm:$0xff]
        %v1081 = vld [vmem:[%s1065 + $0x78] sm:$0xff]
        %v1082 = vld [vmem:[%s1065 + $0x80] sm:$0xff]
        %v1083 = vld [vmem:[%s1065 + $0x88] sm:$0xff]
        %v1084 = vld [vmem:[%s1065 + $0x90] sm:$0xff]
        %v1085 = vld [vmem:[%s1065 + $0x98] sm:$0xff]
        %v1118 = vunpack.c.l.b16 %v1013
        %v1119 = vunpack.c.h.b16 %v1013
        %v1120 = vunpack.c.l.b16 %v1014
        %v1121 = vunpack.c.h.b16 %v1014
        %v1122 = vunpack.c.l.b16 %v1015
        %v1123 = vunpack.c.h.b16 %v1015
        %v1124 = vunpack.c.l.b16 %v1016
        %v1125 = vunpack.c.h.b16 %v1016
        %v1126 = vunpack.c.l.b16 %v1017
        %v1127 = vunpack.c.h.b16 %v1017
        %v1128 = vunpack.c.l.b16 %v1018
        %v1129 = vunpack.c.h.b16 %v1018
        %v1130 = vunpack.c.l.b16 %v1019
        %v1131 = vunpack.c.h.b16 %v1019
        %v1132 = vunpack.c.l.b16 %v1020
        %v1133 = vunpack.c.h.b16 %v1020
        %v1134 = vunpack.c.l.b16 %v1021
        %v1135 = vunpack.c.h.b16 %v1021
        %v1136 = vunpack.c.l.b16 %v1022
        %v1137 = vunpack.c.h.b16 %v1022
        %v1138 = vunpack.c.l.b16 %v1023
        %v1139 = vunpack.c.h.b16 %v1023
        %v1140 = vunpack.c.l.b16 %v1024
        %v1141 = vunpack.c.h.b16 %v1024
        %v1142 = vunpack.c.l.b16 %v1025
        %v1143 = vunpack.c.h.b16 %v1025
        %v1144 = vunpack.c.l.b16 %v1026
        %v1145 = vunpack.c.h.b16 %v1026
        %v1146 = vunpack.c.l.b16 %v1027
        %v1147 = vunpack.c.h.b16 %v1027
        %v1148 = vunpack.c.l.b16 %v1028
        %v1149 = vunpack.c.h.b16 %v1028
        %v1150 = vunpack.c.l.b16 %v1029
        %v1151 = vunpack.c.h.b16 %v1029
        %v1152 = vunpack.c.l.b16 %v1030
        %v1153 = vunpack.c.h.b16 %v1030
        %v1154 = vunpack.c.l.b16 %v1031
        %v1155 = vunpack.c.h.b16 %v1031
        %v1156 = vunpack.c.l.b16 %v1032
        %v1157 = vunpack.c.h.b16 %v1032
        %v1158 = vunpack.c.l.b16 %v1033
        %v1159 = vunpack.c.h.b16 %v1033
        %v1160 = vunpack.c.l.b16 %v1034
        %v1161 = vunpack.c.h.b16 %v1034
        %v1162 = vunpack.c.l.b16 %v1035
        %v1163 = vunpack.c.h.b16 %v1035
        %v1164 = vunpack.c.l.b16 %v1036
        %v1165 = vunpack.c.h.b16 %v1036
        %v1166 = vunpack.c.l.b16 %v1037
        %v1167 = vunpack.c.h.b16 %v1037
        %v1168 = vunpack.c.l.b16 %v1038
        %v1169 = vunpack.c.h.b16 %v1038
        %v1170 = vunpack.c.l.b16 %v1039
        %v1171 = vunpack.c.h.b16 %v1039
        %v1172 = vunpack.c.l.b16 %v1040
        %v1173 = vunpack.c.h.b16 %v1040
        %v1174 = vunpack.c.l.b16 %v1041
        %v1175 = vunpack.c.h.b16 %v1041
        %v1176 = vunpack.c.l.b16 %v1042
        %v1177 = vunpack.c.h.b16 %v1042
        %v1178 = vunpack.c.l.b16 %v1043
        %v1179 = vunpack.c.h.b16 %v1043
        %v1180 = vunpack.c.l.b16 %v1044
        %v1181 = vunpack.c.h.b16 %v1044
        %v1182 = vpack.c.b16 %v1120, %v1118
        %v1183 = vpack.c.b16 %v1121, %v1119
        %v1184 = vpack.c.b16 %v1124, %v1122
        %v1185 = vpack.c.b16 %v1125, %v1123
        %v1186 = vpack.c.b16 %v1128, %v1126
        %v1187 = vpack.c.b16 %v1129, %v1127
        %v1188 = vpack.c.b16 %v1132, %v1130
        %v1189 = vpack.c.b16 %v1133, %v1131
        %v1190 = vpack.c.b16 %v1136, %v1134
        %v1191 = vpack.c.b16 %v1137, %v1135
        %v1192 = vpack.c.b16 %v1140, %v1138
        %v1193 = vpack.c.b16 %v1141, %v1139
        %v1194 = vpack.c.b16 %v1144, %v1142
        %v1195 = vpack.c.b16 %v1145, %v1143
        %v1196 = vpack.c.b16 %v1148, %v1146
        %v1197 = vpack.c.b16 %v1149, %v1147
        %v1198 = vpack.c.b16 %v1152, %v1150
        %v1199 = vpack.c.b16 %v1153, %v1151
        %v1200 = vpack.c.b16 %v1156, %v1154
        %v1201 = vpack.c.b16 %v1157, %v1155
        %v1202 = vpack.c.b16 %v1160, %v1158
        %v1203 = vpack.c.b16 %v1161, %v1159
        %v1204 = vpack.c.b16 %v1164, %v1162
        %v1205 = vpack.c.b16 %v1165, %v1163
        %v1206 = vpack.c.b16 %v1168, %v1166
        %v1207 = vpack.c.b16 %v1169, %v1167
        %v1208 = vpack.c.b16 %v1172, %v1170
        %v1209 = vpack.c.b16 %v1173, %v1171
        %v1210 = vpack.c.b16 %v1176, %v1174
        %v1211 = vpack.c.b16 %v1177, %v1175
        %v1212 = vpack.c.b16 %v1180, %v1178
        %v1213 = vpack.c.b16 %v1181, %v1179
        %v1250 = vunpack.c.l.b16 %v1066
        %v1251 = vunpack.c.h.b16 %v1066
        %v1252 = vunpack.c.l.b16 %v1067
        %v1253 = vunpack.c.h.b16 %v1067
        %v1254 = vunpack.c.l.b16 %v1068
        %v1255 = vunpack.c.h.b16 %v1068
        %v1256 = vunpack.c.l.b16 %v1069
        %v1257 = vunpack.c.h.b16 %v1069
        %v1258 = vunpack.c.l.b16 %v1070
        %v1259 = vunpack.c.h.b16 %v1070
        %v1260 = vunpack.c.l.b16 %v1071
        %v1261 = vunpack.c.h.b16 %v1071
        %v1262 = vunpack.c.l.b16 %v1072
        %v1263 = vunpack.c.h.b16 %v1072
        %v1264 = vunpack.c.l.b16 %v1073
        %v1265 = vunpack.c.h.b16 %v1073
        %v1266 = vunpack.c.l.b16 %v1074
        %v1267 = vunpack.c.h.b16 %v1074
        %v1268 = vunpack.c.l.b16 %v1075
        %v1269 = vunpack.c.h.b16 %v1075
        %v1270 = vunpack.c.l.b16 %v1076
        %v1271 = vunpack.c.h.b16 %v1076
        %v1272 = vunpack.c.l.b16 %v1077
        %v1273 = vunpack.c.h.b16 %v1077
        %v1274 = vunpack.c.l.b16 %v1078
        %v1275 = vunpack.c.h.b16 %v1078
        %v1276 = vunpack.c.l.b16 %v1079
        %v1277 = vunpack.c.h.b16 %v1079
        %v1278 = vunpack.c.l.b16 %v1080
        %v1279 = vunpack.c.h.b16 %v1080
        %v1280 = vunpack.c.l.b16 %v1081
        %v1281 = vunpack.c.h.b16 %v1081
        %v1282 = vunpack.c.l.b16 %v1082
        %v1283 = vunpack.c.h.b16 %v1082
        %v1284 = vunpack.c.l.b16 %v1083
        %v1285 = vunpack.c.h.b16 %v1083
        %v1286 = vunpack.c.l.b16 %v1084
        %v1287 = vunpack.c.h.b16 %v1084
        %v1288 = vunpack.c.l.b16 %v1085
        %v1289 = vunpack.c.h.b16 %v1085
        %v1290 = vpack.c.b16 %v1252, %v1250
        %v1291 = vpack.c.b16 %v1253, %v1251
        %v1292 = vpack.c.b16 %v1256, %v1254
        %v1293 = vpack.c.b16 %v1257, %v1255
        %v1294 = vpack.c.b16 %v1260, %v1258
        %v1295 = vpack.c.b16 %v1261, %v1259
        %v1296 = vpack.c.b16 %v1264, %v1262
        %v1297 = vpack.c.b16 %v1265, %v1263
        %v1298 = vpack.c.b16 %v1268, %v1266
        %v1299 = vpack.c.b16 %v1269, %v1267
        %v1300 = vpack.c.b16 %v1272, %v1270
        %v1301 = vpack.c.b16 %v1273, %v1271
        %v1302 = vpack.c.b16 %v1276, %v1274
        %v1303 = vpack.c.b16 %v1277, %v1275
        %v1304 = vpack.c.b16 %v1280, %v1278
        %v1305 = vpack.c.b16 %v1281, %v1279
        %v1306 = vpack.c.b16 %v1284, %v1282
        %v1307 = vpack.c.b16 %v1285, %v1283
        %v1308 = vpack.c.b16 %v1288, %v1286
        %v1309 = vpack.c.b16 %v1289, %v1287
        %vm1330 = vcmask 261120
        %v1332 = vsel %vm1330, %v1183, 0
        %v1335 = vsel %vm1330, %v1185, 0
        %v1338 = vsel %vm1330, %v1187, 0
        %v1341 = vsel %vm1330, %v1189, 0
        %v1344 = vsel %vm1330, %v1191, 0
        %v1347 = vsel %vm1330, %v1193, 0
        %v1350 = vsel %vm1330, %v1195, 0
        %v1353 = vsel %vm1330, %v1197, 0
        %v1356 = vsel %vm1330, %v1199, 0
        %v1359 = vsel %vm1330, %v1201, 0
        %v1362 = vsel %vm1330, %v1203, 0
        %v1365 = vsel %vm1330, %v1205, 0
        %v1368 = vsel %vm1330, %v1207, 0
        %v1371 = vsel %vm1330, %v1209, 0
        %v1374 = vsel %vm1330, %v1211, 0
        %v1377 = vsel %vm1330, %v1213, 0
        %1379 = vmatprep.subr.bf16.mxu0 %v1305
        %1380 = vmatpush1.bf16.msra.mxu0 %v1304
        %1381 = vmatprep.subr.bf16.mxu0 %v1303
        %1382 = vmatpush1.bf16.msra.mxu0 %v1302
        %1383 = vmatprep.subr.bf16.mxu0 %v1301
        %1384 = vmatpush1.bf16.msra.mxu0 %v1300
        %1385 = vmatprep.subr.bf16.mxu0 %v1299
        %1386 = vmatpush1.bf16.msra.mxu0 %v1298
        %1387 = vmatprep.subr.bf16.mxu0 %v1297
        %1388 = vmatpush1.bf16.msra.mxu0 %v1296
        %1389 = vmatprep.subr.bf16.mxu0 %v1295
        %1390 = vmatpush1.bf16.msra.mxu0 %v1294
        %1391 = vmatprep.subr.bf16.mxu0 %v1293
        %1392 = vmatpush1.bf16.msra.mxu0 %v1292
        %1393 = vmatprep.subr.bf16.mxu0 %v1291
        %1394 = vmatpush1.bf16.msra.mxu0 %v1290
        %1395 = vmatprep.subr.bf16.mxu0 0
        %1396 = vmatpush2.bf16.msra.mxu0 0
        %1397 = vmatprep.subr.bf16.mxu0 0
        %1398 = vmatpush2.bf16.msra.mxu0 0
        %1399 = vmatprep.subr.bf16.mxu0 0
        %1400 = vmatpush2.bf16.msra.mxu0 0
        %1401 = vmatprep.subr.bf16.mxu0 0
        %1402 = vmatpush2.bf16.msra.mxu0 0
        %1403 = vmatprep.subr.bf16.mxu0 0
        %1404 = vmatpush2.bf16.msra.mxu0 0
        %1405 = vmatprep.subr.bf16.mxu0 0
        %1406 = vmatpush2.bf16.msra.mxu0 0
        %1407 = vmatprep.subr.bf16.mxu0 %v1309
        %1408 = vmatpush2.bf16.msra.mxu0 %v1308
        %1409 = vmatprep.subr.bf16.mxu0 %v1307
        %1410 = vmatpush2.bf16.msra.mxu0 %v1306
        %1411 = vmatprep.mubr.bf16.mxu0 %v1332
        %1412 = vmatmul.mubr.bf16.gmra.mxu0 %v1182
        %v1413 = vpop.f32.mrf.mxu0
        %v1414 = vadd.f32 0.0, %v1413
        %v1415 = vpop.f32.mrf.mxu0
        %v1416 = vadd.f32 0.0, %v1415
        %v1417 = vpop.f32.mrf.mxu0
        %v1418 = vadd.f32 0.0, %v1417
        %v1419 = vpop.f32.mrf.mxu0
        %v1420 = vadd.f32 0.0, %v1419
        %1421 = vmatprep.mubr.bf16.mxu0 %v1335
        %1422 = vmatmul.mubr.bf16.gmra.mxu0 %v1184
        %v1423 = vpop.f32.mrf.mxu0
        %v1424 = vadd.f32 0.0, %v1423
        %v1425 = vpop.f32.mrf.mxu0
        %v1426 = vadd.f32 0.0, %v1425
        %v1427 = vpop.f32.mrf.mxu0
        %v1428 = vadd.f32 0.0, %v1427
        %v1429 = vpop.f32.mrf.mxu0
        %v1430 = vadd.f32 0.0, %v1429
        %1431 = vmatprep.mubr.bf16.mxu0 %v1338
        %1432 = vmatmul.mubr.bf16.gmra.mxu0 %v1186
        %v1433 = vpop.f32.mrf.mxu0
        %v1434 = vadd.f32 0.0, %v1433
        %v1435 = vpop.f32.mrf.mxu0
        %v1436 = vadd.f32 0.0, %v1435
        %v1437 = vpop.f32.mrf.mxu0
        %v1438 = vadd.f32 0.0, %v1437
        %v1439 = vpop.f32.mrf.mxu0
        %v1440 = vadd.f32 0.0, %v1439
        %1441 = vmatprep.mubr.bf16.mxu0 %v1341
        %1442 = vmatmul.mubr.bf16.gmra.mxu0 %v1188
        %v1443 = vpop.f32.mrf.mxu0
        %v1444 = vadd.f32 0.0, %v1443
        %v1445 = vpop.f32.mrf.mxu0
        %v1446 = vadd.f32 0.0, %v1445
        %v1447 = vpop.f32.mrf.mxu0
        %v1448 = vadd.f32 0.0, %v1447
        %v1449 = vpop.f32.mrf.mxu0
        %v1450 = vadd.f32 0.0, %v1449
        %1451 = vmatprep.mubr.bf16.mxu0 %v1344
        %1452 = vmatmul.mubr.bf16.gmra.mxu0 %v1190
        %v1453 = vpop.f32.mrf.mxu0
        %v1454 = vadd.f32 0.0, %v1453
        %v1455 = vpop.f32.mrf.mxu0
        %v1456 = vadd.f32 0.0, %v1455
        %v1457 = vpop.f32.mrf.mxu0
        %v1458 = vadd.f32 0.0, %v1457
        %v1459 = vpop.f32.mrf.mxu0
        %v1460 = vadd.f32 0.0, %v1459
        %1461 = vmatprep.mubr.bf16.mxu0 %v1347
        %1462 = vmatmul.mubr.bf16.gmra.mxu0 %v1192
        %v1463 = vpop.f32.mrf.mxu0
        %v1464 = vadd.f32 0.0, %v1463
        %v1465 = vpop.f32.mrf.mxu0
        %v1466 = vadd.f32 0.0, %v1465
        %v1467 = vpop.f32.mrf.mxu0
        %v1468 = vadd.f32 0.0, %v1467
        %v1469 = vpop.f32.mrf.mxu0
        %v1470 = vadd.f32 0.0, %v1469
        %1471 = vmatprep.mubr.bf16.mxu0 %v1350
        %1472 = vmatmul.mubr.bf16.gmra.mxu0 %v1194
        %v1473 = vpop.f32.mrf.mxu0
        %v1474 = vadd.f32 0.0, %v1473
        %v1475 = vpop.f32.mrf.mxu0
        %v1476 = vadd.f32 0.0, %v1475
        %v1477 = vpop.f32.mrf.mxu0
        %v1478 = vadd.f32 0.0, %v1477
        %v1479 = vpop.f32.mrf.mxu0
        %v1480 = vadd.f32 0.0, %v1479
        %1481 = vmatprep.mubr.bf16.mxu0 %v1353
        %1482 = vmatmul.mubr.bf16.gmra.mxu0 %v1196
        %v1483 = vpop.f32.mrf.mxu0
        %v1484 = vadd.f32 0.0, %v1483
        %v1485 = vpop.f32.mrf.mxu0
        %v1486 = vadd.f32 0.0, %v1485
        %v1487 = vpop.f32.mrf.mxu0
        %v1488 = vadd.f32 0.0, %v1487
        %v1489 = vpop.f32.mrf.mxu0
        %v1490 = vadd.f32 0.0, %v1489
        %1491 = vmatprep.mubr.bf16.mxu0 %v1356
        %1492 = vmatmul.mubr.bf16.gmra.mxu0 %v1198
        %v1493 = vpop.f32.mrf.mxu0
        %v1494 = vadd.f32 0.0, %v1493
        %v1495 = vpop.f32.mrf.mxu0
        %v1496 = vadd.f32 0.0, %v1495
        %v1497 = vpop.f32.mrf.mxu0
        %v1498 = vadd.f32 0.0, %v1497
        %v1499 = vpop.f32.mrf.mxu0
        %v1500 = vadd.f32 0.0, %v1499
        %1501 = vmatprep.mubr.bf16.mxu0 %v1359
        %1502 = vmatmul.mubr.bf16.gmra.mxu0 %v1200
        %v1503 = vpop.f32.mrf.mxu0
        %v1504 = vadd.f32 0.0, %v1503
        %v1505 = vpop.f32.mrf.mxu0
        %v1506 = vadd.f32 0.0, %v1505
        %v1507 = vpop.f32.mrf.mxu0
        %v1508 = vadd.f32 0.0, %v1507
        %v1509 = vpop.f32.mrf.mxu0
        %v1510 = vadd.f32 0.0, %v1509
        %1511 = vmatprep.mubr.bf16.mxu0 %v1362
        %1512 = vmatmul.mubr.bf16.gmra.mxu0 %v1202
        %v1513 = vpop.f32.mrf.mxu0
        %v1514 = vadd.f32 0.0, %v1513
        %v1515 = vpop.f32.mrf.mxu0
        %v1516 = vadd.f32 0.0, %v1515
        %v1517 = vpop.f32.mrf.mxu0
        %v1518 = vadd.f32 0.0, %v1517
        %v1519 = vpop.f32.mrf.mxu0
        %v1520 = vadd.f32 0.0, %v1519
        %1521 = vmatprep.mubr.bf16.mxu0 %v1365
        %1522 = vmatmul.mubr.bf16.gmra.mxu0 %v1204
        %v1523 = vpop.f32.mrf.mxu0
        %v1524 = vadd.f32 0.0, %v1523
        %v1525 = vpop.f32.mrf.mxu0
        %v1526 = vadd.f32 0.0, %v1525
        %v1527 = vpop.f32.mrf.mxu0
        %v1528 = vadd.f32 0.0, %v1527
        %v1529 = vpop.f32.mrf.mxu0
        %v1530 = vadd.f32 0.0, %v1529
        %1531 = vmatprep.mubr.bf16.mxu0 %v1368
        %1532 = vmatmul.mubr.bf16.gmra.mxu0 %v1206
        %v1533 = vpop.f32.mrf.mxu0
        %v1534 = vadd.f32 0.0, %v1533
        %v1535 = vpop.f32.mrf.mxu0
        %v1536 = vadd.f32 0.0, %v1535
        %v1537 = vpop.f32.mrf.mxu0
        %v1538 = vadd.f32 0.0, %v1537
        %v1539 = vpop.f32.mrf.mxu0
        %v1540 = vadd.f32 0.0, %v1539
        %1541 = vmatprep.mubr.bf16.mxu0 %v1371
        %1542 = vmatmul.mubr.bf16.gmra.mxu0 %v1208
        %v1543 = vpop.f32.mrf.mxu0
        %v1544 = vadd.f32 0.0, %v1543
        %v1545 = vpop.f32.mrf.mxu0
        %v1546 = vadd.f32 0.0, %v1545
        %v1547 = vpop.f32.mrf.mxu0
        %v1548 = vadd.f32 0.0, %v1547
        %v1549 = vpop.f32.mrf.mxu0
        %v1550 = vadd.f32 0.0, %v1549
        %1551 = vmatprep.mubr.bf16.mxu0 %v1374
        %1552 = vmatmul.mubr.bf16.gmra.mxu0 %v1210
        %v1553 = vpop.f32.mrf.mxu0
        %v1554 = vadd.f32 0.0, %v1553
        %v1555 = vpop.f32.mrf.mxu0
        %v1556 = vadd.f32 0.0, %v1555
        %v1557 = vpop.f32.mrf.mxu0
        %v1558 = vadd.f32 0.0, %v1557
        %v1559 = vpop.f32.mrf.mxu0
        %v1560 = vadd.f32 0.0, %v1559
        %1561 = vmatprep.mubr.bf16.mxu0 %v1377
        %1562 = vmatmul.mubr.bf16.gmra.mxu0 %v1212
        %v1563 = vpop.f32.mrf.mxu0
        %v1564 = vadd.f32 0.0, %v1563
        %v1565 = vpop.f32.mrf.mxu0
        %v1566 = vadd.f32 0.0, %v1565
        %v1567 = vpop.f32.mrf.mxu0
        %v1568 = vadd.f32 0.0, %v1567
        %v1569 = vpop.f32.mrf.mxu0
        %v1570 = vadd.f32 0.0, %v1569
        %1571 = vdwg.mxu0
        %v1573 = vunpack.c.l.b16 %v1012
        %v1574 = vunpack.c.h.b16 %v1012
        %v1575 = vpack.c.b16 %v1118, %v1573
        %v1576 = vpack.c.b16 %v1119, %v1574
        %v1577 = vpack.c.b16 %v1122, %v1120
        %v1578 = vpack.c.b16 %v1123, %v1121
        %v1579 = vpack.c.b16 %v1126, %v1124
        %v1580 = vpack.c.b16 %v1127, %v1125
        %v1581 = vpack.c.b16 %v1130, %v1128
        %v1582 = vpack.c.b16 %v1131, %v1129
        %v1583 = vpack.c.b16 %v1134, %v1132
        %v1584 = vpack.c.b16 %v1135, %v1133
        %v1585 = vpack.c.b16 %v1138, %v1136
        %v1586 = vpack.c.b16 %v1139, %v1137
        %v1587 = vpack.c.b16 %v1142, %v1140
        %v1588 = vpack.c.b16 %v1143, %v1141
        %v1589 = vpack.c.b16 %v1146, %v1144
        %v1590 = vpack.c.b16 %v1147, %v1145
        %v1591 = vpack.c.b16 %v1150, %v1148
        %v1592 = vpack.c.b16 %v1151, %v1149
        %v1593 = vpack.c.b16 %v1154, %v1152
        %v1594 = vpack.c.b16 %v1155, %v1153
        %v1595 = vpack.c.b16 %v1158, %v1156
        %v1596 = vpack.c.b16 %v1159, %v1157
        %v1597 = vpack.c.b16 %v1162, %v1160
        %v1598 = vpack.c.b16 %v1163, %v1161
        %v1599 = vpack.c.b16 %v1166, %v1164
        %v1600 = vpack.c.b16 %v1167, %v1165
        %v1601 = vpack.c.b16 %v1170, %v1168
        %v1602 = vpack.c.b16 %v1171, %v1169
        %v1603 = vpack.c.b16 %v1174, %v1172
        %v1604 = vpack.c.b16 %v1175, %v1173
        %v1605 = vpack.c.b16 %v1178, %v1176
        %v1606 = vpack.c.b16 %v1179, %v1177
        %v1607 = vpack.c.b16 %v1180, %v1180
        %v1608 = vpack.c.b16 %v1181, %v1181
        %vm1609 = vsmask.f32 4352
        %v1611 = vshrl.u32 %v1575, 16
        %v1613 = vrot.slane %v1611, 3
        %v1614 = vshll.u32 %v1575, 16
        %v1616 = vrot.slane %v1614, 4
        %v1617 = vor.u32 %v1613, %v1616
        %v1619 = vshrl.u32 %v1577, 16
        %v1621 = vrot.slane %v1619, 3
        %v1622 = vshll.u32 %v1577, 16
        %v1624 = vrot.slane %v1622, 4
        %v1625 = vor.u32 %v1621, %v1624
        %v1626 = vsel %vm1609, %v1617, %v1625
        %v1628 = vshrl.u32 %v1576, 16
        %v1630 = vrot.slane %v1628, 3
        %v1631 = vshll.u32 %v1576, 16
        %v1633 = vrot.slane %v1631, 4
        %v1634 = vor.u32 %v1630, %v1633
        %v1636 = vshrl.u32 %v1578, 16
        %v1638 = vrot.slane %v1636, 3
        %v1639 = vshll.u32 %v1578, 16
        %v1641 = vrot.slane %v1639, 4
        %v1642 = vor.u32 %v1638, %v1641
        %v1643 = vsel %vm1609, %v1634, %v1642
        %v1645 = vshrl.u32 %v1579, 16
        %v1647 = vrot.slane %v1645, 3
        %v1648 = vshll.u32 %v1579, 16
        %v1650 = vrot.slane %v1648, 4
        %v1651 = vor.u32 %v1647, %v1650
        %v1652 = vsel %vm1609, %v1625, %v1651
        %v1654 = vshrl.u32 %v1580, 16
        %v1656 = vrot.slane %v1654, 3
        %v1657 = vshll.u32 %v1580, 16
        %v1659 = vrot.slane %v1657, 4
        %v1660 = vor.u32 %v1656, %v1659
        %v1661 = vsel %vm1609, %v1642, %v1660
        %v1663 = vshrl.u32 %v1581, 16
        %v1665 = vrot.slane %v1663, 3
        %v1666 = vshll.u32 %v1581, 16
        %v1668 = vrot.slane %v1666, 4
        %v1669 = vor.u32 %v1665, %v1668
        %v1670 = vsel %vm1609, %v1651, %v1669
        %v1672 = vshrl.u32 %v1582, 16
        %v1674 = vrot.slane %v1672, 3
        %v1675 = vshll.u32 %v1582, 16
        %v1677 = vrot.slane %v1675, 4
        %v1678 = vor.u32 %v1674, %v1677
        %v1679 = vsel %vm1609, %v1660, %v1678
        %v1681 = vshrl.u32 %v1583, 16
        %v1683 = vrot.slane %v1681, 3
        %v1684 = vshll.u32 %v1583, 16
        %v1686 = vrot.slane %v1684, 4
        %v1687 = vor.u32 %v1683, %v1686
        %v1688 = vsel %vm1609, %v1669, %v1687
        %v1690 = vshrl.u32 %v1584, 16
        %v1692 = vrot.slane %v1690, 3
        %v1693 = vshll.u32 %v1584, 16
        %v1695 = vrot.slane %v1693, 4
        %v1696 = vor.u32 %v1692, %v1695
        %v1697 = vsel %vm1609, %v1678, %v1696
        %v1699 = vshrl.u32 %v1585, 16
        %v1701 = vrot.slane %v1699, 3
        %v1702 = vshll.u32 %v1585, 16
        %v1704 = vrot.slane %v1702, 4
        %v1705 = vor.u32 %v1701, %v1704
        %v1706 = vsel %vm1609, %v1687, %v1705
        %v1708 = vshrl.u32 %v1586, 16
        %v1710 = vrot.slane %v1708, 3
        %v1711 = vshll.u32 %v1586, 16
        %v1713 = vrot.slane %v1711, 4
        %v1714 = vor.u32 %v1710, %v1713
        %v1715 = vsel %vm1609, %v1696, %v1714
        %v1717 = vshrl.u32 %v1587, 16
        %v1719 = vrot.slane %v1717, 3
        %v1720 = vshll.u32 %v1587, 16
        %v1722 = vrot.slane %v1720, 4
        %v1723 = vor.u32 %v1719, %v1722
        %v1724 = vsel %vm1609, %v1705, %v1723
        %v1726 = vshrl.u32 %v1588, 16
        %v1728 = vrot.slane %v1726, 3
        %v1729 = vshll.u32 %v1588, 16
        %v1731 = vrot.slane %v1729, 4
        %v1732 = vor.u32 %v1728, %v1731
        %v1733 = vsel %vm1609, %v1714, %v1732
        %v1735 = vshrl.u32 %v1589, 16
        %v1737 = vrot.slane %v1735, 3
        %v1738 = vshll.u32 %v1589, 16
        %v1740 = vrot.slane %v1738, 4
        %v1741 = vor.u32 %v1737, %v1740
        %v1742 = vsel %vm1609, %v1723, %v1741
        %v1744 = vshrl.u32 %v1590, 16
        %v1746 = vrot.slane %v1744, 3
        %v1747 = vshll.u32 %v1590, 16
        %v1749 = vrot.slane %v1747, 4
        %v1750 = vor.u32 %v1746, %v1749
        %v1751 = vsel %vm1609, %v1732, %v1750
        %v1753 = vshrl.u32 %v1591, 16
        %v1755 = vrot.slane %v1753, 3
        %v1756 = vshll.u32 %v1591, 16
        %v1758 = vrot.slane %v1756, 4
        %v1759 = vor.u32 %v1755, %v1758
        %v1760 = vsel %vm1609, %v1741, %v1759
        %v1762 = vshrl.u32 %v1592, 16
        %v1764 = vrot.slane %v1762, 3
        %v1765 = vshll.u32 %v1592, 16
        %v1767 = vrot.slane %v1765, 4
        %v1768 = vor.u32 %v1764, %v1767
        %v1769 = vsel %vm1609, %v1750, %v1768
        %v1771 = vshrl.u32 %v1593, 16
        %v1773 = vrot.slane %v1771, 3
        %v1774 = vshll.u32 %v1593, 16
        %v1776 = vrot.slane %v1774, 4
        %v1777 = vor.u32 %v1773, %v1776
        %v1778 = vsel %vm1609, %v1759, %v1777
        %v1780 = vshrl.u32 %v1594, 16
        %v1782 = vrot.slane %v1780, 3
        %v1783 = vshll.u32 %v1594, 16
        %v1785 = vrot.slane %v1783, 4
        %v1786 = vor.u32 %v1782, %v1785
        %v1787 = vsel %vm1609, %v1768, %v1786
        %v1789 = vshrl.u32 %v1595, 16
        %v1791 = vrot.slane %v1789, 3
        %v1792 = vshll.u32 %v1595, 16
        %v1794 = vrot.slane %v1792, 4
        %v1795 = vor.u32 %v1791, %v1794
        %v1796 = vsel %vm1609, %v1777, %v1795
        %v1798 = vshrl.u32 %v1596, 16
        %v1800 = vrot.slane %v1798, 3
        %v1801 = vshll.u32 %v1596, 16
        %v1803 = vrot.slane %v1801, 4
        %v1804 = vor.u32 %v1800, %v1803
        %v1805 = vsel %vm1609, %v1786, %v1804
        %v1807 = vshrl.u32 %v1597, 16
        %v1809 = vrot.slane %v1807, 3
        %v1810 = vshll.u32 %v1597, 16
        %v1812 = vrot.slane %v1810, 4
        %v1813 = vor.u32 %v1809, %v1812
        %v1814 = vsel %vm1609, %v1795, %v1813
        %v1816 = vshrl.u32 %v1598, 16
        %v1818 = vrot.slane %v1816, 3
        %v1819 = vshll.u32 %v1598, 16
        %v1821 = vrot.slane %v1819, 4
        %v1822 = vor.u32 %v1818, %v1821
        %v1823 = vsel %vm1609, %v1804, %v1822
        %v1825 = vshrl.u32 %v1599, 16
        %v1827 = vrot.slane %v1825, 3
        %v1828 = vshll.u32 %v1599, 16
        %v1830 = vrot.slane %v1828, 4
        %v1831 = vor.u32 %v1827, %v1830
        %v1832 = vsel %vm1609, %v1813, %v1831
        %v1834 = vshrl.u32 %v1600, 16
        %v1836 = vrot.slane %v1834, 3
        %v1837 = vshll.u32 %v1600, 16
        %v1839 = vrot.slane %v1837, 4
        %v1840 = vor.u32 %v1836, %v1839
        %v1841 = vsel %vm1609, %v1822, %v1840
        %v1843 = vshrl.u32 %v1601, 16
        %v1845 = vrot.slane %v1843, 3
        %v1846 = vshll.u32 %v1601, 16
        %v1848 = vrot.slane %v1846, 4
        %v1849 = vor.u32 %v1845, %v1848
        %v1850 = vsel %vm1609, %v1831, %v1849
        %v1852 = vshrl.u32 %v1602, 16
        %v1854 = vrot.slane %v1852, 3
        %v1855 = vshll.u32 %v1602, 16
        %v1857 = vrot.slane %v1855, 4
        %v1858 = vor.u32 %v1854, %v1857
        %v1859 = vsel %vm1609, %v1840, %v1858
        %v1861 = vshrl.u32 %v1603, 16
        %v1863 = vrot.slane %v1861, 3
        %v1864 = vshll.u32 %v1603, 16
        %v1866 = vrot.slane %v1864, 4
        %v1867 = vor.u32 %v1863, %v1866
        %v1868 = vsel %vm1609, %v1849, %v1867
        %v1870 = vshrl.u32 %v1604, 16
        %v1872 = vrot.slane %v1870, 3
        %v1873 = vshll.u32 %v1604, 16
        %v1875 = vrot.slane %v1873, 4
        %v1876 = vor.u32 %v1872, %v1875
        %v1877 = vsel %vm1609, %v1858, %v1876
        %v1879 = vshrl.u32 %v1605, 16
        %v1881 = vrot.slane %v1879, 3
        %v1882 = vshll.u32 %v1605, 16
        %v1884 = vrot.slane %v1882, 4
        %v1885 = vor.u32 %v1881, %v1884
        %v1886 = vsel %vm1609, %v1867, %v1885
        %v1888 = vshrl.u32 %v1606, 16
        %v1890 = vrot.slane %v1888, 3
        %v1891 = vshll.u32 %v1606, 16
        %v1893 = vrot.slane %v1891, 4
        %v1894 = vor.u32 %v1890, %v1893
        %v1895 = vsel %vm1609, %v1876, %v1894
        %v1897 = vshrl.u32 %v1607, 16
        %v1899 = vrot.slane %v1897, 3
        %v1900 = vshll.u32 %v1607, 16
        %v1902 = vrot.slane %v1900, 4
        %v1903 = vor.u32 %v1899, %v1902
        %v1904 = vsel %vm1609, %v1885, %v1903
        %v1906 = vshrl.u32 %v1608, 16
        %v1908 = vrot.slane %v1906, 3
        %v1909 = vshll.u32 %v1608, 16
        %v1911 = vrot.slane %v1909, 4
        %v1912 = vor.u32 %v1908, %v1911
        %v1913 = vsel %vm1609, %v1894, %v1912
        %v1950 = vunpack.c.l.b16 %v1045
        %v1951 = vunpack.c.h.b16 %v1045
        %v1952 = vunpack.c.l.b16 %v1046
        %v1953 = vunpack.c.h.b16 %v1046
        %v1954 = vunpack.c.l.b16 %v1047
        %v1955 = vunpack.c.h.b16 %v1047
        %v1956 = vunpack.c.l.b16 %v1048
        %v1957 = vunpack.c.h.b16 %v1048
        %v1958 = vunpack.c.l.b16 %v1049
        %v1959 = vunpack.c.h.b16 %v1049
        %v1960 = vunpack.c.l.b16 %v1050
        %v1961 = vunpack.c.h.b16 %v1050
        %v1962 = vunpack.c.l.b16 %v1051
        %v1963 = vunpack.c.h.b16 %v1051
        %v1964 = vunpack.c.l.b16 %v1052
        %v1965 = vunpack.c.h.b16 %v1052
        %v1966 = vunpack.c.l.b16 %v1053
        %v1967 = vunpack.c.h.b16 %v1053
        %v1968 = vunpack.c.l.b16 %v1054
        %v1969 = vunpack.c.h.b16 %v1054
        %v1970 = vunpack.c.l.b16 %v1055
        %v1971 = vunpack.c.h.b16 %v1055
        %v1972 = vunpack.c.l.b16 %v1056
        %v1973 = vunpack.c.h.b16 %v1056
        %v1974 = vunpack.c.l.b16 %v1057
        %v1975 = vunpack.c.h.b16 %v1057
        %v1976 = vunpack.c.l.b16 %v1058
        %v1977 = vunpack.c.h.b16 %v1058
        %v1978 = vunpack.c.l.b16 %v1059
        %v1979 = vunpack.c.h.b16 %v1059
        %v1980 = vunpack.c.l.b16 %v1060
        %v1981 = vunpack.c.h.b16 %v1060
        %v1982 = vunpack.c.l.b16 %v1061
        %v1983 = vunpack.c.h.b16 %v1061
        %v1984 = vunpack.c.l.b16 %v1062
        %v1985 = vunpack.c.h.b16 %v1062
        %v1986 = vunpack.c.l.b16 %v1063
        %v1987 = vunpack.c.h.b16 %v1063
        %v1988 = vunpack.c.l.b16 %v1064
        %v1989 = vunpack.c.h.b16 %v1064
        %v1990 = vpack.c.b16 %v1952, %v1950
        %v1991 = vpack.c.b16 %v1953, %v1951
        %v1992 = vpack.c.b16 %v1956, %v1954
        %v1993 = vpack.c.b16 %v1957, %v1955
        %v1994 = vpack.c.b16 %v1960, %v1958
        %v1995 = vpack.c.b16 %v1961, %v1959
        %v1996 = vpack.c.b16 %v1964, %v1962
        %v1997 = vpack.c.b16 %v1965, %v1963
        %v1998 = vpack.c.b16 %v1968, %v1966
        %v1999 = vpack.c.b16 %v1969, %v1967
        %v2000 = vpack.c.b16 %v1972, %v1970
        %v2001 = vpack.c.b16 %v1973, %v1971
        %v2002 = vpack.c.b16 %v1976, %v1974
        %v2003 = vpack.c.b16 %v1977, %v1975
        %v2004 = vpack.c.b16 %v1980, %v1978
        %v2005 = vpack.c.b16 %v1981, %v1979
        %v2006 = vpack.c.b16 %v1984, %v1982
        %v2007 = vpack.c.b16 %v1985, %v1983
        %v2008 = vpack.c.b16 %v1988, %v1986
        %v2009 = vpack.c.b16 %v1989, %v1987
        %v2031 = vsel %vm1330, %v1643, 0
        %v2034 = vsel %vm1330, %v1661, 0
        %v2037 = vsel %vm1330, %v1679, 0
        %v2040 = vsel %vm1330, %v1697, 0
        %v2043 = vsel %vm1330, %v1715, 0
        %v2046 = vsel %vm1330, %v1733, 0
        %v2049 = vsel %vm1330, %v1751, 0
        %v2052 = vsel %vm1330, %v1769, 0
        %v2055 = vsel %vm1330, %v1787, 0
        %v2058 = vsel %vm1330, %v1805, 0
        %v2061 = vsel %vm1330, %v1823, 0
        %v2064 = vsel %vm1330, %v1841, 0
        %v2067 = vsel %vm1330, %v1859, 0
        %v2070 = vsel %vm1330, %v1877, 0
        %v2073 = vsel %vm1330, %v1895, 0
        %v2076 = vsel %vm1330, %v1913, 0
        %2078 = vmatprep.subr.bf16.mxu0 %v2005
        %2079 = vmatpush1.bf16.msra.mxu0 %v2004
        %2080 = vmatprep.subr.bf16.mxu0 %v2003
        %2081 = vmatpush1.bf16.msra.mxu0 %v2002
        %2082 = vmatprep.subr.bf16.mxu0 %v2001
        %2083 = vmatpush1.bf16.msra.mxu0 %v2000
        %2084 = vmatprep.subr.bf16.mxu0 %v1999
        %2085 = vmatpush1.bf16.msra.mxu0 %v1998
        %2086 = vmatprep.subr.bf16.mxu0 %v1997
        %2087 = vmatpush1.bf16.msra.mxu0 %v1996
        %2088 = vmatprep.subr.bf16.mxu0 %v1995
        %2089 = vmatpush1.bf16.msra.mxu0 %v1994
        %2090 = vmatprep.subr.bf16.mxu0 %v1993
        %2091 = vmatpush1.bf16.msra.mxu0 %v1992
        %2092 = vmatprep.subr.bf16.mxu0 %v1991
        %2093 = vmatpush1.bf16.msra.mxu0 %v1990
        %2094 = vmatprep.subr.bf16.mxu0 0
        %2095 = vmatpush2.bf16.msra.mxu0 0
        %2096 = vmatprep.subr.bf16.mxu0 0
        %2097 = vmatpush2.bf16.msra.mxu0 0
        %2098 = vmatprep.subr.bf16.mxu0 0
        %2099 = vmatpush2.bf16.msra.mxu0 0
        %2100 = vmatprep.subr.bf16.mxu0 0
        %2101 = vmatpush2.bf16.msra.mxu0 0
        %2102 = vmatprep.subr.bf16.mxu0 0
        %2103 = vmatpush2.bf16.msra.mxu0 0
        %2104 = vmatprep.subr.bf16.mxu0 0
        %2105 = vmatpush2.bf16.msra.mxu0 0
        %2106 = vmatprep.subr.bf16.mxu0 %v2009
        %2107 = vmatpush2.bf16.msra.mxu0 %v2008
        %2108 = vmatprep.subr.bf16.mxu0 %v2007
        %2109 = vmatpush2.bf16.msra.mxu0 %v2006
        %2110 = vmatprep.mubr.bf16.mxu0 %v2031
        %2111 = vmatmul.mubr.bf16.gmra.mxu0 %v1626
        %v2112 = vpop.f32.mrf.mxu0
        %v2113 = vadd.f32 %v1414, %v2112
        %v2114 = vpop.f32.mrf.mxu0
        %v2115 = vadd.f32 %v1416, %v2114
        %v2116 = vpop.f32.mrf.mxu0
        %v2117 = vadd.f32 %v1418, %v2116
        %v2118 = vpop.f32.mrf.mxu0
        %v2119 = vadd.f32 %v1420, %v2118
        %2120 = vmatprep.mubr.bf16.mxu0 %v2034
        %2121 = vmatmul.mubr.bf16.gmra.mxu0 %v1652
        %v2122 = vpop.f32.mrf.mxu0
        %v2123 = vadd.f32 %v1424, %v2122
        %v2124 = vpop.f32.mrf.mxu0
        %v2125 = vadd.f32 %v1426, %v2124
        %v2126 = vpop.f32.mrf.mxu0
        %v2127 = vadd.f32 %v1428, %v2126
        %v2128 = vpop.f32.mrf.mxu0
        %v2129 = vadd.f32 %v1430, %v2128
        %2130 = vmatprep.mubr.bf16.mxu0 %v2037
        %2131 = vmatmul.mubr.bf16.gmra.mxu0 %v1670
        %v2132 = vpop.f32.mrf.mxu0
        %v2133 = vadd.f32 %v1434, %v2132
        %v2134 = vpop.f32.mrf.mxu0
        %v2135 = vadd.f32 %v1436, %v2134
        %v2136 = vpop.f32.mrf.mxu0
        %v2137 = vadd.f32 %v1438, %v2136
        %v2138 = vpop.f32.mrf.mxu0
        %v2139 = vadd.f32 %v1440, %v2138
        %2140 = vmatprep.mubr.bf16.mxu0 %v2040
        %2141 = vmatmul.mubr.bf16.gmra.mxu0 %v1688
        %v2142 = vpop.f32.mrf.mxu0
        %v2143 = vadd.f32 %v1444, %v2142
        %v2144 = vpop.f32.mrf.mxu0
        %v2145 = vadd.f32 %v1446, %v2144
        %v2146 = vpop.f32.mrf.mxu0
        %v2147 = vadd.f32 %v1448, %v2146
        %v2148 = vpop.f32.mrf.mxu0
        %v2149 = vadd.f32 %v1450, %v2148
        %2150 = vmatprep.mubr.bf16.mxu0 %v2043
        %2151 = vmatmul.mubr.bf16.gmra.mxu0 %v1706
        %v2152 = vpop.f32.mrf.mxu0
        %v2153 = vadd.f32 %v1454, %v2152
        %v2154 = vpop.f32.mrf.mxu0
        %v2155 = vadd.f32 %v1456, %v2154
        %v2156 = vpop.f32.mrf.mxu0
        %v2157 = vadd.f32 %v1458, %v2156
        %v2158 = vpop.f32.mrf.mxu0
        %v2159 = vadd.f32 %v1460, %v2158
        %2160 = vmatprep.mubr.bf16.mxu0 %v2046
        %2161 = vmatmul.mubr.bf16.gmra.mxu0 %v1724
        %v2162 = vpop.f32.mrf.mxu0
        %v2163 = vadd.f32 %v1464, %v2162
        %v2164 = vpop.f32.mrf.mxu0
        %v2165 = vadd.f32 %v1466, %v2164
        %v2166 = vpop.f32.mrf.mxu0
        %v2167 = vadd.f32 %v1468, %v2166
        %v2168 = vpop.f32.mrf.mxu0
        %v2169 = vadd.f32 %v1470, %v2168
        %2170 = vmatprep.mubr.bf16.mxu0 %v2049
        %2171 = vmatmul.mubr.bf16.gmra.mxu0 %v1742
        %v2172 = vpop.f32.mrf.mxu0
        %v2173 = vadd.f32 %v1474, %v2172
        %v2174 = vpop.f32.mrf.mxu0
        %v2175 = vadd.f32 %v1476, %v2174
        %v2176 = vpop.f32.mrf.mxu0
        %v2177 = vadd.f32 %v1478, %v2176
        %v2178 = vpop.f32.mrf.mxu0
        %v2179 = vadd.f32 %v1480, %v2178
        %2180 = vmatprep.mubr.bf16.mxu0 %v2052
        %2181 = vmatmul.mubr.bf16.gmra.mxu0 %v1760
        %v2182 = vpop.f32.mrf.mxu0
        %v2183 = vadd.f32 %v1484, %v2182
        %v2184 = vpop.f32.mrf.mxu0
        %v2185 = vadd.f32 %v1486, %v2184
        %v2186 = vpop.f32.mrf.mxu0
        %v2187 = vadd.f32 %v1488, %v2186
        %v2188 = vpop.f32.mrf.mxu0
        %v2189 = vadd.f32 %v1490, %v2188
        %2190 = vmatprep.mubr.bf16.mxu0 %v2055
        %2191 = vmatmul.mubr.bf16.gmra.mxu0 %v1778
        %v2192 = vpop.f32.mrf.mxu0
        %v2193 = vadd.f32 %v1494, %v2192
        %v2194 = vpop.f32.mrf.mxu0
        %v2195 = vadd.f32 %v1496, %v2194
        %v2196 = vpop.f32.mrf.mxu0
        %v2197 = vadd.f32 %v1498, %v2196
        %v2198 = vpop.f32.mrf.mxu0
        %v2199 = vadd.f32 %v1500, %v2198
        %2200 = vmatprep.mubr.bf16.mxu0 %v2058
        %2201 = vmatmul.mubr.bf16.gmra.mxu0 %v1796
        %v2202 = vpop.f32.mrf.mxu0
        %v2203 = vadd.f32 %v1504, %v2202
        %v2204 = vpop.f32.mrf.mxu0
        %v2205 = vadd.f32 %v1506, %v2204
        %v2206 = vpop.f32.mrf.mxu0
        %v2207 = vadd.f32 %v1508, %v2206
        %v2208 = vpop.f32.mrf.mxu0
        %v2209 = vadd.f32 %v1510, %v2208
        %2210 = vmatprep.mubr.bf16.mxu0 %v2061
        %2211 = vmatmul.mubr.bf16.gmra.mxu0 %v1814
        %v2212 = vpop.f32.mrf.mxu0
        %v2213 = vadd.f32 %v1514, %v2212
        %v2214 = vpop.f32.mrf.mxu0
        %v2215 = vadd.f32 %v1516, %v2214
        %v2216 = vpop.f32.mrf.mxu0
        %v2217 = vadd.f32 %v1518, %v2216
        %v2218 = vpop.f32.mrf.mxu0
        %v2219 = vadd.f32 %v1520, %v2218
        %2220 = vmatprep.mubr.bf16.mxu0 %v2064
        %2221 = vmatmul.mubr.bf16.gmra.mxu0 %v1832
        %v2222 = vpop.f32.mrf.mxu0
        %v2223 = vadd.f32 %v1524, %v2222
        %v2224 = vpop.f32.mrf.mxu0
        %v2225 = vadd.f32 %v1526, %v2224
        %v2226 = vpop.f32.mrf.mxu0
        %v2227 = vadd.f32 %v1528, %v2226
        %v2228 = vpop.f32.mrf.mxu0
        %v2229 = vadd.f32 %v1530, %v2228
        %2230 = vmatprep.mubr.bf16.mxu0 %v2067
        %2231 = vmatmul.mubr.bf16.gmra.mxu0 %v1850
        %v2232 = vpop.f32.mrf.mxu0
        %v2233 = vadd.f32 %v1534, %v2232
        %v2234 = vpop.f32.mrf.mxu0
        %v2235 = vadd.f32 %v1536, %v2234
        %v2236 = vpop.f32.mrf.mxu0
        %v2237 = vadd.f32 %v1538, %v2236
        %v2238 = vpop.f32.mrf.mxu0
        %v2239 = vadd.f32 %v1540, %v2238
        %2240 = vmatprep.mubr.bf16.mxu0 %v2070
        %2241 = vmatmul.mubr.bf16.gmra.mxu0 %v1868
        %v2242 = vpop.f32.mrf.mxu0
        %v2243 = vadd.f32 %v1544, %v2242
        %v2244 = vpop.f32.mrf.mxu0
        %v2245 = vadd.f32 %v1546, %v2244
        %v2246 = vpop.f32.mrf.mxu0
        %v2247 = vadd.f32 %v1548, %v2246
        %v2248 = vpop.f32.mrf.mxu0
        %v2249 = vadd.f32 %v1550, %v2248
        %2250 = vmatprep.mubr.bf16.mxu0 %v2073
        %2251 = vmatmul.mubr.bf16.gmra.mxu0 %v1886
        %v2252 = vpop.f32.mrf.mxu0
        %v2253 = vadd.f32 %v1554, %v2252
        %v2254 = vpop.f32.mrf.mxu0
        %v2255 = vadd.f32 %v1556, %v2254
        %v2256 = vpop.f32.mrf.mxu0
        %v2257 = vadd.f32 %v1558, %v2256
        %v2258 = vpop.f32.mrf.mxu0
        %v2259 = vadd.f32 %v1560, %v2258
        %2260 = vmatprep.mubr.bf16.mxu0 %v2076
        %2261 = vmatmul.mubr.bf16.gmra.mxu0 %v1904
        %v2262 = vpop.f32.mrf.mxu0
        %v2263 = vadd.f32 %v1564, %v2262
        %v2264 = vpop.f32.mrf.mxu0
        %v2265 = vadd.f32 %v1566, %v2264
        %v2266 = vpop.f32.mrf.mxu0
        %v2267 = vadd.f32 %v1568, %v2266
        %v2268 = vpop.f32.mrf.mxu0
        %v2269 = vadd.f32 %v1570, %v2268
        %2270 = vdwg.mxu0
        %v2271 = vld [vmem:[%s0 + $0x10] sm:$0xff]
        %v2272 = vld [vmem:[%s0 + $0x18] sm:$0xff]
        %v2273 = vld [vmem:[%s0 + $0x20] sm:$0xff]
        %v2274 = vld [vmem:[%s0 + $0x28] sm:$0xff]
        %v2275 = vld [vmem:[%s0 + $0x30] sm:$0xff]
        %v2276 = vld [vmem:[%s0 + $0x38] sm:$0xff]
        %v2277 = vld [vmem:[%s0 + $0x40] sm:$0xff]
        %v2278 = vld [vmem:[%s0 + $0x48] sm:$0xff]
        %v2279 = vld [vmem:[%s0 + $0x50] sm:$0xff]
        %v2280 = vld [vmem:[%s0 + $0x58] sm:$0xff]
        %v2281 = vld [vmem:[%s0 + $0x60] sm:$0xff]
        %v2282 = vld [vmem:[%s0 + $0x68] sm:$0xff]
        %v2283 = vld [vmem:[%s0 + $0x70] sm:$0xff]
        %v2284 = vld [vmem:[%s0 + $0x78] sm:$0xff]
        %v2285 = vld [vmem:[%s0 + $0x80] sm:$0xff]
        %v2286 = vld [vmem:[%s0 + $0x88] sm:$0xff]
        %v2287 = vld [vmem:[%s0 + $0x90] sm:$0xff]
        %v2288 = vld [vmem:[%s0 + $0x98] sm:$0xff]
        %v2289 = vld [vmem:[%s0 + $0xa0] sm:$0xff]
        %v2290 = vld [vmem:[%s0 + $0xa8] sm:$0xff]
        %v2291 = vld [vmem:[%s0 + $0xb0] sm:$0xff]
        %v2292 = vld [vmem:[%s0 + $0xb8] sm:$0xff]
        %v2293 = vld [vmem:[%s0 + $0xc0] sm:$0xff]
        %v2294 = vld [vmem:[%s0 + $0xc8] sm:$0xff]
        %v2295 = vld [vmem:[%s0 + $0xd0] sm:$0xff]
        %v2296 = vld [vmem:[%s0 + $0xd8] sm:$0xff]
        %v2297 = vld [vmem:[%s0 + $0xe0] sm:$0xff]
        %v2298 = vld [vmem:[%s0 + $0xe8] sm:$0xff]
        %v2299 = vld [vmem:[%s0 + $0xf0] sm:$0xff]
        %v2300 = vld [vmem:[%s0 + $0xf8] sm:$0xff]
        %v2301 = vld [vmem:[%s0 + $0x100] sm:$0xff]
        %v2302 = vld [vmem:[%s0 + $0x108] sm:$0xff]
        %v2303 = vld [vmem:[%s0 + $0x110] sm:$0x11]
        %s2304 = scalar_lea.vmem %s967, 320 [#allocation2]
        %v2305 = vld [vmem:[%s2304] sm:$0xff]
        %v2306 = vld [vmem:[%s2304 + $0x8] sm:$0xff]
        %v2307 = vld [vmem:[%s2304 + $0x10] sm:$0xff]
        %v2308 = vld [vmem:[%s2304 + $0x18] sm:$0xff]
        %v2309 = vld [vmem:[%s2304 + $0x20] sm:$0xff]
        %v2310 = vld [vmem:[%s2304 + $0x28] sm:$0xff]
        %v2311 = vld [vmem:[%s2304 + $0x30] sm:$0xff]
        %v2312 = vld [vmem:[%s2304 + $0x38] sm:$0xff]
        %v2313 = vld [vmem:[%s2304 + $0x40] sm:$0xff]
        %v2314 = vld [vmem:[%s2304 + $0x48] sm:$0xff]
        %v2315 = vld [vmem:[%s2304 + $0x50] sm:$0xff]
        %v2316 = vld [vmem:[%s2304 + $0x58] sm:$0xff]
        %v2317 = vld [vmem:[%s2304 + $0x60] sm:$0xff]
        %v2318 = vld [vmem:[%s2304 + $0x68] sm:$0xff]
        %v2319 = vld [vmem:[%s2304 + $0x70] sm:$0xff]
        %v2320 = vld [vmem:[%s2304 + $0x78] sm:$0xff]
        %v2321 = vld [vmem:[%s2304 + $0x80] sm:$0xff]
        %v2322 = vld [vmem:[%s2304 + $0x88] sm:$0xff]
        %v2323 = vld [vmem:[%s2304 + $0x90] sm:$0xff]
        %v2324 = vld [vmem:[%s2304 + $0x98] sm:$0xff]
        %v2358 = vunpack.c.l.b16 %v2271
        %v2359 = vunpack.c.h.b16 %v2271
        %v2360 = vunpack.c.l.b16 %v2272
        %v2361 = vunpack.c.h.b16 %v2272
        %v2362 = vunpack.c.l.b16 %v2273
        %v2363 = vunpack.c.h.b16 %v2273
        %v2364 = vunpack.c.l.b16 %v2274
        %v2365 = vunpack.c.h.b16 %v2274
        %v2366 = vunpack.c.l.b16 %v2275
        %v2367 = vunpack.c.h.b16 %v2275
        %v2368 = vunpack.c.l.b16 %v2276
        %v2369 = vunpack.c.h.b16 %v2276
        %v2370 = vunpack.c.l.b16 %v2277
        %v2371 = vunpack.c.h.b16 %v2277
        %v2372 = vunpack.c.l.b16 %v2278
        %v2373 = vunpack.c.h.b16 %v2278
        %v2374 = vunpack.c.l.b16 %v2279
        %v2375 = vunpack.c.h.b16 %v2279
        %v2376 = vunpack.c.l.b16 %v2280
        %v2377 = vunpack.c.h.b16 %v2280
        %v2378 = vunpack.c.l.b16 %v2281
        %v2379 = vunpack.c.h.b16 %v2281
        %v2380 = vunpack.c.l.b16 %v2282
        %v2381 = vunpack.c.h.b16 %v2282
        %v2382 = vunpack.c.l.b16 %v2283
        %v2383 = vunpack.c.h.b16 %v2283
        %v2384 = vunpack.c.l.b16 %v2284
        %v2385 = vunpack.c.h.b16 %v2284
        %v2386 = vunpack.c.l.b16 %v2285
        %v2387 = vunpack.c.h.b16 %v2285
        %v2388 = vunpack.c.l.b16 %v2286
        %v2389 = vunpack.c.h.b16 %v2286
        %v2390 = vunpack.c.l.b16 %v2287
        %v2391 = vunpack.c.h.b16 %v2287
        %v2392 = vunpack.c.l.b16 %v2288
        %v2393 = vunpack.c.h.b16 %v2288
        %v2394 = vunpack.c.l.b16 %v2289
        %v2395 = vunpack.c.h.b16 %v2289
        %v2396 = vunpack.c.l.b16 %v2290
        %v2397 = vunpack.c.h.b16 %v2290
        %v2398 = vunpack.c.l.b16 %v2291
        %v2399 = vunpack.c.h.b16 %v2291
        %v2400 = vunpack.c.l.b16 %v2292
        %v2401 = vunpack.c.h.b16 %v2292
        %v2402 = vunpack.c.l.b16 %v2293
        %v2403 = vunpack.c.h.b16 %v2293
        %v2404 = vunpack.c.l.b16 %v2294
        %v2405 = vunpack.c.h.b16 %v2294
        %v2406 = vunpack.c.l.b16 %v2295
        %v2407 = vunpack.c.h.b16 %v2295
        %v2408 = vunpack.c.l.b16 %v2296
        %v2409 = vunpack.c.h.b16 %v2296
        %v2410 = vunpack.c.l.b16 %v2297
        %v2411 = vunpack.c.h.b16 %v2297
        %v2412 = vunpack.c.l.b16 %v2298
        %v2413 = vunpack.c.h.b16 %v2298
        %v2414 = vunpack.c.l.b16 %v2299
        %v2415 = vunpack.c.h.b16 %v2299
        %v2416 = vunpack.c.l.b16 %v2300
        %v2417 = vunpack.c.h.b16 %v2300
        %v2418 = vunpack.c.l.b16 %v2301
        %v2419 = vunpack.c.h.b16 %v2301
        %v2420 = vunpack.c.l.b16 %v2302
        %v2421 = vunpack.c.h.b16 %v2302
        %v2422 = vunpack.c.l.b16 %v2303
        %v2423 = vunpack.c.h.b16 %v2303
        %v2424 = vpack.c.b16 %v2360, %v2358
        %v2425 = vpack.c.b16 %v2361, %v2359
        %v2426 = vpack.c.b16 %v2364, %v2362
        %v2427 = vpack.c.b16 %v2365, %v2363
        %v2428 = vpack.c.b16 %v2368, %v2366
        %v2429 = vpack.c.b16 %v2369, %v2367
        %v2430 = vpack.c.b16 %v2372, %v2370
        %v2431 = vpack.c.b16 %v2373, %v2371
        %v2432 = vpack.c.b16 %v2376, %v2374
        %v2433 = vpack.c.b16 %v2377, %v2375
        %v2434 = vpack.c.b16 %v2380, %v2378
        %v2435 = vpack.c.b16 %v2381, %v2379
        %v2436 = vpack.c.b16 %v2384, %v2382
        %v2437 = vpack.c.b16 %v2385, %v2383
        %v2438 = vpack.c.b16 %v2388, %v2386
        %v2439 = vpack.c.b16 %v2389, %v2387
        %v2440 = vpack.c.b16 %v2392, %v2390
        %v2441 = vpack.c.b16 %v2393, %v2391
        %v2442 = vpack.c.b16 %v2396, %v2394
        %v2443 = vpack.c.b16 %v2397, %v2395
        %v2444 = vpack.c.b16 %v2400, %v2398
        %v2445 = vpack.c.b16 %v2401, %v2399
        %v2446 = vpack.c.b16 %v2404, %v2402
        %v2447 = vpack.c.b16 %v2405, %v2403
        %v2448 = vpack.c.b16 %v2408, %v2406
        %v2449 = vpack.c.b16 %v2409, %v2407
        %v2450 = vpack.c.b16 %v2412, %v2410
        %v2451 = vpack.c.b16 %v2413, %v2411
        %v2452 = vpack.c.b16 %v2416, %v2414
        %v2453 = vpack.c.b16 %v2417, %v2415
        %v2454 = vpack.c.b16 %v2420, %v2418
        %v2455 = vpack.c.b16 %v2421, %v2419
        %v2456 = vpack.c.b16 %v2422, %v2422
        %v2457 = vpack.c.b16 %v2423, %v2423
        %vm2458 = vsmask.f32 7424
        %v2460 = vshrl.u32 %v2424, 16
        %v2462 = vshll.u32 %v2424, 16
        %v2464 = vrot.slane %v2462, 1
        %v2465 = vor.u32 %v2460, %v2464
        %v2467 = vshll.u32 %v2426, 16
        %v2469 = vrot.slane %v2467, 1
        %v2470 = vsel %vm2458, %v2465, %v2469
        %v2472 = vshrl.u32 %v2425, 16
        %v2474 = vshll.u32 %v2425, 16
        %v2476 = vrot.slane %v2474, 1
        %v2477 = vor.u32 %v2472, %v2476
        %v2479 = vshll.u32 %v2427, 16
        %v2481 = vrot.slane %v2479, 1
        %v2482 = vsel %vm2458, %v2477, %v2481
        %v2483 = vshrl.u32 %v2426, 16
        %v2485 = vor.u32 %v2483, %v2469
        %v2487 = vshll.u32 %v2428, 16
        %v2489 = vrot.slane %v2487, 1
        %v2490 = vsel %vm2458, %v2485, %v2489
        %v2491 = vshrl.u32 %v2427, 16
        %v2493 = vor.u32 %v2491, %v2481
        %v2495 = vshll.u32 %v2429, 16
        %v2497 = vrot.slane %v2495, 1
        %v2498 = vsel %vm2458, %v2493, %v2497
        %v2499 = vshrl.u32 %v2428, 16
        %v2501 = vor.u32 %v2499, %v2489
        %v2503 = vshll.u32 %v2430, 16
        %v2505 = vrot.slane %v2503, 1
        %v2506 = vsel %vm2458, %v2501, %v2505
        %v2507 = vshrl.u32 %v2429, 16
        %v2509 = vor.u32 %v2507, %v2497
        %v2511 = vshll.u32 %v2431, 16
        %v2513 = vrot.slane %v2511, 1
        %v2514 = vsel %vm2458, %v2509, %v2513
        %v2515 = vshrl.u32 %v2430, 16
        %v2517 = vor.u32 %v2515, %v2505
        %v2519 = vshll.u32 %v2432, 16
        %v2521 = vrot.slane %v2519, 1
        %v2522 = vsel %vm2458, %v2517, %v2521
        %v2523 = vshrl.u32 %v2431, 16
        %v2525 = vor.u32 %v2523, %v2513
        %v2527 = vshll.u32 %v2433, 16
        %v2529 = vrot.slane %v2527, 1
        %v2530 = vsel %vm2458, %v2525, %v2529
        %v2531 = vshrl.u32 %v2432, 16
        %v2533 = vor.u32 %v2531, %v2521
        %v2535 = vshll.u32 %v2434, 16
        %v2537 = vrot.slane %v2535, 1
        %v2538 = vsel %vm2458, %v2533, %v2537
        %v2539 = vshrl.u32 %v2433, 16
        %v2541 = vor.u32 %v2539, %v2529
        %v2543 = vshll.u32 %v2435, 16
        %v2545 = vrot.slane %v2543, 1
        %v2546 = vsel %vm2458, %v2541, %v2545
        %v2547 = vshrl.u32 %v2434, 16
        %v2549 = vor.u32 %v2547, %v2537
        %v2551 = vshll.u32 %v2436, 16
        %v2553 = vrot.slane %v2551, 1
        %v2554 = vsel %vm2458, %v2549, %v2553
        %v2555 = vshrl.u32 %v2435, 16
        %v2557 = vor.u32 %v2555, %v2545
        %v2559 = vshll.u32 %v2437, 16
        %v2561 = vrot.slane %v2559, 1
        %v2562 = vsel %vm2458, %v2557, %v2561
        %v2563 = vshrl.u32 %v2436, 16
        %v2565 = vor.u32 %v2563, %v2553
        %v2567 = vshll.u32 %v2438, 16
        %v2569 = vrot.slane %v2567, 1
        %v2570 = vsel %vm2458, %v2565, %v2569
        %v2571 = vshrl.u32 %v2437, 16
        %v2573 = vor.u32 %v2571, %v2561
        %v2575 = vshll.u32 %v2439, 16
        %v2577 = vrot.slane %v2575, 1
        %v2578 = vsel %vm2458, %v2573, %v2577
        %v2579 = vshrl.u32 %v2438, 16
        %v2581 = vor.u32 %v2579, %v2569
        %v2583 = vshll.u32 %v2440, 16
        %v2585 = vrot.slane %v2583, 1
        %v2586 = vsel %vm2458, %v2581, %v2585
        %v2587 = vshrl.u32 %v2439, 16
        %v2589 = vor.u32 %v2587, %v2577
        %v2591 = vshll.u32 %v2441, 16
        %v2593 = vrot.slane %v2591, 1
        %v2594 = vsel %vm2458, %v2589, %v2593
        %v2595 = vshrl.u32 %v2440, 16
        %v2597 = vor.u32 %v2595, %v2585
        %v2599 = vshll.u32 %v2442, 16
        %v2601 = vrot.slane %v2599, 1
        %v2602 = vsel %vm2458, %v2597, %v2601
        %v2603 = vshrl.u32 %v2441, 16
        %v2605 = vor.u32 %v2603, %v2593
        %v2607 = vshll.u32 %v2443, 16
        %v2609 = vrot.slane %v2607, 1
        %v2610 = vsel %vm2458, %v2605, %v2609
        %v2611 = vshrl.u32 %v2442, 16
        %v2613 = vor.u32 %v2611, %v2601
        %v2615 = vshll.u32 %v2444, 16
        %v2617 = vrot.slane %v2615, 1
        %v2618 = vsel %vm2458, %v2613, %v2617
        %v2619 = vshrl.u32 %v2443, 16
        %v2621 = vor.u32 %v2619, %v2609
        %v2623 = vshll.u32 %v2445, 16
        %v2625 = vrot.slane %v2623, 1
        %v2626 = vsel %vm2458, %v2621, %v2625
        %v2627 = vshrl.u32 %v2444, 16
        %v2629 = vor.u32 %v2627, %v2617
        %v2631 = vshll.u32 %v2446, 16
        %v2633 = vrot.slane %v2631, 1
        %v2634 = vsel %vm2458, %v2629, %v2633
        %v2635 = vshrl.u32 %v2445, 16
        %v2637 = vor.u32 %v2635, %v2625
        %v2639 = vshll.u32 %v2447, 16
        %v2641 = vrot.slane %v2639, 1
        %v2642 = vsel %vm2458, %v2637, %v2641
        %v2643 = vshrl.u32 %v2446, 16
        %v2645 = vor.u32 %v2643, %v2633
        %v2647 = vshll.u32 %v2448, 16
        %v2649 = vrot.slane %v2647, 1
        %v2650 = vsel %vm2458, %v2645, %v2649
        %v2651 = vshrl.u32 %v2447, 16
        %v2653 = vor.u32 %v2651, %v2641
        %v2655 = vshll.u32 %v2449, 16
        %v2657 = vrot.slane %v2655, 1
        %v2658 = vsel %vm2458, %v2653, %v2657
        %v2659 = vshrl.u32 %v2448, 16
        %v2661 = vor.u32 %v2659, %v2649
        %v2663 = vshll.u32 %v2450, 16
        %v2665 = vrot.slane %v2663, 1
        %v2666 = vsel %vm2458, %v2661, %v2665
        %v2667 = vshrl.u32 %v2449, 16
        %v2669 = vor.u32 %v2667, %v2657
        %v2671 = vshll.u32 %v2451, 16
        %v2673 = vrot.slane %v2671, 1
        %v2674 = vsel %vm2458, %v2669, %v2673
        %v2675 = vshrl.u32 %v2450, 16
        %v2677 = vor.u32 %v2675, %v2665
        %v2679 = vshll.u32 %v2452, 16
        %v2681 = vrot.slane %v2679, 1
        %v2682 = vsel %vm2458, %v2677, %v2681
        %v2683 = vshrl.u32 %v2451, 16
        %v2685 = vor.u32 %v2683, %v2673
        %v2687 = vshll.u32 %v2453, 16
        %v2689 = vrot.slane %v2687, 1
        %v2690 = vsel %vm2458, %v2685, %v2689
        %v2691 = vshrl.u32 %v2452, 16
        %v2693 = vor.u32 %v2691, %v2681
        %v2695 = vshll.u32 %v2454, 16
        %v2697 = vrot.slane %v2695, 1
        %v2698 = vsel %vm2458, %v2693, %v2697
        %v2699 = vshrl.u32 %v2453, 16
        %v2701 = vor.u32 %v2699, %v2689
        %v2703 = vshll.u32 %v2455, 16
        %v2705 = vrot.slane %v2703, 1
        %v2706 = vsel %vm2458, %v2701, %v2705
        %v2707 = vshrl.u32 %v2454, 16
        %v2709 = vor.u32 %v2707, %v2697
        %v2711 = vshll.u32 %v2456, 16
        %v2713 = vrot.slane %v2711, 1
        %v2714 = vsel %vm2458, %v2709, %v2713
        %v2715 = vshrl.u32 %v2455, 16
        %v2717 = vor.u32 %v2715, %v2705
        %v2719 = vshll.u32 %v2457, 16
        %v2721 = vrot.slane %v2719, 1
        %v2722 = vsel %vm2458, %v2717, %v2721
        %v2759 = vunpack.c.l.b16 %v2305
        %v2760 = vunpack.c.h.b16 %v2305
        %v2761 = vunpack.c.l.b16 %v2306
        %v2762 = vunpack.c.h.b16 %v2306
        %v2763 = vunpack.c.l.b16 %v2307
        %v2764 = vunpack.c.h.b16 %v2307
        %v2765 = vunpack.c.l.b16 %v2308
        %v2766 = vunpack.c.h.b16 %v2308
        %v2767 = vunpack.c.l.b16 %v2309
        %v2768 = vunpack.c.h.b16 %v2309
        %v2769 = vunpack.c.l.b16 %v2310
        %v2770 = vunpack.c.h.b16 %v2310
        %v2771 = vunpack.c.l.b16 %v2311
        %v2772 = vunpack.c.h.b16 %v2311
        %v2773 = vunpack.c.l.b16 %v2312
        %v2774 = vunpack.c.h.b16 %v2312
        %v2775 = vunpack.c.l.b16 %v2313
        %v2776 = vunpack.c.h.b16 %v2313
        %v2777 = vunpack.c.l.b16 %v2314
        %v2778 = vunpack.c.h.b16 %v2314
        %v2779 = vunpack.c.l.b16 %v2315
        %v2780 = vunpack.c.h.b16 %v2315
        %v2781 = vunpack.c.l.b16 %v2316
        %v2782 = vunpack.c.h.b16 %v2316
        %v2783 = vunpack.c.l.b16 %v2317
        %v2784 = vunpack.c.h.b16 %v2317
        %v2785 = vunpack.c.l.b16 %v2318
        %v2786 = vunpack.c.h.b16 %v2318
        %v2787 = vunpack.c.l.b16 %v2319
        %v2788 = vunpack.c.h.b16 %v2319
        %v2789 = vunpack.c.l.b16 %v2320
        %v2790 = vunpack.c.h.b16 %v2320
        %v2791 = vunpack.c.l.b16 %v2321
        %v2792 = vunpack.c.h.b16 %v2321
        %v2793 = vunpack.c.l.b16 %v2322
        %v2794 = vunpack.c.h.b16 %v2322
        %v2795 = vunpack.c.l.b16 %v2323
        %v2796 = vunpack.c.h.b16 %v2323
        %v2797 = vunpack.c.l.b16 %v2324
        %v2798 = vunpack.c.h.b16 %v2324
        %v2799 = vpack.c.b16 %v2761, %v2759
        %v2800 = vpack.c.b16 %v2762, %v2760
        %v2801 = vpack.c.b16 %v2765, %v2763
        %v2802 = vpack.c.b16 %v2766, %v2764
        %v2803 = vpack.c.b16 %v2769, %v2767
        %v2804 = vpack.c.b16 %v2770, %v2768
        %v2805 = vpack.c.b16 %v2773, %v2771
        %v2806 = vpack.c.b16 %v2774, %v2772
        %v2807 = vpack.c.b16 %v2777, %v2775
        %v2808 = vpack.c.b16 %v2778, %v2776
        %v2809 = vpack.c.b16 %v2781, %v2779
        %v2810 = vpack.c.b16 %v2782, %v2780
        %v2811 = vpack.c.b16 %v2785, %v2783
        %v2812 = vpack.c.b16 %v2786, %v2784
        %v2813 = vpack.c.b16 %v2789, %v2787
        %v2814 = vpack.c.b16 %v2790, %v2788
        %v2815 = vpack.c.b16 %v2793, %v2791
        %v2816 = vpack.c.b16 %v2794, %v2792
        %v2817 = vpack.c.b16 %v2797, %v2795
        %v2818 = vpack.c.b16 %v2798, %v2796
        %v2840 = vsel %vm1330, %v2482, 0
        %v2843 = vsel %vm1330, %v2498, 0
        %v2846 = vsel %vm1330, %v2514, 0
        %v2849 = vsel %vm1330, %v2530, 0
        %v2852 = vsel %vm1330, %v2546, 0
        %v2855 = vsel %vm1330, %v2562, 0
        %v2858 = vsel %vm1330, %v2578, 0
        %v2861 = vsel %vm1330, %v2594, 0
        %v2864 = vsel %vm1330, %v2610, 0
        %v2867 = vsel %vm1330, %v2626, 0
        %v2870 = vsel %vm1330, %v2642, 0
        %v2873 = vsel %vm1330, %v2658, 0
        %v2876 = vsel %vm1330, %v2674, 0
        %v2879 = vsel %vm1330, %v2690, 0
        %v2882 = vsel %vm1330, %v2706, 0
        %v2885 = vsel %vm1330, %v2722, 0
        %2887 = vmatprep.subr.bf16.mxu0 %v2814
        %2888 = vmatpush1.bf16.msra.mxu0 %v2813
        %2889 = vmatprep.subr.bf16.mxu0 %v2812
        %2890 = vmatpush1.bf16.msra.mxu0 %v2811
        %2891 = vmatprep.subr.bf16.mxu0 %v2810
        %2892 = vmatpush1.bf16.msra.mxu0 %v2809
        %2893 = vmatprep.subr.bf16.mxu0 %v2808
        %2894 = vmatpush1.bf16.msra.mxu0 %v2807
        %2895 = vmatprep.subr.bf16.mxu0 %v2806
        %2896 = vmatpush1.bf16.msra.mxu0 %v2805
        %2897 = vmatprep.subr.bf16.mxu0 %v2804
        %2898 = vmatpush1.bf16.msra.mxu0 %v2803
        %2899 = vmatprep.subr.bf16.mxu0 %v2802
        %2900 = vmatpush1.bf16.msra.mxu0 %v2801
        %2901 = vmatprep.subr.bf16.mxu0 %v2800
        %2902 = vmatpush1.bf16.msra.mxu0 %v2799
        %2903 = vmatprep.subr.bf16.mxu0 0
        %2904 = vmatpush2.bf16.msra.mxu0 0
        %2905 = vmatprep.subr.bf16.mxu0 0
        %2906 = vmatpush2.bf16.msra.mxu0 0
        %2907 = vmatprep.subr.bf16.mxu0 0
        %2908 = vmatpush2.bf16.msra.mxu0 0
        %2909 = vmatprep.subr.bf16.mxu0 0
        %2910 = vmatpush2.bf16.msra.mxu0 0
        %2911 = vmatprep.subr.bf16.mxu0 0
        %2912 = vmatpush2.bf16.msra.mxu0 0
        %2913 = vmatprep.subr.bf16.mxu0 0
        %2914 = vmatpush2.bf16.msra.mxu0 0
        %2915 = vmatprep.subr.bf16.mxu0 %v2818
        %2916 = vmatpush2.bf16.msra.mxu0 %v2817
        %2917 = vmatprep.subr.bf16.mxu0 %v2816
        %2918 = vmatpush2.bf16.msra.mxu0 %v2815
        %2919 = vmatprep.mubr.bf16.mxu0 %v2840
        %2920 = vmatmul.mubr.bf16.gmra.mxu0 %v2470
        %v2921 = vpop.f32.mrf.mxu0
        %v2922 = vadd.f32 0.0, %v2921
        %v2923 = vpop.f32.mrf.mxu0
        %v2924 = vadd.f32 0.0, %v2923
        %v2925 = vpop.f32.mrf.mxu0
        %v2926 = vadd.f32 0.0, %v2925
        %v2927 = vpop.f32.mrf.mxu0
        %v2928 = vadd.f32 0.0, %v2927
        %2929 = vmatprep.mubr.bf16.mxu0 %v2843
        %2930 = vmatmul.mubr.bf16.gmra.mxu0 %v2490
        %v2931 = vpop.f32.mrf.mxu0
        %v2932 = vadd.f32 0.0, %v2931
        %v2933 = vpop.f32.mrf.mxu0
        %v2934 = vadd.f32 0.0, %v2933
        %v2935 = vpop.f32.mrf.mxu0
        %v2936 = vadd.f32 0.0, %v2935
        %v2937 = vpop.f32.mrf.mxu0
        %v2938 = vadd.f32 0.0, %v2937
        %2939 = vmatprep.mubr.bf16.mxu0 %v2846
        %2940 = vmatmul.mubr.bf16.gmra.mxu0 %v2506
        %v2941 = vpop.f32.mrf.mxu0
        %v2942 = vadd.f32 0.0, %v2941
        %v2943 = vpop.f32.mrf.mxu0
        %v2944 = vadd.f32 0.0, %v2943
        %v2945 = vpop.f32.mrf.mxu0
        %v2946 = vadd.f32 0.0, %v2945
        %v2947 = vpop.f32.mrf.mxu0
        %v2948 = vadd.f32 0.0, %v2947
        %2949 = vmatprep.mubr.bf16.mxu0 %v2849
        %2950 = vmatmul.mubr.bf16.gmra.mxu0 %v2522
        %v2951 = vpop.f32.mrf.mxu0
        %v2952 = vadd.f32 0.0, %v2951
        %v2953 = vpop.f32.mrf.mxu0
        %v2954 = vadd.f32 0.0, %v2953
        %v2955 = vpop.f32.mrf.mxu0
        %v2956 = vadd.f32 0.0, %v2955
        %v2957 = vpop.f32.mrf.mxu0
        %v2958 = vadd.f32 0.0, %v2957
        %2959 = vmatprep.mubr.bf16.mxu0 %v2852
        %2960 = vmatmul.mubr.bf16.gmra.mxu0 %v2538
        %v2961 = vpop.f32.mrf.mxu0
        %v2962 = vadd.f32 0.0, %v2961
        %v2963 = vpop.f32.mrf.mxu0
        %v2964 = vadd.f32 0.0, %v2963
        %v2965 = vpop.f32.mrf.mxu0
        %v2966 = vadd.f32 0.0, %v2965
        %v2967 = vpop.f32.mrf.mxu0
        %v2968 = vadd.f32 0.0, %v2967
        %2969 = vmatprep.mubr.bf16.mxu0 %v2855
        %2970 = vmatmul.mubr.bf16.gmra.mxu0 %v2554
        %v2971 = vpop.f32.mrf.mxu0
        %v2972 = vadd.f32 0.0, %v2971
        %v2973 = vpop.f32.mrf.mxu0
        %v2974 = vadd.f32 0.0, %v2973
        %v2975 = vpop.f32.mrf.mxu0
        %v2976 = vadd.f32 0.0, %v2975
        %v2977 = vpop.f32.mrf.mxu0
        %v2978 = vadd.f32 0.0, %v2977
        %2979 = vmatprep.mubr.bf16.mxu0 %v2858
        %2980 = vmatmul.mubr.bf16.gmra.mxu0 %v2570
        %v2981 = vpop.f32.mrf.mxu0
        %v2982 = vadd.f32 0.0, %v2981
        %v2983 = vpop.f32.mrf.mxu0
        %v2984 = vadd.f32 0.0, %v2983
        %v2985 = vpop.f32.mrf.mxu0
        %v2986 = vadd.f32 0.0, %v2985
        %v2987 = vpop.f32.mrf.mxu0
        %v2988 = vadd.f32 0.0, %v2987
        %2989 = vmatprep.mubr.bf16.mxu0 %v2861
        %2990 = vmatmul.mubr.bf16.gmra.mxu0 %v2586
        %v2991 = vpop.f32.mrf.mxu0
        %v2992 = vadd.f32 0.0, %v2991
        %v2993 = vpop.f32.mrf.mxu0
        %v2994 = vadd.f32 0.0, %v2993
        %v2995 = vpop.f32.mrf.mxu0
        %v2996 = vadd.f32 0.0, %v2995
        %v2997 = vpop.f32.mrf.mxu0
        %v2998 = vadd.f32 0.0, %v2997
        %2999 = vmatprep.mubr.bf16.mxu0 %v2864
        %3000 = vmatmul.mubr.bf16.gmra.mxu0 %v2602
        %v3001 = vpop.f32.mrf.mxu0
        %v3002 = vadd.f32 0.0, %v3001
        %v3003 = vpop.f32.mrf.mxu0
        %v3004 = vadd.f32 0.0, %v3003
        %v3005 = vpop.f32.mrf.mxu0
        %v3006 = vadd.f32 0.0, %v3005
        %v3007 = vpop.f32.mrf.mxu0
        %v3008 = vadd.f32 0.0, %v3007
        %3009 = vmatprep.mubr.bf16.mxu0 %v2867
        %3010 = vmatmul.mubr.bf16.gmra.mxu0 %v2618
        %v3011 = vpop.f32.mrf.mxu0
        %v3012 = vadd.f32 0.0, %v3011
        %v3013 = vpop.f32.mrf.mxu0
        %v3014 = vadd.f32 0.0, %v3013
        %v3015 = vpop.f32.mrf.mxu0
        %v3016 = vadd.f32 0.0, %v3015
        %v3017 = vpop.f32.mrf.mxu0
        %v3018 = vadd.f32 0.0, %v3017
        %3019 = vmatprep.mubr.bf16.mxu0 %v2870
        %3020 = vmatmul.mubr.bf16.gmra.mxu0 %v2634
        %v3021 = vpop.f32.mrf.mxu0
        %v3022 = vadd.f32 0.0, %v3021
        %v3023 = vpop.f32.mrf.mxu0
        %v3024 = vadd.f32 0.0, %v3023
        %v3025 = vpop.f32.mrf.mxu0
        %v3026 = vadd.f32 0.0, %v3025
        %v3027 = vpop.f32.mrf.mxu0
        %v3028 = vadd.f32 0.0, %v3027
        %3029 = vmatprep.mubr.bf16.mxu0 %v2873
        %3030 = vmatmul.mubr.bf16.gmra.mxu0 %v2650
        %v3031 = vpop.f32.mrf.mxu0
        %v3032 = vadd.f32 0.0, %v3031
        %v3033 = vpop.f32.mrf.mxu0
        %v3034 = vadd.f32 0.0, %v3033
        %v3035 = vpop.f32.mrf.mxu0
        %v3036 = vadd.f32 0.0, %v3035
        %v3037 = vpop.f32.mrf.mxu0
        %v3038 = vadd.f32 0.0, %v3037
        %3039 = vmatprep.mubr.bf16.mxu0 %v2876
        %3040 = vmatmul.mubr.bf16.gmra.mxu0 %v2666
        %v3041 = vpop.f32.mrf.mxu0
        %v3042 = vadd.f32 0.0, %v3041
        %v3043 = vpop.f32.mrf.mxu0
        %v3044 = vadd.f32 0.0, %v3043
        %v3045 = vpop.f32.mrf.mxu0
        %v3046 = vadd.f32 0.0, %v3045
        %v3047 = vpop.f32.mrf.mxu0
        %v3048 = vadd.f32 0.0, %v3047
        %3049 = vmatprep.mubr.bf16.mxu0 %v2879
        %3050 = vmatmul.mubr.bf16.gmra.mxu0 %v2682
        %v3051 = vpop.f32.mrf.mxu0
        %v3052 = vadd.f32 0.0, %v3051
        %v3053 = vpop.f32.mrf.mxu0
        %v3054 = vadd.f32 0.0, %v3053
        %v3055 = vpop.f32.mrf.mxu0
        %v3056 = vadd.f32 0.0, %v3055
        %v3057 = vpop.f32.mrf.mxu0
        %v3058 = vadd.f32 0.0, %v3057
        %3059 = vmatprep.mubr.bf16.mxu0 %v2882
        %3060 = vmatmul.mubr.bf16.gmra.mxu0 %v2698
        %v3061 = vpop.f32.mrf.mxu0
        %v3062 = vadd.f32 0.0, %v3061
        %v3063 = vpop.f32.mrf.mxu0
        %v3064 = vadd.f32 0.0, %v3063
        %v3065 = vpop.f32.mrf.mxu0
        %v3066 = vadd.f32 0.0, %v3065
        %v3067 = vpop.f32.mrf.mxu0
        %v3068 = vadd.f32 0.0, %v3067
        %3069 = vmatprep.mubr.bf16.mxu0 %v2885
        %3070 = vmatmul.mubr.bf16.gmra.mxu0 %v2714
        %v3071 = vpop.f32.mrf.mxu0
        %v3072 = vadd.f32 0.0, %v3071
        %v3073 = vpop.f32.mrf.mxu0
        %v3074 = vadd.f32 0.0, %v3073
        %v3075 = vpop.f32.mrf.mxu0
        %v3076 = vadd.f32 0.0, %v3075
        %v3077 = vpop.f32.mrf.mxu0
        %v3078 = vadd.f32 0.0, %v3077
        %3079 = vdwg.mxu0
        %v3080 = vadd.f32 %v2113, %v2922
        %v3081 = vadd.f32 %v2115, %v2924
        %v3082 = vadd.f32 %v2117, %v2926
        %v3083 = vadd.f32 %v2119, %v2928
        %v3084 = vadd.f32 %v2123, %v2932
        %v3085 = vadd.f32 %v2125, %v2934
        %v3086 = vadd.f32 %v2127, %v2936
        %v3087 = vadd.f32 %v2129, %v2938
        %v3088 = vadd.f32 %v2133, %v2942
        %v3089 = vadd.f32 %v2135, %v2944
        %v3090 = vadd.f32 %v2137, %v2946
        %v3091 = vadd.f32 %v2139, %v2948
        %v3092 = vadd.f32 %v2143, %v2952
        %v3093 = vadd.f32 %v2145, %v2954
        %v3094 = vadd.f32 %v2147, %v2956
        %v3095 = vadd.f32 %v2149, %v2958
        %v3096 = vadd.f32 %v2153, %v2962
        %v3097 = vadd.f32 %v2155, %v2964
        %v3098 = vadd.f32 %v2157, %v2966
        %v3099 = vadd.f32 %v2159, %v2968
        %v3100 = vadd.f32 %v2163, %v2972
        %v3101 = vadd.f32 %v2165, %v2974
        %v3102 = vadd.f32 %v2167, %v2976
        %v3103 = vadd.f32 %v2169, %v2978
        %v3104 = vadd.f32 %v2173, %v2982
        %v3105 = vadd.f32 %v2175, %v2984
        %v3106 = vadd.f32 %v2177, %v2986
        %v3107 = vadd.f32 %v2179, %v2988
        %v3108 = vadd.f32 %v2183, %v2992
        %v3109 = vadd.f32 %v2185, %v2994
        %v3110 = vadd.f32 %v2187, %v2996
        %v3111 = vadd.f32 %v2189, %v2998
        %v3112 = vadd.f32 %v2193, %v3002
        %v3113 = vadd.f32 %v2195, %v3004
        %v3114 = vadd.f32 %v2197, %v3006
        %v3115 = vadd.f32 %v2199, %v3008
        %v3116 = vadd.f32 %v2203, %v3012
        %v3117 = vadd.f32 %v2205, %v3014
        %v3118 = vadd.f32 %v2207, %v3016
        %v3119 = vadd.f32 %v2209, %v3018
        %v3120 = vadd.f32 %v2213, %v3022
        %v3121 = vadd.f32 %v2215, %v3024
        %v3122 = vadd.f32 %v2217, %v3026
        %v3123 = vadd.f32 %v2219, %v3028
        %v3124 = vadd.f32 %v2223, %v3032
        %v3125 = vadd.f32 %v2225, %v3034
        %v3126 = vadd.f32 %v2227, %v3036
        %v3127 = vadd.f32 %v2229, %v3038
        %v3128 = vadd.f32 %v2233, %v3042
        %v3129 = vadd.f32 %v2235, %v3044
        %v3130 = vadd.f32 %v2237, %v3046
        %v3131 = vadd.f32 %v2239, %v3048
        %v3132 = vadd.f32 %v2243, %v3052
        %v3133 = vadd.f32 %v2245, %v3054
        %v3134 = vadd.f32 %v2247, %v3056
        %v3135 = vadd.f32 %v2249, %v3058
        %v3136 = vadd.f32 %v2253, %v3062
        %v3137 = vadd.f32 %v2255, %v3064
        %v3138 = vadd.f32 %v2257, %v3066
        %v3139 = vadd.f32 %v2259, %v3068
        %v3140 = vadd.f32 %v2263, %v3072
        %v3141 = vadd.f32 %v2265, %v3074
        %v3142 = vadd.f32 %v2267, %v3076
        %v3143 = vadd.f32 %v2269, %v3078
        %v3144 = vld [vmem:[%s0 + $0x18] sm:$0x88]
        %v3145 = vld [vmem:[%s0 + $0x20] sm:$0xff]
        %v3146 = vld [vmem:[%s0 + $0x28] sm:$0xff]
        %v3147 = vld [vmem:[%s0 + $0x30] sm:$0xff]
        %v3148 = vld [vmem:[%s0 + $0x38] sm:$0xff]
        %v3149 = vld [vmem:[%s0 + $0x40] sm:$0xff]
        %v3150 = vld [vmem:[%s0 + $0x48] sm:$0xff]
        %v3151 = vld [vmem:[%s0 + $0x50] sm:$0xff]
        %v3152 = vld [vmem:[%s0 + $0x58] sm:$0xff]
        %v3153 = vld [vmem:[%s0 + $0x60] sm:$0xff]
        %v3154 = vld [vmem:[%s0 + $0x68] sm:$0xff]
        %v3155 = vld [vmem:[%s0 + $0x70] sm:$0xff]
        %v3156 = vld [vmem:[%s0 + $0x78] sm:$0xff]
        %v3157 = vld [vmem:[%s0 + $0x80] sm:$0xff]
        %v3158 = vld [vmem:[%s0 + $0x88] sm:$0xff]
        %v3159 = vld [vmem:[%s0 + $0x90] sm:$0xff]
        %v3160 = vld [vmem:[%s0 + $0x98] sm:$0xff]
        %v3161 = vld [vmem:[%s0 + $0xa0] sm:$0xff]
        %v3162 = vld [vmem:[%s0 + $0xa8] sm:$0xff]
        %v3163 = vld [vmem:[%s0 + $0xb0] sm:$0xff]
        %v3164 = vld [vmem:[%s0 + $0xb8] sm:$0xff]
        %v3165 = vld [vmem:[%s0 + $0xc0] sm:$0xff]
        %v3166 = vld [vmem:[%s0 + $0xc8] sm:$0xff]
        %v3167 = vld [vmem:[%s0 + $0xd0] sm:$0xff]
        %v3168 = vld [vmem:[%s0 + $0xd8] sm:$0xff]
        %v3169 = vld [vmem:[%s0 + $0xe0] sm:$0xff]
        %v3170 = vld [vmem:[%s0 + $0xe8] sm:$0xff]
        %v3171 = vld [vmem:[%s0 + $0xf0] sm:$0xff]
        %v3172 = vld [vmem:[%s0 + $0xf8] sm:$0xff]
        %v3173 = vld [vmem:[%s0 + $0x100] sm:$0xff]
        %v3174 = vld [vmem:[%s0 + $0x108] sm:$0xff]
        %v3175 = vld [vmem:[%s0 + $0x110] sm:$0xff]
        %v3176 = vld [vmem:[%s0 + $0x118] sm:$0xff]
        %s3177 = scalar_lea.vmem %s967, 480 [#allocation2]
        %v3178 = vld [vmem:[%s3177] sm:$0xff]
        %v3179 = vld [vmem:[%s3177 + $0x8] sm:$0xff]
        %v3180 = vld [vmem:[%s3177 + $0x10] sm:$0xff]
        %v3181 = vld [vmem:[%s3177 + $0x18] sm:$0xff]
        %v3182 = vld [vmem:[%s3177 + $0x20] sm:$0xff]
        %v3183 = vld [vmem:[%s3177 + $0x28] sm:$0xff]
        %v3184 = vld [vmem:[%s3177 + $0x30] sm:$0xff]
        %v3185 = vld [vmem:[%s3177 + $0x38] sm:$0xff]
        %v3186 = vld [vmem:[%s3177 + $0x40] sm:$0xff]
        %v3187 = vld [vmem:[%s3177 + $0x48] sm:$0xff]
        %v3188 = vld [vmem:[%s3177 + $0x50] sm:$0xff]
        %v3189 = vld [vmem:[%s3177 + $0x58] sm:$0xff]
        %v3190 = vld [vmem:[%s3177 + $0x60] sm:$0xff]
        %v3191 = vld [vmem:[%s3177 + $0x68] sm:$0xff]
        %v3192 = vld [vmem:[%s3177 + $0x70] sm:$0xff]
        %v3193 = vld [vmem:[%s3177 + $0x78] sm:$0xff]
        %v3194 = vld [vmem:[%s3177 + $0x80] sm:$0xff]
        %v3195 = vld [vmem:[%s3177 + $0x88] sm:$0xff]
        %v3196 = vld [vmem:[%s3177 + $0x90] sm:$0xff]
        %v3197 = vld [vmem:[%s3177 + $0x98] sm:$0xff]
        %v3231 = vunpack.c.l.b16 %v3144
        %v3232 = vunpack.c.h.b16 %v3144
        %v3233 = vunpack.c.l.b16 %v3145
        %v3234 = vunpack.c.h.b16 %v3145
        %v3235 = vunpack.c.l.b16 %v3146
        %v3236 = vunpack.c.h.b16 %v3146
        %v3237 = vunpack.c.l.b16 %v3147
        %v3238 = vunpack.c.h.b16 %v3147
        %v3239 = vunpack.c.l.b16 %v3148
        %v3240 = vunpack.c.h.b16 %v3148
        %v3241 = vunpack.c.l.b16 %v3149
        %v3242 = vunpack.c.h.b16 %v3149
        %v3243 = vunpack.c.l.b16 %v3150
        %v3244 = vunpack.c.h.b16 %v3150
        %v3245 = vunpack.c.l.b16 %v3151
        %v3246 = vunpack.c.h.b16 %v3151
        %v3247 = vunpack.c.l.b16 %v3152
        %v3248 = vunpack.c.h.b16 %v3152
        %v3249 = vunpack.c.l.b16 %v3153
        %v3250 = vunpack.c.h.b16 %v3153
        %v3251 = vunpack.c.l.b16 %v3154
        %v3252 = vunpack.c.h.b16 %v3154
        %v3253 = vunpack.c.l.b16 %v3155
        %v3254 = vunpack.c.h.b16 %v3155
        %v3255 = vunpack.c.l.b16 %v3156
        %v3256 = vunpack.c.h.b16 %v3156
        %v3257 = vunpack.c.l.b16 %v3157
        %v3258 = vunpack.c.h.b16 %v3157
        %v3259 = vunpack.c.l.b16 %v3158
        %v3260 = vunpack.c.h.b16 %v3158
        %v3261 = vunpack.c.l.b16 %v3159
        %v3262 = vunpack.c.h.b16 %v3159
        %v3263 = vunpack.c.l.b16 %v3160
        %v3264 = vunpack.c.h.b16 %v3160
        %v3265 = vunpack.c.l.b16 %v3161
        %v3266 = vunpack.c.h.b16 %v3161
        %v3267 = vunpack.c.l.b16 %v3162
        %v3268 = vunpack.c.h.b16 %v3162
        %v3269 = vunpack.c.l.b16 %v3163
        %v3270 = vunpack.c.h.b16 %v3163
        %v3271 = vunpack.c.l.b16 %v3164
        %v3272 = vunpack.c.h.b16 %v3164
        %v3273 = vunpack.c.l.b16 %v3165
        %v3274 = vunpack.c.h.b16 %v3165
        %v3275 = vunpack.c.l.b16 %v3166
        %v3276 = vunpack.c.h.b16 %v3166
        %v3277 = vunpack.c.l.b16 %v3167
        %v3278 = vunpack.c.h.b16 %v3167
        %v3279 = vunpack.c.l.b16 %v3168
        %v3280 = vunpack.c.h.b16 %v3168
        %v3281 = vunpack.c.l.b16 %v3169
        %v3282 = vunpack.c.h.b16 %v3169
        %v3283 = vunpack.c.l.b16 %v3170
        %v3284 = vunpack.c.h.b16 %v3170
        %v3285 = vunpack.c.l.b16 %v3171
        %v3286 = vunpack.c.h.b16 %v3171
        %v3287 = vunpack.c.l.b16 %v3172
        %v3288 = vunpack.c.h.b16 %v3172
        %v3289 = vunpack.c.l.b16 %v3173
        %v3290 = vunpack.c.h.b16 %v3173
        %v3291 = vunpack.c.l.b16 %v3174
        %v3292 = vunpack.c.h.b16 %v3174
        %v3293 = vunpack.c.l.b16 %v3175
        %v3294 = vunpack.c.h.b16 %v3175
        %v3295 = vunpack.c.l.b16 %v3176
        %v3296 = vunpack.c.h.b16 %v3176
        %v3297 = vpack.c.b16 %v3233, %v3231
        %v3298 = vpack.c.b16 %v3234, %v3232
        %v3299 = vpack.c.b16 %v3237, %v3235
        %v3300 = vpack.c.b16 %v3238, %v3236
        %v3301 = vpack.c.b16 %v3241, %v3239
        %v3302 = vpack.c.b16 %v3242, %v3240
        %v3303 = vpack.c.b16 %v3245, %v3243
        %v3304 = vpack.c.b16 %v3246, %v3244
        %v3305 = vpack.c.b16 %v3249, %v3247
        %v3306 = vpack.c.b16 %v3250, %v3248
        %v3307 = vpack.c.b16 %v3253, %v3251
        %v3308 = vpack.c.b16 %v3254, %v3252
        %v3309 = vpack.c.b16 %v3257, %v3255
        %v3310 = vpack.c.b16 %v3258, %v3256
        %v3311 = vpack.c.b16 %v3261, %v3259
        %v3312 = vpack.c.b16 %v3262, %v3260
        %v3313 = vpack.c.b16 %v3265, %v3263
        %v3314 = vpack.c.b16 %v3266, %v3264
        %v3315 = vpack.c.b16 %v3269, %v3267
        %v3316 = vpack.c.b16 %v3270, %v3268
        %v3317 = vpack.c.b16 %v3273, %v3271
        %v3318 = vpack.c.b16 %v3274, %v3272
        %v3319 = vpack.c.b16 %v3277, %v3275
        %v3320 = vpack.c.b16 %v3278, %v3276
        %v3321 = vpack.c.b16 %v3281, %v3279
        %v3322 = vpack.c.b16 %v3282, %v3280
        %v3323 = vpack.c.b16 %v3285, %v3283
        %v3324 = vpack.c.b16 %v3286, %v3284
        %v3325 = vpack.c.b16 %v3289, %v3287
        %v3326 = vpack.c.b16 %v3290, %v3288
        %v3327 = vpack.c.b16 %v3293, %v3291
        %v3328 = vpack.c.b16 %v3294, %v3292
        %v3329 = vpack.c.b16 %v3295, %v3295
        %v3330 = vpack.c.b16 %v3296, %v3296
        %v3332 = vshrl.u32 %v3297, 16
        %v3334 = vrot.slane %v3332, 3
        %v3335 = vshll.u32 %v3297, 16
        %v3337 = vrot.slane %v3335, 4
        %v3338 = vor.u32 %v3334, %v3337
        %v3340 = vshrl.u32 %v3299, 16
        %v3342 = vrot.slane %v3340, 3
        %v3343 = vshll.u32 %v3299, 16
        %v3345 = vrot.slane %v3343, 4
        %v3346 = vor.u32 %v3342, %v3345
        %v3347 = vsel %vm1609, %v3338, %v3346
        %v3349 = vshrl.u32 %v3298, 16
        %v3351 = vrot.slane %v3349, 3
        %v3352 = vshll.u32 %v3298, 16
        %v3354 = vrot.slane %v3352, 4
        %v3355 = vor.u32 %v3351, %v3354
        %v3357 = vshrl.u32 %v3300, 16
        %v3359 = vrot.slane %v3357, 3
        %v3360 = vshll.u32 %v3300, 16
        %v3362 = vrot.slane %v3360, 4
        %v3363 = vor.u32 %v3359, %v3362
        %v3364 = vsel %vm1609, %v3355, %v3363
        %v3366 = vshrl.u32 %v3301, 16
        %v3368 = vrot.slane %v3366, 3
        %v3369 = vshll.u32 %v3301, 16
        %v3371 = vrot.slane %v3369, 4
        %v3372 = vor.u32 %v3368, %v3371
        %v3373 = vsel %vm1609, %v3346, %v3372
        %v3375 = vshrl.u32 %v3302, 16
        %v3377 = vrot.slane %v3375, 3
        %v3378 = vshll.u32 %v3302, 16
        %v3380 = vrot.slane %v3378, 4
        %v3381 = vor.u32 %v3377, %v3380
        %v3382 = vsel %vm1609, %v3363, %v3381
        %v3384 = vshrl.u32 %v3303, 16
        %v3386 = vrot.slane %v3384, 3
        %v3387 = vshll.u32 %v3303, 16
        %v3389 = vrot.slane %v3387, 4
        %v3390 = vor.u32 %v3386, %v3389
        %v3391 = vsel %vm1609, %v3372, %v3390
        %v3393 = vshrl.u32 %v3304, 16
        %v3395 = vrot.slane %v3393, 3
        %v3396 = vshll.u32 %v3304, 16
        %v3398 = vrot.slane %v3396, 4
        %v3399 = vor.u32 %v3395, %v3398
        %v3400 = vsel %vm1609, %v3381, %v3399
        %v3402 = vshrl.u32 %v3305, 16
        %v3404 = vrot.slane %v3402, 3
        %v3405 = vshll.u32 %v3305, 16
        %v3407 = vrot.slane %v3405, 4
        %v3408 = vor.u32 %v3404, %v3407
        %v3409 = vsel %vm1609, %v3390, %v3408
        %v3411 = vshrl.u32 %v3306, 16
        %v3413 = vrot.slane %v3411, 3
        %v3414 = vshll.u32 %v3306, 16
        %v3416 = vrot.slane %v3414, 4
        %v3417 = vor.u32 %v3413, %v3416
        %v3418 = vsel %vm1609, %v3399, %v3417
        %v3420 = vshrl.u32 %v3307, 16
        %v3422 = vrot.slane %v3420, 3
        %v3423 = vshll.u32 %v3307, 16
        %v3425 = vrot.slane %v3423, 4
        %v3426 = vor.u32 %v3422, %v3425
        %v3427 = vsel %vm1609, %v3408, %v3426
        %v3429 = vshrl.u32 %v3308, 16
        %v3431 = vrot.slane %v3429, 3
        %v3432 = vshll.u32 %v3308, 16
        %v3434 = vrot.slane %v3432, 4
        %v3435 = vor.u32 %v3431, %v3434
        %v3436 = vsel %vm1609, %v3417, %v3435
        %v3438 = vshrl.u32 %v3309, 16
        %v3440 = vrot.slane %v3438, 3
        %v3441 = vshll.u32 %v3309, 16
        %v3443 = vrot.slane %v3441, 4
        %v3444 = vor.u32 %v3440, %v3443
        %v3445 = vsel %vm1609, %v3426, %v3444
        %v3447 = vshrl.u32 %v3310, 16
        %v3449 = vrot.slane %v3447, 3
        %v3450 = vshll.u32 %v3310, 16
        %v3452 = vrot.slane %v3450, 4
        %v3453 = vor.u32 %v3449, %v3452
        %v3454 = vsel %vm1609, %v3435, %v3453
        %v3456 = vshrl.u32 %v3311, 16
        %v3458 = vrot.slane %v3456, 3
        %v3459 = vshll.u32 %v3311, 16
        %v3461 = vrot.slane %v3459, 4
        %v3462 = vor.u32 %v3458, %v3461
        %v3463 = vsel %vm1609, %v3444, %v3462
        %v3465 = vshrl.u32 %v3312, 16
        %v3467 = vrot.slane %v3465, 3
        %v3468 = vshll.u32 %v3312, 16
        %v3470 = vrot.slane %v3468, 4
        %v3471 = vor.u32 %v3467, %v3470
        %v3472 = vsel %vm1609, %v3453, %v3471
        %v3474 = vshrl.u32 %v3313, 16
        %v3476 = vrot.slane %v3474, 3
        %v3477 = vshll.u32 %v3313, 16
        %v3479 = vrot.slane %v3477, 4
        %v3480 = vor.u32 %v3476, %v3479
        %v3481 = vsel %vm1609, %v3462, %v3480
        %v3483 = vshrl.u32 %v3314, 16
        %v3485 = vrot.slane %v3483, 3
        %v3486 = vshll.u32 %v3314, 16
        %v3488 = vrot.slane %v3486, 4
        %v3489 = vor.u32 %v3485, %v3488
        %v3490 = vsel %vm1609, %v3471, %v3489
        %v3492 = vshrl.u32 %v3315, 16
        %v3494 = vrot.slane %v3492, 3
        %v3495 = vshll.u32 %v3315, 16
        %v3497 = vrot.slane %v3495, 4
        %v3498 = vor.u32 %v3494, %v3497
        %v3499 = vsel %vm1609, %v3480, %v3498
        %v3501 = vshrl.u32 %v3316, 16
        %v3503 = vrot.slane %v3501, 3
        %v3504 = vshll.u32 %v3316, 16
        %v3506 = vrot.slane %v3504, 4
        %v3507 = vor.u32 %v3503, %v3506
        %v3508 = vsel %vm1609, %v3489, %v3507
        %v3510 = vshrl.u32 %v3317, 16
        %v3512 = vrot.slane %v3510, 3
        %v3513 = vshll.u32 %v3317, 16
        %v3515 = vrot.slane %v3513, 4
        %v3516 = vor.u32 %v3512, %v3515
        %v3517 = vsel %vm1609, %v3498, %v3516
        %v3519 = vshrl.u32 %v3318, 16
        %v3521 = vrot.slane %v3519, 3
        %v3522 = vshll.u32 %v3318, 16
        %v3524 = vrot.slane %v3522, 4
        %v3525 = vor.u32 %v3521, %v3524
        %v3526 = vsel %vm1609, %v3507, %v3525
        %v3528 = vshrl.u32 %v3319, 16
        %v3530 = vrot.slane %v3528, 3
        %v3531 = vshll.u32 %v3319, 16
        %v3533 = vrot.slane %v3531, 4
        %v3534 = vor.u32 %v3530, %v3533
        %v3535 = vsel %vm1609, %v3516, %v3534
        %v3537 = vshrl.u32 %v3320, 16
        %v3539 = vrot.slane %v3537, 3
        %v3540 = vshll.u32 %v3320, 16
        %v3542 = vrot.slane %v3540, 4
        %v3543 = vor.u32 %v3539, %v3542
        %v3544 = vsel %vm1609, %v3525, %v3543
        %v3546 = vshrl.u32 %v3321, 16
        %v3548 = vrot.slane %v3546, 3
        %v3549 = vshll.u32 %v3321, 16
        %v3551 = vrot.slane %v3549, 4
        %v3552 = vor.u32 %v3548, %v3551
        %v3553 = vsel %vm1609, %v3534, %v3552
        %v3555 = vshrl.u32 %v3322, 16
        %v3557 = vrot.slane %v3555, 3
        %v3558 = vshll.u32 %v3322, 16
        %v3560 = vrot.slane %v3558, 4
        %v3561 = vor.u32 %v3557, %v3560
        %v3562 = vsel %vm1609, %v3543, %v3561
        %v3564 = vshrl.u32 %v3323, 16
        %v3566 = vrot.slane %v3564, 3
        %v3567 = vshll.u32 %v3323, 16
        %v3569 = vrot.slane %v3567, 4
        %v3570 = vor.u32 %v3566, %v3569
        %v3571 = vsel %vm1609, %v3552, %v3570
        %v3573 = vshrl.u32 %v3324, 16
        %v3575 = vrot.slane %v3573, 3
        %v3576 = vshll.u32 %v3324, 16
        %v3578 = vrot.slane %v3576, 4
        %v3579 = vor.u32 %v3575, %v3578
        %v3580 = vsel %vm1609, %v3561, %v3579
        %v3582 = vshrl.u32 %v3325, 16
        %v3584 = vrot.slane %v3582, 3
        %v3585 = vshll.u32 %v3325, 16
        %v3587 = vrot.slane %v3585, 4
        %v3588 = vor.u32 %v3584, %v3587
        %v3589 = vsel %vm1609, %v3570, %v3588
        %v3591 = vshrl.u32 %v3326, 16
        %v3593 = vrot.slane %v3591, 3
        %v3594 = vshll.u32 %v3326, 16
        %v3596 = vrot.slane %v3594, 4
        %v3597 = vor.u32 %v3593, %v3596
        %v3598 = vsel %vm1609, %v3579, %v3597
        %v3600 = vshrl.u32 %v3327, 16
        %v3602 = vrot.slane %v3600, 3
        %v3603 = vshll.u32 %v3327, 16
        %v3605 = vrot.slane %v3603, 4
        %v3606 = vor.u32 %v3602, %v3605
        %v3607 = vsel %vm1609, %v3588, %v3606
        %v3609 = vshrl.u32 %v3328, 16
        %v3611 = vrot.slane %v3609, 3
        %v3612 = vshll.u32 %v3328, 16
        %v3614 = vrot.slane %v3612, 4
        %v3615 = vor.u32 %v3611, %v3614
        %v3616 = vsel %vm1609, %v3597, %v3615
        %v3618 = vshrl.u32 %v3329, 16
        %v3620 = vrot.slane %v3618, 3
        %v3621 = vshll.u32 %v3329, 16
        %v3623 = vrot.slane %v3621, 4
        %v3624 = vor.u32 %v3620, %v3623
        %v3625 = vsel %vm1609, %v3606, %v3624
        %v3627 = vshrl.u32 %v3330, 16
        %v3629 = vrot.slane %v3627, 3
        %v3630 = vshll.u32 %v3330, 16
        %v3632 = vrot.slane %v3630, 4
        %v3633 = vor.u32 %v3629, %v3632
        %v3634 = vsel %vm1609, %v3615, %v3633
        %v3671 = vunpack.c.l.b16 %v3178
        %v3672 = vunpack.c.h.b16 %v3178
        %v3673 = vunpack.c.l.b16 %v3179
        %v3674 = vunpack.c.h.b16 %v3179
        %v3675 = vunpack.c.l.b16 %v3180
        %v3676 = vunpack.c.h.b16 %v3180
        %v3677 = vunpack.c.l.b16 %v3181
        %v3678 = vunpack.c.h.b16 %v3181
        %v3679 = vunpack.c.l.b16 %v3182
        %v3680 = vunpack.c.h.b16 %v3182
        %v3681 = vunpack.c.l.b16 %v3183
        %v3682 = vunpack.c.h.b16 %v3183
        %v3683 = vunpack.c.l.b16 %v3184
        %v3684 = vunpack.c.h.b16 %v3184
        %v3685 = vunpack.c.l.b16 %v3185
        %v3686 = vunpack.c.h.b16 %v3185
        %v3687 = vunpack.c.l.b16 %v3186
        %v3688 = vunpack.c.h.b16 %v3186
        %v3689 = vunpack.c.l.b16 %v3187
        %v3690 = vunpack.c.h.b16 %v3187
        %v3691 = vunpack.c.l.b16 %v3188
        %v3692 = vunpack.c.h.b16 %v3188
        %v3693 = vunpack.c.l.b16 %v3189
        %v3694 = vunpack.c.h.b16 %v3189
        %v3695 = vunpack.c.l.b16 %v3190
        %v3696 = vunpack.c.h.b16 %v3190
        %v3697 = vunpack.c.l.b16 %v3191
        %v3698 = vunpack.c.h.b16 %v3191
        %v3699 = vunpack.c.l.b16 %v3192
        %v3700 = vunpack.c.h.b16 %v3192
        %v3701 = vunpack.c.l.b16 %v3193
        %v3702 = vunpack.c.h.b16 %v3193
        %v3703 = vunpack.c.l.b16 %v3194
        %v3704 = vunpack.c.h.b16 %v3194
        %v3705 = vunpack.c.l.b16 %v3195
        %v3706 = vunpack.c.h.b16 %v3195
        %v3707 = vunpack.c.l.b16 %v3196
        %v3708 = vunpack.c.h.b16 %v3196
        %v3709 = vunpack.c.l.b16 %v3197
        %v3710 = vunpack.c.h.b16 %v3197
        %v3711 = vpack.c.b16 %v3673, %v3671
        %v3712 = vpack.c.b16 %v3674, %v3672
        %v3713 = vpack.c.b16 %v3677, %v3675
        %v3714 = vpack.c.b16 %v3678, %v3676
        %v3715 = vpack.c.b16 %v3681, %v3679
        %v3716 = vpack.c.b16 %v3682, %v3680
        %v3717 = vpack.c.b16 %v3685, %v3683
        %v3718 = vpack.c.b16 %v3686, %v3684
        %v3719 = vpack.c.b16 %v3689, %v3687
        %v3720 = vpack.c.b16 %v3690, %v3688
        %v3721 = vpack.c.b16 %v3693, %v3691
        %v3722 = vpack.c.b16 %v3694, %v3692
        %v3723 = vpack.c.b16 %v3697, %v3695
        %v3724 = vpack.c.b16 %v3698, %v3696
        %v3725 = vpack.c.b16 %v3701, %v3699
        %v3726 = vpack.c.b16 %v3702, %v3700
        %v3727 = vpack.c.b16 %v3705, %v3703
        %v3728 = vpack.c.b16 %v3706, %v3704
        %v3729 = vpack.c.b16 %v3709, %v3707
        %v3730 = vpack.c.b16 %v3710, %v3708
        %v3752 = vsel %vm1330, %v3364, 0
        %v3755 = vsel %vm1330, %v3382, 0
        %v3758 = vsel %vm1330, %v3400, 0
        %v3761 = vsel %vm1330, %v3418, 0
        %v3764 = vsel %vm1330, %v3436, 0
        %v3767 = vsel %vm1330, %v3454, 0
        %v3770 = vsel %vm1330, %v3472, 0
        %v3773 = vsel %vm1330, %v3490, 0
        %v3776 = vsel %vm1330, %v3508, 0
        %v3779 = vsel %vm1330, %v3526, 0
        %v3782 = vsel %vm1330, %v3544, 0
        %v3785 = vsel %vm1330, %v3562, 0
        %v3788 = vsel %vm1330, %v3580, 0
        %v3791 = vsel %vm1330, %v3598, 0
        %v3794 = vsel %vm1330, %v3616, 0
        %v3797 = vsel %vm1330, %v3634, 0
        %3799 = vmatprep.subr.bf16.mxu0 %v3726
        %3800 = vmatpush1.bf16.msra.mxu0 %v3725
        %3801 = vmatprep.subr.bf16.mxu0 %v3724
        %3802 = vmatpush1.bf16.msra.mxu0 %v3723
        %3803 = vmatprep.subr.bf16.mxu0 %v3722
        %3804 = vmatpush1.bf16.msra.mxu0 %v3721
        %3805 = vmatprep.subr.bf16.mxu0 %v3720
        %3806 = vmatpush1.bf16.msra.mxu0 %v3719
        %3807 = vmatprep.subr.bf16.mxu0 %v3718
        %3808 = vmatpush1.bf16.msra.mxu0 %v3717
        %3809 = vmatprep.subr.bf16.mxu0 %v3716
        %3810 = vmatpush1.bf16.msra.mxu0 %v3715
        %3811 = vmatprep.subr.bf16.mxu0 %v3714
        %3812 = vmatpush1.bf16.msra.mxu0 %v3713
        %3813 = vmatprep.subr.bf16.mxu0 %v3712
        %3814 = vmatpush1.bf16.msra.mxu0 %v3711
        %3815 = vmatprep.subr.bf16.mxu0 0
        %3816 = vmatpush2.bf16.msra.mxu0 0
        %3817 = vmatprep.subr.bf16.mxu0 0
        %3818 = vmatpush2.bf16.msra.mxu0 0
        %3819 = vmatprep.subr.bf16.mxu0 0
        %3820 = vmatpush2.bf16.msra.mxu0 0
        %3821 = vmatprep.subr.bf16.mxu0 0
        %3822 = vmatpush2.bf16.msra.mxu0 0
        %3823 = vmatprep.subr.bf16.mxu0 0
        %3824 = vmatpush2.bf16.msra.mxu0 0
        %3825 = vmatprep.subr.bf16.mxu0 0
        %3826 = vmatpush2.bf16.msra.mxu0 0
        %3827 = vmatprep.subr.bf16.mxu0 %v3730
        %3828 = vmatpush2.bf16.msra.mxu0 %v3729
        %3829 = vmatprep.subr.bf16.mxu0 %v3728
        %3830 = vmatpush2.bf16.msra.mxu0 %v3727
        %3831 = vmatprep.mubr.bf16.mxu0 %v3752
        %3832 = vmatmul.mubr.bf16.gmra.mxu0 %v3347
        %v3833 = vpop.f32.mrf.mxu0
        %v3834 = vadd.f32 0.0, %v3833
        %v3835 = vpop.f32.mrf.mxu0
        %v3836 = vadd.f32 0.0, %v3835
        %v3837 = vpop.f32.mrf.mxu0
        %v3838 = vadd.f32 0.0, %v3837
        %v3839 = vpop.f32.mrf.mxu0
        %v3840 = vadd.f32 0.0, %v3839
        %3841 = vmatprep.mubr.bf16.mxu0 %v3755
        %3842 = vmatmul.mubr.bf16.gmra.mxu0 %v3373
        %v3843 = vpop.f32.mrf.mxu0
        %v3844 = vadd.f32 0.0, %v3843
        %v3845 = vpop.f32.mrf.mxu0
        %v3846 = vadd.f32 0.0, %v3845
        %v3847 = vpop.f32.mrf.mxu0
        %v3848 = vadd.f32 0.0, %v3847
        %v3849 = vpop.f32.mrf.mxu0
        %v3850 = vadd.f32 0.0, %v3849
        %3851 = vmatprep.mubr.bf16.mxu0 %v3758
        %3852 = vmatmul.mubr.bf16.gmra.mxu0 %v3391
        %v3853 = vpop.f32.mrf.mxu0
        %v3854 = vadd.f32 0.0, %v3853
        %v3855 = vpop.f32.mrf.mxu0
        %v3856 = vadd.f32 0.0, %v3855
        %v3857 = vpop.f32.mrf.mxu0
        %v3858 = vadd.f32 0.0, %v3857
        %v3859 = vpop.f32.mrf.mxu0
        %v3860 = vadd.f32 0.0, %v3859
        %3861 = vmatprep.mubr.bf16.mxu0 %v3761
        %3862 = vmatmul.mubr.bf16.gmra.mxu0 %v3409
        %v3863 = vpop.f32.mrf.mxu0
        %v3864 = vadd.f32 0.0, %v3863
        %v3865 = vpop.f32.mrf.mxu0
        %v3866 = vadd.f32 0.0, %v3865
        %v3867 = vpop.f32.mrf.mxu0
        %v3868 = vadd.f32 0.0, %v3867
        %v3869 = vpop.f32.mrf.mxu0
        %v3870 = vadd.f32 0.0, %v3869
        %3871 = vmatprep.mubr.bf16.mxu0 %v3764
        %3872 = vmatmul.mubr.bf16.gmra.mxu0 %v3427
        %v3873 = vpop.f32.mrf.mxu0
        %v3874 = vadd.f32 0.0, %v3873
        %v3875 = vpop.f32.mrf.mxu0
        %v3876 = vadd.f32 0.0, %v3875
        %v3877 = vpop.f32.mrf.mxu0
        %v3878 = vadd.f32 0.0, %v3877
        %v3879 = vpop.f32.mrf.mxu0
        %v3880 = vadd.f32 0.0, %v3879
        %3881 = vmatprep.mubr.bf16.mxu0 %v3767
        %3882 = vmatmul.mubr.bf16.gmra.mxu0 %v3445
        %v3883 = vpop.f32.mrf.mxu0
        %v3884 = vadd.f32 0.0, %v3883
        %v3885 = vpop.f32.mrf.mxu0
        %v3886 = vadd.f32 0.0, %v3885
        %v3887 = vpop.f32.mrf.mxu0
        %v3888 = vadd.f32 0.0, %v3887
        %v3889 = vpop.f32.mrf.mxu0
        %v3890 = vadd.f32 0.0, %v3889
        %3891 = vmatprep.mubr.bf16.mxu0 %v3770
        %3892 = vmatmul.mubr.bf16.gmra.mxu0 %v3463
        %v3893 = vpop.f32.mrf.mxu0
        %v3894 = vadd.f32 0.0, %v3893
        %v3895 = vpop.f32.mrf.mxu0
        %v3896 = vadd.f32 0.0, %v3895
        %v3897 = vpop.f32.mrf.mxu0
        %v3898 = vadd.f32 0.0, %v3897
        %v3899 = vpop.f32.mrf.mxu0
        %v3900 = vadd.f32 0.0, %v3899
        %3901 = vmatprep.mubr.bf16.mxu0 %v3773
        %3902 = vmatmul.mubr.bf16.gmra.mxu0 %v3481
        %v3903 = vpop.f32.mrf.mxu0
        %v3904 = vadd.f32 0.0, %v3903
        %v3905 = vpop.f32.mrf.mxu0
        %v3906 = vadd.f32 0.0, %v3905
        %v3907 = vpop.f32.mrf.mxu0
        %v3908 = vadd.f32 0.0, %v3907
        %v3909 = vpop.f32.mrf.mxu0
        %v3910 = vadd.f32 0.0, %v3909
        %3911 = vmatprep.mubr.bf16.mxu0 %v3776
        %3912 = vmatmul.mubr.bf16.gmra.mxu0 %v3499
        %v3913 = vpop.f32.mrf.mxu0
        %v3914 = vadd.f32 0.0, %v3913
        %v3915 = vpop.f32.mrf.mxu0
        %v3916 = vadd.f32 0.0, %v3915
        %v3917 = vpop.f32.mrf.mxu0
        %v3918 = vadd.f32 0.0, %v3917
        %v3919 = vpop.f32.mrf.mxu0
        %v3920 = vadd.f32 0.0, %v3919
        %3921 = vmatprep.mubr.bf16.mxu0 %v3779
        %3922 = vmatmul.mubr.bf16.gmra.mxu0 %v3517
        %v3923 = vpop.f32.mrf.mxu0
        %v3924 = vadd.f32 0.0, %v3923
        %v3925 = vpop.f32.mrf.mxu0
        %v3926 = vadd.f32 0.0, %v3925
        %v3927 = vpop.f32.mrf.mxu0
        %v3928 = vadd.f32 0.0, %v3927
        %v3929 = vpop.f32.mrf.mxu0
        %v3930 = vadd.f32 0.0, %v3929
        %3931 = vmatprep.mubr.bf16.mxu0 %v3782
        %3932 = vmatmul.mubr.bf16.gmra.mxu0 %v3535
        %v3933 = vpop.f32.mrf.mxu0
        %v3934 = vadd.f32 0.0, %v3933
        %v3935 = vpop.f32.mrf.mxu0
        %v3936 = vadd.f32 0.0, %v3935
        %v3937 = vpop.f32.mrf.mxu0
        %v3938 = vadd.f32 0.0, %v3937
        %v3939 = vpop.f32.mrf.mxu0
        %v3940 = vadd.f32 0.0, %v3939
        %3941 = vmatprep.mubr.bf16.mxu0 %v3785
        %3942 = vmatmul.mubr.bf16.gmra.mxu0 %v3553
        %v3943 = vpop.f32.mrf.mxu0
        %v3944 = vadd.f32 0.0, %v3943
        %v3945 = vpop.f32.mrf.mxu0
        %v3946 = vadd.f32 0.0, %v3945
        %v3947 = vpop.f32.mrf.mxu0
        %v3948 = vadd.f32 0.0, %v3947
        %v3949 = vpop.f32.mrf.mxu0
        %v3950 = vadd.f32 0.0, %v3949
        %3951 = vmatprep.mubr.bf16.mxu0 %v3788
        %3952 = vmatmul.mubr.bf16.gmra.mxu0 %v3571
        %v3953 = vpop.f32.mrf.mxu0
        %v3954 = vadd.f32 0.0, %v3953
        %v3955 = vpop.f32.mrf.mxu0
        %v3956 = vadd.f32 0.0, %v3955
        %v3957 = vpop.f32.mrf.mxu0
        %v3958 = vadd.f32 0.0, %v3957
        %v3959 = vpop.f32.mrf.mxu0
        %v3960 = vadd.f32 0.0, %v3959
        %3961 = vmatprep.mubr.bf16.mxu0 %v3791
        %3962 = vmatmul.mubr.bf16.gmra.mxu0 %v3589
        %v3963 = vpop.f32.mrf.mxu0
        %v3964 = vadd.f32 0.0, %v3963
        %v3965 = vpop.f32.mrf.mxu0
        %v3966 = vadd.f32 0.0, %v3965
        %v3967 = vpop.f32.mrf.mxu0
        %v3968 = vadd.f32 0.0, %v3967
        %v3969 = vpop.f32.mrf.mxu0
        %v3970 = vadd.f32 0.0, %v3969
        %3971 = vmatprep.mubr.bf16.mxu0 %v3794
        %3972 = vmatmul.mubr.bf16.gmra.mxu0 %v3607
        %v3973 = vpop.f32.mrf.mxu0
        %v3974 = vadd.f32 0.0, %v3973
        %v3975 = vpop.f32.mrf.mxu0
        %v3976 = vadd.f32 0.0, %v3975
        %v3977 = vpop.f32.mrf.mxu0
        %v3978 = vadd.f32 0.0, %v3977
        %v3979 = vpop.f32.mrf.mxu0
        %v3980 = vadd.f32 0.0, %v3979
        %3981 = vmatprep.mubr.bf16.mxu0 %v3797
        %3982 = vmatmul.mubr.bf16.gmra.mxu0 %v3625
        %v3983 = vpop.f32.mrf.mxu0
        %v3984 = vadd.f32 0.0, %v3983
        %v3985 = vpop.f32.mrf.mxu0
        %v3986 = vadd.f32 0.0, %v3985
        %v3987 = vpop.f32.mrf.mxu0
        %v3988 = vadd.f32 0.0, %v3987
        %v3989 = vpop.f32.mrf.mxu0
        %v3990 = vadd.f32 0.0, %v3989
        %3991 = vdwg.mxu0
        %v3992 = vadd.f32 %v3080, %v3834
        %v3993 = vadd.f32 %v3081, %v3836
        %v3994 = vadd.f32 %v3082, %v3838
        %v3995 = vadd.f32 %v3083, %v3840
        %v3996 = vadd.f32 %v3084, %v3844
        %v3997 = vadd.f32 %v3085, %v3846
        %v3998 = vadd.f32 %v3086, %v3848
        %v3999 = vadd.f32 %v3087, %v3850
        %v4000 = vadd.f32 %v3088, %v3854
        %v4001 = vadd.f32 %v3089, %v3856
        %v4002 = vadd.f32 %v3090, %v3858
        %v4003 = vadd.f32 %v3091, %v3860
        %v4004 = vadd.f32 %v3092, %v3864
        %v4005 = vadd.f32 %v3093, %v3866
        %v4006 = vadd.f32 %v3094, %v3868
        %v4007 = vadd.f32 %v3095, %v3870
        %v4008 = vadd.f32 %v3096, %v3874
        %v4009 = vadd.f32 %v3097, %v3876
        %v4010 = vadd.f32 %v3098, %v3878
        %v4011 = vadd.f32 %v3099, %v3880
        %v4012 = vadd.f32 %v3100, %v3884
        %v4013 = vadd.f32 %v3101, %v3886
        %v4014 = vadd.f32 %v3102, %v3888
        %v4015 = vadd.f32 %v3103, %v3890
        %v4016 = vadd.f32 %v3104, %v3894
        %v4017 = vadd.f32 %v3105, %v3896
        %v4018 = vadd.f32 %v3106, %v3898
        %v4019 = vadd.f32 %v3107, %v3900
        %v4020 = vadd.f32 %v3108, %v3904
        %v4021 = vadd.f32 %v3109, %v3906
        %v4022 = vadd.f32 %v3110, %v3908
        %v4023 = vadd.f32 %v3111, %v3910
        %v4024 = vadd.f32 %v3112, %v3914
        %v4025 = vadd.f32 %v3113, %v3916
        %v4026 = vadd.f32 %v3114, %v3918
        %v4027 = vadd.f32 %v3115, %v3920
        %v4028 = vadd.f32 %v3116, %v3924
        %v4029 = vadd.f32 %v3117, %v3926
        %v4030 = vadd.f32 %v3118, %v3928
        %v4031 = vadd.f32 %v3119, %v3930
        %v4032 = vadd.f32 %v3120, %v3934
        %v4033 = vadd.f32 %v3121, %v3936
        %v4034 = vadd.f32 %v3122, %v3938
        %v4035 = vadd.f32 %v3123, %v3940
        %v4036 = vadd.f32 %v3124, %v3944
        %v4037 = vadd.f32 %v3125, %v3946
        %v4038 = vadd.f32 %v3126, %v3948
        %v4039 = vadd.f32 %v3127, %v3950
        %v4040 = vadd.f32 %v3128, %v3954
        %v4041 = vadd.f32 %v3129, %v3956
        %v4042 = vadd.f32 %v3130, %v3958
        %v4043 = vadd.f32 %v3131, %v3960
        %v4044 = vadd.f32 %v3132, %v3964
        %v4045 = vadd.f32 %v3133, %v3966
        %v4046 = vadd.f32 %v3134, %v3968
        %v4047 = vadd.f32 %v3135, %v3970
        %v4048 = vadd.f32 %v3136, %v3974
        %v4049 = vadd.f32 %v3137, %v3976
        %v4050 = vadd.f32 %v3138, %v3978
        %v4051 = vadd.f32 %v3139, %v3980
        %v4052 = vadd.f32 %v3140, %v3984
        %v4053 = vadd.f32 %v3141, %v3986
        %v4054 = vadd.f32 %v3142, %v3988
        %v4055 = vadd.f32 %v3143, %v3990
        %s4056 = scalar_lea.vmem %s967, 640 [#allocation2]
        %v4057 = vld [vmem:[%s4056] sm:$0xff]
        %v4058 = vld [vmem:[%s4056 + $0x8] sm:$0xff]
        %v4059 = vld [vmem:[%s4056 + $0x10] sm:$0xff]
        %v4060 = vld [vmem:[%s4056 + $0x18] sm:$0xff]
        %v4061 = vld [vmem:[%s4056 + $0x20] sm:$0xff]
        %v4062 = vld [vmem:[%s4056 + $0x28] sm:$0xff]
        %v4063 = vld [vmem:[%s4056 + $0x30] sm:$0xff]
        %v4064 = vld [vmem:[%s4056 + $0x38] sm:$0xff]
        %v4065 = vld [vmem:[%s4056 + $0x40] sm:$0xff]
        %v4066 = vld [vmem:[%s4056 + $0x48] sm:$0xff]
        %v4067 = vld [vmem:[%s4056 + $0x50] sm:$0xff]
        %v4068 = vld [vmem:[%s4056 + $0x58] sm:$0xff]
        %v4069 = vld [vmem:[%s4056 + $0x60] sm:$0xff]
        %v4070 = vld [vmem:[%s4056 + $0x68] sm:$0xff]
        %v4071 = vld [vmem:[%s4056 + $0x70] sm:$0xff]
        %v4072 = vld [vmem:[%s4056 + $0x78] sm:$0xff]
        %v4073 = vld [vmem:[%s4056 + $0x80] sm:$0xff]
        %v4074 = vld [vmem:[%s4056 + $0x88] sm:$0xff]
        %v4075 = vld [vmem:[%s4056 + $0x90] sm:$0xff]
        %v4076 = vld [vmem:[%s4056 + $0x98] sm:$0xff]
        %v4077 = vpack.c.b16 %v3235, %v3233
        %v4078 = vpack.c.b16 %v3236, %v3234
        %v4079 = vpack.c.b16 %v3239, %v3237
        %v4080 = vpack.c.b16 %v3240, %v3238
        %v4081 = vpack.c.b16 %v3243, %v3241
        %v4082 = vpack.c.b16 %v3244, %v3242
        %v4083 = vpack.c.b16 %v3247, %v3245
        %v4084 = vpack.c.b16 %v3248, %v3246
        %v4085 = vpack.c.b16 %v3251, %v3249
        %v4086 = vpack.c.b16 %v3252, %v3250
        %v4087 = vpack.c.b16 %v3255, %v3253
        %v4088 = vpack.c.b16 %v3256, %v3254
        %v4089 = vpack.c.b16 %v3259, %v3257
        %v4090 = vpack.c.b16 %v3260, %v3258
        %v4091 = vpack.c.b16 %v3263, %v3261
        %v4092 = vpack.c.b16 %v3264, %v3262
        %v4093 = vpack.c.b16 %v3267, %v3265
        %v4094 = vpack.c.b16 %v3268, %v3266
        %v4095 = vpack.c.b16 %v3271, %v3269
        %v4096 = vpack.c.b16 %v3272, %v3270
        %v4097 = vpack.c.b16 %v3275, %v3273
        %v4098 = vpack.c.b16 %v3276, %v3274
        %v4099 = vpack.c.b16 %v3279, %v3277
        %v4100 = vpack.c.b16 %v3280, %v3278
        %v4101 = vpack.c.b16 %v3283, %v3281
        %v4102 = vpack.c.b16 %v3284, %v3282
        %v4103 = vpack.c.b16 %v3287, %v3285
        %v4104 = vpack.c.b16 %v3288, %v3286
        %v4105 = vpack.c.b16 %v3291, %v3289
        %v4106 = vpack.c.b16 %v3292, %v3290
        %v4107 = vpack.c.b16 %v3295, %v3293
        %v4108 = vpack.c.b16 %v3296, %v3294
        %v4145 = vunpack.c.l.b16 %v4057
        %v4146 = vunpack.c.h.b16 %v4057
        %v4147 = vunpack.c.l.b16 %v4058
        %v4148 = vunpack.c.h.b16 %v4058
        %v4149 = vunpack.c.l.b16 %v4059
        %v4150 = vunpack.c.h.b16 %v4059
        %v4151 = vunpack.c.l.b16 %v4060
        %v4152 = vunpack.c.h.b16 %v4060
        %v4153 = vunpack.c.l.b16 %v4061
        %v4154 = vunpack.c.h.b16 %v4061
        %v4155 = vunpack.c.l.b16 %v4062
        %v4156 = vunpack.c.h.b16 %v4062
        %v4157 = vunpack.c.l.b16 %v4063
        %v4158 = vunpack.c.h.b16 %v4063
        %v4159 = vunpack.c.l.b16 %v4064
        %v4160 = vunpack.c.h.b16 %v4064
        %v4161 = vunpack.c.l.b16 %v4065
        %v4162 = vunpack.c.h.b16 %v4065
        %v4163 = vunpack.c.l.b16 %v4066
        %v4164 = vunpack.c.h.b16 %v4066
        %v4165 = vunpack.c.l.b16 %v4067
        %v4166 = vunpack.c.h.b16 %v4067
        %v4167 = vunpack.c.l.b16 %v4068
        %v4168 = vunpack.c.h.b16 %v4068
        %v4169 = vunpack.c.l.b16 %v4069
        %v4170 = vunpack.c.h.b16 %v4069
        %v4171 = vunpack.c.l.b16 %v4070
        %v4172 = vunpack.c.h.b16 %v4070
        %v4173 = vunpack.c.l.b16 %v4071
        %v4174 = vunpack.c.h.b16 %v4071
        %v4175 = vunpack.c.l.b16 %v4072
        %v4176 = vunpack.c.h.b16 %v4072
        %v4177 = vunpack.c.l.b16 %v4073
        %v4178 = vunpack.c.h.b16 %v4073
        %v4179 = vunpack.c.l.b16 %v4074
        %v4180 = vunpack.c.h.b16 %v4074
        %v4181 = vunpack.c.l.b16 %v4075
        %v4182 = vunpack.c.h.b16 %v4075
        %v4183 = vunpack.c.l.b16 %v4076
        %v4184 = vunpack.c.h.b16 %v4076
        %v4185 = vpack.c.b16 %v4147, %v4145
        %v4186 = vpack.c.b16 %v4148, %v4146
        %v4187 = vpack.c.b16 %v4151, %v4149
        %v4188 = vpack.c.b16 %v4152, %v4150
        %v4189 = vpack.c.b16 %v4155, %v4153
        %v4190 = vpack.c.b16 %v4156, %v4154
        %v4191 = vpack.c.b16 %v4159, %v4157
        %v4192 = vpack.c.b16 %v4160, %v4158
        %v4193 = vpack.c.b16 %v4163, %v4161
        %v4194 = vpack.c.b16 %v4164, %v4162
        %v4195 = vpack.c.b16 %v4167, %v4165
        %v4196 = vpack.c.b16 %v4168, %v4166
        %v4197 = vpack.c.b16 %v4171, %v4169
        %v4198 = vpack.c.b16 %v4172, %v4170
        %v4199 = vpack.c.b16 %v4175, %v4173
        %v4200 = vpack.c.b16 %v4176, %v4174
        %v4201 = vpack.c.b16 %v4179, %v4177
        %v4202 = vpack.c.b16 %v4180, %v4178
        %v4203 = vpack.c.b16 %v4183, %v4181
        %v4204 = vpack.c.b16 %v4184, %v4182
        %v4226 = vsel %vm1330, %v4078, 0
        %v4229 = vsel %vm1330, %v4080, 0
        %v4232 = vsel %vm1330, %v4082, 0
        %v4235 = vsel %vm1330, %v4084, 0
        %v4238 = vsel %vm1330, %v4086, 0
        %v4241 = vsel %vm1330, %v4088, 0
        %v4244 = vsel %vm1330, %v4090, 0
        %v4247 = vsel %vm1330, %v4092, 0
        %v4250 = vsel %vm1330, %v4094, 0
        %v4253 = vsel %vm1330, %v4096, 0
        %v4256 = vsel %vm1330, %v4098, 0
        %v4259 = vsel %vm1330, %v4100, 0
        %v4262 = vsel %vm1330, %v4102, 0
        %v4265 = vsel %vm1330, %v4104, 0
        %v4268 = vsel %vm1330, %v4106, 0
        %v4271 = vsel %vm1330, %v4108, 0
        %4273 = vmatprep.subr.bf16.mxu0 %v4200
        %4274 = vmatpush1.bf16.msra.mxu0 %v4199
        %4275 = vmatprep.subr.bf16.mxu0 %v4198
        %4276 = vmatpush1.bf16.msra.mxu0 %v4197
        %4277 = vmatprep.subr.bf16.mxu0 %v4196
        %4278 = vmatpush1.bf16.msra.mxu0 %v4195
        %4279 = vmatprep.subr.bf16.mxu0 %v4194
        %4280 = vmatpush1.bf16.msra.mxu0 %v4193
        %4281 = vmatprep.subr.bf16.mxu0 %v4192
        %4282 = vmatpush1.bf16.msra.mxu0 %v4191
        %4283 = vmatprep.subr.bf16.mxu0 %v4190
        %4284 = vmatpush1.bf16.msra.mxu0 %v4189
        %4285 = vmatprep.subr.bf16.mxu0 %v4188
        %4286 = vmatpush1.bf16.msra.mxu0 %v4187
        %4287 = vmatprep.subr.bf16.mxu0 %v4186
        %4288 = vmatpush1.bf16.msra.mxu0 %v4185
        %4289 = vmatprep.subr.bf16.mxu0 0
        %4290 = vmatpush2.bf16.msra.mxu0 0
        %4291 = vmatprep.subr.bf16.mxu0 0
        %4292 = vmatpush2.bf16.msra.mxu0 0
        %4293 = vmatprep.subr.bf16.mxu0 0
        %4294 = vmatpush2.bf16.msra.mxu0 0
        %4295 = vmatprep.subr.bf16.mxu0 0
        %4296 = vmatpush2.bf16.msra.mxu0 0
        %4297 = vmatprep.subr.bf16.mxu0 0
        %4298 = vmatpush2.bf16.msra.mxu0 0
        %4299 = vmatprep.subr.bf16.mxu0 0
        %4300 = vmatpush2.bf16.msra.mxu0 0
        %4301 = vmatprep.subr.bf16.mxu0 %v4204
        %4302 = vmatpush2.bf16.msra.mxu0 %v4203
        %4303 = vmatprep.subr.bf16.mxu0 %v4202
        %4304 = vmatpush2.bf16.msra.mxu0 %v4201
        %4305 = vmatprep.mubr.bf16.mxu0 %v4226
        %4306 = vmatmul.mubr.bf16.gmra.mxu0 %v4077
        %v4307 = vpop.f32.mrf.mxu0
        %v4308 = vadd.f32 0.0, %v4307
        %v4309 = vpop.f32.mrf.mxu0
        %v4310 = vadd.f32 0.0, %v4309
        %v4311 = vpop.f32.mrf.mxu0
        %v4312 = vadd.f32 0.0, %v4311
        %v4313 = vpop.f32.mrf.mxu0
        %v4314 = vadd.f32 0.0, %v4313
        %4315 = vmatprep.mubr.bf16.mxu0 %v4229
        %4316 = vmatmul.mubr.bf16.gmra.mxu0 %v4079
        %v4317 = vpop.f32.mrf.mxu0
        %v4318 = vadd.f32 0.0, %v4317
        %v4319 = vpop.f32.mrf.mxu0
        %v4320 = vadd.f32 0.0, %v4319
        %v4321 = vpop.f32.mrf.mxu0
        %v4322 = vadd.f32 0.0, %v4321
        %v4323 = vpop.f32.mrf.mxu0
        %v4324 = vadd.f32 0.0, %v4323
        %4325 = vmatprep.mubr.bf16.mxu0 %v4232
        %4326 = vmatmul.mubr.bf16.gmra.mxu0 %v4081
        %v4327 = vpop.f32.mrf.mxu0
        %v4328 = vadd.f32 0.0, %v4327
        %v4329 = vpop.f32.mrf.mxu0
        %v4330 = vadd.f32 0.0, %v4329
        %v4331 = vpop.f32.mrf.mxu0
        %v4332 = vadd.f32 0.0, %v4331
        %v4333 = vpop.f32.mrf.mxu0
        %v4334 = vadd.f32 0.0, %v4333
        %4335 = vmatprep.mubr.bf16.mxu0 %v4235
        %4336 = vmatmul.mubr.bf16.gmra.mxu0 %v4083
        %v4337 = vpop.f32.mrf.mxu0
        %v4338 = vadd.f32 0.0, %v4337
        %v4339 = vpop.f32.mrf.mxu0
        %v4340 = vadd.f32 0.0, %v4339
        %v4341 = vpop.f32.mrf.mxu0
        %v4342 = vadd.f32 0.0, %v4341
        %v4343 = vpop.f32.mrf.mxu0
        %v4344 = vadd.f32 0.0, %v4343
        %4345 = vmatprep.mubr.bf16.mxu0 %v4238
        %4346 = vmatmul.mubr.bf16.gmra.mxu0 %v4085
        %v4347 = vpop.f32.mrf.mxu0
        %v4348 = vadd.f32 0.0, %v4347
        %v4349 = vpop.f32.mrf.mxu0
        %v4350 = vadd.f32 0.0, %v4349
        %v4351 = vpop.f32.mrf.mxu0
        %v4352 = vadd.f32 0.0, %v4351
        %v4353 = vpop.f32.mrf.mxu0
        %v4354 = vadd.f32 0.0, %v4353
        %4355 = vmatprep.mubr.bf16.mxu0 %v4241
        %4356 = vmatmul.mubr.bf16.gmra.mxu0 %v4087
        %v4357 = vpop.f32.mrf.mxu0
        %v4358 = vadd.f32 0.0, %v4357
        %v4359 = vpop.f32.mrf.mxu0
        %v4360 = vadd.f32 0.0, %v4359
        %v4361 = vpop.f32.mrf.mxu0
        %v4362 = vadd.f32 0.0, %v4361
        %v4363 = vpop.f32.mrf.mxu0
        %v4364 = vadd.f32 0.0, %v4363
        %4365 = vmatprep.mubr.bf16.mxu0 %v4244
        %4366 = vmatmul.mubr.bf16.gmra.mxu0 %v4089
        %v4367 = vpop.f32.mrf.mxu0
        %v4368 = vadd.f32 0.0, %v4367
        %v4369 = vpop.f32.mrf.mxu0
        %v4370 = vadd.f32 0.0, %v4369
        %v4371 = vpop.f32.mrf.mxu0
        %v4372 = vadd.f32 0.0, %v4371
        %v4373 = vpop.f32.mrf.mxu0
        %v4374 = vadd.f32 0.0, %v4373
        %4375 = vmatprep.mubr.bf16.mxu0 %v4247
        %4376 = vmatmul.mubr.bf16.gmra.mxu0 %v4091
        %v4377 = vpop.f32.mrf.mxu0
        %v4378 = vadd.f32 0.0, %v4377
        %v4379 = vpop.f32.mrf.mxu0
        %v4380 = vadd.f32 0.0, %v4379
        %v4381 = vpop.f32.mrf.mxu0
        %v4382 = vadd.f32 0.0, %v4381
        %v4383 = vpop.f32.mrf.mxu0
        %v4384 = vadd.f32 0.0, %v4383
        %4385 = vmatprep.mubr.bf16.mxu0 %v4250
        %4386 = vmatmul.mubr.bf16.gmra.mxu0 %v4093
        %v4387 = vpop.f32.mrf.mxu0
        %v4388 = vadd.f32 0.0, %v4387
        %v4389 = vpop.f32.mrf.mxu0
        %v4390 = vadd.f32 0.0, %v4389
        %v4391 = vpop.f32.mrf.mxu0
        %v4392 = vadd.f32 0.0, %v4391
        %v4393 = vpop.f32.mrf.mxu0
        %v4394 = vadd.f32 0.0, %v4393
        %4395 = vmatprep.mubr.bf16.mxu0 %v4253
        %4396 = vmatmul.mubr.bf16.gmra.mxu0 %v4095
        %v4397 = vpop.f32.mrf.mxu0
        %v4398 = vadd.f32 0.0, %v4397
        %v4399 = vpop.f32.mrf.mxu0
        %v4400 = vadd.f32 0.0, %v4399
        %v4401 = vpop.f32.mrf.mxu0
        %v4402 = vadd.f32 0.0, %v4401
        %v4403 = vpop.f32.mrf.mxu0
        %v4404 = vadd.f32 0.0, %v4403
        %4405 = vmatprep.mubr.bf16.mxu0 %v4256
        %4406 = vmatmul.mubr.bf16.gmra.mxu0 %v4097
        %v4407 = vpop.f32.mrf.mxu0
        %v4408 = vadd.f32 0.0, %v4407
        %v4409 = vpop.f32.mrf.mxu0
        %v4410 = vadd.f32 0.0, %v4409
        %v4411 = vpop.f32.mrf.mxu0
        %v4412 = vadd.f32 0.0, %v4411
        %v4413 = vpop.f32.mrf.mxu0
        %v4414 = vadd.f32 0.0, %v4413
        %4415 = vmatprep.mubr.bf16.mxu0 %v4259
        %4416 = vmatmul.mubr.bf16.gmra.mxu0 %v4099
        %v4417 = vpop.f32.mrf.mxu0
        %v4418 = vadd.f32 0.0, %v4417
        %v4419 = vpop.f32.mrf.mxu0
        %v4420 = vadd.f32 0.0, %v4419
        %v4421 = vpop.f32.mrf.mxu0
        %v4422 = vadd.f32 0.0, %v4421
        %v4423 = vpop.f32.mrf.mxu0
        %v4424 = vadd.f32 0.0, %v4423
        %4425 = vmatprep.mubr.bf16.mxu0 %v4262
        %4426 = vmatmul.mubr.bf16.gmra.mxu0 %v4101
        %v4427 = vpop.f32.mrf.mxu0
        %v4428 = vadd.f32 0.0, %v4427
        %v4429 = vpop.f32.mrf.mxu0
        %v4430 = vadd.f32 0.0, %v4429
        %v4431 = vpop.f32.mrf.mxu0
        %v4432 = vadd.f32 0.0, %v4431
        %v4433 = vpop.f32.mrf.mxu0
        %v4434 = vadd.f32 0.0, %v4433
        %4435 = vmatprep.mubr.bf16.mxu0 %v4265
        %4436 = vmatmul.mubr.bf16.gmra.mxu0 %v4103
        %v4437 = vpop.f32.mrf.mxu0
        %v4438 = vadd.f32 0.0, %v4437
        %v4439 = vpop.f32.mrf.mxu0
        %v4440 = vadd.f32 0.0, %v4439
        %v4441 = vpop.f32.mrf.mxu0
        %v4442 = vadd.f32 0.0, %v4441
        %v4443 = vpop.f32.mrf.mxu0
        %v4444 = vadd.f32 0.0, %v4443
        %4445 = vmatprep.mubr.bf16.mxu0 %v4268
        %4446 = vmatmul.mubr.bf16.gmra.mxu0 %v4105
        %v4447 = vpop.f32.mrf.mxu0
        %v4448 = vadd.f32 0.0, %v4447
        %v4449 = vpop.f32.mrf.mxu0
        %v4450 = vadd.f32 0.0, %v4449
        %v4451 = vpop.f32.mrf.mxu0
        %v4452 = vadd.f32 0.0, %v4451
        %v4453 = vpop.f32.mrf.mxu0
        %v4454 = vadd.f32 0.0, %v4453
        %4455 = vmatprep.mubr.bf16.mxu0 %v4271
        %4456 = vmatmul.mubr.bf16.gmra.mxu0 %v4107
        %v4457 = vpop.f32.mrf.mxu0
        %v4458 = vadd.f32 0.0, %v4457
        %v4459 = vpop.f32.mrf.mxu0
        %v4460 = vadd.f32 0.0, %v4459
        %v4461 = vpop.f32.mrf.mxu0
        %v4462 = vadd.f32 0.0, %v4461
        %v4463 = vpop.f32.mrf.mxu0
        %v4464 = vadd.f32 0.0, %v4463
        %4465 = vdwg.mxu0
        %v4466 = vadd.f32 %v3992, %v4308
        %v4467 = vadd.f32 %v3993, %v4310
        %v4468 = vadd.f32 %v3994, %v4312
        %v4469 = vadd.f32 %v3995, %v4314
        %v4470 = vadd.f32 %v3996, %v4318
        %v4471 = vadd.f32 %v3997, %v4320
        %v4472 = vadd.f32 %v3998, %v4322
        %v4473 = vadd.f32 %v3999, %v4324
        %v4474 = vadd.f32 %v4000, %v4328
        %v4475 = vadd.f32 %v4001, %v4330
        %v4476 = vadd.f32 %v4002, %v4332
        %v4477 = vadd.f32 %v4003, %v4334
        %v4478 = vadd.f32 %v4004, %v4338
        %v4479 = vadd.f32 %v4005, %v4340
        %v4480 = vadd.f32 %v4006, %v4342
        %v4481 = vadd.f32 %v4007, %v4344
        %v4482 = vadd.f32 %v4008, %v4348
        %v4483 = vadd.f32 %v4009, %v4350
        %v4484 = vadd.f32 %v4010, %v4352
        %v4485 = vadd.f32 %v4011, %v4354
        %v4486 = vadd.f32 %v4012, %v4358
        %v4487 = vadd.f32 %v4013, %v4360
        %v4488 = vadd.f32 %v4014, %v4362
        %v4489 = vadd.f32 %v4015, %v4364
        %v4490 = vadd.f32 %v4016, %v4368
        %v4491 = vadd.f32 %v4017, %v4370
        %v4492 = vadd.f32 %v4018, %v4372
        %v4493 = vadd.f32 %v4019, %v4374
        %v4494 = vadd.f32 %v4020, %v4378
        %v4495 = vadd.f32 %v4021, %v4380
        %v4496 = vadd.f32 %v4022, %v4382
        %v4497 = vadd.f32 %v4023, %v4384
        %v4498 = vadd.f32 %v4024, %v4388
        %v4499 = vadd.f32 %v4025, %v4390
        %v4500 = vadd.f32 %v4026, %v4392
        %v4501 = vadd.f32 %v4027, %v4394
        %v4502 = vadd.f32 %v4028, %v4398
        %v4503 = vadd.f32 %v4029, %v4400
        %v4504 = vadd.f32 %v4030, %v4402
        %v4505 = vadd.f32 %v4031, %v4404
        %v4506 = vadd.f32 %v4032, %v4408
        %v4507 = vadd.f32 %v4033, %v4410
        %v4508 = vadd.f32 %v4034, %v4412
        %v4509 = vadd.f32 %v4035, %v4414
        %v4510 = vadd.f32 %v4036, %v4418
        %v4511 = vadd.f32 %v4037, %v4420
        %v4512 = vadd.f32 %v4038, %v4422
        %v4513 = vadd.f32 %v4039, %v4424
        %v4514 = vadd.f32 %v4040, %v4428
        %v4515 = vadd.f32 %v4041, %v4430
        %v4516 = vadd.f32 %v4042, %v4432
        %v4517 = vadd.f32 %v4043, %v4434
        %v4518 = vadd.f32 %v4044, %v4438
        %v4519 = vadd.f32 %v4045, %v4440
        %v4520 = vadd.f32 %v4046, %v4442
        %v4521 = vadd.f32 %v4047, %v4444
        %v4522 = vadd.f32 %v4048, %v4448
        %v4523 = vadd.f32 %v4049, %v4450
        %v4524 = vadd.f32 %v4050, %v4452
        %v4525 = vadd.f32 %v4051, %v4454
        %v4526 = vadd.f32 %v4052, %v4458
        %v4527 = vadd.f32 %v4053, %v4460
        %v4528 = vadd.f32 %v4054, %v4462
        %v4529 = vadd.f32 %v4055, %v4464
        %v4530 = vld [vmem:[%s0 + $0x20] sm:$0xff]
        %v4531 = vld [vmem:[%s0 + $0x28] sm:$0xff]
        %v4532 = vld [vmem:[%s0 + $0x30] sm:$0xff]
        %v4533 = vld [vmem:[%s0 + $0x38] sm:$0xff]
        %v4534 = vld [vmem:[%s0 + $0x40] sm:$0xff]
        %v4535 = vld [vmem:[%s0 + $0x48] sm:$0xff]
        %v4536 = vld [vmem:[%s0 + $0x50] sm:$0xff]
        %v4537 = vld [vmem:[%s0 + $0x58] sm:$0xff]
        %v4538 = vld [vmem:[%s0 + $0x60] sm:$0xff]
        %v4539 = vld [vmem:[%s0 + $0x68] sm:$0xff]
        %v4540 = vld [vmem:[%s0 + $0x70] sm:$0xff]
        %v4541 = vld [vmem:[%s0 + $0x78] sm:$0xff]
        %v4542 = vld [vmem:[%s0 + $0x80] sm:$0xff]
        %v4543 = vld [vmem:[%s0 + $0x88] sm:$0xff]
        %v4544 = vld [vmem:[%s0 + $0x90] sm:$0xff]
        %v4545 = vld [vmem:[%s0 + $0x98] sm:$0xff]
        %v4546 = vld [vmem:[%s0 + $0xa0] sm:$0xff]
        %v4547 = vld [vmem:[%s0 + $0xa8] sm:$0xff]
        %v4548 = vld [vmem:[%s0 + $0xb0] sm:$0xff]
        %v4549 = vld [vmem:[%s0 + $0xb8] sm:$0xff]
        %v4550 = vld [vmem:[%s0 + $0xc0] sm:$0xff]
        %v4551 = vld [vmem:[%s0 + $0xc8] sm:$0xff]
        %v4552 = vld [vmem:[%s0 + $0xd0] sm:$0xff]
        %v4553 = vld [vmem:[%s0 + $0xd8] sm:$0xff]
        %v4554 = vld [vmem:[%s0 + $0xe0] sm:$0xff]
        %v4555 = vld [vmem:[%s0 + $0xe8] sm:$0xff]
        %v4556 = vld [vmem:[%s0 + $0xf0] sm:$0xff]
        %v4557 = vld [vmem:[%s0 + $0xf8] sm:$0xff]
        %v4558 = vld [vmem:[%s0 + $0x100] sm:$0xff]
        %v4559 = vld [vmem:[%s0 + $0x108] sm:$0xff]
        %v4560 = vld [vmem:[%s0 + $0x110] sm:$0xff]
        %v4561 = vld [vmem:[%s0 + $0x118] sm:$0xff]
        %v4562 = vld [vmem:[%s0 + $0x120] sm:$0x11]
        %s4563 = scalar_lea.vmem %s967, 800 [#allocation2]
        %v4564 = vld [vmem:[%s4563] sm:$0xff]
        %v4565 = vld [vmem:[%s4563 + $0x8] sm:$0xff]
        %v4566 = vld [vmem:[%s4563 + $0x10] sm:$0xff]
        %v4567 = vld [vmem:[%s4563 + $0x18] sm:$0xff]
        %v4568 = vld [vmem:[%s4563 + $0x20] sm:$0xff]
        %v4569 = vld [vmem:[%s4563 + $0x28] sm:$0xff]
        %v4570 = vld [vmem:[%s4563 + $0x30] sm:$0xff]
        %v4571 = vld [vmem:[%s4563 + $0x38] sm:$0xff]
        %v4572 = vld [vmem:[%s4563 + $0x40] sm:$0xff]
        %v4573 = vld [vmem:[%s4563 + $0x48] sm:$0xff]
        %v4574 = vld [vmem:[%s4563 + $0x50] sm:$0xff]
        %v4575 = vld [vmem:[%s4563 + $0x58] sm:$0xff]
        %v4576 = vld [vmem:[%s4563 + $0x60] sm:$0xff]
        %v4577 = vld [vmem:[%s4563 + $0x68] sm:$0xff]
        %v4578 = vld [vmem:[%s4563 + $0x70] sm:$0xff]
        %v4579 = vld [vmem:[%s4563 + $0x78] sm:$0xff]
        %v4580 = vld [vmem:[%s4563 + $0x80] sm:$0xff]
        %v4581 = vld [vmem:[%s4563 + $0x88] sm:$0xff]
        %v4582 = vld [vmem:[%s4563 + $0x90] sm:$0xff]
        %v4583 = vld [vmem:[%s4563 + $0x98] sm:$0xff]
        %v4617 = vunpack.c.l.b16 %v4530
        %v4618 = vunpack.c.h.b16 %v4530
        %v4619 = vunpack.c.l.b16 %v4531
        %v4620 = vunpack.c.h.b16 %v4531
        %v4621 = vunpack.c.l.b16 %v4532
        %v4622 = vunpack.c.h.b16 %v4532
        %v4623 = vunpack.c.l.b16 %v4533
        %v4624 = vunpack.c.h.b16 %v4533
        %v4625 = vunpack.c.l.b16 %v4534
        %v4626 = vunpack.c.h.b16 %v4534
        %v4627 = vunpack.c.l.b16 %v4535
        %v4628 = vunpack.c.h.b16 %v4535
        %v4629 = vunpack.c.l.b16 %v4536
        %v4630 = vunpack.c.h.b16 %v4536
        %v4631 = vunpack.c.l.b16 %v4537
        %v4632 = vunpack.c.h.b16 %v4537
        %v4633 = vunpack.c.l.b16 %v4538
        %v4634 = vunpack.c.h.b16 %v4538
        %v4635 = vunpack.c.l.b16 %v4539
        %v4636 = vunpack.c.h.b16 %v4539
        %v4637 = vunpack.c.l.b16 %v4540
        %v4638 = vunpack.c.h.b16 %v4540
        %v4639 = vunpack.c.l.b16 %v4541
        %v4640 = vunpack.c.h.b16 %v4541
        %v4641 = vunpack.c.l.b16 %v4542
        %v4642 = vunpack.c.h.b16 %v4542
        %v4643 = vunpack.c.l.b16 %v4543
        %v4644 = vunpack.c.h.b16 %v4543
        %v4645 = vunpack.c.l.b16 %v4544
        %v4646 = vunpack.c.h.b16 %v4544
        %v4647 = vunpack.c.l.b16 %v4545
        %v4648 = vunpack.c.h.b16 %v4545
        %v4649 = vunpack.c.l.b16 %v4546
        %v4650 = vunpack.c.h.b16 %v4546
        %v4651 = vunpack.c.l.b16 %v4547
        %v4652 = vunpack.c.h.b16 %v4547
        %v4653 = vunpack.c.l.b16 %v4548
        %v4654 = vunpack.c.h.b16 %v4548
        %v4655 = vunpack.c.l.b16 %v4549
        %v4656 = vunpack.c.h.b16 %v4549
        %v4657 = vunpack.c.l.b16 %v4550
        %v4658 = vunpack.c.h.b16 %v4550
        %v4659 = vunpack.c.l.b16 %v4551
        %v4660 = vunpack.c.h.b16 %v4551
        %v4661 = vunpack.c.l.b16 %v4552
        %v4662 = vunpack.c.h.b16 %v4552
        %v4663 = vunpack.c.l.b16 %v4553
        %v4664 = vunpack.c.h.b16 %v4553
        %v4665 = vunpack.c.l.b16 %v4554
        %v4666 = vunpack.c.h.b16 %v4554
        %v4667 = vunpack.c.l.b16 %v4555
        %v4668 = vunpack.c.h.b16 %v4555
        %v4669 = vunpack.c.l.b16 %v4556
        %v4670 = vunpack.c.h.b16 %v4556
        %v4671 = vunpack.c.l.b16 %v4557
        %v4672 = vunpack.c.h.b16 %v4557
        %v4673 = vunpack.c.l.b16 %v4558
        %v4674 = vunpack.c.h.b16 %v4558
        %v4675 = vunpack.c.l.b16 %v4559
        %v4676 = vunpack.c.h.b16 %v4559
        %v4677 = vunpack.c.l.b16 %v4560
        %v4678 = vunpack.c.h.b16 %v4560
        %v4679 = vunpack.c.l.b16 %v4561
        %v4680 = vunpack.c.h.b16 %v4561
        %v4681 = vunpack.c.l.b16 %v4562
        %v4682 = vunpack.c.h.b16 %v4562
        %v4683 = vpack.c.b16 %v4619, %v4617
        %v4684 = vpack.c.b16 %v4620, %v4618
        %v4685 = vpack.c.b16 %v4623, %v4621
        %v4686 = vpack.c.b16 %v4624, %v4622
        %v4687 = vpack.c.b16 %v4627, %v4625
        %v4688 = vpack.c.b16 %v4628, %v4626
        %v4689 = vpack.c.b16 %v4631, %v4629
        %v4690 = vpack.c.b16 %v4632, %v4630
        %v4691 = vpack.c.b16 %v4635, %v4633
        %v4692 = vpack.c.b16 %v4636, %v4634
        %v4693 = vpack.c.b16 %v4639, %v4637
        %v4694 = vpack.c.b16 %v4640, %v4638
        %v4695 = vpack.c.b16 %v4643, %v4641
        %v4696 = vpack.c.b16 %v4644, %v4642
        %v4697 = vpack.c.b16 %v4647, %v4645
        %v4698 = vpack.c.b16 %v4648, %v4646
        %v4699 = vpack.c.b16 %v4651, %v4649
        %v4700 = vpack.c.b16 %v4652, %v4650
        %v4701 = vpack.c.b16 %v4655, %v4653
        %v4702 = vpack.c.b16 %v4656, %v4654
        %v4703 = vpack.c.b16 %v4659, %v4657
        %v4704 = vpack.c.b16 %v4660, %v4658
        %v4705 = vpack.c.b16 %v4663, %v4661
        %v4706 = vpack.c.b16 %v4664, %v4662
        %v4707 = vpack.c.b16 %v4667, %v4665
        %v4708 = vpack.c.b16 %v4668, %v4666
        %v4709 = vpack.c.b16 %v4671, %v4669
        %v4710 = vpack.c.b16 %v4672, %v4670
        %v4711 = vpack.c.b16 %v4675, %v4673
        %v4712 = vpack.c.b16 %v4676, %v4674
        %v4713 = vpack.c.b16 %v4679, %v4677
        %v4714 = vpack.c.b16 %v4680, %v4678
        %v4715 = vpack.c.b16 %v4681, %v4681
        %v4716 = vpack.c.b16 %v4682, %v4682
        %v4718 = vshrl.u32 %v4683, 16
        %v4720 = vshll.u32 %v4683, 16
        %v4722 = vrot.slane %v4720, 1
        %v4723 = vor.u32 %v4718, %v4722
        %v4725 = vshll.u32 %v4685, 16
        %v4727 = vrot.slane %v4725, 1
        %v4728 = vsel %vm2458, %v4723, %v4727
        %v4730 = vshrl.u32 %v4684, 16
        %v4732 = vshll.u32 %v4684, 16
        %v4734 = vrot.slane %v4732, 1
        %v4735 = vor.u32 %v4730, %v4734
        %v4737 = vshll.u32 %v4686, 16
        %v4739 = vrot.slane %v4737, 1
        %v4740 = vsel %vm2458, %v4735, %v4739
        %v4741 = vshrl.u32 %v4685, 16
        %v4743 = vor.u32 %v4741, %v4727
        %v4745 = vshll.u32 %v4687, 16
        %v4747 = vrot.slane %v4745, 1
        %v4748 = vsel %vm2458, %v4743, %v4747
        %v4749 = vshrl.u32 %v4686, 16
        %v4751 = vor.u32 %v4749, %v4739
        %v4753 = vshll.u32 %v4688, 16
        %v4755 = vrot.slane %v4753, 1
        %v4756 = vsel %vm2458, %v4751, %v4755
        %v4757 = vshrl.u32 %v4687, 16
        %v4759 = vor.u32 %v4757, %v4747
        %v4761 = vshll.u32 %v4689, 16
        %v4763 = vrot.slane %v4761, 1
        %v4764 = vsel %vm2458, %v4759, %v4763
        %v4765 = vshrl.u32 %v4688, 16
        %v4767 = vor.u32 %v4765, %v4755
        %v4769 = vshll.u32 %v4690, 16
        %v4771 = vrot.slane %v4769, 1
        %v4772 = vsel %vm2458, %v4767, %v4771
        %v4773 = vshrl.u32 %v4689, 16
        %v4775 = vor.u32 %v4773, %v4763
        %v4777 = vshll.u32 %v4691, 16
        %v4779 = vrot.slane %v4777, 1
        %v4780 = vsel %vm2458, %v4775, %v4779
        %v4781 = vshrl.u32 %v4690, 16
        %v4783 = vor.u32 %v4781, %v4771
        %v4785 = vshll.u32 %v4692, 16
        %v4787 = vrot.slane %v4785, 1
        %v4788 = vsel %vm2458, %v4783, %v4787
        %v4789 = vshrl.u32 %v4691, 16
        %v4791 = vor.u32 %v4789, %v4779
        %v4793 = vshll.u32 %v4693, 16
        %v4795 = vrot.slane %v4793, 1
        %v4796 = vsel %vm2458, %v4791, %v4795
        %v4797 = vshrl.u32 %v4692, 16
        %v4799 = vor.u32 %v4797, %v4787
        %v4801 = vshll.u32 %v4694, 16
        %v4803 = vrot.slane %v4801, 1
        %v4804 = vsel %vm2458, %v4799, %v4803
        %v4805 = vshrl.u32 %v4693, 16
        %v4807 = vor.u32 %v4805, %v4795
        %v4809 = vshll.u32 %v4695, 16
        %v4811 = vrot.slane %v4809, 1
        %v4812 = vsel %vm2458, %v4807, %v4811
        %v4813 = vshrl.u32 %v4694, 16
        %v4815 = vor.u32 %v4813, %v4803
        %v4817 = vshll.u32 %v4696, 16
        %v4819 = vrot.slane %v4817, 1
        %v4820 = vsel %vm2458, %v4815, %v4819
        %v4821 = vshrl.u32 %v4695, 16
        %v4823 = vor.u32 %v4821, %v4811
        %v4825 = vshll.u32 %v4697, 16
        %v4827 = vrot.slane %v4825, 1
        %v4828 = vsel %vm2458, %v4823, %v4827
        %v4829 = vshrl.u32 %v4696, 16
        %v4831 = vor.u32 %v4829, %v4819
        %v4833 = vshll.u32 %v4698, 16
        %v4835 = vrot.slane %v4833, 1
        %v4836 = vsel %vm2458, %v4831, %v4835
        %v4837 = vshrl.u32 %v4697, 16
        %v4839 = vor.u32 %v4837, %v4827
        %v4841 = vshll.u32 %v4699, 16
        %v4843 = vrot.slane %v4841, 1
        %v4844 = vsel %vm2458, %v4839, %v4843
        %v4845 = vshrl.u32 %v4698, 16
        %v4847 = vor.u32 %v4845, %v4835
        %v4849 = vshll.u32 %v4700, 16
        %v4851 = vrot.slane %v4849, 1
        %v4852 = vsel %vm2458, %v4847, %v4851
        %v4853 = vshrl.u32 %v4699, 16
        %v4855 = vor.u32 %v4853, %v4843
        %v4857 = vshll.u32 %v4701, 16
        %v4859 = vrot.slane %v4857, 1
        %v4860 = vsel %vm2458, %v4855, %v4859
        %v4861 = vshrl.u32 %v4700, 16
        %v4863 = vor.u32 %v4861, %v4851
        %v4865 = vshll.u32 %v4702, 16
        %v4867 = vrot.slane %v4865, 1
        %v4868 = vsel %vm2458, %v4863, %v4867
        %v4869 = vshrl.u32 %v4701, 16
        %v4871 = vor.u32 %v4869, %v4859
        %v4873 = vshll.u32 %v4703, 16
        %v4875 = vrot.slane %v4873, 1
        %v4876 = vsel %vm2458, %v4871, %v4875
        %v4877 = vshrl.u32 %v4702, 16
        %v4879 = vor.u32 %v4877, %v4867
        %v4881 = vshll.u32 %v4704, 16
        %v4883 = vrot.slane %v4881, 1
        %v4884 = vsel %vm2458, %v4879, %v4883
        %v4885 = vshrl.u32 %v4703, 16
        %v4887 = vor.u32 %v4885, %v4875
        %v4889 = vshll.u32 %v4705, 16
        %v4891 = vrot.slane %v4889, 1
        %v4892 = vsel %vm2458, %v4887, %v4891
        %v4893 = vshrl.u32 %v4704, 16
        %v4895 = vor.u32 %v4893, %v4883
        %v4897 = vshll.u32 %v4706, 16
        %v4899 = vrot.slane %v4897, 1
        %v4900 = vsel %vm2458, %v4895, %v4899
        %v4901 = vshrl.u32 %v4705, 16
        %v4903 = vor.u32 %v4901, %v4891
        %v4905 = vshll.u32 %v4707, 16
        %v4907 = vrot.slane %v4905, 1
        %v4908 = vsel %vm2458, %v4903, %v4907
        %v4909 = vshrl.u32 %v4706, 16
        %v4911 = vor.u32 %v4909, %v4899
        %v4913 = vshll.u32 %v4708, 16
        %v4915 = vrot.slane %v4913, 1
        %v4916 = vsel %vm2458, %v4911, %v4915
        %v4917 = vshrl.u32 %v4707, 16
        %v4919 = vor.u32 %v4917, %v4907
        %v4921 = vshll.u32 %v4709, 16
        %v4923 = vrot.slane %v4921, 1
        %v4924 = vsel %vm2458, %v4919, %v4923
        %v4925 = vshrl.u32 %v4708, 16
        %v4927 = vor.u32 %v4925, %v4915
        %v4929 = vshll.u32 %v4710, 16
        %v4931 = vrot.slane %v4929, 1
        %v4932 = vsel %vm2458, %v4927, %v4931
        %v4933 = vshrl.u32 %v4709, 16
        %v4935 = vor.u32 %v4933, %v4923
        %v4937 = vshll.u32 %v4711, 16
        %v4939 = vrot.slane %v4937, 1
        %v4940 = vsel %vm2458, %v4935, %v4939
        %v4941 = vshrl.u32 %v4710, 16
        %v4943 = vor.u32 %v4941, %v4931
        %v4945 = vshll.u32 %v4712, 16
        %v4947 = vrot.slane %v4945, 1
        %v4948 = vsel %vm2458, %v4943, %v4947
        %v4949 = vshrl.u32 %v4711, 16
        %v4951 = vor.u32 %v4949, %v4939
        %v4953 = vshll.u32 %v4713, 16
        %v4955 = vrot.slane %v4953, 1
        %v4956 = vsel %vm2458, %v4951, %v4955
        %v4957 = vshrl.u32 %v4712, 16
        %v4959 = vor.u32 %v4957, %v4947
        %v4961 = vshll.u32 %v4714, 16
        %v4963 = vrot.slane %v4961, 1
        %v4964 = vsel %vm2458, %v4959, %v4963
        %v4965 = vshrl.u32 %v4713, 16
        %v4967 = vor.u32 %v4965, %v4955
        %v4969 = vshll.u32 %v4715, 16
        %v4971 = vrot.slane %v4969, 1
        %v4972 = vsel %vm2458, %v4967, %v4971
        %v4973 = vshrl.u32 %v4714, 16
        %v4975 = vor.u32 %v4973, %v4963
        %v4977 = vshll.u32 %v4716, 16
        %v4979 = vrot.slane %v4977, 1
        %v4980 = vsel %vm2458, %v4975, %v4979
        %v5017 = vunpack.c.l.b16 %v4564
        %v5018 = vunpack.c.h.b16 %v4564
        %v5019 = vunpack.c.l.b16 %v4565
        %v5020 = vunpack.c.h.b16 %v4565
        %v5021 = vunpack.c.l.b16 %v4566
        %v5022 = vunpack.c.h.b16 %v4566
        %v5023 = vunpack.c.l.b16 %v4567
        %v5024 = vunpack.c.h.b16 %v4567
        %v5025 = vunpack.c.l.b16 %v4568
        %v5026 = vunpack.c.h.b16 %v4568
        %v5027 = vunpack.c.l.b16 %v4569
        %v5028 = vunpack.c.h.b16 %v4569
        %v5029 = vunpack.c.l.b16 %v4570
        %v5030 = vunpack.c.h.b16 %v4570
        %v5031 = vunpack.c.l.b16 %v4571
        %v5032 = vunpack.c.h.b16 %v4571
        %v5033 = vunpack.c.l.b16 %v4572
        %v5034 = vunpack.c.h.b16 %v4572
        %v5035 = vunpack.c.l.b16 %v4573
        %v5036 = vunpack.c.h.b16 %v4573
        %v5037 = vunpack.c.l.b16 %v4574
        %v5038 = vunpack.c.h.b16 %v4574
        %v5039 = vunpack.c.l.b16 %v4575
        %v5040 = vunpack.c.h.b16 %v4575
        %v5041 = vunpack.c.l.b16 %v4576
        %v5042 = vunpack.c.h.b16 %v4576
        %v5043 = vunpack.c.l.b16 %v4577
        %v5044 = vunpack.c.h.b16 %v4577
        %v5045 = vunpack.c.l.b16 %v4578
        %v5046 = vunpack.c.h.b16 %v4578
        %v5047 = vunpack.c.l.b16 %v4579
        %v5048 = vunpack.c.h.b16 %v4579
        %v5049 = vunpack.c.l.b16 %v4580
        %v5050 = vunpack.c.h.b16 %v4580
        %v5051 = vunpack.c.l.b16 %v4581
        %v5052 = vunpack.c.h.b16 %v4581
        %v5053 = vunpack.c.l.b16 %v4582
        %v5054 = vunpack.c.h.b16 %v4582
        %v5055 = vunpack.c.l.b16 %v4583
        %v5056 = vunpack.c.h.b16 %v4583
        %v5057 = vpack.c.b16 %v5019, %v5017
        %v5058 = vpack.c.b16 %v5020, %v5018
        %v5059 = vpack.c.b16 %v5023, %v5021
        %v5060 = vpack.c.b16 %v5024, %v5022
        %v5061 = vpack.c.b16 %v5027, %v5025
        %v5062 = vpack.c.b16 %v5028, %v5026
        %v5063 = vpack.c.b16 %v5031, %v5029
        %v5064 = vpack.c.b16 %v5032, %v5030
        %v5065 = vpack.c.b16 %v5035, %v5033
        %v5066 = vpack.c.b16 %v5036, %v5034
        %v5067 = vpack.c.b16 %v5039, %v5037
        %v5068 = vpack.c.b16 %v5040, %v5038
        %v5069 = vpack.c.b16 %v5043, %v5041
        %v5070 = vpack.c.b16 %v5044, %v5042
        %v5071 = vpack.c.b16 %v5047, %v5045
        %v5072 = vpack.c.b16 %v5048, %v5046
        %v5073 = vpack.c.b16 %v5051, %v5049
        %v5074 = vpack.c.b16 %v5052, %v5050
        %v5075 = vpack.c.b16 %v5055, %v5053
        %v5076 = vpack.c.b16 %v5056, %v5054
        %v5098 = vsel %vm1330, %v4740, 0
        %v5101 = vsel %vm1330, %v4756, 0
        %v5104 = vsel %vm1330, %v4772, 0
        %v5107 = vsel %vm1330, %v4788, 0
        %v5110 = vsel %vm1330, %v4804, 0
        %v5113 = vsel %vm1330, %v4820, 0
        %v5116 = vsel %vm1330, %v4836, 0
        %v5119 = vsel %vm1330, %v4852, 0
        %v5122 = vsel %vm1330, %v4868, 0
        %v5125 = vsel %vm1330, %v4884, 0
        %v5128 = vsel %vm1330, %v4900, 0
        %v5131 = vsel %vm1330, %v4916, 0
        %v5134 = vsel %vm1330, %v4932, 0
        %v5137 = vsel %vm1330, %v4948, 0
        %v5140 = vsel %vm1330, %v4964, 0
        %v5143 = vsel %vm1330, %v4980, 0
        %5145 = vmatprep.subr.bf16.mxu0 %v5072
        %5146 = vmatpush1.bf16.msra.mxu0 %v5071
        %5147 = vmatprep.subr.bf16.mxu0 %v5070
        %5148 = vmatpush1.bf16.msra.mxu0 %v5069
        %5149 = vmatprep.subr.bf16.mxu0 %v5068
        %5150 = vmatpush1.bf16.msra.mxu0 %v5067
        %5151 = vmatprep.subr.bf16.mxu0 %v5066
        %5152 = vmatpush1.bf16.msra.mxu0 %v5065
        %5153 = vmatprep.subr.bf16.mxu0 %v5064
        %5154 = vmatpush1.bf16.msra.mxu0 %v5063
        %5155 = vmatprep.subr.bf16.mxu0 %v5062
        %5156 = vmatpush1.bf16.msra.mxu0 %v5061
        %5157 = vmatprep.subr.bf16.mxu0 %v5060
        %5158 = vmatpush1.bf16.msra.mxu0 %v5059
        %5159 = vmatprep.subr.bf16.mxu0 %v5058
        %5160 = vmatpush1.bf16.msra.mxu0 %v5057
        %5161 = vmatprep.subr.bf16.mxu0 0
        %5162 = vmatpush2.bf16.msra.mxu0 0
        %5163 = vmatprep.subr.bf16.mxu0 0
        %5164 = vmatpush2.bf16.msra.mxu0 0
        %5165 = vmatprep.subr.bf16.mxu0 0
        %5166 = vmatpush2.bf16.msra.mxu0 0
        %5167 = vmatprep.subr.bf16.mxu0 0
        %5168 = vmatpush2.bf16.msra.mxu0 0
        %5169 = vmatprep.subr.bf16.mxu0 0
        %5170 = vmatpush2.bf16.msra.mxu0 0
        %5171 = vmatprep.subr.bf16.mxu0 0
        %5172 = vmatpush2.bf16.msra.mxu0 0
        %5173 = vmatprep.subr.bf16.mxu0 %v5076
        %5174 = vmatpush2.bf16.msra.mxu0 %v5075
        %5175 = vmatprep.subr.bf16.mxu0 %v5074
        %5176 = vmatpush2.bf16.msra.mxu0 %v5073
        %5177 = vmatprep.mubr.bf16.mxu0 %v5098
        %5178 = vmatmul.mubr.bf16.gmra.mxu0 %v4728
        %v5179 = vpop.f32.mrf.mxu0
        %v5180 = vadd.f32 0.0, %v5179
        %v5181 = vpop.f32.mrf.mxu0
        %v5182 = vadd.f32 0.0, %v5181
        %v5183 = vpop.f32.mrf.mxu0
        %v5184 = vadd.f32 0.0, %v5183
        %v5185 = vpop.f32.mrf.mxu0
        %v5186 = vadd.f32 0.0, %v5185
        %5187 = vmatprep.mubr.bf16.mxu0 %v5101
        %5188 = vmatmul.mubr.bf16.gmra.mxu0 %v4748
        %v5189 = vpop.f32.mrf.mxu0
        %v5190 = vadd.f32 0.0, %v5189
        %v5191 = vpop.f32.mrf.mxu0
        %v5192 = vadd.f32 0.0, %v5191
        %v5193 = vpop.f32.mrf.mxu0
        %v5194 = vadd.f32 0.0, %v5193
        %v5195 = vpop.f32.mrf.mxu0
        %v5196 = vadd.f32 0.0, %v5195
        %5197 = vmatprep.mubr.bf16.mxu0 %v5104
        %5198 = vmatmul.mubr.bf16.gmra.mxu0 %v4764
        %v5199 = vpop.f32.mrf.mxu0
        %v5200 = vadd.f32 0.0, %v5199
        %v5201 = vpop.f32.mrf.mxu0
        %v5202 = vadd.f32 0.0, %v5201
        %v5203 = vpop.f32.mrf.mxu0
        %v5204 = vadd.f32 0.0, %v5203
        %v5205 = vpop.f32.mrf.mxu0
        %v5206 = vadd.f32 0.0, %v5205
        %5207 = vmatprep.mubr.bf16.mxu0 %v5107
        %5208 = vmatmul.mubr.bf16.gmra.mxu0 %v4780
        %v5209 = vpop.f32.mrf.mxu0
        %v5210 = vadd.f32 0.0, %v5209
        %v5211 = vpop.f32.mrf.mxu0
        %v5212 = vadd.f32 0.0, %v5211
        %v5213 = vpop.f32.mrf.mxu0
        %v5214 = vadd.f32 0.0, %v5213
        %v5215 = vpop.f32.mrf.mxu0
        %v5216 = vadd.f32 0.0, %v5215
        %5217 = vmatprep.mubr.bf16.mxu0 %v5110
        %5218 = vmatmul.mubr.bf16.gmra.mxu0 %v4796
        %v5219 = vpop.f32.mrf.mxu0
        %v5220 = vadd.f32 0.0, %v5219
        %v5221 = vpop.f32.mrf.mxu0
        %v5222 = vadd.f32 0.0, %v5221
        %v5223 = vpop.f32.mrf.mxu0
        %v5224 = vadd.f32 0.0, %v5223
        %v5225 = vpop.f32.mrf.mxu0
        %v5226 = vadd.f32 0.0, %v5225
        %5227 = vmatprep.mubr.bf16.mxu0 %v5113
        %5228 = vmatmul.mubr.bf16.gmra.mxu0 %v4812
        %v5229 = vpop.f32.mrf.mxu0
        %v5230 = vadd.f32 0.0, %v5229
        %v5231 = vpop.f32.mrf.mxu0
        %v5232 = vadd.f32 0.0, %v5231
        %v5233 = vpop.f32.mrf.mxu0
        %v5234 = vadd.f32 0.0, %v5233
        %v5235 = vpop.f32.mrf.mxu0
        %v5236 = vadd.f32 0.0, %v5235
        %5237 = vmatprep.mubr.bf16.mxu0 %v5116
        %5238 = vmatmul.mubr.bf16.gmra.mxu0 %v4828
        %v5239 = vpop.f32.mrf.mxu0
        %v5240 = vadd.f32 0.0, %v5239
        %v5241 = vpop.f32.mrf.mxu0
        %v5242 = vadd.f32 0.0, %v5241
        %v5243 = vpop.f32.mrf.mxu0
        %v5244 = vadd.f32 0.0, %v5243
        %v5245 = vpop.f32.mrf.mxu0
        %v5246 = vadd.f32 0.0, %v5245
        %5247 = vmatprep.mubr.bf16.mxu0 %v5119
        %5248 = vmatmul.mubr.bf16.gmra.mxu0 %v4844
        %v5249 = vpop.f32.mrf.mxu0
        %v5250 = vadd.f32 0.0, %v5249
        %v5251 = vpop.f32.mrf.mxu0
        %v5252 = vadd.f32 0.0, %v5251
        %v5253 = vpop.f32.mrf.mxu0
        %v5254 = vadd.f32 0.0, %v5253
        %v5255 = vpop.f32.mrf.mxu0
        %v5256 = vadd.f32 0.0, %v5255
        %5257 = vmatprep.mubr.bf16.mxu0 %v5122
        %5258 = vmatmul.mubr.bf16.gmra.mxu0 %v4860
        %v5259 = vpop.f32.mrf.mxu0
        %v5260 = vadd.f32 0.0, %v5259
        %v5261 = vpop.f32.mrf.mxu0
        %v5262 = vadd.f32 0.0, %v5261
        %v5263 = vpop.f32.mrf.mxu0
        %v5264 = vadd.f32 0.0, %v5263
        %v5265 = vpop.f32.mrf.mxu0
        %v5266 = vadd.f32 0.0, %v5265
        %5267 = vmatprep.mubr.bf16.mxu0 %v5125
        %5268 = vmatmul.mubr.bf16.gmra.mxu0 %v4876
        %v5269 = vpop.f32.mrf.mxu0
        %v5270 = vadd.f32 0.0, %v5269
        %v5271 = vpop.f32.mrf.mxu0
        %v5272 = vadd.f32 0.0, %v5271
        %v5273 = vpop.f32.mrf.mxu0
        %v5274 = vadd.f32 0.0, %v5273
        %v5275 = vpop.f32.mrf.mxu0
        %v5276 = vadd.f32 0.0, %v5275
        %5277 = vmatprep.mubr.bf16.mxu0 %v5128
        %5278 = vmatmul.mubr.bf16.gmra.mxu0 %v4892
        %v5279 = vpop.f32.mrf.mxu0
        %v5280 = vadd.f32 0.0, %v5279
        %v5281 = vpop.f32.mrf.mxu0
        %v5282 = vadd.f32 0.0, %v5281
        %v5283 = vpop.f32.mrf.mxu0
        %v5284 = vadd.f32 0.0, %v5283
        %v5285 = vpop.f32.mrf.mxu0
        %v5286 = vadd.f32 0.0, %v5285
        %5287 = vmatprep.mubr.bf16.mxu0 %v5131
        %5288 = vmatmul.mubr.bf16.gmra.mxu0 %v4908
        %v5289 = vpop.f32.mrf.mxu0
        %v5290 = vadd.f32 0.0, %v5289
        %v5291 = vpop.f32.mrf.mxu0
        %v5292 = vadd.f32 0.0, %v5291
        %v5293 = vpop.f32.mrf.mxu0
        %v5294 = vadd.f32 0.0, %v5293
        %v5295 = vpop.f32.mrf.mxu0
        %v5296 = vadd.f32 0.0, %v5295
        %5297 = vmatprep.mubr.bf16.mxu0 %v5134
        %5298 = vmatmul.mubr.bf16.gmra.mxu0 %v4924
        %v5299 = vpop.f32.mrf.mxu0
        %v5300 = vadd.f32 0.0, %v5299
        %v5301 = vpop.f32.mrf.mxu0
        %v5302 = vadd.f32 0.0, %v5301
        %v5303 = vpop.f32.mrf.mxu0
        %v5304 = vadd.f32 0.0, %v5303
        %v5305 = vpop.f32.mrf.mxu0
        %v5306 = vadd.f32 0.0, %v5305
        %5307 = vmatprep.mubr.bf16.mxu0 %v5137
        %5308 = vmatmul.mubr.bf16.gmra.mxu0 %v4940
        %v5309 = vpop.f32.mrf.mxu0
        %v5310 = vadd.f32 0.0, %v5309
        %v5311 = vpop.f32.mrf.mxu0
        %v5312 = vadd.f32 0.0, %v5311
        %v5313 = vpop.f32.mrf.mxu0
        %v5314 = vadd.f32 0.0, %v5313
        %v5315 = vpop.f32.mrf.mxu0
        %v5316 = vadd.f32 0.0, %v5315
        %5317 = vmatprep.mubr.bf16.mxu0 %v5140
        %5318 = vmatmul.mubr.bf16.gmra.mxu0 %v4956
        %v5319 = vpop.f32.mrf.mxu0
        %v5320 = vadd.f32 0.0, %v5319
        %v5321 = vpop.f32.mrf.mxu0
        %v5322 = vadd.f32 0.0, %v5321
        %v5323 = vpop.f32.mrf.mxu0
        %v5324 = vadd.f32 0.0, %v5323
        %v5325 = vpop.f32.mrf.mxu0
        %v5326 = vadd.f32 0.0, %v5325
        %5327 = vmatprep.mubr.bf16.mxu0 %v5143
        %5328 = vmatmul.mubr.bf16.gmra.mxu0 %v4972
        %v5329 = vpop.f32.mrf.mxu0
        %v5330 = vadd.f32 0.0, %v5329
        %v5331 = vpop.f32.mrf.mxu0
        %v5332 = vadd.f32 0.0, %v5331
        %v5333 = vpop.f32.mrf.mxu0
        %v5334 = vadd.f32 0.0, %v5333
        %v5335 = vpop.f32.mrf.mxu0
        %v5336 = vadd.f32 0.0, %v5335
        %5337 = vdwg.mxu0
        %v5338 = vadd.f32 %v4466, %v5180
        %v5339 = vadd.f32 %v4467, %v5182
        %v5340 = vadd.f32 %v4468, %v5184
        %v5341 = vadd.f32 %v4469, %v5186
        %v5342 = vadd.f32 %v4470, %v5190
        %v5343 = vadd.f32 %v4471, %v5192
        %v5344 = vadd.f32 %v4472, %v5194
        %v5345 = vadd.f32 %v4473, %v5196
        %v5346 = vadd.f32 %v4474, %v5200
        %v5347 = vadd.f32 %v4475, %v5202
        %v5348 = vadd.f32 %v4476, %v5204
        %v5349 = vadd.f32 %v4477, %v5206
        %v5350 = vadd.f32 %v4478, %v5210
        %v5351 = vadd.f32 %v4479, %v5212
        %v5352 = vadd.f32 %v4480, %v5214
        %v5353 = vadd.f32 %v4481, %v5216
        %v5354 = vadd.f32 %v4482, %v5220
        %v5355 = vadd.f32 %v4483, %v5222
        %v5356 = vadd.f32 %v4484, %v5224
        %v5357 = vadd.f32 %v4485, %v5226
        %v5358 = vadd.f32 %v4486, %v5230
        %v5359 = vadd.f32 %v4487, %v5232
        %v5360 = vadd.f32 %v4488, %v5234
        %v5361 = vadd.f32 %v4489, %v5236
        %v5362 = vadd.f32 %v4490, %v5240
        %v5363 = vadd.f32 %v4491, %v5242
        %v5364 = vadd.f32 %v4492, %v5244
        %v5365 = vadd.f32 %v4493, %v5246
        %v5366 = vadd.f32 %v4494, %v5250
        %v5367 = vadd.f32 %v4495, %v5252
        %v5368 = vadd.f32 %v4496, %v5254
        %v5369 = vadd.f32 %v4497, %v5256
        %v5370 = vadd.f32 %v4498, %v5260
        %v5371 = vadd.f32 %v4499, %v5262
        %v5372 = vadd.f32 %v4500, %v5264
        %v5373 = vadd.f32 %v4501, %v5266
        %v5374 = vadd.f32 %v4502, %v5270
        %v5375 = vadd.f32 %v4503, %v5272
        %v5376 = vadd.f32 %v4504, %v5274
        %v5377 = vadd.f32 %v4505, %v5276
        %v5378 = vadd.f32 %v4506, %v5280
        %v5379 = vadd.f32 %v4507, %v5282
        %v5380 = vadd.f32 %v4508, %v5284
        %v5381 = vadd.f32 %v4509, %v5286
        %v5382 = vadd.f32 %v4510, %v5290
        %v5383 = vadd.f32 %v4511, %v5292
        %v5384 = vadd.f32 %v4512, %v5294
        %v5385 = vadd.f32 %v4513, %v5296
        %v5386 = vadd.f32 %v4514, %v5300
        %v5387 = vadd.f32 %v4515, %v5302
        %v5388 = vadd.f32 %v4516, %v5304
        %v5389 = vadd.f32 %v4517, %v5306
        %v5390 = vadd.f32 %v4518, %v5310
        %v5391 = vadd.f32 %v4519, %v5312
        %v5392 = vadd.f32 %v4520, %v5314
        %v5393 = vadd.f32 %v4521, %v5316
        %v5394 = vadd.f32 %v4522, %v5320
        %v5395 = vadd.f32 %v4523, %v5322
        %v5396 = vadd.f32 %v4524, %v5324
        %v5397 = vadd.f32 %v4525, %v5326
        %v5398 = vadd.f32 %v4526, %v5330
        %v5399 = vadd.f32 %v4527, %v5332
        %v5400 = vadd.f32 %v4528, %v5334
        %v5401 = vadd.f32 %v4529, %v5336
        %v5402 = vld [vmem:[%s0 + $0x28] sm:$0x88]
        %v5403 = vld [vmem:[%s0 + $0x30] sm:$0xff]
        %v5404 = vld [vmem:[%s0 + $0x38] sm:$0xff]
        %v5405 = vld [vmem:[%s0 + $0x40] sm:$0xff]
        %v5406 = vld [vmem:[%s0 + $0x48] sm:$0xff]
        %v5407 = vld [vmem:[%s0 + $0x50] sm:$0xff]
        %v5408 = vld [vmem:[%s0 + $0x58] sm:$0xff]
        %v5409 = vld [vmem:[%s0 + $0x60] sm:$0xff]
        %v5410 = vld [vmem:[%s0 + $0x68] sm:$0xff]
        %v5411 = vld [vmem:[%s0 + $0x70] sm:$0xff]
        %v5412 = vld [vmem:[%s0 + $0x78] sm:$0xff]
        %v5413 = vld [vmem:[%s0 + $0x80] sm:$0xff]
        %v5414 = vld [vmem:[%s0 + $0x88] sm:$0xff]
        %v5415 = vld [vmem:[%s0 + $0x90] sm:$0xff]
        %v5416 = vld [vmem:[%s0 + $0x98] sm:$0xff]
        %v5417 = vld [vmem:[%s0 + $0xa0] sm:$0xff]
        %v5418 = vld [vmem:[%s0 + $0xa8] sm:$0xff]
        %v5419 = vld [vmem:[%s0 + $0xb0] sm:$0xff]
        %v5420 = vld [vmem:[%s0 + $0xb8] sm:$0xff]
        %v5421 = vld [vmem:[%s0 + $0xc0] sm:$0xff]
        %v5422 = vld [vmem:[%s0 + $0xc8] sm:$0xff]
        %v5423 = vld [vmem:[%s0 + $0xd0] sm:$0xff]
        %v5424 = vld [vmem:[%s0 + $0xd8] sm:$0xff]
        %v5425 = vld [vmem:[%s0 + $0xe0] sm:$0xff]
        %v5426 = vld [vmem:[%s0 + $0xe8] sm:$0xff]
        %v5427 = vld [vmem:[%s0 + $0xf0] sm:$0xff]
        %v5428 = vld [vmem:[%s0 + $0xf8] sm:$0xff]
        %v5429 = vld [vmem:[%s0 + $0x100] sm:$0xff]
        %v5430 = vld [vmem:[%s0 + $0x108] sm:$0xff]
        %v5431 = vld [vmem:[%s0 + $0x110] sm:$0xff]
        %v5432 = vld [vmem:[%s0 + $0x118] sm:$0xff]
        %v5433 = vld [vmem:[%s0 + $0x120] sm:$0xff]
        %v5434 = vld [vmem:[%s0 + $0x128] sm:$0xff]
        %s5435 = scalar_lea.vmem %s967, 960 [#allocation2]
        %v5436 = vld [vmem:[%s5435] sm:$0xff]
        %v5437 = vld [vmem:[%s5435 + $0x8] sm:$0xff]
        %v5438 = vld [vmem:[%s5435 + $0x10] sm:$0xff]
        %v5439 = vld [vmem:[%s5435 + $0x18] sm:$0xff]
        %v5440 = vld [vmem:[%s5435 + $0x20] sm:$0xff]
        %v5441 = vld [vmem:[%s5435 + $0x28] sm:$0xff]
        %v5442 = vld [vmem:[%s5435 + $0x30] sm:$0xff]
        %v5443 = vld [vmem:[%s5435 + $0x38] sm:$0xff]
        %v5444 = vld [vmem:[%s5435 + $0x40] sm:$0xff]
        %v5445 = vld [vmem:[%s5435 + $0x48] sm:$0xff]
        %v5446 = vld [vmem:[%s5435 + $0x50] sm:$0xff]
        %v5447 = vld [vmem:[%s5435 + $0x58] sm:$0xff]
        %v5448 = vld [vmem:[%s5435 + $0x60] sm:$0xff]
        %v5449 = vld [vmem:[%s5435 + $0x68] sm:$0xff]
        %v5450 = vld [vmem:[%s5435 + $0x70] sm:$0xff]
        %v5451 = vld [vmem:[%s5435 + $0x78] sm:$0xff]
        %v5452 = vld [vmem:[%s5435 + $0x80] sm:$0xff]
        %v5453 = vld [vmem:[%s5435 + $0x88] sm:$0xff]
        %v5454 = vld [vmem:[%s5435 + $0x90] sm:$0xff]
        %v5455 = vld [vmem:[%s5435 + $0x98] sm:$0xff]
        %v5489 = vunpack.c.l.b16 %v5402
        %v5490 = vunpack.c.h.b16 %v5402
        %v5491 = vunpack.c.l.b16 %v5403
        %v5492 = vunpack.c.h.b16 %v5403
        %v5493 = vunpack.c.l.b16 %v5404
        %v5494 = vunpack.c.h.b16 %v5404
        %v5495 = vunpack.c.l.b16 %v5405
        %v5496 = vunpack.c.h.b16 %v5405
        %v5497 = vunpack.c.l.b16 %v5406
        %v5498 = vunpack.c.h.b16 %v5406
        %v5499 = vunpack.c.l.b16 %v5407
        %v5500 = vunpack.c.h.b16 %v5407
        %v5501 = vunpack.c.l.b16 %v5408
        %v5502 = vunpack.c.h.b16 %v5408
        %v5503 = vunpack.c.l.b16 %v5409
        %v5504 = vunpack.c.h.b16 %v5409
        %v5505 = vunpack.c.l.b16 %v5410
        %v5506 = vunpack.c.h.b16 %v5410
        %v5507 = vunpack.c.l.b16 %v5411
        %v5508 = vunpack.c.h.b16 %v5411
        %v5509 = vunpack.c.l.b16 %v5412
        %v5510 = vunpack.c.h.b16 %v5412
        %v5511 = vunpack.c.l.b16 %v5413
        %v5512 = vunpack.c.h.b16 %v5413
        %v5513 = vunpack.c.l.b16 %v5414
        %v5514 = vunpack.c.h.b16 %v5414
        %v5515 = vunpack.c.l.b16 %v5415
        %v5516 = vunpack.c.h.b16 %v5415
        %v5517 = vunpack.c.l.b16 %v5416
        %v5518 = vunpack.c.h.b16 %v5416
        %v5519 = vunpack.c.l.b16 %v5417
        %v5520 = vunpack.c.h.b16 %v5417
        %v5521 = vunpack.c.l.b16 %v5418
        %v5522 = vunpack.c.h.b16 %v5418
        %v5523 = vunpack.c.l.b16 %v5419
        %v5524 = vunpack.c.h.b16 %v5419
        %v5525 = vunpack.c.l.b16 %v5420
        %v5526 = vunpack.c.h.b16 %v5420
        %v5527 = vunpack.c.l.b16 %v5421
        %v5528 = vunpack.c.h.b16 %v5421
        %v5529 = vunpack.c.l.b16 %v5422
        %v5530 = vunpack.c.h.b16 %v5422
        %v5531 = vunpack.c.l.b16 %v5423
        %v5532 = vunpack.c.h.b16 %v5423
        %v5533 = vunpack.c.l.b16 %v5424
        %v5534 = vunpack.c.h.b16 %v5424
        %v5535 = vunpack.c.l.b16 %v5425
        %v5536 = vunpack.c.h.b16 %v5425
        %v5537 = vunpack.c.l.b16 %v5426
        %v5538 = vunpack.c.h.b16 %v5426
        %v5539 = vunpack.c.l.b16 %v5427
        %v5540 = vunpack.c.h.b16 %v5427
        %v5541 = vunpack.c.l.b16 %v5428
        %v5542 = vunpack.c.h.b16 %v5428
        %v5543 = vunpack.c.l.b16 %v5429
        %v5544 = vunpack.c.h.b16 %v5429
        %v5545 = vunpack.c.l.b16 %v5430
        %v5546 = vunpack.c.h.b16 %v5430
        %v5547 = vunpack.c.l.b16 %v5431
        %v5548 = vunpack.c.h.b16 %v5431
        %v5549 = vunpack.c.l.b16 %v5432
        %v5550 = vunpack.c.h.b16 %v5432
        %v5551 = vunpack.c.l.b16 %v5433
        %v5552 = vunpack.c.h.b16 %v5433
        %v5553 = vunpack.c.l.b16 %v5434
        %v5554 = vunpack.c.h.b16 %v5434
        %v5555 = vpack.c.b16 %v5491, %v5489
        %v5556 = vpack.c.b16 %v5492, %v5490
        %v5557 = vpack.c.b16 %v5495, %v5493
        %v5558 = vpack.c.b16 %v5496, %v5494
        %v5559 = vpack.c.b16 %v5499, %v5497
        %v5560 = vpack.c.b16 %v5500, %v5498
        %v5561 = vpack.c.b16 %v5503, %v5501
        %v5562 = vpack.c.b16 %v5504, %v5502
        %v5563 = vpack.c.b16 %v5507, %v5505
        %v5564 = vpack.c.b16 %v5508, %v5506
        %v5565 = vpack.c.b16 %v5511, %v5509
        %v5566 = vpack.c.b16 %v5512, %v5510
        %v5567 = vpack.c.b16 %v5515, %v5513
        %v5568 = vpack.c.b16 %v5516, %v5514
        %v5569 = vpack.c.b16 %v5519, %v5517
        %v5570 = vpack.c.b16 %v5520, %v5518
        %v5571 = vpack.c.b16 %v5523, %v5521
        %v5572 = vpack.c.b16 %v5524, %v5522
        %v5573 = vpack.c.b16 %v5527, %v5525
        %v5574 = vpack.c.b16 %v5528, %v5526
        %v5575 = vpack.c.b16 %v5531, %v5529
        %v5576 = vpack.c.b16 %v5532, %v5530
        %v5577 = vpack.c.b16 %v5535, %v5533
        %v5578 = vpack.c.b16 %v5536, %v5534
        %v5579 = vpack.c.b16 %v5539, %v5537
        %v5580 = vpack.c.b16 %v5540, %v5538
        %v5581 = vpack.c.b16 %v5543, %v5541
        %v5582 = vpack.c.b16 %v5544, %v5542
        %v5583 = vpack.c.b16 %v5547, %v5545
        %v5584 = vpack.c.b16 %v5548, %v5546
        %v5585 = vpack.c.b16 %v5551, %v5549
        %v5586 = vpack.c.b16 %v5552, %v5550
        %v5587 = vpack.c.b16 %v5553, %v5553
        %v5588 = vpack.c.b16 %v5554, %v5554
        %v5590 = vshrl.u32 %v5555, 16
        %v5592 = vrot.slane %v5590, 3
        %v5593 = vshll.u32 %v5555, 16
        %v5595 = vrot.slane %v5593, 4
        %v5596 = vor.u32 %v5592, %v5595
        %v5598 = vshrl.u32 %v5557, 16
        %v5600 = vrot.slane %v5598, 3
        %v5601 = vshll.u32 %v5557, 16
        %v5603 = vrot.slane %v5601, 4
        %v5604 = vor.u32 %v5600, %v5603
        %v5605 = vsel %vm1609, %v5596, %v5604
        %v5607 = vshrl.u32 %v5556, 16
        %v5609 = vrot.slane %v5607, 3
        %v5610 = vshll.u32 %v5556, 16
        %v5612 = vrot.slane %v5610, 4
        %v5613 = vor.u32 %v5609, %v5612
        %v5615 = vshrl.u32 %v5558, 16
        %v5617 = vrot.slane %v5615, 3
        %v5618 = vshll.u32 %v5558, 16
        %v5620 = vrot.slane %v5618, 4
        %v5621 = vor.u32 %v5617, %v5620
        %v5622 = vsel %vm1609, %v5613, %v5621
        %v5624 = vshrl.u32 %v5559, 16
        %v5626 = vrot.slane %v5624, 3
        %v5627 = vshll.u32 %v5559, 16
        %v5629 = vrot.slane %v5627, 4
        %v5630 = vor.u32 %v5626, %v5629
        %v5631 = vsel %vm1609, %v5604, %v5630
        %v5633 = vshrl.u32 %v5560, 16
        %v5635 = vrot.slane %v5633, 3
        %v5636 = vshll.u32 %v5560, 16
        %v5638 = vrot.slane %v5636, 4
        %v5639 = vor.u32 %v5635, %v5638
        %v5640 = vsel %vm1609, %v5621, %v5639
        %v5642 = vshrl.u32 %v5561, 16
        %v5644 = vrot.slane %v5642, 3
        %v5645 = vshll.u32 %v5561, 16
        %v5647 = vrot.slane %v5645, 4
        %v5648 = vor.u32 %v5644, %v5647
        %v5649 = vsel %vm1609, %v5630, %v5648
        %v5651 = vshrl.u32 %v5562, 16
        %v5653 = vrot.slane %v5651, 3
        %v5654 = vshll.u32 %v5562, 16
        %v5656 = vrot.slane %v5654, 4
        %v5657 = vor.u32 %v5653, %v5656
        %v5658 = vsel %vm1609, %v5639, %v5657
        %v5660 = vshrl.u32 %v5563, 16
        %v5662 = vrot.slane %v5660, 3
        %v5663 = vshll.u32 %v5563, 16
        %v5665 = vrot.slane %v5663, 4
        %v5666 = vor.u32 %v5662, %v5665
        %v5667 = vsel %vm1609, %v5648, %v5666
        %v5669 = vshrl.u32 %v5564, 16
        %v5671 = vrot.slane %v5669, 3
        %v5672 = vshll.u32 %v5564, 16
        %v5674 = vrot.slane %v5672, 4
        %v5675 = vor.u32 %v5671, %v5674
        %v5676 = vsel %vm1609, %v5657, %v5675
        %v5678 = vshrl.u32 %v5565, 16
        %v5680 = vrot.slane %v5678, 3
        %v5681 = vshll.u32 %v5565, 16
        %v5683 = vrot.slane %v5681, 4
        %v5684 = vor.u32 %v5680, %v5683
        %v5685 = vsel %vm1609, %v5666, %v5684
        %v5687 = vshrl.u32 %v5566, 16
        %v5689 = vrot.slane %v5687, 3
        %v5690 = vshll.u32 %v5566, 16
        %v5692 = vrot.slane %v5690, 4
        %v5693 = vor.u32 %v5689, %v5692
        %v5694 = vsel %vm1609, %v5675, %v5693
        %v5696 = vshrl.u32 %v5567, 16
        %v5698 = vrot.slane %v5696, 3
        %v5699 = vshll.u32 %v5567, 16
        %v5701 = vrot.slane %v5699, 4
        %v5702 = vor.u32 %v5698, %v5701
        %v5703 = vsel %vm1609, %v5684, %v5702
        %v5705 = vshrl.u32 %v5568, 16
        %v5707 = vrot.slane %v5705, 3
        %v5708 = vshll.u32 %v5568, 16
        %v5710 = vrot.slane %v5708, 4
        %v5711 = vor.u32 %v5707, %v5710
        %v5712 = vsel %vm1609, %v5693, %v5711
        %v5714 = vshrl.u32 %v5569, 16
        %v5716 = vrot.slane %v5714, 3
        %v5717 = vshll.u32 %v5569, 16
        %v5719 = vrot.slane %v5717, 4
        %v5720 = vor.u32 %v5716, %v5719
        %v5721 = vsel %vm1609, %v5702, %v5720
        %v5723 = vshrl.u32 %v5570, 16
        %v5725 = vrot.slane %v5723, 3
        %v5726 = vshll.u32 %v5570, 16
        %v5728 = vrot.slane %v5726, 4
        %v5729 = vor.u32 %v5725, %v5728
        %v5730 = vsel %vm1609, %v5711, %v5729
        %v5732 = vshrl.u32 %v5571, 16
        %v5734 = vrot.slane %v5732, 3
        %v5735 = vshll.u32 %v5571, 16
        %v5737 = vrot.slane %v5735, 4
        %v5738 = vor.u32 %v5734, %v5737
        %v5739 = vsel %vm1609, %v5720, %v5738
        %v5741 = vshrl.u32 %v5572, 16
        %v5743 = vrot.slane %v5741, 3
        %v5744 = vshll.u32 %v5572, 16
        %v5746 = vrot.slane %v5744, 4
        %v5747 = vor.u32 %v5743, %v5746
        %v5748 = vsel %vm1609, %v5729, %v5747
        %v5750 = vshrl.u32 %v5573, 16
        %v5752 = vrot.slane %v5750, 3
        %v5753 = vshll.u32 %v5573, 16
        %v5755 = vrot.slane %v5753, 4
        %v5756 = vor.u32 %v5752, %v5755
        %v5757 = vsel %vm1609, %v5738, %v5756
        %v5759 = vshrl.u32 %v5574, 16
        %v5761 = vrot.slane %v5759, 3
        %v5762 = vshll.u32 %v5574, 16
        %v5764 = vrot.slane %v5762, 4
        %v5765 = vor.u32 %v5761, %v5764
        %v5766 = vsel %vm1609, %v5747, %v5765
        %v5768 = vshrl.u32 %v5575, 16
        %v5770 = vrot.slane %v5768, 3
        %v5771 = vshll.u32 %v5575, 16
        %v5773 = vrot.slane %v5771, 4
        %v5774 = vor.u32 %v5770, %v5773
        %v5775 = vsel %vm1609, %v5756, %v5774
        %v5777 = vshrl.u32 %v5576, 16
        %v5779 = vrot.slane %v5777, 3
        %v5780 = vshll.u32 %v5576, 16
        %v5782 = vrot.slane %v5780, 4
        %v5783 = vor.u32 %v5779, %v5782
        %v5784 = vsel %vm1609, %v5765, %v5783
        %v5786 = vshrl.u32 %v5577, 16
        %v5788 = vrot.slane %v5786, 3
        %v5789 = vshll.u32 %v5577, 16
        %v5791 = vrot.slane %v5789, 4
        %v5792 = vor.u32 %v5788, %v5791
        %v5793 = vsel %vm1609, %v5774, %v5792
        %v5795 = vshrl.u32 %v5578, 16
        %v5797 = vrot.slane %v5795, 3
        %v5798 = vshll.u32 %v5578, 16
        %v5800 = vrot.slane %v5798, 4
        %v5801 = vor.u32 %v5797, %v5800
        %v5802 = vsel %vm1609, %v5783, %v5801
        %v5804 = vshrl.u32 %v5579, 16
        %v5806 = vrot.slane %v5804, 3
        %v5807 = vshll.u32 %v5579, 16
        %v5809 = vrot.slane %v5807, 4
        %v5810 = vor.u32 %v5806, %v5809
        %v5811 = vsel %vm1609, %v5792, %v5810
        %v5813 = vshrl.u32 %v5580, 16
        %v5815 = vrot.slane %v5813, 3
        %v5816 = vshll.u32 %v5580, 16
        %v5818 = vrot.slane %v5816, 4
        %v5819 = vor.u32 %v5815, %v5818
        %v5820 = vsel %vm1609, %v5801, %v5819
        %v5822 = vshrl.u32 %v5581, 16
        %v5824 = vrot.slane %v5822, 3
        %v5825 = vshll.u32 %v5581, 16
        %v5827 = vrot.slane %v5825, 4
        %v5828 = vor.u32 %v5824, %v5827
        %v5829 = vsel %vm1609, %v5810, %v5828
        %v5831 = vshrl.u32 %v5582, 16
        %v5833 = vrot.slane %v5831, 3
        %v5834 = vshll.u32 %v5582, 16
        %v5836 = vrot.slane %v5834, 4
        %v5837 = vor.u32 %v5833, %v5836
        %v5838 = vsel %vm1609, %v5819, %v5837
        %v5840 = vshrl.u32 %v5583, 16
        %v5842 = vrot.slane %v5840, 3
        %v5843 = vshll.u32 %v5583, 16
        %v5845 = vrot.slane %v5843, 4
        %v5846 = vor.u32 %v5842, %v5845
        %v5847 = vsel %vm1609, %v5828, %v5846
        %v5849 = vshrl.u32 %v5584, 16
        %v5851 = vrot.slane %v5849, 3
        %v5852 = vshll.u32 %v5584, 16
        %v5854 = vrot.slane %v5852, 4
        %v5855 = vor.u32 %v5851, %v5854
        %v5856 = vsel %vm1609, %v5837, %v5855
        %v5858 = vshrl.u32 %v5585, 16
        %v5860 = vrot.slane %v5858, 3
        %v5861 = vshll.u32 %v5585, 16
        %v5863 = vrot.slane %v5861, 4
        %v5864 = vor.u32 %v5860, %v5863
        %v5865 = vsel %vm1609, %v5846, %v5864
        %v5867 = vshrl.u32 %v5586, 16
        %v5869 = vrot.slane %v5867, 3
        %v5870 = vshll.u32 %v5586, 16
        %v5872 = vrot.slane %v5870, 4
        %v5873 = vor.u32 %v5869, %v5872
        %v5874 = vsel %vm1609, %v5855, %v5873
        %v5876 = vshrl.u32 %v5587, 16
        %v5878 = vrot.slane %v5876, 3
        %v5879 = vshll.u32 %v5587, 16
        %v5881 = vrot.slane %v5879, 4
        %v5882 = vor.u32 %v5878, %v5881
        %v5883 = vsel %vm1609, %v5864, %v5882
        %v5885 = vshrl.u32 %v5588, 16
        %v5887 = vrot.slane %v5885, 3
        %v5888 = vshll.u32 %v5588, 16
        %v5890 = vrot.slane %v5888, 4
        %v5891 = vor.u32 %v5887, %v5890
        %v5892 = vsel %vm1609, %v5873, %v5891
        %v5929 = vunpack.c.l.b16 %v5436
        %v5930 = vunpack.c.h.b16 %v5436
        %v5931 = vunpack.c.l.b16 %v5437
        %v5932 = vunpack.c.h.b16 %v5437
        %v5933 = vunpack.c.l.b16 %v5438
        %v5934 = vunpack.c.h.b16 %v5438
        %v5935 = vunpack.c.l.b16 %v5439
        %v5936 = vunpack.c.h.b16 %v5439
        %v5937 = vunpack.c.l.b16 %v5440
        %v5938 = vunpack.c.h.b16 %v5440
        %v5939 = vunpack.c.l.b16 %v5441
        %v5940 = vunpack.c.h.b16 %v5441
        %v5941 = vunpack.c.l.b16 %v5442
        %v5942 = vunpack.c.h.b16 %v5442
        %v5943 = vunpack.c.l.b16 %v5443
        %v5944 = vunpack.c.h.b16 %v5443
        %v5945 = vunpack.c.l.b16 %v5444
        %v5946 = vunpack.c.h.b16 %v5444
        %v5947 = vunpack.c.l.b16 %v5445
        %v5948 = vunpack.c.h.b16 %v5445
        %v5949 = vunpack.c.l.b16 %v5446
        %v5950 = vunpack.c.h.b16 %v5446
        %v5951 = vunpack.c.l.b16 %v5447
        %v5952 = vunpack.c.h.b16 %v5447
        %v5953 = vunpack.c.l.b16 %v5448
        %v5954 = vunpack.c.h.b16 %v5448
        %v5955 = vunpack.c.l.b16 %v5449
        %v5956 = vunpack.c.h.b16 %v5449
        %v5957 = vunpack.c.l.b16 %v5450
        %v5958 = vunpack.c.h.b16 %v5450
        %v5959 = vunpack.c.l.b16 %v5451
        %v5960 = vunpack.c.h.b16 %v5451
        %v5961 = vunpack.c.l.b16 %v5452
        %v5962 = vunpack.c.h.b16 %v5452
        %v5963 = vunpack.c.l.b16 %v5453
        %v5964 = vunpack.c.h.b16 %v5453
        %v5965 = vunpack.c.l.b16 %v5454
        %v5966 = vunpack.c.h.b16 %v5454
        %v5967 = vunpack.c.l.b16 %v5455
        %v5968 = vunpack.c.h.b16 %v5455
        %v5969 = vpack.c.b16 %v5931, %v5929
        %v5970 = vpack.c.b16 %v5932, %v5930
        %v5971 = vpack.c.b16 %v5935, %v5933
        %v5972 = vpack.c.b16 %v5936, %v5934
        %v5973 = vpack.c.b16 %v5939, %v5937
        %v5974 = vpack.c.b16 %v5940, %v5938
        %v5975 = vpack.c.b16 %v5943, %v5941
        %v5976 = vpack.c.b16 %v5944, %v5942
        %v5977 = vpack.c.b16 %v5947, %v5945
        %v5978 = vpack.c.b16 %v5948, %v5946
        %v5979 = vpack.c.b16 %v5951, %v5949
        %v5980 = vpack.c.b16 %v5952, %v5950
        %v5981 = vpack.c.b16 %v5955, %v5953
        %v5982 = vpack.c.b16 %v5956, %v5954
        %v5983 = vpack.c.b16 %v5959, %v5957
        %v5984 = vpack.c.b16 %v5960, %v5958
        %v5985 = vpack.c.b16 %v5963, %v5961
        %v5986 = vpack.c.b16 %v5964, %v5962
        %v5987 = vpack.c.b16 %v5967, %v5965
        %v5988 = vpack.c.b16 %v5968, %v5966
        %v6010 = vsel %vm1330, %v5622, 0
        %v6013 = vsel %vm1330, %v5640, 0
        %v6016 = vsel %vm1330, %v5658, 0
        %v6019 = vsel %vm1330, %v5676, 0
        %v6022 = vsel %vm1330, %v5694, 0
        %v6025 = vsel %vm1330, %v5712, 0
        %v6028 = vsel %vm1330, %v5730, 0
        %v6031 = vsel %vm1330, %v5748, 0
        %v6034 = vsel %vm1330, %v5766, 0
        %v6037 = vsel %vm1330, %v5784, 0
        %v6040 = vsel %vm1330, %v5802, 0
        %v6043 = vsel %vm1330, %v5820, 0
        %v6046 = vsel %vm1330, %v5838, 0
        %v6049 = vsel %vm1330, %v5856, 0
        %v6052 = vsel %vm1330, %v5874, 0
        %v6055 = vsel %vm1330, %v5892, 0
        %6057 = vmatprep.subr.bf16.mxu0 %v5984
        %6058 = vmatpush1.bf16.msra.mxu0 %v5983
        %6059 = vmatprep.subr.bf16.mxu0 %v5982
        %6060 = vmatpush1.bf16.msra.mxu0 %v5981
        %6061 = vmatprep.subr.bf16.mxu0 %v5980
        %6062 = vmatpush1.bf16.msra.mxu0 %v5979
        %6063 = vmatprep.subr.bf16.mxu0 %v5978
        %6064 = vmatpush1.bf16.msra.mxu0 %v5977
        %6065 = vmatprep.subr.bf16.mxu0 %v5976
        %6066 = vmatpush1.bf16.msra.mxu0 %v5975
        %6067 = vmatprep.subr.bf16.mxu0 %v5974
        %6068 = vmatpush1.bf16.msra.mxu0 %v5973
        %6069 = vmatprep.subr.bf16.mxu0 %v5972
        %6070 = vmatpush1.bf16.msra.mxu0 %v5971
        %6071 = vmatprep.subr.bf16.mxu0 %v5970
        %6072 = vmatpush1.bf16.msra.mxu0 %v5969
        %6073 = vmatprep.subr.bf16.mxu0 0
        %6074 = vmatpush2.bf16.msra.mxu0 0
        %6075 = vmatprep.subr.bf16.mxu0 0
        %6076 = vmatpush2.bf16.msra.mxu0 0
        %6077 = vmatprep.subr.bf16.mxu0 0
        %6078 = vmatpush2.bf16.msra.mxu0 0
        %6079 = vmatprep.subr.bf16.mxu0 0
        %6080 = vmatpush2.bf16.msra.mxu0 0
        %6081 = vmatprep.subr.bf16.mxu0 0
        %6082 = vmatpush2.bf16.msra.mxu0 0
        %6083 = vmatprep.subr.bf16.mxu0 0
        %6084 = vmatpush2.bf16.msra.mxu0 0
        %6085 = vmatprep.subr.bf16.mxu0 %v5988
        %6086 = vmatpush2.bf16.msra.mxu0 %v5987
        %6087 = vmatprep.subr.bf16.mxu0 %v5986
        %6088 = vmatpush2.bf16.msra.mxu0 %v5985
        %6089 = vmatprep.mubr.bf16.mxu0 %v6010
        %6090 = vmatmul.mubr.bf16.gmra.mxu0 %v5605
        %v6091 = vpop.f32.mrf.mxu0
        %v6092 = vadd.f32 0.0, %v6091
        %v6093 = vpop.f32.mrf.mxu0
        %v6094 = vadd.f32 0.0, %v6093
        %v6095 = vpop.f32.mrf.mxu0
        %v6096 = vadd.f32 0.0, %v6095
        %v6097 = vpop.f32.mrf.mxu0
        %v6098 = vadd.f32 0.0, %v6097
        %6099 = vmatprep.mubr.bf16.mxu0 %v6013
        %6100 = vmatmul.mubr.bf16.gmra.mxu0 %v5631
        %v6101 = vpop.f32.mrf.mxu0
        %v6102 = vadd.f32 0.0, %v6101
        %v6103 = vpop.f32.mrf.mxu0
        %v6104 = vadd.f32 0.0, %v6103
        %v6105 = vpop.f32.mrf.mxu0
        %v6106 = vadd.f32 0.0, %v6105
        %v6107 = vpop.f32.mrf.mxu0
        %v6108 = vadd.f32 0.0, %v6107
        %6109 = vmatprep.mubr.bf16.mxu0 %v6016
        %6110 = vmatmul.mubr.bf16.gmra.mxu0 %v5649
        %v6111 = vpop.f32.mrf.mxu0
        %v6112 = vadd.f32 0.0, %v6111
        %v6113 = vpop.f32.mrf.mxu0
        %v6114 = vadd.f32 0.0, %v6113
        %v6115 = vpop.f32.mrf.mxu0
        %v6116 = vadd.f32 0.0, %v6115
        %v6117 = vpop.f32.mrf.mxu0
        %v6118 = vadd.f32 0.0, %v6117
        %6119 = vmatprep.mubr.bf16.mxu0 %v6019
        %6120 = vmatmul.mubr.bf16.gmra.mxu0 %v5667
        %v6121 = vpop.f32.mrf.mxu0
        %v6122 = vadd.f32 0.0, %v6121
        %v6123 = vpop.f32.mrf.mxu0
        %v6124 = vadd.f32 0.0, %v6123
        %v6125 = vpop.f32.mrf.mxu0
        %v6126 = vadd.f32 0.0, %v6125
        %v6127 = vpop.f32.mrf.mxu0
        %v6128 = vadd.f32 0.0, %v6127
        %6129 = vmatprep.mubr.bf16.mxu0 %v6022
        %6130 = vmatmul.mubr.bf16.gmra.mxu0 %v5685
        %v6131 = vpop.f32.mrf.mxu0
        %v6132 = vadd.f32 0.0, %v6131
        %v6133 = vpop.f32.mrf.mxu0
        %v6134 = vadd.f32 0.0, %v6133
        %v6135 = vpop.f32.mrf.mxu0
        %v6136 = vadd.f32 0.0, %v6135
        %v6137 = vpop.f32.mrf.mxu0
        %v6138 = vadd.f32 0.0, %v6137
        %6139 = vmatprep.mubr.bf16.mxu0 %v6025
        %6140 = vmatmul.mubr.bf16.gmra.mxu0 %v5703
        %v6141 = vpop.f32.mrf.mxu0
        %v6142 = vadd.f32 0.0, %v6141
        %v6143 = vpop.f32.mrf.mxu0
        %v6144 = vadd.f32 0.0, %v6143
        %v6145 = vpop.f32.mrf.mxu0
        %v6146 = vadd.f32 0.0, %v6145
        %v6147 = vpop.f32.mrf.mxu0
        %v6148 = vadd.f32 0.0, %v6147
        %6149 = vmatprep.mubr.bf16.mxu0 %v6028
        %6150 = vmatmul.mubr.bf16.gmra.mxu0 %v5721
        %v6151 = vpop.f32.mrf.mxu0
        %v6152 = vadd.f32 0.0, %v6151
        %v6153 = vpop.f32.mrf.mxu0
        %v6154 = vadd.f32 0.0, %v6153
        %v6155 = vpop.f32.mrf.mxu0
        %v6156 = vadd.f32 0.0, %v6155
        %v6157 = vpop.f32.mrf.mxu0
        %v6158 = vadd.f32 0.0, %v6157
        %6159 = vmatprep.mubr.bf16.mxu0 %v6031
        %6160 = vmatmul.mubr.bf16.gmra.mxu0 %v5739
        %v6161 = vpop.f32.mrf.mxu0
        %v6162 = vadd.f32 0.0, %v6161
        %v6163 = vpop.f32.mrf.mxu0
        %v6164 = vadd.f32 0.0, %v6163
        %v6165 = vpop.f32.mrf.mxu0
        %v6166 = vadd.f32 0.0, %v6165
        %v6167 = vpop.f32.mrf.mxu0
        %v6168 = vadd.f32 0.0, %v6167
        %6169 = vmatprep.mubr.bf16.mxu0 %v6034
        %6170 = vmatmul.mubr.bf16.gmra.mxu0 %v5757
        %v6171 = vpop.f32.mrf.mxu0
        %v6172 = vadd.f32 0.0, %v6171
        %v6173 = vpop.f32.mrf.mxu0
        %v6174 = vadd.f32 0.0, %v6173
        %v6175 = vpop.f32.mrf.mxu0
        %v6176 = vadd.f32 0.0, %v6175
        %v6177 = vpop.f32.mrf.mxu0
        %v6178 = vadd.f32 0.0, %v6177
        %6179 = vmatprep.mubr.bf16.mxu0 %v6037
        %6180 = vmatmul.mubr.bf16.gmra.mxu0 %v5775
        %v6181 = vpop.f32.mrf.mxu0
        %v6182 = vadd.f32 0.0, %v6181
        %v6183 = vpop.f32.mrf.mxu0
        %v6184 = vadd.f32 0.0, %v6183
        %v6185 = vpop.f32.mrf.mxu0
        %v6186 = vadd.f32 0.0, %v6185
        %v6187 = vpop.f32.mrf.mxu0
        %v6188 = vadd.f32 0.0, %v6187
        %6189 = vmatprep.mubr.bf16.mxu0 %v6040
        %6190 = vmatmul.mubr.bf16.gmra.mxu0 %v5793
        %v6191 = vpop.f32.mrf.mxu0
        %v6192 = vadd.f32 0.0, %v6191
        %v6193 = vpop.f32.mrf.mxu0
        %v6194 = vadd.f32 0.0, %v6193
        %v6195 = vpop.f32.mrf.mxu0
        %v6196 = vadd.f32 0.0, %v6195
        %v6197 = vpop.f32.mrf.mxu0
        %v6198 = vadd.f32 0.0, %v6197
        %6199 = vmatprep.mubr.bf16.mxu0 %v6043
        %6200 = vmatmul.mubr.bf16.gmra.mxu0 %v5811
        %v6201 = vpop.f32.mrf.mxu0
        %v6202 = vadd.f32 0.0, %v6201
        %v6203 = vpop.f32.mrf.mxu0
        %v6204 = vadd.f32 0.0, %v6203
        %v6205 = vpop.f32.mrf.mxu0
        %v6206 = vadd.f32 0.0, %v6205
        %v6207 = vpop.f32.mrf.mxu0
        %v6208 = vadd.f32 0.0, %v6207
        %6209 = vmatprep.mubr.bf16.mxu0 %v6046
        %6210 = vmatmul.mubr.bf16.gmra.mxu0 %v5829
        %v6211 = vpop.f32.mrf.mxu0
        %v6212 = vadd.f32 0.0, %v6211
        %v6213 = vpop.f32.mrf.mxu0
        %v6214 = vadd.f32 0.0, %v6213
        %v6215 = vpop.f32.mrf.mxu0
        %v6216 = vadd.f32 0.0, %v6215
        %v6217 = vpop.f32.mrf.mxu0
        %v6218 = vadd.f32 0.0, %v6217
        %6219 = vmatprep.mubr.bf16.mxu0 %v6049
        %6220 = vmatmul.mubr.bf16.gmra.mxu0 %v5847
        %v6221 = vpop.f32.mrf.mxu0
        %v6222 = vadd.f32 0.0, %v6221
        %v6223 = vpop.f32.mrf.mxu0
        %v6224 = vadd.f32 0.0, %v6223
        %v6225 = vpop.f32.mrf.mxu0
        %v6226 = vadd.f32 0.0, %v6225
        %v6227 = vpop.f32.mrf.mxu0
        %v6228 = vadd.f32 0.0, %v6227
        %6229 = vmatprep.mubr.bf16.mxu0 %v6052
        %6230 = vmatmul.mubr.bf16.gmra.mxu0 %v5865
        %v6231 = vpop.f32.mrf.mxu0
        %v6232 = vadd.f32 0.0, %v6231
        %v6233 = vpop.f32.mrf.mxu0
        %v6234 = vadd.f32 0.0, %v6233
        %v6235 = vpop.f32.mrf.mxu0
        %v6236 = vadd.f32 0.0, %v6235
        %v6237 = vpop.f32.mrf.mxu0
        %v6238 = vadd.f32 0.0, %v6237
        %6239 = vmatprep.mubr.bf16.mxu0 %v6055
        %6240 = vmatmul.mubr.bf16.gmra.mxu0 %v5883
        %v6241 = vpop.f32.mrf.mxu0
        %v6242 = vadd.f32 0.0, %v6241
        %v6243 = vpop.f32.mrf.mxu0
        %v6244 = vadd.f32 0.0, %v6243
        %v6245 = vpop.f32.mrf.mxu0
        %v6246 = vadd.f32 0.0, %v6245
        %v6247 = vpop.f32.mrf.mxu0
        %v6248 = vadd.f32 0.0, %v6247
        %6249 = vdwg.mxu0
        %v6250 = vadd.f32 %v5338, %v6092
        %v6251 = vadd.f32 %v5339, %v6094
        %v6252 = vadd.f32 %v5340, %v6096
        %v6253 = vadd.f32 %v5341, %v6098
        %v6254 = vadd.f32 %v5342, %v6102
        %v6255 = vadd.f32 %v5343, %v6104
        %v6256 = vadd.f32 %v5344, %v6106
        %v6257 = vadd.f32 %v5345, %v6108
        %v6258 = vadd.f32 %v5346, %v6112
        %v6259 = vadd.f32 %v5347, %v6114
        %v6260 = vadd.f32 %v5348, %v6116
        %v6261 = vadd.f32 %v5349, %v6118
        %v6262 = vadd.f32 %v5350, %v6122
        %v6263 = vadd.f32 %v5351, %v6124
        %v6264 = vadd.f32 %v5352, %v6126
        %v6265 = vadd.f32 %v5353, %v6128
        %v6266 = vadd.f32 %v5354, %v6132
        %v6267 = vadd.f32 %v5355, %v6134
        %v6268 = vadd.f32 %v5356, %v6136
        %v6269 = vadd.f32 %v5357, %v6138
        %v6270 = vadd.f32 %v5358, %v6142
        %v6271 = vadd.f32 %v5359, %v6144
        %v6272 = vadd.f32 %v5360, %v6146
        %v6273 = vadd.f32 %v5361, %v6148
        %v6274 = vadd.f32 %v5362, %v6152
        %v6275 = vadd.f32 %v5363, %v6154
        %v6276 = vadd.f32 %v5364, %v6156
        %v6277 = vadd.f32 %v5365, %v6158
        %v6278 = vadd.f32 %v5366, %v6162
        %v6279 = vadd.f32 %v5367, %v6164
        %v6280 = vadd.f32 %v5368, %v6166
        %v6281 = vadd.f32 %v5369, %v6168
        %v6282 = vadd.f32 %v5370, %v6172
        %v6283 = vadd.f32 %v5371, %v6174
        %v6284 = vadd.f32 %v5372, %v6176
        %v6285 = vadd.f32 %v5373, %v6178
        %v6286 = vadd.f32 %v5374, %v6182
        %v6287 = vadd.f32 %v5375, %v6184
        %v6288 = vadd.f32 %v5376, %v6186
        %v6289 = vadd.f32 %v5377, %v6188
        %v6290 = vadd.f32 %v5378, %v6192
        %v6291 = vadd.f32 %v5379, %v6194
        %v6292 = vadd.f32 %v5380, %v6196
        %v6293 = vadd.f32 %v5381, %v6198
        %v6294 = vadd.f32 %v5382, %v6202
        %v6295 = vadd.f32 %v5383, %v6204
        %v6296 = vadd.f32 %v5384, %v6206
        %v6297 = vadd.f32 %v5385, %v6208
        %v6298 = vadd.f32 %v5386, %v6212
        %v6299 = vadd.f32 %v5387, %v6214
        %v6300 = vadd.f32 %v5388, %v6216
        %v6301 = vadd.f32 %v5389, %v6218
        %v6302 = vadd.f32 %v5390, %v6222
        %v6303 = vadd.f32 %v5391, %v6224
        %v6304 = vadd.f32 %v5392, %v6226
        %v6305 = vadd.f32 %v5393, %v6228
        %v6306 = vadd.f32 %v5394, %v6232
        %v6307 = vadd.f32 %v5395, %v6234
        %v6308 = vadd.f32 %v5396, %v6236
        %v6309 = vadd.f32 %v5397, %v6238
        %v6310 = vadd.f32 %v5398, %v6242
        %v6311 = vadd.f32 %v5399, %v6244
        %v6312 = vadd.f32 %v5400, %v6246
        %v6313 = vadd.f32 %v5401, %v6248
        %s6314 = scalar_lea.vmem %s967, 1120 [#allocation2]
        %v6315 = vld [vmem:[%s6314] sm:$0xff]
        %v6316 = vld [vmem:[%s6314 + $0x8] sm:$0xff]
        %v6317 = vld [vmem:[%s6314 + $0x10] sm:$0xff]
        %v6318 = vld [vmem:[%s6314 + $0x18] sm:$0xff]
        %v6319 = vld [vmem:[%s6314 + $0x20] sm:$0xff]
        %v6320 = vld [vmem:[%s6314 + $0x28] sm:$0xff]
        %v6321 = vld [vmem:[%s6314 + $0x30] sm:$0xff]
        %v6322 = vld [vmem:[%s6314 + $0x38] sm:$0xff]
        %v6323 = vld [vmem:[%s6314 + $0x40] sm:$0xff]
        %v6324 = vld [vmem:[%s6314 + $0x48] sm:$0xff]
        %v6325 = vld [vmem:[%s6314 + $0x50] sm:$0xff]
        %v6326 = vld [vmem:[%s6314 + $0x58] sm:$0xff]
        %v6327 = vld [vmem:[%s6314 + $0x60] sm:$0xff]
        %v6328 = vld [vmem:[%s6314 + $0x68] sm:$0xff]
        %v6329 = vld [vmem:[%s6314 + $0x70] sm:$0xff]
        %v6330 = vld [vmem:[%s6314 + $0x78] sm:$0xff]
        %v6331 = vld [vmem:[%s6314 + $0x80] sm:$0xff]
        %v6332 = vld [vmem:[%s6314 + $0x88] sm:$0xff]
        %v6333 = vld [vmem:[%s6314 + $0x90] sm:$0xff]
        %v6334 = vld [vmem:[%s6314 + $0x98] sm:$0xff]
        %v6335 = vpack.c.b16 %v5493, %v5491
        %v6336 = vpack.c.b16 %v5494, %v5492
        %v6337 = vpack.c.b16 %v5497, %v5495
        %v6338 = vpack.c.b16 %v5498, %v5496
        %v6339 = vpack.c.b16 %v5501, %v5499
        %v6340 = vpack.c.b16 %v5502, %v5500
        %v6341 = vpack.c.b16 %v5505, %v5503
        %v6342 = vpack.c.b16 %v5506, %v5504
        %v6343 = vpack.c.b16 %v5509, %v5507
        %v6344 = vpack.c.b16 %v5510, %v5508
        %v6345 = vpack.c.b16 %v5513, %v5511
        %v6346 = vpack.c.b16 %v5514, %v5512
        %v6347 = vpack.c.b16 %v5517, %v5515
        %v6348 = vpack.c.b16 %v5518, %v5516
        %v6349 = vpack.c.b16 %v5521, %v5519
        %v6350 = vpack.c.b16 %v5522, %v5520
        %v6351 = vpack.c.b16 %v5525, %v5523
        %v6352 = vpack.c.b16 %v5526, %v5524
        %v6353 = vpack.c.b16 %v5529, %v5527
        %v6354 = vpack.c.b16 %v5530, %v5528
        %v6355 = vpack.c.b16 %v5533, %v5531
        %v6356 = vpack.c.b16 %v5534, %v5532
        %v6357 = vpack.c.b16 %v5537, %v5535
        %v6358 = vpack.c.b16 %v5538, %v5536
        %v6359 = vpack.c.b16 %v5541, %v5539
        %v6360 = vpack.c.b16 %v5542, %v5540
        %v6361 = vpack.c.b16 %v5545, %v5543
        %v6362 = vpack.c.b16 %v5546, %v5544
        %v6363 = vpack.c.b16 %v5549, %v5547
        %v6364 = vpack.c.b16 %v5550, %v5548
        %v6365 = vpack.c.b16 %v5553, %v5551
        %v6366 = vpack.c.b16 %v5554, %v5552
        %v6403 = vunpack.c.l.b16 %v6315
        %v6404 = vunpack.c.h.b16 %v6315
        %v6405 = vunpack.c.l.b16 %v6316
        %v6406 = vunpack.c.h.b16 %v6316
        %v6407 = vunpack.c.l.b16 %v6317
        %v6408 = vunpack.c.h.b16 %v6317
        %v6409 = vunpack.c.l.b16 %v6318
        %v6410 = vunpack.c.h.b16 %v6318
        %v6411 = vunpack.c.l.b16 %v6319
        %v6412 = vunpack.c.h.b16 %v6319
        %v6413 = vunpack.c.l.b16 %v6320
        %v6414 = vunpack.c.h.b16 %v6320
        %v6415 = vunpack.c.l.b16 %v6321
        %v6416 = vunpack.c.h.b16 %v6321
        %v6417 = vunpack.c.l.b16 %v6322
        %v6418 = vunpack.c.h.b16 %v6322
        %v6419 = vunpack.c.l.b16 %v6323
        %v6420 = vunpack.c.h.b16 %v6323
        %v6421 = vunpack.c.l.b16 %v6324
        %v6422 = vunpack.c.h.b16 %v6324
        %v6423 = vunpack.c.l.b16 %v6325
        %v6424 = vunpack.c.h.b16 %v6325
        %v6425 = vunpack.c.l.b16 %v6326
        %v6426 = vunpack.c.h.b16 %v6326
        %v6427 = vunpack.c.l.b16 %v6327
        %v6428 = vunpack.c.h.b16 %v6327
        %v6429 = vunpack.c.l.b16 %v6328
        %v6430 = vunpack.c.h.b16 %v6328
        %v6431 = vunpack.c.l.b16 %v6329
        %v6432 = vunpack.c.h.b16 %v6329
        %v6433 = vunpack.c.l.b16 %v6330
        %v6434 = vunpack.c.h.b16 %v6330
        %v6435 = vunpack.c.l.b16 %v6331
        %v6436 = vunpack.c.h.b16 %v6331
        %v6437 = vunpack.c.l.b16 %v6332
        %v6438 = vunpack.c.h.b16 %v6332
        %v6439 = vunpack.c.l.b16 %v6333
        %v6440 = vunpack.c.h.b16 %v6333
        %v6441 = vunpack.c.l.b16 %v6334
        %v6442 = vunpack.c.h.b16 %v6334
        %v6443 = vpack.c.b16 %v6405, %v6403
        %v6444 = vpack.c.b16 %v6406, %v6404
        %v6445 = vpack.c.b16 %v6409, %v6407
        %v6446 = vpack.c.b16 %v6410, %v6408
        %v6447 = vpack.c.b16 %v6413, %v6411
        %v6448 = vpack.c.b16 %v6414, %v6412
        %v6449 = vpack.c.b16 %v6417, %v6415
        %v6450 = vpack.c.b16 %v6418, %v6416
        %v6451 = vpack.c.b16 %v6421, %v6419
        %v6452 = vpack.c.b16 %v6422, %v6420
        %v6453 = vpack.c.b16 %v6425, %v6423
        %v6454 = vpack.c.b16 %v6426, %v6424
        %v6455 = vpack.c.b16 %v6429, %v6427
        %v6456 = vpack.c.b16 %v6430, %v6428
        %v6457 = vpack.c.b16 %v6433, %v6431
        %v6458 = vpack.c.b16 %v6434, %v6432
        %v6459 = vpack.c.b16 %v6437, %v6435
        %v6460 = vpack.c.b16 %v6438, %v6436
        %v6461 = vpack.c.b16 %v6441, %v6439
        %v6462 = vpack.c.b16 %v6442, %v6440
        %v6484 = vsel %vm1330, %v6336, 0
        %v6487 = vsel %vm1330, %v6338, 0
        %v6490 = vsel %vm1330, %v6340, 0
        %v6493 = vsel %vm1330, %v6342, 0
        %v6496 = vsel %vm1330, %v6344, 0
        %v6499 = vsel %vm1330, %v6346, 0
        %v6502 = vsel %vm1330, %v6348, 0
        %v6505 = vsel %vm1330, %v6350, 0
        %v6508 = vsel %vm1330, %v6352, 0
        %v6511 = vsel %vm1330, %v6354, 0
        %v6514 = vsel %vm1330, %v6356, 0
        %v6517 = vsel %vm1330, %v6358, 0
        %v6520 = vsel %vm1330, %v6360, 0
        %v6523 = vsel %vm1330, %v6362, 0
        %v6526 = vsel %vm1330, %v6364, 0
        %v6529 = vsel %vm1330, %v6366, 0
        %6531 = vmatprep.subr.bf16.mxu0 %v6458
        %6532 = vmatpush1.bf16.msra.mxu0 %v6457
        %6533 = vmatprep.subr.bf16.mxu0 %v6456
        %6534 = vmatpush1.bf16.msra.mxu0 %v6455
        %6535 = vmatprep.subr.bf16.mxu0 %v6454
        %6536 = vmatpush1.bf16.msra.mxu0 %v6453
        %6537 = vmatprep.subr.bf16.mxu0 %v6452
        %6538 = vmatpush1.bf16.msra.mxu0 %v6451
        %6539 = vmatprep.subr.bf16.mxu0 %v6450
        %6540 = vmatpush1.bf16.msra.mxu0 %v6449
        %6541 = vmatprep.subr.bf16.mxu0 %v6448
        %6542 = vmatpush1.bf16.msra.mxu0 %v6447
        %6543 = vmatprep.subr.bf16.mxu0 %v6446
        %6544 = vmatpush1.bf16.msra.mxu0 %v6445
        %6545 = vmatprep.subr.bf16.mxu0 %v6444
        %6546 = vmatpush1.bf16.msra.mxu0 %v6443
        %6547 = vmatprep.subr.bf16.mxu0 0
        %6548 = vmatpush2.bf16.msra.mxu0 0
        %6549 = vmatprep.subr.bf16.mxu0 0
        %6550 = vmatpush2.bf16.msra.mxu0 0
        %6551 = vmatprep.subr.bf16.mxu0 0
        %6552 = vmatpush2.bf16.msra.mxu0 0
        %6553 = vmatprep.subr.bf16.mxu0 0
        %6554 = vmatpush2.bf16.msra.mxu0 0
        %6555 = vmatprep.subr.bf16.mxu0 0
        %6556 = vmatpush2.bf16.msra.mxu0 0
        %6557 = vmatprep.subr.bf16.mxu0 0
        %6558 = vmatpush2.bf16.msra.mxu0 0
        %6559 = vmatprep.subr.bf16.mxu0 %v6462
        %6560 = vmatpush2.bf16.msra.mxu0 %v6461
        %6561 = vmatprep.subr.bf16.mxu0 %v6460
        %6562 = vmatpush2.bf16.msra.mxu0 %v6459
        %6563 = vmatprep.mubr.bf16.mxu0 %v6484
        %6564 = vmatmul.mubr.bf16.gmra.mxu0 %v6335
        %v6565 = vpop.f32.mrf.mxu0
        %v6566 = vadd.f32 0.0, %v6565
        %v6567 = vpop.f32.mrf.mxu0
        %v6568 = vadd.f32 0.0, %v6567
        %v6569 = vpop.f32.mrf.mxu0
        %v6570 = vadd.f32 0.0, %v6569
        %v6571 = vpop.f32.mrf.mxu0
        %v6572 = vadd.f32 0.0, %v6571
        %6573 = vmatprep.mubr.bf16.mxu0 %v6487
        %6574 = vmatmul.mubr.bf16.gmra.mxu0 %v6337
        %v6575 = vpop.f32.mrf.mxu0
        %v6576 = vadd.f32 0.0, %v6575
        %v6577 = vpop.f32.mrf.mxu0
        %v6578 = vadd.f32 0.0, %v6577
        %v6579 = vpop.f32.mrf.mxu0
        %v6580 = vadd.f32 0.0, %v6579
        %v6581 = vpop.f32.mrf.mxu0
        %v6582 = vadd.f32 0.0, %v6581
        %6583 = vmatprep.mubr.bf16.mxu0 %v6490
        %6584 = vmatmul.mubr.bf16.gmra.mxu0 %v6339
        %v6585 = vpop.f32.mrf.mxu0
        %v6586 = vadd.f32 0.0, %v6585
        %v6587 = vpop.f32.mrf.mxu0
        %v6588 = vadd.f32 0.0, %v6587
        %v6589 = vpop.f32.mrf.mxu0
        %v6590 = vadd.f32 0.0, %v6589
        %v6591 = vpop.f32.mrf.mxu0
        %v6592 = vadd.f32 0.0, %v6591
        %6593 = vmatprep.mubr.bf16.mxu0 %v6493
        %6594 = vmatmul.mubr.bf16.gmra.mxu0 %v6341
        %v6595 = vpop.f32.mrf.mxu0
        %v6596 = vadd.f32 0.0, %v6595
        %v6597 = vpop.f32.mrf.mxu0
        %v6598 = vadd.f32 0.0, %v6597
        %v6599 = vpop.f32.mrf.mxu0
        %v6600 = vadd.f32 0.0, %v6599
        %v6601 = vpop.f32.mrf.mxu0
        %v6602 = vadd.f32 0.0, %v6601
        %6603 = vmatprep.mubr.bf16.mxu0 %v6496
        %6604 = vmatmul.mubr.bf16.gmra.mxu0 %v6343
        %v6605 = vpop.f32.mrf.mxu0
        %v6606 = vadd.f32 0.0, %v6605
        %v6607 = vpop.f32.mrf.mxu0
        %v6608 = vadd.f32 0.0, %v6607
        %v6609 = vpop.f32.mrf.mxu0
        %v6610 = vadd.f32 0.0, %v6609
        %v6611 = vpop.f32.mrf.mxu0
        %v6612 = vadd.f32 0.0, %v6611
        %6613 = vmatprep.mubr.bf16.mxu0 %v6499
        %6614 = vmatmul.mubr.bf16.gmra.mxu0 %v6345
        %v6615 = vpop.f32.mrf.mxu0
        %v6616 = vadd.f32 0.0, %v6615
        %v6617 = vpop.f32.mrf.mxu0
        %v6618 = vadd.f32 0.0, %v6617
        %v6619 = vpop.f32.mrf.mxu0
        %v6620 = vadd.f32 0.0, %v6619
        %v6621 = vpop.f32.mrf.mxu0
        %v6622 = vadd.f32 0.0, %v6621
        %6623 = vmatprep.mubr.bf16.mxu0 %v6502
        %6624 = vmatmul.mubr.bf16.gmra.mxu0 %v6347
        %v6625 = vpop.f32.mrf.mxu0
        %v6626 = vadd.f32 0.0, %v6625
        %v6627 = vpop.f32.mrf.mxu0
        %v6628 = vadd.f32 0.0, %v6627
        %v6629 = vpop.f32.mrf.mxu0
        %v6630 = vadd.f32 0.0, %v6629
        %v6631 = vpop.f32.mrf.mxu0
        %v6632 = vadd.f32 0.0, %v6631
        %6633 = vmatprep.mubr.bf16.mxu0 %v6505
        %6634 = vmatmul.mubr.bf16.gmra.mxu0 %v6349
        %v6635 = vpop.f32.mrf.mxu0
        %v6636 = vadd.f32 0.0, %v6635
        %v6637 = vpop.f32.mrf.mxu0
        %v6638 = vadd.f32 0.0, %v6637
        %v6639 = vpop.f32.mrf.mxu0
        %v6640 = vadd.f32 0.0, %v6639
        %v6641 = vpop.f32.mrf.mxu0
        %v6642 = vadd.f32 0.0, %v6641
        %6643 = vmatprep.mubr.bf16.mxu0 %v6508
        %6644 = vmatmul.mubr.bf16.gmra.mxu0 %v6351
        %v6645 = vpop.f32.mrf.mxu0
        %v6646 = vadd.f32 0.0, %v6645
        %v6647 = vpop.f32.mrf.mxu0
        %v6648 = vadd.f32 0.0, %v6647
        %v6649 = vpop.f32.mrf.mxu0
        %v6650 = vadd.f32 0.0, %v6649
        %v6651 = vpop.f32.mrf.mxu0
        %v6652 = vadd.f32 0.0, %v6651
        %6653 = vmatprep.mubr.bf16.mxu0 %v6511
        %6654 = vmatmul.mubr.bf16.gmra.mxu0 %v6353
        %v6655 = vpop.f32.mrf.mxu0
        %v6656 = vadd.f32 0.0, %v6655
        %v6657 = vpop.f32.mrf.mxu0
        %v6658 = vadd.f32 0.0, %v6657
        %v6659 = vpop.f32.mrf.mxu0
        %v6660 = vadd.f32 0.0, %v6659
        %v6661 = vpop.f32.mrf.mxu0
        %v6662 = vadd.f32 0.0, %v6661
        %6663 = vmatprep.mubr.bf16.mxu0 %v6514
        %6664 = vmatmul.mubr.bf16.gmra.mxu0 %v6355
        %v6665 = vpop.f32.mrf.mxu0
        %v6666 = vadd.f32 0.0, %v6665
        %v6667 = vpop.f32.mrf.mxu0
        %v6668 = vadd.f32 0.0, %v6667
        %v6669 = vpop.f32.mrf.mxu0
        %v6670 = vadd.f32 0.0, %v6669
        %v6671 = vpop.f32.mrf.mxu0
        %v6672 = vadd.f32 0.0, %v6671
        %6673 = vmatprep.mubr.bf16.mxu0 %v6517
        %6674 = vmatmul.mubr.bf16.gmra.mxu0 %v6357
        %v6675 = vpop.f32.mrf.mxu0
        %v6676 = vadd.f32 0.0, %v6675
        %v6677 = vpop.f32.mrf.mxu0
        %v6678 = vadd.f32 0.0, %v6677
        %v6679 = vpop.f32.mrf.mxu0
        %v6680 = vadd.f32 0.0, %v6679
        %v6681 = vpop.f32.mrf.mxu0
        %v6682 = vadd.f32 0.0, %v6681
        %6683 = vmatprep.mubr.bf16.mxu0 %v6520
        %6684 = vmatmul.mubr.bf16.gmra.mxu0 %v6359
        %v6685 = vpop.f32.mrf.mxu0
        %v6686 = vadd.f32 0.0, %v6685
        %v6687 = vpop.f32.mrf.mxu0
        %v6688 = vadd.f32 0.0, %v6687
        %v6689 = vpop.f32.mrf.mxu0
        %v6690 = vadd.f32 0.0, %v6689
        %v6691 = vpop.f32.mrf.mxu0
        %v6692 = vadd.f32 0.0, %v6691
        %6693 = vmatprep.mubr.bf16.mxu0 %v6523
        %6694 = vmatmul.mubr.bf16.gmra.mxu0 %v6361
        %v6695 = vpop.f32.mrf.mxu0
        %v6696 = vadd.f32 0.0, %v6695
        %v6697 = vpop.f32.mrf.mxu0
        %v6698 = vadd.f32 0.0, %v6697
        %v6699 = vpop.f32.mrf.mxu0
        %v6700 = vadd.f32 0.0, %v6699
        %v6701 = vpop.f32.mrf.mxu0
        %v6702 = vadd.f32 0.0, %v6701
        %6703 = vmatprep.mubr.bf16.mxu0 %v6526
        %6704 = vmatmul.mubr.bf16.gmra.mxu0 %v6363
        %v6705 = vpop.f32.mrf.mxu0
        %v6706 = vadd.f32 0.0, %v6705
        %v6707 = vpop.f32.mrf.mxu0
        %v6708 = vadd.f32 0.0, %v6707
        %v6709 = vpop.f32.mrf.mxu0
        %v6710 = vadd.f32 0.0, %v6709
        %v6711 = vpop.f32.mrf.mxu0
        %v6712 = vadd.f32 0.0, %v6711
        %6713 = vmatprep.mubr.bf16.mxu0 %v6529
        %6714 = vmatmul.mubr.bf16.gmra.mxu0 %v6365
        %v6715 = vpop.f32.mrf.mxu0
        %v6716 = vadd.f32 0.0, %v6715
        %v6717 = vpop.f32.mrf.mxu0
        %v6718 = vadd.f32 0.0, %v6717
        %v6719 = vpop.f32.mrf.mxu0
        %v6720 = vadd.f32 0.0, %v6719
        %v6721 = vpop.f32.mrf.mxu0
        %v6722 = vadd.f32 0.0, %v6721
        %6723 = vdwg.mxu0
        %v6724 = vadd.f32 %v6250, %v6566
        %v6725 = vadd.f32 %v6251, %v6568
        %v6726 = vadd.f32 %v6252, %v6570
        %v6727 = vadd.f32 %v6253, %v6572
        %v6728 = vadd.f32 %v6254, %v6576
        %v6729 = vadd.f32 %v6255, %v6578
        %v6730 = vadd.f32 %v6256, %v6580
        %v6731 = vadd.f32 %v6257, %v6582
        %v6732 = vadd.f32 %v6258, %v6586
        %v6733 = vadd.f32 %v6259, %v6588
        %v6734 = vadd.f32 %v6260, %v6590
        %v6735 = vadd.f32 %v6261, %v6592
        %v6736 = vadd.f32 %v6262, %v6596
        %v6737 = vadd.f32 %v6263, %v6598
        %v6738 = vadd.f32 %v6264, %v6600
        %v6739 = vadd.f32 %v6265, %v6602
        %v6740 = vadd.f32 %v6266, %v6606
        %v6741 = vadd.f32 %v6267, %v6608
        %v6742 = vadd.f32 %v6268, %v6610
        %v6743 = vadd.f32 %v6269, %v6612
        %v6744 = vadd.f32 %v6270, %v6616
        %v6745 = vadd.f32 %v6271, %v6618
        %v6746 = vadd.f32 %v6272, %v6620
        %v6747 = vadd.f32 %v6273, %v6622
        %v6748 = vadd.f32 %v6274, %v6626
        %v6749 = vadd.f32 %v6275, %v6628
        %v6750 = vadd.f32 %v6276, %v6630
        %v6751 = vadd.f32 %v6277, %v6632
        %v6752 = vadd.f32 %v6278, %v6636
        %v6753 = vadd.f32 %v6279, %v6638
        %v6754 = vadd.f32 %v6280, %v6640
        %v6755 = vadd.f32 %v6281, %v6642
        %v6756 = vadd.f32 %v6282, %v6646
        %v6757 = vadd.f32 %v6283, %v6648
        %v6758 = vadd.f32 %v6284, %v6650
        %v6759 = vadd.f32 %v6285, %v6652
        %v6760 = vadd.f32 %v6286, %v6656
        %v6761 = vadd.f32 %v6287, %v6658
        %v6762 = vadd.f32 %v6288, %v6660
        %v6763 = vadd.f32 %v6289, %v6662
        %v6764 = vadd.f32 %v6290, %v6666
        %v6765 = vadd.f32 %v6291, %v6668
        %v6766 = vadd.f32 %v6292, %v6670
        %v6767 = vadd.f32 %v6293, %v6672
        %v6768 = vadd.f32 %v6294, %v6676
        %v6769 = vadd.f32 %v6295, %v6678
        %v6770 = vadd.f32 %v6296, %v6680
        %v6771 = vadd.f32 %v6297, %v6682
        %v6772 = vadd.f32 %v6298, %v6686
        %v6773 = vadd.f32 %v6299, %v6688
        %v6774 = vadd.f32 %v6300, %v6690
        %v6775 = vadd.f32 %v6301, %v6692
        %v6776 = vadd.f32 %v6302, %v6696
        %v6777 = vadd.f32 %v6303, %v6698
        %v6778 = vadd.f32 %v6304, %v6700
        %v6779 = vadd.f32 %v6305, %v6702
        %v6780 = vadd.f32 %v6306, %v6706
        %v6781 = vadd.f32 %v6307, %v6708
        %v6782 = vadd.f32 %v6308, %v6710
        %v6783 = vadd.f32 %v6309, %v6712
        %v6784 = vadd.f32 %v6310, %v6716
        %v6785 = vadd.f32 %v6311, %v6718
        %v6786 = vadd.f32 %v6312, %v6720
        %v6787 = vadd.f32 %v6313, %v6722
        %v6788 = vld [vmem:[%s0 + $0x30] sm:$0xff]
        %v6789 = vld [vmem:[%s0 + $0x38] sm:$0xff]
        %v6790 = vld [vmem:[%s0 + $0x40] sm:$0xff]
        %v6791 = vld [vmem:[%s0 + $0x48] sm:$0xff]
        %v6792 = vld [vmem:[%s0 + $0x50] sm:$0xff]
        %v6793 = vld [vmem:[%s0 + $0x58] sm:$0xff]
        %v6794 = vld [vmem:[%s0 + $0x60] sm:$0xff]
        %v6795 = vld [vmem:[%s0 + $0x68] sm:$0xff]
        %v6796 = vld [vmem:[%s0 + $0x70] sm:$0xff]
        %v6797 = vld [vmem:[%s0 + $0x78] sm:$0xff]
        %v6798 = vld [vmem:[%s0 + $0x80] sm:$0xff]
        %v6799 = vld [vmem:[%s0 + $0x88] sm:$0xff]
        %v6800 = vld [vmem:[%s0 + $0x90] sm:$0xff]
        %v6801 = vld [vmem:[%s0 + $0x98] sm:$0xff]
        %v6802 = vld [vmem:[%s0 + $0xa0] sm:$0xff]
        %v6803 = vld [vmem:[%s0 + $0xa8] sm:$0xff]
        %v6804 = vld [vmem:[%s0 + $0xb0] sm:$0xff]
        %v6805 = vld [vmem:[%s0 + $0xb8] sm:$0xff]
        %v6806 = vld [vmem:[%s0 + $0xc0] sm:$0xff]
        %v6807 = vld [vmem:[%s0 + $0xc8] sm:$0xff]
        %v6808 = vld [vmem:[%s0 + $0xd0] sm:$0xff]
        %v6809 = vld [vmem:[%s0 + $0xd8] sm:$0xff]
        %v6810 = vld [vmem:[%s0 + $0xe0] sm:$0xff]
        %v6811 = vld [vmem:[%s0 + $0xe8] sm:$0xff]
        %v6812 = vld [vmem:[%s0 + $0xf0] sm:$0xff]
        %v6813 = vld [vmem:[%s0 + $0xf8] sm:$0xff]
        %v6814 = vld [vmem:[%s0 + $0x100] sm:$0xff]
        %v6815 = vld [vmem:[%s0 + $0x108] sm:$0xff]
        %v6816 = vld [vmem:[%s0 + $0x110] sm:$0xff]
        %v6817 = vld [vmem:[%s0 + $0x118] sm:$0xff]
        %v6818 = vld [vmem:[%s0 + $0x120] sm:$0xff]
        %v6819 = vld [vmem:[%s0 + $0x128] sm:$0xff]
        %v6820 = vld [vmem:[%s0 + $0x130] sm:$0x11]
        %s6821 = scalar_lea.vmem %s967, 1280 [#allocation2]
        %v6822 = vld [vmem:[%s6821] sm:$0xff]
        %v6823 = vld [vmem:[%s6821 + $0x8] sm:$0xff]
        %v6824 = vld [vmem:[%s6821 + $0x10] sm:$0xff]
        %v6825 = vld [vmem:[%s6821 + $0x18] sm:$0xff]
        %v6826 = vld [vmem:[%s6821 + $0x20] sm:$0xff]
        %v6827 = vld [vmem:[%s6821 + $0x28] sm:$0xff]
        %v6828 = vld [vmem:[%s6821 + $0x30] sm:$0xff]
        %v6829 = vld [vmem:[%s6821 + $0x38] sm:$0xff]
        %v6830 = vld [vmem:[%s6821 + $0x40] sm:$0xff]
        %v6831 = vld [vmem:[%s6821 + $0x48] sm:$0xff]
        %v6832 = vld [vmem:[%s6821 + $0x50] sm:$0xff]
        %v6833 = vld [vmem:[%s6821 + $0x58] sm:$0xff]
        %v6834 = vld [vmem:[%s6821 + $0x60] sm:$0xff]
        %v6835 = vld [vmem:[%s6821 + $0x68] sm:$0xff]
        %v6836 = vld [vmem:[%s6821 + $0x70] sm:$0xff]
        %v6837 = vld [vmem:[%s6821 + $0x78] sm:$0xff]
        %v6838 = vld [vmem:[%s6821 + $0x80] sm:$0xff]
        %v6839 = vld [vmem:[%s6821 + $0x88] sm:$0xff]
        %v6840 = vld [vmem:[%s6821 + $0x90] sm:$0xff]
        %v6841 = vld [vmem:[%s6821 + $0x98] sm:$0xff]
        %v6875 = vunpack.c.l.b16 %v6788
        %v6876 = vunpack.c.h.b16 %v6788
        %v6877 = vunpack.c.l.b16 %v6789
        %v6878 = vunpack.c.h.b16 %v6789
        %v6879 = vunpack.c.l.b16 %v6790
        %v6880 = vunpack.c.h.b16 %v6790
        %v6881 = vunpack.c.l.b16 %v6791
        %v6882 = vunpack.c.h.b16 %v6791
        %v6883 = vunpack.c.l.b16 %v6792
        %v6884 = vunpack.c.h.b16 %v6792
        %v6885 = vunpack.c.l.b16 %v6793
        %v6886 = vunpack.c.h.b16 %v6793
        %v6887 = vunpack.c.l.b16 %v6794
        %v6888 = vunpack.c.h.b16 %v6794
        %v6889 = vunpack.c.l.b16 %v6795
        %v6890 = vunpack.c.h.b16 %v6795
        %v6891 = vunpack.c.l.b16 %v6796
        %v6892 = vunpack.c.h.b16 %v6796
        %v6893 = vunpack.c.l.b16 %v6797
        %v6894 = vunpack.c.h.b16 %v6797
        %v6895 = vunpack.c.l.b16 %v6798
        %v6896 = vunpack.c.h.b16 %v6798
        %v6897 = vunpack.c.l.b16 %v6799
        %v6898 = vunpack.c.h.b16 %v6799
        %v6899 = vunpack.c.l.b16 %v6800
        %v6900 = vunpack.c.h.b16 %v6800
        %v6901 = vunpack.c.l.b16 %v6801
        %v6902 = vunpack.c.h.b16 %v6801
        %v6903 = vunpack.c.l.b16 %v6802
        %v6904 = vunpack.c.h.b16 %v6802
        %v6905 = vunpack.c.l.b16 %v6803
        %v6906 = vunpack.c.h.b16 %v6803
        %v6907 = vunpack.c.l.b16 %v6804
        %v6908 = vunpack.c.h.b16 %v6804
        %v6909 = vunpack.c.l.b16 %v6805
        %v6910 = vunpack.c.h.b16 %v6805
        %v6911 = vunpack.c.l.b16 %v6806
        %v6912 = vunpack.c.h.b16 %v6806
        %v6913 = vunpack.c.l.b16 %v6807
        %v6914 = vunpack.c.h.b16 %v6807
        %v6915 = vunpack.c.l.b16 %v6808
        %v6916 = vunpack.c.h.b16 %v6808
        %v6917 = vunpack.c.l.b16 %v6809
        %v6918 = vunpack.c.h.b16 %v6809
        %v6919 = vunpack.c.l.b16 %v6810
        %v6920 = vunpack.c.h.b16 %v6810
        %v6921 = vunpack.c.l.b16 %v6811
        %v6922 = vunpack.c.h.b16 %v6811
        %v6923 = vunpack.c.l.b16 %v6812
        %v6924 = vunpack.c.h.b16 %v6812
        %v6925 = vunpack.c.l.b16 %v6813
        %v6926 = vunpack.c.h.b16 %v6813
        %v6927 = vunpack.c.l.b16 %v6814
        %v6928 = vunpack.c.h.b16 %v6814
        %v6929 = vunpack.c.l.b16 %v6815
        %v6930 = vunpack.c.h.b16 %v6815
        %v6931 = vunpack.c.l.b16 %v6816
        %v6932 = vunpack.c.h.b16 %v6816
        %v6933 = vunpack.c.l.b16 %v6817
        %v6934 = vunpack.c.h.b16 %v6817
        %v6935 = vunpack.c.l.b16 %v6818
        %v6936 = vunpack.c.h.b16 %v6818
        %v6937 = vunpack.c.l.b16 %v6819
        %v6938 = vunpack.c.h.b16 %v6819
        %v6939 = vunpack.c.l.b16 %v6820
        %v6940 = vunpack.c.h.b16 %v6820
        %v6941 = vpack.c.b16 %v6877, %v6875
        %v6942 = vpack.c.b16 %v6878, %v6876
        %v6943 = vpack.c.b16 %v6881, %v6879
        %v6944 = vpack.c.b16 %v6882, %v6880
        %v6945 = vpack.c.b16 %v6885, %v6883
        %v6946 = vpack.c.b16 %v6886, %v6884
        %v6947 = vpack.c.b16 %v6889, %v6887
        %v6948 = vpack.c.b16 %v6890, %v6888
        %v6949 = vpack.c.b16 %v6893, %v6891
        %v6950 = vpack.c.b16 %v6894, %v6892
        %v6951 = vpack.c.b16 %v6897, %v6895
        %v6952 = vpack.c.b16 %v6898, %v6896
        %v6953 = vpack.c.b16 %v6901, %v6899
        %v6954 = vpack.c.b16 %v6902, %v6900
        %v6955 = vpack.c.b16 %v6905, %v6903
        %v6956 = vpack.c.b16 %v6906, %v6904
        %v6957 = vpack.c.b16 %v6909, %v6907
        %v6958 = vpack.c.b16 %v6910, %v6908
        %v6959 = vpack.c.b16 %v6913, %v6911
        %v6960 = vpack.c.b16 %v6914, %v6912
        %v6961 = vpack.c.b16 %v6917, %v6915
        %v6962 = vpack.c.b16 %v6918, %v6916
        %v6963 = vpack.c.b16 %v6921, %v6919
        %v6964 = vpack.c.b16 %v6922, %v6920
        %v6965 = vpack.c.b16 %v6925, %v6923
        %v6966 = vpack.c.b16 %v6926, %v6924
        %v6967 = vpack.c.b16 %v6929, %v6927
        %v6968 = vpack.c.b16 %v6930, %v6928
        %v6969 = vpack.c.b16 %v6933, %v6931
        %v6970 = vpack.c.b16 %v6934, %v6932
        %v6971 = vpack.c.b16 %v6937, %v6935
        %v6972 = vpack.c.b16 %v6938, %v6936
        %v6973 = vpack.c.b16 %v6939, %v6939
        %v6974 = vpack.c.b16 %v6940, %v6940
        %v6976 = vshrl.u32 %v6941, 16
        %v6978 = vshll.u32 %v6941, 16
        %v6980 = vrot.slane %v6978, 1
        %v6981 = vor.u32 %v6976, %v6980
        %v6983 = vshll.u32 %v6943, 16
        %v6985 = vrot.slane %v6983, 1
        %v6986 = vsel %vm2458, %v6981, %v6985
        %v6988 = vshrl.u32 %v6942, 16
        %v6990 = vshll.u32 %v6942, 16
        %v6992 = vrot.slane %v6990, 1
        %v6993 = vor.u32 %v6988, %v6992
        %v6995 = vshll.u32 %v6944, 16
        %v6997 = vrot.slane %v6995, 1
        %v6998 = vsel %vm2458, %v6993, %v6997
        %v6999 = vshrl.u32 %v6943, 16
        %v7001 = vor.u32 %v6999, %v6985
        %v7003 = vshll.u32 %v6945, 16
        %v7005 = vrot.slane %v7003, 1
        %v7006 = vsel %vm2458, %v7001, %v7005
        %v7007 = vshrl.u32 %v6944, 16
        %v7009 = vor.u32 %v7007, %v6997
        %v7011 = vshll.u32 %v6946, 16
        %v7013 = vrot.slane %v7011, 1
        %v7014 = vsel %vm2458, %v7009, %v7013
        %v7015 = vshrl.u32 %v6945, 16
        %v7017 = vor.u32 %v7015, %v7005
        %v7019 = vshll.u32 %v6947, 16
        %v7021 = vrot.slane %v7019, 1
        %v7022 = vsel %vm2458, %v7017, %v7021
        %v7023 = vshrl.u32 %v6946, 16
        %v7025 = vor.u32 %v7023, %v7013
        %v7027 = vshll.u32 %v6948, 16
        %v7029 = vrot.slane %v7027, 1
        %v7030 = vsel %vm2458, %v7025, %v7029
        %v7031 = vshrl.u32 %v6947, 16
        %v7033 = vor.u32 %v7031, %v7021
        %v7035 = vshll.u32 %v6949, 16
        %v7037 = vrot.slane %v7035, 1
        %v7038 = vsel %vm2458, %v7033, %v7037
        %v7039 = vshrl.u32 %v6948, 16
        %v7041 = vor.u32 %v7039, %v7029
        %v7043 = vshll.u32 %v6950, 16
        %v7045 = vrot.slane %v7043, 1
        %v7046 = vsel %vm2458, %v7041, %v7045
        %v7047 = vshrl.u32 %v6949, 16
        %v7049 = vor.u32 %v7047, %v7037
        %v7051 = vshll.u32 %v6951, 16
        %v7053 = vrot.slane %v7051, 1
        %v7054 = vsel %vm2458, %v7049, %v7053
        %v7055 = vshrl.u32 %v6950, 16
        %v7057 = vor.u32 %v7055, %v7045
        %v7059 = vshll.u32 %v6952, 16
        %v7061 = vrot.slane %v7059, 1
        %v7062 = vsel %vm2458, %v7057, %v7061
        %v7063 = vshrl.u32 %v6951, 16
        %v7065 = vor.u32 %v7063, %v7053
        %v7067 = vshll.u32 %v6953, 16
        %v7069 = vrot.slane %v7067, 1
        %v7070 = vsel %vm2458, %v7065, %v7069
        %v7071 = vshrl.u32 %v6952, 16
        %v7073 = vor.u32 %v7071, %v7061
        %v7075 = vshll.u32 %v6954, 16
        %v7077 = vrot.slane %v7075, 1
        %v7078 = vsel %vm2458, %v7073, %v7077
        %v7079 = vshrl.u32 %v6953, 16
        %v7081 = vor.u32 %v7079, %v7069
        %v7083 = vshll.u32 %v6955, 16
        %v7085 = vrot.slane %v7083, 1
        %v7086 = vsel %vm2458, %v7081, %v7085
        %v7087 = vshrl.u32 %v6954, 16
        %v7089 = vor.u32 %v7087, %v7077
        %v7091 = vshll.u32 %v6956, 16
        %v7093 = vrot.slane %v7091, 1
        %v7094 = vsel %vm2458, %v7089, %v7093
        %v7095 = vshrl.u32 %v6955, 16
        %v7097 = vor.u32 %v7095, %v7085
        %v7099 = vshll.u32 %v6957, 16
        %v7101 = vrot.slane %v7099, 1
        %v7102 = vsel %vm2458, %v7097, %v7101
        %v7103 = vshrl.u32 %v6956, 16
        %v7105 = vor.u32 %v7103, %v7093
        %v7107 = vshll.u32 %v6958, 16
        %v7109 = vrot.slane %v7107, 1
        %v7110 = vsel %vm2458, %v7105, %v7109
        %v7111 = vshrl.u32 %v6957, 16
        %v7113 = vor.u32 %v7111, %v7101
        %v7115 = vshll.u32 %v6959, 16
        %v7117 = vrot.slane %v7115, 1
        %v7118 = vsel %vm2458, %v7113, %v7117
        %v7119 = vshrl.u32 %v6958, 16
        %v7121 = vor.u32 %v7119, %v7109
        %v7123 = vshll.u32 %v6960, 16
        %v7125 = vrot.slane %v7123, 1
        %v7126 = vsel %vm2458, %v7121, %v7125
        %v7127 = vshrl.u32 %v6959, 16
        %v7129 = vor.u32 %v7127, %v7117
        %v7131 = vshll.u32 %v6961, 16
        %v7133 = vrot.slane %v7131, 1
        %v7134 = vsel %vm2458, %v7129, %v7133
        %v7135 = vshrl.u32 %v6960, 16
        %v7137 = vor.u32 %v7135, %v7125
        %v7139 = vshll.u32 %v6962, 16
        %v7141 = vrot.slane %v7139, 1
        %v7142 = vsel %vm2458, %v7137, %v7141
        %v7143 = vshrl.u32 %v6961, 16
        %v7145 = vor.u32 %v7143, %v7133
        %v7147 = vshll.u32 %v6963, 16
        %v7149 = vrot.slane %v7147, 1
        %v7150 = vsel %vm2458, %v7145, %v7149
        %v7151 = vshrl.u32 %v6962, 16
        %v7153 = vor.u32 %v7151, %v7141
        %v7155 = vshll.u32 %v6964, 16
        %v7157 = vrot.slane %v7155, 1
        %v7158 = vsel %vm2458, %v7153, %v7157
        %v7159 = vshrl.u32 %v6963, 16
        %v7161 = vor.u32 %v7159, %v7149
        %v7163 = vshll.u32 %v6965, 16
        %v7165 = vrot.slane %v7163, 1
        %v7166 = vsel %vm2458, %v7161, %v7165
        %v7167 = vshrl.u32 %v6964, 16
        %v7169 = vor.u32 %v7167, %v7157
        %v7171 = vshll.u32 %v6966, 16
        %v7173 = vrot.slane %v7171, 1
        %v7174 = vsel %vm2458, %v7169, %v7173
        %v7175 = vshrl.u32 %v6965, 16
        %v7177 = vor.u32 %v7175, %v7165
        %v7179 = vshll.u32 %v6967, 16
        %v7181 = vrot.slane %v7179, 1
        %v7182 = vsel %vm2458, %v7177, %v7181
        %v7183 = vshrl.u32 %v6966, 16
        %v7185 = vor.u32 %v7183, %v7173
        %v7187 = vshll.u32 %v6968, 16
        %v7189 = vrot.slane %v7187, 1
        %v7190 = vsel %vm2458, %v7185, %v7189
        %v7191 = vshrl.u32 %v6967, 16
        %v7193 = vor.u32 %v7191, %v7181
        %v7195 = vshll.u32 %v6969, 16
        %v7197 = vrot.slane %v7195, 1
        %v7198 = vsel %vm2458, %v7193, %v7197
        %v7199 = vshrl.u32 %v6968, 16
        %v7201 = vor.u32 %v7199, %v7189
        %v7203 = vshll.u32 %v6970, 16
        %v7205 = vrot.slane %v7203, 1
        %v7206 = vsel %vm2458, %v7201, %v7205
        %v7207 = vshrl.u32 %v6969, 16
        %v7209 = vor.u32 %v7207, %v7197
        %v7211 = vshll.u32 %v6971, 16
        %v7213 = vrot.slane %v7211, 1
        %v7214 = vsel %vm2458, %v7209, %v7213
        %v7215 = vshrl.u32 %v6970, 16
        %v7217 = vor.u32 %v7215, %v7205
        %v7219 = vshll.u32 %v6972, 16
        %v7221 = vrot.slane %v7219, 1
        %v7222 = vsel %vm2458, %v7217, %v7221
        %v7223 = vshrl.u32 %v6971, 16
        %v7225 = vor.u32 %v7223, %v7213
        %v7227 = vshll.u32 %v6973, 16
        %v7229 = vrot.slane %v7227, 1
        %v7230 = vsel %vm2458, %v7225, %v7229
        %v7231 = vshrl.u32 %v6972, 16
        %v7233 = vor.u32 %v7231, %v7221
        %v7235 = vshll.u32 %v6974, 16
        %v7237 = vrot.slane %v7235, 1
        %v7238 = vsel %vm2458, %v7233, %v7237
        %v7275 = vunpack.c.l.b16 %v6822
        %v7276 = vunpack.c.h.b16 %v6822
        %v7277 = vunpack.c.l.b16 %v6823
        %v7278 = vunpack.c.h.b16 %v6823
        %v7279 = vunpack.c.l.b16 %v6824
        %v7280 = vunpack.c.h.b16 %v6824
        %v7281 = vunpack.c.l.b16 %v6825
        %v7282 = vunpack.c.h.b16 %v6825
        %v7283 = vunpack.c.l.b16 %v6826
        %v7284 = vunpack.c.h.b16 %v6826
        %v7285 = vunpack.c.l.b16 %v6827
        %v7286 = vunpack.c.h.b16 %v6827
        %v7287 = vunpack.c.l.b16 %v6828
        %v7288 = vunpack.c.h.b16 %v6828
        %v7289 = vunpack.c.l.b16 %v6829
        %v7290 = vunpack.c.h.b16 %v6829
        %v7291 = vunpack.c.l.b16 %v6830
        %v7292 = vunpack.c.h.b16 %v6830
        %v7293 = vunpack.c.l.b16 %v6831
        %v7294 = vunpack.c.h.b16 %v6831
        %v7295 = vunpack.c.l.b16 %v6832
        %v7296 = vunpack.c.h.b16 %v6832
        %v7297 = vunpack.c.l.b16 %v6833
        %v7298 = vunpack.c.h.b16 %v6833
        %v7299 = vunpack.c.l.b16 %v6834
        %v7300 = vunpack.c.h.b16 %v6834
        %v7301 = vunpack.c.l.b16 %v6835
        %v7302 = vunpack.c.h.b16 %v6835
        %v7303 = vunpack.c.l.b16 %v6836
        %v7304 = vunpack.c.h.b16 %v6836
        %v7305 = vunpack.c.l.b16 %v6837
        %v7306 = vunpack.c.h.b16 %v6837
        %v7307 = vunpack.c.l.b16 %v6838
        %v7308 = vunpack.c.h.b16 %v6838
        %v7309 = vunpack.c.l.b16 %v6839
        %v7310 = vunpack.c.h.b16 %v6839
        %v7311 = vunpack.c.l.b16 %v6840
        %v7312 = vunpack.c.h.b16 %v6840
        %v7313 = vunpack.c.l.b16 %v6841
        %v7314 = vunpack.c.h.b16 %v6841
        %v7315 = vpack.c.b16 %v7277, %v7275
        %v7316 = vpack.c.b16 %v7278, %v7276
        %v7317 = vpack.c.b16 %v7281, %v7279
        %v7318 = vpack.c.b16 %v7282, %v7280
        %v7319 = vpack.c.b16 %v7285, %v7283
        %v7320 = vpack.c.b16 %v7286, %v7284
        %v7321 = vpack.c.b16 %v7289, %v7287
        %v7322 = vpack.c.b16 %v7290, %v7288
        %v7323 = vpack.c.b16 %v7293, %v7291
        %v7324 = vpack.c.b16 %v7294, %v7292
        %v7325 = vpack.c.b16 %v7297, %v7295
        %v7326 = vpack.c.b16 %v7298, %v7296
        %v7327 = vpack.c.b16 %v7301, %v7299
        %v7328 = vpack.c.b16 %v7302, %v7300
        %v7329 = vpack.c.b16 %v7305, %v7303
        %v7330 = vpack.c.b16 %v7306, %v7304
        %v7331 = vpack.c.b16 %v7309, %v7307
        %v7332 = vpack.c.b16 %v7310, %v7308
        %v7333 = vpack.c.b16 %v7313, %v7311
        %v7334 = vpack.c.b16 %v7314, %v7312
        %v7356 = vsel %vm1330, %v6998, 0
        %v7359 = vsel %vm1330, %v7014, 0
        %v7362 = vsel %vm1330, %v7030, 0
        %v7365 = vsel %vm1330, %v7046, 0
        %v7368 = vsel %vm1330, %v7062, 0
        %v7371 = vsel %vm1330, %v7078, 0
        %v7374 = vsel %vm1330, %v7094, 0
        %v7377 = vsel %vm1330, %v7110, 0
        %v7380 = vsel %vm1330, %v7126, 0
        %v7383 = vsel %vm1330, %v7142, 0
        %v7386 = vsel %vm1330, %v7158, 0
        %v7389 = vsel %vm1330, %v7174, 0
        %v7392 = vsel %vm1330, %v7190, 0
        %v7395 = vsel %vm1330, %v7206, 0
        %v7398 = vsel %vm1330, %v7222, 0
        %v7401 = vsel %vm1330, %v7238, 0
        %7403 = vmatprep.subr.bf16.mxu0 %v7330
        %7404 = vmatpush1.bf16.msra.mxu0 %v7329
        %7405 = vmatprep.subr.bf16.mxu0 %v7328
        %7406 = vmatpush1.bf16.msra.mxu0 %v7327
        %7407 = vmatprep.subr.bf16.mxu0 %v7326
        %7408 = vmatpush1.bf16.msra.mxu0 %v7325
        %7409 = vmatprep.subr.bf16.mxu0 %v7324
        %7410 = vmatpush1.bf16.msra.mxu0 %v7323
        %7411 = vmatprep.subr.bf16.mxu0 %v7322
        %7412 = vmatpush1.bf16.msra.mxu0 %v7321
        %7413 = vmatprep.subr.bf16.mxu0 %v7320
        %7414 = vmatpush1.bf16.msra.mxu0 %v7319
        %7415 = vmatprep.subr.bf16.mxu0 %v7318
        %7416 = vmatpush1.bf16.msra.mxu0 %v7317
        %7417 = vmatprep.subr.bf16.mxu0 %v7316
        %7418 = vmatpush1.bf16.msra.mxu0 %v7315
        %7419 = vmatprep.subr.bf16.mxu0 0
        %7420 = vmatpush2.bf16.msra.mxu0 0
        %7421 = vmatprep.subr.bf16.mxu0 0
        %7422 = vmatpush2.bf16.msra.mxu0 0
        %7423 = vmatprep.subr.bf16.mxu0 0
        %7424 = vmatpush2.bf16.msra.mxu0 0
        %7425 = vmatprep.subr.bf16.mxu0 0
        %7426 = vmatpush2.bf16.msra.mxu0 0
        %7427 = vmatprep.subr.bf16.mxu0 0
        %7428 = vmatpush2.bf16.msra.mxu0 0
        %7429 = vmatprep.subr.bf16.mxu0 0
        %7430 = vmatpush2.bf16.msra.mxu0 0
        %7431 = vmatprep.subr.bf16.mxu0 %v7334
        %7432 = vmatpush2.bf16.msra.mxu0 %v7333
        %7433 = vmatprep.subr.bf16.mxu0 %v7332
        %7434 = vmatpush2.bf16.msra.mxu0 %v7331
        %7435 = vmatprep.mubr.bf16.mxu0 %v7356
        %7436 = vmatmul.mubr.bf16.gmra.mxu0 %v6986
        %v7437 = vpop.f32.mrf.mxu0
        %v7438 = vadd.f32 0.0, %v7437
        %v7439 = vpop.f32.mrf.mxu0
        %v7440 = vadd.f32 0.0, %v7439
        %v7441 = vpop.f32.mrf.mxu0
        %v7442 = vadd.f32 0.0, %v7441
        %v7443 = vpop.f32.mrf.mxu0
        %v7444 = vadd.f32 0.0, %v7443
        %7445 = vmatprep.mubr.bf16.mxu0 %v7359
        %7446 = vmatmul.mubr.bf16.gmra.mxu0 %v7006
        %v7447 = vpop.f32.mrf.mxu0
        %v7448 = vadd.f32 0.0, %v7447
        %v7449 = vpop.f32.mrf.mxu0
        %v7450 = vadd.f32 0.0, %v7449
        %v7451 = vpop.f32.mrf.mxu0
        %v7452 = vadd.f32 0.0, %v7451
        %v7453 = vpop.f32.mrf.mxu0
        %v7454 = vadd.f32 0.0, %v7453
        %7455 = vmatprep.mubr.bf16.mxu0 %v7362
        %7456 = vmatmul.mubr.bf16.gmra.mxu0 %v7022
        %v7457 = vpop.f32.mrf.mxu0
        %v7458 = vadd.f32 0.0, %v7457
        %v7459 = vpop.f32.mrf.mxu0
        %v7460 = vadd.f32 0.0, %v7459
        %v7461 = vpop.f32.mrf.mxu0
        %v7462 = vadd.f32 0.0, %v7461
        %v7463 = vpop.f32.mrf.mxu0
        %v7464 = vadd.f32 0.0, %v7463
        %7465 = vmatprep.mubr.bf16.mxu0 %v7365
        %7466 = vmatmul.mubr.bf16.gmra.mxu0 %v7038
        %v7467 = vpop.f32.mrf.mxu0
        %v7468 = vadd.f32 0.0, %v7467
        %v7469 = vpop.f32.mrf.mxu0
        %v7470 = vadd.f32 0.0, %v7469
        %v7471 = vpop.f32.mrf.mxu0
        %v7472 = vadd.f32 0.0, %v7471
        %v7473 = vpop.f32.mrf.mxu0
        %v7474 = vadd.f32 0.0, %v7473
        %7475 = vmatprep.mubr.bf16.mxu0 %v7368
        %7476 = vmatmul.mubr.bf16.gmra.mxu0 %v7054
        %v7477 = vpop.f32.mrf.mxu0
        %v7478 = vadd.f32 0.0, %v7477
        %v7479 = vpop.f32.mrf.mxu0
        %v7480 = vadd.f32 0.0, %v7479
        %v7481 = vpop.f32.mrf.mxu0
        %v7482 = vadd.f32 0.0, %v7481
        %v7483 = vpop.f32.mrf.mxu0
        %v7484 = vadd.f32 0.0, %v7483
        %7485 = vmatprep.mubr.bf16.mxu0 %v7371
        %7486 = vmatmul.mubr.bf16.gmra.mxu0 %v7070
        %v7487 = vpop.f32.mrf.mxu0
        %v7488 = vadd.f32 0.0, %v7487
        %v7489 = vpop.f32.mrf.mxu0
        %v7490 = vadd.f32 0.0, %v7489
        %v7491 = vpop.f32.mrf.mxu0
        %v7492 = vadd.f32 0.0, %v7491
        %v7493 = vpop.f32.mrf.mxu0
        %v7494 = vadd.f32 0.0, %v7493
        %7495 = vmatprep.mubr.bf16.mxu0 %v7374
        %7496 = vmatmul.mubr.bf16.gmra.mxu0 %v7086
        %v7497 = vpop.f32.mrf.mxu0
        %v7498 = vadd.f32 0.0, %v7497
        %v7499 = vpop.f32.mrf.mxu0
        %v7500 = vadd.f32 0.0, %v7499
        %v7501 = vpop.f32.mrf.mxu0
        %v7502 = vadd.f32 0.0, %v7501
        %v7503 = vpop.f32.mrf.mxu0
        %v7504 = vadd.f32 0.0, %v7503
        %7505 = vmatprep.mubr.bf16.mxu0 %v7377
        %7506 = vmatmul.mubr.bf16.gmra.mxu0 %v7102
        %v7507 = vpop.f32.mrf.mxu0
        %v7508 = vadd.f32 0.0, %v7507
        %v7509 = vpop.f32.mrf.mxu0
        %v7510 = vadd.f32 0.0, %v7509
        %v7511 = vpop.f32.mrf.mxu0
        %v7512 = vadd.f32 0.0, %v7511
        %v7513 = vpop.f32.mrf.mxu0
        %v7514 = vadd.f32 0.0, %v7513
        %7515 = vmatprep.mubr.bf16.mxu0 %v7380
        %7516 = vmatmul.mubr.bf16.gmra.mxu0 %v7118
        %v7517 = vpop.f32.mrf.mxu0
        %v7518 = vadd.f32 0.0, %v7517
        %v7519 = vpop.f32.mrf.mxu0
        %v7520 = vadd.f32 0.0, %v7519
        %v7521 = vpop.f32.mrf.mxu0
        %v7522 = vadd.f32 0.0, %v7521
        %v7523 = vpop.f32.mrf.mxu0
        %v7524 = vadd.f32 0.0, %v7523
        %7525 = vmatprep.mubr.bf16.mxu0 %v7383
        %7526 = vmatmul.mubr.bf16.gmra.mxu0 %v7134
        %v7527 = vpop.f32.mrf.mxu0
        %v7528 = vadd.f32 0.0, %v7527
        %v7529 = vpop.f32.mrf.mxu0
        %v7530 = vadd.f32 0.0, %v7529
        %v7531 = vpop.f32.mrf.mxu0
        %v7532 = vadd.f32 0.0, %v7531
        %v7533 = vpop.f32.mrf.mxu0
        %v7534 = vadd.f32 0.0, %v7533
        %7535 = vmatprep.mubr.bf16.mxu0 %v7386
        %7536 = vmatmul.mubr.bf16.gmra.mxu0 %v7150
        %v7537 = vpop.f32.mrf.mxu0
        %v7538 = vadd.f32 0.0, %v7537
        %v7539 = vpop.f32.mrf.mxu0
        %v7540 = vadd.f32 0.0, %v7539
        %v7541 = vpop.f32.mrf.mxu0
        %v7542 = vadd.f32 0.0, %v7541
        %v7543 = vpop.f32.mrf.mxu0
        %v7544 = vadd.f32 0.0, %v7543
        %7545 = vmatprep.mubr.bf16.mxu0 %v7389
        %7546 = vmatmul.mubr.bf16.gmra.mxu0 %v7166
        %v7547 = vpop.f32.mrf.mxu0
        %v7548 = vadd.f32 0.0, %v7547
        %v7549 = vpop.f32.mrf.mxu0
        %v7550 = vadd.f32 0.0, %v7549
        %v7551 = vpop.f32.mrf.mxu0
        %v7552 = vadd.f32 0.0, %v7551
        %v7553 = vpop.f32.mrf.mxu0
        %v7554 = vadd.f32 0.0, %v7553
        %7555 = vmatprep.mubr.bf16.mxu0 %v7392
        %7556 = vmatmul.mubr.bf16.gmra.mxu0 %v7182
        %v7557 = vpop.f32.mrf.mxu0
        %v7558 = vadd.f32 0.0, %v7557
        %v7559 = vpop.f32.mrf.mxu0
        %v7560 = vadd.f32 0.0, %v7559
        %v7561 = vpop.f32.mrf.mxu0
        %v7562 = vadd.f32 0.0, %v7561
        %v7563 = vpop.f32.mrf.mxu0
        %v7564 = vadd.f32 0.0, %v7563
        %7565 = vmatprep.mubr.bf16.mxu0 %v7395
        %7566 = vmatmul.mubr.bf16.gmra.mxu0 %v7198
        %v7567 = vpop.f32.mrf.mxu0
        %v7568 = vadd.f32 0.0, %v7567
        %v7569 = vpop.f32.mrf.mxu0
        %v7570 = vadd.f32 0.0, %v7569
        %v7571 = vpop.f32.mrf.mxu0
        %v7572 = vadd.f32 0.0, %v7571
        %v7573 = vpop.f32.mrf.mxu0
        %v7574 = vadd.f32 0.0, %v7573
        %7575 = vmatprep.mubr.bf16.mxu0 %v7398
        %7576 = vmatmul.mubr.bf16.gmra.mxu0 %v7214
        %v7577 = vpop.f32.mrf.mxu0
        %v7578 = vadd.f32 0.0, %v7577
        %v7579 = vpop.f32.mrf.mxu0
        %v7580 = vadd.f32 0.0, %v7579
        %v7581 = vpop.f32.mrf.mxu0
        %v7582 = vadd.f32 0.0, %v7581
        %v7583 = vpop.f32.mrf.mxu0
        %v7584 = vadd.f32 0.0, %v7583
        %7585 = vmatprep.mubr.bf16.mxu0 %v7401
        %7586 = vmatmul.mubr.bf16.gmra.mxu0 %v7230
        %v7587 = vpop.f32.mrf.mxu0
        %v7588 = vadd.f32 0.0, %v7587
        %v7589 = vpop.f32.mrf.mxu0
        %v7590 = vadd.f32 0.0, %v7589
        %v7591 = vpop.f32.mrf.mxu0
        %v7592 = vadd.f32 0.0, %v7591
        %v7593 = vpop.f32.mrf.mxu0
        %v7594 = vadd.f32 0.0, %v7593
        %7595 = vdwg.mxu0
        %v7596 = vadd.f32 %v6724, %v7438
        %v7597 = vadd.f32 %v6725, %v7440
        %v7598 = vadd.f32 %v6726, %v7442
        %v7599 = vadd.f32 %v6727, %v7444
        %v7600 = vadd.f32 %v6728, %v7448
        %v7601 = vadd.f32 %v6729, %v7450
        %v7602 = vadd.f32 %v6730, %v7452
        %v7603 = vadd.f32 %v6731, %v7454
        %v7604 = vadd.f32 %v6732, %v7458
        %v7605 = vadd.f32 %v6733, %v7460
        %v7606 = vadd.f32 %v6734, %v7462
        %v7607 = vadd.f32 %v6735, %v7464
        %v7608 = vadd.f32 %v6736, %v7468
        %v7609 = vadd.f32 %v6737, %v7470
        %v7610 = vadd.f32 %v6738, %v7472
        %v7611 = vadd.f32 %v6739, %v7474
        %v7612 = vadd.f32 %v6740, %v7478
        %v7613 = vadd.f32 %v6741, %v7480
        %v7614 = vadd.f32 %v6742, %v7482
        %v7615 = vadd.f32 %v6743, %v7484
        %v7616 = vadd.f32 %v6744, %v7488
        %v7617 = vadd.f32 %v6745, %v7490
        %v7618 = vadd.f32 %v6746, %v7492
        %v7619 = vadd.f32 %v6747, %v7494
        %v7620 = vadd.f32 %v6748, %v7498
        %v7621 = vadd.f32 %v6749, %v7500
        %v7622 = vadd.f32 %v6750, %v7502
        %v7623 = vadd.f32 %v6751, %v7504
        %v7624 = vadd.f32 %v6752, %v7508
        %v7625 = vadd.f32 %v6753, %v7510
        %v7626 = vadd.f32 %v6754, %v7512
        %v7627 = vadd.f32 %v6755, %v7514
        %v7628 = vadd.f32 %v6756, %v7518
        %v7629 = vadd.f32 %v6757, %v7520
        %v7630 = vadd.f32 %v6758, %v7522
        %v7631 = vadd.f32 %v6759, %v7524
        %v7632 = vadd.f32 %v6760, %v7528
        %v7633 = vadd.f32 %v6761, %v7530
        %v7634 = vadd.f32 %v6762, %v7532
        %v7635 = vadd.f32 %v6763, %v7534
        %v7636 = vadd.f32 %v6764, %v7538
        %v7637 = vadd.f32 %v6765, %v7540
        %v7638 = vadd.f32 %v6766, %v7542
        %v7639 = vadd.f32 %v6767, %v7544
        %v7640 = vadd.f32 %v6768, %v7548
        %v7641 = vadd.f32 %v6769, %v7550
        %v7642 = vadd.f32 %v6770, %v7552
        %v7643 = vadd.f32 %v6771, %v7554
        %v7644 = vadd.f32 %v6772, %v7558
        %v7645 = vadd.f32 %v6773, %v7560
        %v7646 = vadd.f32 %v6774, %v7562
        %v7647 = vadd.f32 %v6775, %v7564
        %v7648 = vadd.f32 %v6776, %v7568
        %v7649 = vadd.f32 %v6777, %v7570
        %v7650 = vadd.f32 %v6778, %v7572
        %v7651 = vadd.f32 %v6779, %v7574
        %v7652 = vadd.f32 %v6780, %v7578
        %v7653 = vadd.f32 %v6781, %v7580
        %v7654 = vadd.f32 %v6782, %v7582
        %v7655 = vadd.f32 %v6783, %v7584
        %v7656 = vadd.f32 %v6784, %v7588
        %v7657 = vadd.f32 %v6785, %v7590
        %v7658 = vadd.f32 %v6786, %v7592
        %v7659 = vadd.f32 %v6787, %v7594
        %v7660 = vld [vmem:[%s2] sm:$0xff]
        %v7661 = vld [vmem:[%s2 + $0x8] sm:$0xff]
        %v7662 = vld [vmem:[%s2 + $0x10] sm:$0xff]
        %v7663 = vld [vmem:[%s2 + $0x18] sm:$0xff]
        %v7664 = vld [vmem:[%s2 + $0x20] sm:$0xff]
        %v7665 = vld [vmem:[%s2 + $0x28] sm:$0xff]
        %v7666 = vld [vmem:[%s2 + $0x30] sm:$0xff]
        %v7667 = vld [vmem:[%s2 + $0x38] sm:$0xff]
        %v7668 = vld [vmem:[%s2 + $0x40] sm:$0xff]
        %v7669 = vld [vmem:[%s2 + $0x48] sm:$0xff]
        %v7670 = vld [vmem:[%s2 + $0x50] sm:$0xff]
        %v7671 = vld [vmem:[%s2 + $0x58] sm:$0xff]
        %v7672 = vld [vmem:[%s2 + $0x60] sm:$0xff]
        %v7673 = vld [vmem:[%s2 + $0x68] sm:$0xff]
        %v7674 = vld [vmem:[%s2 + $0x70] sm:$0xff]
        %v7675 = vld [vmem:[%s2 + $0x78] sm:$0xff]
        %v7676 = vld [vmem:[%s2 + $0x80] sm:$0xff]
        %v7677 = vld [vmem:[%s2 + $0x88] sm:$0xff]
        %v7678 = vld [vmem:[%s2 + $0x90] sm:$0xff]
        %v7679 = vld [vmem:[%s2 + $0x98] sm:$0xff]
        %v7680 = vld [vmem:[%s2 + $0xa0] sm:$0xff]
        %v7681 = vld [vmem:[%s2 + $0xa8] sm:$0xff]
        %v7682 = vld [vmem:[%s2 + $0xb0] sm:$0xff]
        %v7683 = vld [vmem:[%s2 + $0xb8] sm:$0xff]
        %v7684 = vld [vmem:[%s2 + $0xc0] sm:$0xff]
        %v7685 = vld [vmem:[%s2 + $0xc8] sm:$0xff]
        %v7686 = vld [vmem:[%s2 + $0xd0] sm:$0xff]
        %v7687 = vld [vmem:[%s2 + $0xd8] sm:$0xff]
        %v7688 = vld [vmem:[%s2 + $0xe0] sm:$0xff]
        %v7689 = vld [vmem:[%s2 + $0xe8] sm:$0xff]
        %v7690 = vld [vmem:[%s2 + $0xf0] sm:$0xff]
        %v7691 = vld [vmem:[%s2 + $0xf8] sm:$0xff]
        %7693 = vset.pattern.permute.xlu0 0
        %7694 = vperm.xlu0 %7693, %v7660
        %v7695 = vpop.permute.xlu0 %7694
        %7698 = vset.pattern.permute.xlu0 0
        %7699 = vperm.xlu0 %7698, %v7661
        %v7700 = vpop.permute.xlu0 %7699
        %7703 = vset.pattern.permute.xlu0 0
        %7704 = vperm.xlu0 %7703, %v7662
        %v7705 = vpop.permute.xlu0 %7704
        %7708 = vset.pattern.permute.xlu0 0
        %7709 = vperm.xlu0 %7708, %v7663
        %v7710 = vpop.permute.xlu0 %7709
        %7713 = vset.pattern.permute.xlu0 0
        %7714 = vperm.xlu0 %7713, %v7664
        %v7715 = vpop.permute.xlu0 %7714
        %7718 = vset.pattern.permute.xlu0 0
        %7719 = vperm.xlu0 %7718, %v7665
        %v7720 = vpop.permute.xlu0 %7719
        %7723 = vset.pattern.permute.xlu0 0
        %7724 = vperm.xlu0 %7723, %v7666
        %v7725 = vpop.permute.xlu0 %7724
        %7728 = vset.pattern.permute.xlu0 0
        %7729 = vperm.xlu0 %7728, %v7667
        %v7730 = vpop.permute.xlu0 %7729
        %7733 = vset.pattern.permute.xlu0 0
        %7734 = vperm.xlu0 %7733, %v7668
        %v7735 = vpop.permute.xlu0 %7734
        %7738 = vset.pattern.permute.xlu0 0
        %7739 = vperm.xlu0 %7738, %v7669
        %v7740 = vpop.permute.xlu0 %7739
        %7743 = vset.pattern.permute.xlu0 0
        %7744 = vperm.xlu0 %7743, %v7670
        %v7745 = vpop.permute.xlu0 %7744
        %7748 = vset.pattern.permute.xlu0 0
        %7749 = vperm.xlu0 %7748, %v7671
        %v7750 = vpop.permute.xlu0 %7749
        %7753 = vset.pattern.permute.xlu0 0
        %7754 = vperm.xlu0 %7753, %v7672
        %v7755 = vpop.permute.xlu0 %7754
        %7758 = vset.pattern.permute.xlu0 0
        %7759 = vperm.xlu0 %7758, %v7673
        %v7760 = vpop.permute.xlu0 %7759
        %7763 = vset.pattern.permute.xlu0 0
        %7764 = vperm.xlu0 %7763, %v7674
        %v7765 = vpop.permute.xlu0 %7764
        %7768 = vset.pattern.permute.xlu0 0
        %7769 = vperm.xlu0 %7768, %v7675
        %v7770 = vpop.permute.xlu0 %7769
        %7773 = vset.pattern.permute.xlu0 0
        %7774 = vperm.xlu0 %7773, %v7676
        %v7775 = vpop.permute.xlu0 %7774
        %7778 = vset.pattern.permute.xlu0 0
        %7779 = vperm.xlu0 %7778, %v7677
        %v7780 = vpop.permute.xlu0 %7779
        %7783 = vset.pattern.permute.xlu0 0
        %7784 = vperm.xlu0 %7783, %v7678
        %v7785 = vpop.permute.xlu0 %7784
        %7788 = vset.pattern.permute.xlu0 0
        %7789 = vperm.xlu0 %7788, %v7679
        %v7790 = vpop.permute.xlu0 %7789
        %7793 = vset.pattern.permute.xlu0 0
        %7794 = vperm.xlu0 %7793, %v7680
        %v7795 = vpop.permute.xlu0 %7794
        %7798 = vset.pattern.permute.xlu0 0
        %7799 = vperm.xlu0 %7798, %v7681
        %v7800 = vpop.permute.xlu0 %7799
        %7803 = vset.pattern.permute.xlu0 0
        %7804 = vperm.xlu0 %7803, %v7682
        %v7805 = vpop.permute.xlu0 %7804
        %7808 = vset.pattern.permute.xlu0 0
        %7809 = vperm.xlu0 %7808, %v7683
        %v7810 = vpop.permute.xlu0 %7809
        %7813 = vset.pattern.permute.xlu0 0
        %7814 = vperm.xlu0 %7813, %v7684
        %v7815 = vpop.permute.xlu0 %7814
        %7818 = vset.pattern.permute.xlu0 0
        %7819 = vperm.xlu0 %7818, %v7685
        %v7820 = vpop.permute.xlu0 %7819
        %7823 = vset.pattern.permute.xlu0 0
        %7824 = vperm.xlu0 %7823, %v7686
        %v7825 = vpop.permute.xlu0 %7824
        %7828 = vset.pattern.permute.xlu0 0
        %7829 = vperm.xlu0 %7828, %v7687
        %v7830 = vpop.permute.xlu0 %7829
        %7833 = vset.pattern.permute.xlu0 0
        %7834 = vperm.xlu0 %7833, %v7688
        %v7835 = vpop.permute.xlu0 %7834
        %7838 = vset.pattern.permute.xlu0 0
        %7839 = vperm.xlu0 %7838, %v7689
        %v7840 = vpop.permute.xlu0 %7839
        %7843 = vset.pattern.permute.xlu0 0
        %7844 = vperm.xlu0 %7843, %v7690
        %v7845 = vpop.permute.xlu0 %7844
        %7848 = vset.pattern.permute.xlu0 0
        %7849 = vperm.xlu0 %7848, %v7691
        %v7850 = vpop.permute.xlu0 %7849
        %v7852 = vmul.f32 %v7596, %v7695
        %v7853 = vmul.f32 %v7597, %v7695
        %v7854 = vmul.f32 %v7598, %v7700
        %v7855 = vmul.f32 %v7599, %v7700
        %v7856 = vmul.f32 %v7600, %v7705
        %v7857 = vmul.f32 %v7601, %v7705
        %v7858 = vmul.f32 %v7602, %v7710
        %v7859 = vmul.f32 %v7603, %v7710
        %v7860 = vmul.f32 %v7604, %v7715
        %v7861 = vmul.f32 %v7605, %v7715
        %v7862 = vmul.f32 %v7606, %v7720
        %v7863 = vmul.f32 %v7607, %v7720
        %v7864 = vmul.f32 %v7608, %v7725
        %v7865 = vmul.f32 %v7609, %v7725
        %v7866 = vmul.f32 %v7610, %v7730
        %v7867 = vmul.f32 %v7611, %v7730
        %v7868 = vmul.f32 %v7612, %v7735
        %v7869 = vmul.f32 %v7613, %v7735
        %v7870 = vmul.f32 %v7614, %v7740
        %v7871 = vmul.f32 %v7615, %v7740
        %v7872 = vmul.f32 %v7616, %v7745
        %v7873 = vmul.f32 %v7617, %v7745
        %v7874 = vmul.f32 %v7618, %v7750
        %v7875 = vmul.f32 %v7619, %v7750
        %v7876 = vmul.f32 %v7620, %v7755
        %v7877 = vmul.f32 %v7621, %v7755
        %v7878 = vmul.f32 %v7622, %v7760
        %v7879 = vmul.f32 %v7623, %v7760
        %v7880 = vmul.f32 %v7624, %v7765
        %v7881 = vmul.f32 %v7625, %v7765
        %v7882 = vmul.f32 %v7626, %v7770
        %v7883 = vmul.f32 %v7627, %v7770
        %v7884 = vmul.f32 %v7628, %v7775
        %v7885 = vmul.f32 %v7629, %v7775
        %v7886 = vmul.f32 %v7630, %v7780
        %v7887 = vmul.f32 %v7631, %v7780
        %v7888 = vmul.f32 %v7632, %v7785
        %v7889 = vmul.f32 %v7633, %v7785
        %v7890 = vmul.f32 %v7634, %v7790
        %v7891 = vmul.f32 %v7635, %v7790
        %v7892 = vmul.f32 %v7636, %v7795
        %v7893 = vmul.f32 %v7637, %v7795
        %v7894 = vmul.f32 %v7638, %v7800
        %v7895 = vmul.f32 %v7639, %v7800
        %v7896 = vmul.f32 %v7640, %v7805
        %v7897 = vmul.f32 %v7641, %v7805
        %v7898 = vmul.f32 %v7642, %v7810
        %v7899 = vmul.f32 %v7643, %v7810
        %v7900 = vmul.f32 %v7644, %v7815
        %v7901 = vmul.f32 %v7645, %v7815
        %v7902 = vmul.f32 %v7646, %v7820
        %v7903 = vmul.f32 %v7647, %v7820
        %v7904 = vmul.f32 %v7648, %v7825
        %v7905 = vmul.f32 %v7649, %v7825
        %v7906 = vmul.f32 %v7650, %v7830
        %v7907 = vmul.f32 %v7651, %v7830
        %v7908 = vmul.f32 %v7652, %v7835
        %v7909 = vmul.f32 %v7653, %v7835
        %v7910 = vmul.f32 %v7654, %v7840
        %v7911 = vmul.f32 %v7655, %v7840
        %v7912 = vmul.f32 %v7656, %v7845
        %v7913 = vmul.f32 %v7657, %v7845
        %v7914 = vmul.f32 %v7658, %v7850
        %v7915 = vmul.f32 %v7659, %v7850
        %v7916 = vadd.f32 %v7852, %v7854
        %v7917 = vadd.f32 %v7916, %v7856
        %v7918 = vadd.f32 %v7917, %v7858
        %v7919 = vadd.f32 %v7918, %v7860
        %v7920 = vadd.f32 %v7919, %v7862
        %v7921 = vadd.f32 %v7920, %v7864
        %v7922 = vadd.f32 %v7921, %v7866
        %v7923 = vadd.f32 %v7922, %v7868
        %v7924 = vadd.f32 %v7923, %v7870
        %v7925 = vadd.f32 %v7924, %v7872
        %v7926 = vadd.f32 %v7925, %v7874
        %v7927 = vadd.f32 %v7926, %v7876
        %v7928 = vadd.f32 %v7927, %v7878
        %v7929 = vadd.f32 %v7928, %v7880
        %v7930 = vadd.f32 %v7929, %v7882
        %v7931 = vadd.f32 %v7930, %v7884
        %v7932 = vadd.f32 %v7931, %v7886
        %v7933 = vadd.f32 %v7932, %v7888
        %v7934 = vadd.f32 %v7933, %v7890
        %v7935 = vadd.f32 %v7934, %v7892
        %v7936 = vadd.f32 %v7935, %v7894
        %v7937 = vadd.f32 %v7936, %v7896
        %v7938 = vadd.f32 %v7937, %v7898
        %v7939 = vadd.f32 %v7938, %v7900
        %v7940 = vadd.f32 %v7939, %v7902
        %v7941 = vadd.f32 %v7940, %v7904
        %v7942 = vadd.f32 %v7941, %v7906
        %v7943 = vadd.f32 %v7942, %v7908
        %v7944 = vadd.f32 %v7943, %v7910
        %v7945 = vadd.f32 %v7944, %v7912
        %v7946 = vadd.f32 %v7945, %v7914
        %v7947 = vrot.slane %v7946, 4
        %v7948 = vadd.f32 %v7946, %v7947
        %v7949 = vrot.slane %v7948, 2
        %v7950 = vadd.f32 %v7948, %v7949
        %v7951 = vrot.slane %v7950, 1
        %v7952 = vadd.f32 %v7950, %v7951
        %v7953 = vadd.f32 %v7853, %v7855
        %v7954 = vadd.f32 %v7953, %v7857
        %v7955 = vadd.f32 %v7954, %v7859
        %v7956 = vadd.f32 %v7955, %v7861
        %v7957 = vadd.f32 %v7956, %v7863
        %v7958 = vadd.f32 %v7957, %v7865
        %v7959 = vadd.f32 %v7958, %v7867
        %v7960 = vadd.f32 %v7959, %v7869
        %v7961 = vadd.f32 %v7960, %v7871
        %v7962 = vadd.f32 %v7961, %v7873
        %v7963 = vadd.f32 %v7962, %v7875
        %v7964 = vadd.f32 %v7963, %v7877
        %v7965 = vadd.f32 %v7964, %v7879
        %v7966 = vadd.f32 %v7965, %v7881
        %v7967 = vadd.f32 %v7966, %v7883
        %v7968 = vadd.f32 %v7967, %v7885
        %v7969 = vadd.f32 %v7968, %v7887
        %v7970 = vadd.f32 %v7969, %v7889
        %v7971 = vadd.f32 %v7970, %v7891
        %v7972 = vadd.f32 %v7971, %v7893
        %v7973 = vadd.f32 %v7972, %v7895
        %v7974 = vadd.f32 %v7973, %v7897
        %v7975 = vadd.f32 %v7974, %v7899
        %v7976 = vadd.f32 %v7975, %v7901
        %v7977 = vadd.f32 %v7976, %v7903
        %v7978 = vadd.f32 %v7977, %v7905
        %v7979 = vadd.f32 %v7978, %v7907
        %v7980 = vadd.f32 %v7979, %v7909
        %v7981 = vadd.f32 %v7980, %v7911
        %v7982 = vadd.f32 %v7981, %v7913
        %v7983 = vadd.f32 %v7982, %v7915
        %v7984 = vrot.slane %v7983, 4
        %v7985 = vadd.f32 %v7983, %v7984
        %v7986 = vrot.slane %v7985, 2
        %v7987 = vadd.f32 %v7985, %v7986
        %v7988 = vrot.slane %v7987, 1
        %v7989 = vadd.f32 %v7987, %v7988
        %v7990 = vmul.f32 %v7952, 0.0051020407
        %v7991 = vmul.f32 %v7989, 0.0051020407
        %v7992 = vsub.f32 %v7596, %v7990
        %v7993 = vsub.f32 %v7597, %v7991
        %v7994 = vsub.f32 %v7598, %v7990
        %v7995 = vsub.f32 %v7599, %v7991
        %v7996 = vsub.f32 %v7600, %v7990
        %v7997 = vsub.f32 %v7601, %v7991
        %v7998 = vsub.f32 %v7602, %v7990
        %v7999 = vsub.f32 %v7603, %v7991
        %v8000 = vsub.f32 %v7604, %v7990
        %v8001 = vsub.f32 %v7605, %v7991
        %v8002 = vsub.f32 %v7606, %v7990
        %v8003 = vsub.f32 %v7607, %v7991
        %v8004 = vsub.f32 %v7608, %v7990
        %v8005 = vsub.f32 %v7609, %v7991
        %v8006 = vsub.f32 %v7610, %v7990
        %v8007 = vsub.f32 %v7611, %v7991
        %v8008 = vsub.f32 %v7612, %v7990
        %v8009 = vsub.f32 %v7613, %v7991
        %v8010 = vsub.f32 %v7614, %v7990
        %v8011 = vsub.f32 %v7615, %v7991
        %v8012 = vsub.f32 %v7616, %v7990
        %v8013 = vsub.f32 %v7617, %v7991
        %v8014 = vsub.f32 %v7618, %v7990
        %v8015 = vsub.f32 %v7619, %v7991
        %v8016 = vsub.f32 %v7620, %v7990
        %v8017 = vsub.f32 %v7621, %v7991
        %v8018 = vsub.f32 %v7622, %v7990
        %v8019 = vsub.f32 %v7623, %v7991
        %v8020 = vsub.f32 %v7624, %v7990
        %v8021 = vsub.f32 %v7625, %v7991
        %v8022 = vsub.f32 %v7626, %v7990
        %v8023 = vsub.f32 %v7627, %v7991
        %v8024 = vsub.f32 %v7628, %v7990
        %v8025 = vsub.f32 %v7629, %v7991
        %v8026 = vsub.f32 %v7630, %v7990
        %v8027 = vsub.f32 %v7631, %v7991
        %v8028 = vsub.f32 %v7632, %v7990
        %v8029 = vsub.f32 %v7633, %v7991
        %v8030 = vsub.f32 %v7634, %v7990
        %v8031 = vsub.f32 %v7635, %v7991
        %v8032 = vsub.f32 %v7636, %v7990
        %v8033 = vsub.f32 %v7637, %v7991
        %v8034 = vsub.f32 %v7638, %v7990
        %v8035 = vsub.f32 %v7639, %v7991
        %v8036 = vsub.f32 %v7640, %v7990
        %v8037 = vsub.f32 %v7641, %v7991
        %v8038 = vsub.f32 %v7642, %v7990
        %v8039 = vsub.f32 %v7643, %v7991
        %v8040 = vsub.f32 %v7644, %v7990
        %v8041 = vsub.f32 %v7645, %v7991
        %v8042 = vsub.f32 %v7646, %v7990
        %v8043 = vsub.f32 %v7647, %v7991
        %v8044 = vsub.f32 %v7648, %v7990
        %v8045 = vsub.f32 %v7649, %v7991
        %v8046 = vsub.f32 %v7650, %v7990
        %v8047 = vsub.f32 %v7651, %v7991
        %v8048 = vsub.f32 %v7652, %v7990
        %v8049 = vsub.f32 %v7653, %v7991
        %v8050 = vsub.f32 %v7654, %v7990
        %v8051 = vsub.f32 %v7655, %v7991
        %v8052 = vsub.f32 %v7656, %v7990
        %v8053 = vsub.f32 %v7657, %v7991
        %v8054 = vsub.f32 %v7658, %v7990
        %v8055 = vsub.f32 %v7659, %v7991
        %v8056 = vmul.f32 %v7992, %v7695
        %v8057 = vmul.f32 %v7993, %v7695
        %v8058 = vmul.f32 %v7994, %v7700
        %v8059 = vmul.f32 %v7995, %v7700
        %v8060 = vmul.f32 %v7996, %v7705
        %v8061 = vmul.f32 %v7997, %v7705
        %v8062 = vmul.f32 %v7998, %v7710
        %v8063 = vmul.f32 %v7999, %v7710
        %v8064 = vmul.f32 %v8000, %v7715
        %v8065 = vmul.f32 %v8001, %v7715
        %v8066 = vmul.f32 %v8002, %v7720
        %v8067 = vmul.f32 %v8003, %v7720
        %v8068 = vmul.f32 %v8004, %v7725
        %v8069 = vmul.f32 %v8005, %v7725
        %v8070 = vmul.f32 %v8006, %v7730
        %v8071 = vmul.f32 %v8007, %v7730
        %v8072 = vmul.f32 %v8008, %v7735
        %v8073 = vmul.f32 %v8009, %v7735
        %v8074 = vmul.f32 %v8010, %v7740
        %v8075 = vmul.f32 %v8011, %v7740
        %v8076 = vmul.f32 %v8012, %v7745
        %v8077 = vmul.f32 %v8013, %v7745
        %v8078 = vmul.f32 %v8014, %v7750
        %v8079 = vmul.f32 %v8015, %v7750
        %v8080 = vmul.f32 %v8016, %v7755
        %v8081 = vmul.f32 %v8017, %v7755
        %v8082 = vmul.f32 %v8018, %v7760
        %v8083 = vmul.f32 %v8019, %v7760
        %v8084 = vmul.f32 %v8020, %v7765
        %v8085 = vmul.f32 %v8021, %v7765
        %v8086 = vmul.f32 %v8022, %v7770
        %v8087 = vmul.f32 %v8023, %v7770
        %v8088 = vmul.f32 %v8024, %v7775
        %v8089 = vmul.f32 %v8025, %v7775
        %v8090 = vmul.f32 %v8026, %v7780
        %v8091 = vmul.f32 %v8027, %v7780
        %v8092 = vmul.f32 %v8028, %v7785
        %v8093 = vmul.f32 %v8029, %v7785
        %v8094 = vmul.f32 %v8030, %v7790
        %v8095 = vmul.f32 %v8031, %v7790
        %v8096 = vmul.f32 %v8032, %v7795
        %v8097 = vmul.f32 %v8033, %v7795
        %v8098 = vmul.f32 %v8034, %v7800
        %v8099 = vmul.f32 %v8035, %v7800
        %v8100 = vmul.f32 %v8036, %v7805
        %v8101 = vmul.f32 %v8037, %v7805
        %v8102 = vmul.f32 %v8038, %v7810
        %v8103 = vmul.f32 %v8039, %v7810
        %v8104 = vmul.f32 %v8040, %v7815
        %v8105 = vmul.f32 %v8041, %v7815
        %v8106 = vmul.f32 %v8042, %v7820
        %v8107 = vmul.f32 %v8043, %v7820
        %v8108 = vmul.f32 %v8044, %v7825
        %v8109 = vmul.f32 %v8045, %v7825
        %v8110 = vmul.f32 %v8046, %v7830
        %v8111 = vmul.f32 %v8047, %v7830
        %v8112 = vmul.f32 %v8048, %v7835
        %v8113 = vmul.f32 %v8049, %v7835
        %v8114 = vmul.f32 %v8050, %v7840
        %v8115 = vmul.f32 %v8051, %v7840
        %v8116 = vmul.f32 %v8052, %v7845
        %v8117 = vmul.f32 %v8053, %v7845
        %v8118 = vmul.f32 %v8054, %v7850
        %v8119 = vmul.f32 %v8055, %v7850
        %v8120 = vmul.f32 %v8056, %v8056
        %v8121 = vmul.f32 %v8057, %v8057
        %v8122 = vmul.f32 %v8058, %v8058
        %v8123 = vmul.f32 %v8059, %v8059
        %v8124 = vmul.f32 %v8060, %v8060
        %v8125 = vmul.f32 %v8061, %v8061
        %v8126 = vmul.f32 %v8062, %v8062
        %v8127 = vmul.f32 %v8063, %v8063
        %v8128 = vmul.f32 %v8064, %v8064
        %v8129 = vmul.f32 %v8065, %v8065
        %v8130 = vmul.f32 %v8066, %v8066
        %v8131 = vmul.f32 %v8067, %v8067
        %v8132 = vmul.f32 %v8068, %v8068
        %v8133 = vmul.f32 %v8069, %v8069
        %v8134 = vmul.f32 %v8070, %v8070
        %v8135 = vmul.f32 %v8071, %v8071
        %v8136 = vmul.f32 %v8072, %v8072
        %v8137 = vmul.f32 %v8073, %v8073
        %v8138 = vmul.f32 %v8074, %v8074
        %v8139 = vmul.f32 %v8075, %v8075
        %v8140 = vmul.f32 %v8076, %v8076
        %v8141 = vmul.f32 %v8077, %v8077
        %v8142 = vmul.f32 %v8078, %v8078
        %v8143 = vmul.f32 %v8079, %v8079
        %v8144 = vmul.f32 %v8080, %v8080
        %v8145 = vmul.f32 %v8081, %v8081
        %v8146 = vmul.f32 %v8082, %v8082
        %v8147 = vmul.f32 %v8083, %v8083
        %v8148 = vmul.f32 %v8084, %v8084
        %v8149 = vmul.f32 %v8085, %v8085
        %v8150 = vmul.f32 %v8086, %v8086
        %v8151 = vmul.f32 %v8087, %v8087
        %v8152 = vmul.f32 %v8088, %v8088
        %v8153 = vmul.f32 %v8089, %v8089
        %v8154 = vmul.f32 %v8090, %v8090
        %v8155 = vmul.f32 %v8091, %v8091
        %v8156 = vmul.f32 %v8092, %v8092
        %v8157 = vmul.f32 %v8093, %v8093
        %v8158 = vmul.f32 %v8094, %v8094
        %v8159 = vmul.f32 %v8095, %v8095
        %v8160 = vmul.f32 %v8096, %v8096
        %v8161 = vmul.f32 %v8097, %v8097
        %v8162 = vmul.f32 %v8098, %v8098
        %v8163 = vmul.f32 %v8099, %v8099
        %v8164 = vmul.f32 %v8100, %v8100
        %v8165 = vmul.f32 %v8101, %v8101
        %v8166 = vmul.f32 %v8102, %v8102
        %v8167 = vmul.f32 %v8103, %v8103
        %v8168 = vmul.f32 %v8104, %v8104
        %v8169 = vmul.f32 %v8105, %v8105
        %v8170 = vmul.f32 %v8106, %v8106
        %v8171 = vmul.f32 %v8107, %v8107
        %v8172 = vmul.f32 %v8108, %v8108
        %v8173 = vmul.f32 %v8109, %v8109
        %v8174 = vmul.f32 %v8110, %v8110
        %v8175 = vmul.f32 %v8111, %v8111
        %v8176 = vmul.f32 %v8112, %v8112
        %v8177 = vmul.f32 %v8113, %v8113
        %v8178 = vmul.f32 %v8114, %v8114
        %v8179 = vmul.f32 %v8115, %v8115
        %v8180 = vmul.f32 %v8116, %v8116
        %v8181 = vmul.f32 %v8117, %v8117
        %v8182 = vmul.f32 %v8118, %v8118
        %v8183 = vmul.f32 %v8119, %v8119
        %v8184 = vadd.f32 %v8120, %v8122
        %v8185 = vadd.f32 %v8184, %v8124
        %v8186 = vadd.f32 %v8185, %v8126
        %v8187 = vadd.f32 %v8186, %v8128
        %v8188 = vadd.f32 %v8187, %v8130
        %v8189 = vadd.f32 %v8188, %v8132
        %v8190 = vadd.f32 %v8189, %v8134
        %v8191 = vadd.f32 %v8190, %v8136
        %v8192 = vadd.f32 %v8191, %v8138
        %v8193 = vadd.f32 %v8192, %v8140
        %v8194 = vadd.f32 %v8193, %v8142
        %v8195 = vadd.f32 %v8194, %v8144
        %v8196 = vadd.f32 %v8195, %v8146
        %v8197 = vadd.f32 %v8196, %v8148
        %v8198 = vadd.f32 %v8197, %v8150
        %v8199 = vadd.f32 %v8198, %v8152
        %v8200 = vadd.f32 %v8199, %v8154
        %v8201 = vadd.f32 %v8200, %v8156
        %v8202 = vadd.f32 %v8201, %v8158
        %v8203 = vadd.f32 %v8202, %v8160
        %v8204 = vadd.f32 %v8203, %v8162
        %v8205 = vadd.f32 %v8204, %v8164
        %v8206 = vadd.f32 %v8205, %v8166
        %v8207 = vadd.f32 %v8206, %v8168
        %v8208 = vadd.f32 %v8207, %v8170
        %v8209 = vadd.f32 %v8208, %v8172
        %v8210 = vadd.f32 %v8209, %v8174
        %v8211 = vadd.f32 %v8210, %v8176
        %v8212 = vadd.f32 %v8211, %v8178
        %v8213 = vadd.f32 %v8212, %v8180
        %v8214 = vadd.f32 %v8213, %v8182
        %v8215 = vrot.slane %v8214, 4
        %v8216 = vadd.f32 %v8214, %v8215
        %v8217 = vrot.slane %v8216, 2
        %v8218 = vadd.f32 %v8216, %v8217
        %v8219 = vrot.slane %v8218, 1
        %v8220 = vadd.f32 %v8218, %v8219
        %v8221 = vadd.f32 %v8121, %v8123
        %v8222 = vadd.f32 %v8221, %v8125
        %v8223 = vadd.f32 %v8222, %v8127
        %v8224 = vadd.f32 %v8223, %v8129
        %v8225 = vadd.f32 %v8224, %v8131
        %v8226 = vadd.f32 %v8225, %v8133
        %v8227 = vadd.f32 %v8226, %v8135
        %v8228 = vadd.f32 %v8227, %v8137
        %v8229 = vadd.f32 %v8228, %v8139
        %v8230 = vadd.f32 %v8229, %v8141
        %v8231 = vadd.f32 %v8230, %v8143
        %v8232 = vadd.f32 %v8231, %v8145
        %v8233 = vadd.f32 %v8232, %v8147
        %v8234 = vadd.f32 %v8233, %v8149
        %v8235 = vadd.f32 %v8234, %v8151
        %v8236 = vadd.f32 %v8235, %v8153
        %v8237 = vadd.f32 %v8236, %v8155
        %v8238 = vadd.f32 %v8237, %v8157
        %v8239 = vadd.f32 %v8238, %v8159
        %v8240 = vadd.f32 %v8239, %v8161
        %v8241 = vadd.f32 %v8240, %v8163
        %v8242 = vadd.f32 %v8241, %v8165
        %v8243 = vadd.f32 %v8242, %v8167
        %v8244 = vadd.f32 %v8243, %v8169
        %v8245 = vadd.f32 %v8244, %v8171
        %v8246 = vadd.f32 %v8245, %v8173
        %v8247 = vadd.f32 %v8246, %v8175
        %v8248 = vadd.f32 %v8247, %v8177
        %v8249 = vadd.f32 %v8248, %v8179
        %v8250 = vadd.f32 %v8249, %v8181
        %v8251 = vadd.f32 %v8250, %v8183
        %v8252 = vrot.slane %v8251, 4
        %v8253 = vadd.f32 %v8251, %v8252
        %v8254 = vrot.slane %v8253, 2
        %v8255 = vadd.f32 %v8253, %v8254
        %v8256 = vrot.slane %v8255, 1
        %v8257 = vadd.f32 %v8255, %v8256
        %v8258 = vmul.f32 %v8220, 0.0051020407
        %v8259 = vmul.f32 %v8257, 0.0051020407
        %v8260 = vadd.f32 %v8258, 0.001
        %v8261 = vadd.f32 %v8259, 0.001
        %v8262 = vrsqrt.pop %v8260
        %v8263 = vrsqrt.pop %v8261
        %v8264 = vld [vmem:[%s1003] sm:$0x3]
        %v8266 = vlaneseq
        %v8267 = vshrl.u32 %v8266, 7
        %v8268 = vsub.s32 0, %v8267
        %v8269 = vrot.slane %v8264, %v8268
        %v8270 = vlaneseq
        %v8271 = vshrl.u32 %v8270, 7
        %v8272 = vsub.s32 1, %v8271
        %v8273 = vrot.slane %v8264, %v8272
        %v8276 = vmul.f32 %v8262, %v8269
        %v8277 = vmul.f32 %v8263, %v8273
        %v8278 = vld [vmem:[%s1008] sm:$0x3]
        %v8279 = vmul.f32 %v7990, %v8276
        %v8280 = vmul.f32 %v7991, %v8277
        %v8283 = vcombine.low %v8279, %v8280
        %v8285 = vunpack.c.l.s4 1966171168
        %v8286 = vunpack.c.0.s8 %v8285
        %v8287 = vlaneseq
        %v8288 = vshrl.u32 %v8287, 7
        %v8289 = vsub.s32 %v8286, %v8288
        %v8290 = vrot.slane %v8283, %v8289
        %v8292 = vunpack.c.l.s4 1966171168
        %v8293 = vunpack.c.0.s8 %v8292
        %v8294 = vlaneseq
        %v8295 = vshrl.u32 %v8294, 7
        %v8296 = vsub.s32 %v8293, %v8295
        %v8297 = vrot.slane %v8290, %v8296
        %v8299 = vsub.f32 %v8278, %v8297
        %v8300 = vlaneseq
        %v8301 = vshrl.u32 %v8300, 7
        %v8302 = vsub.s32 0, %v8301
        %v8303 = vrot.slane %v8276, %v8302
        %v8304 = vlaneseq
        %v8305 = vshrl.u32 %v8304, 7
        %v8306 = vsub.s32 0, %v8305
        %v8307 = vrot.slane %v8277, %v8306
        %v8308 = vmul.f32 %v7596, %v8303
        %v8309 = vmul.f32 %v7597, %v8307
        %v8310 = vmul.f32 %v7598, %v8303
        %v8311 = vmul.f32 %v7599, %v8307
        %v8312 = vmul.f32 %v7600, %v8303
        %v8313 = vmul.f32 %v7601, %v8307
        %v8314 = vmul.f32 %v7602, %v8303
        %v8315 = vmul.f32 %v7603, %v8307
        %v8316 = vmul.f32 %v7604, %v8303
        %v8317 = vmul.f32 %v7605, %v8307
        %v8318 = vmul.f32 %v7606, %v8303
        %v8319 = vmul.f32 %v7607, %v8307
        %v8320 = vmul.f32 %v7608, %v8303
        %v8321 = vmul.f32 %v7609, %v8307
        %v8322 = vmul.f32 %v7610, %v8303
        %v8323 = vmul.f32 %v7611, %v8307
        %v8324 = vmul.f32 %v7612, %v8303
        %v8325 = vmul.f32 %v7613, %v8307
        %v8326 = vmul.f32 %v7614, %v8303
        %v8327 = vmul.f32 %v7615, %v8307
        %v8328 = vmul.f32 %v7616, %v8303
        %v8329 = vmul.f32 %v7617, %v8307
        %v8330 = vmul.f32 %v7618, %v8303
        %v8331 = vmul.f32 %v7619, %v8307
        %v8332 = vmul.f32 %v7620, %v8303
        %v8333 = vmul.f32 %v7621, %v8307
        %v8334 = vmul.f32 %v7622, %v8303
        %v8335 = vmul.f32 %v7623, %v8307
        %v8336 = vmul.f32 %v7624, %v8303
        %v8337 = vmul.f32 %v7625, %v8307
        %v8338 = vmul.f32 %v7626, %v8303
        %v8339 = vmul.f32 %v7627, %v8307
        %v8340 = vmul.f32 %v7628, %v8303
        %v8341 = vmul.f32 %v7629, %v8307
        %v8342 = vmul.f32 %v7630, %v8303
        %v8343 = vmul.f32 %v7631, %v8307
        %v8344 = vmul.f32 %v7632, %v8303
        %v8345 = vmul.f32 %v7633, %v8307
        %v8346 = vmul.f32 %v7634, %v8303
        %v8347 = vmul.f32 %v7635, %v8307
        %v8348 = vmul.f32 %v7636, %v8303
        %v8349 = vmul.f32 %v7637, %v8307
        %v8350 = vmul.f32 %v7638, %v8303
        %v8351 = vmul.f32 %v7639, %v8307
        %v8352 = vmul.f32 %v7640, %v8303
        %v8353 = vmul.f32 %v7641, %v8307
        %v8354 = vmul.f32 %v7642, %v8303
        %v8355 = vmul.f32 %v7643, %v8307
        %v8356 = vmul.f32 %v7644, %v8303
        %v8357 = vmul.f32 %v7645, %v8307
        %v8358 = vmul.f32 %v7646, %v8303
        %v8359 = vmul.f32 %v7647, %v8307
        %v8360 = vmul.f32 %v7648, %v8303
        %v8361 = vmul.f32 %v7649, %v8307
        %v8362 = vmul.f32 %v7650, %v8303
        %v8363 = vmul.f32 %v7651, %v8307
        %v8364 = vmul.f32 %v7652, %v8303
        %v8365 = vmul.f32 %v7653, %v8307
        %v8366 = vmul.f32 %v7654, %v8303
        %v8367 = vmul.f32 %v7655, %v8307
        %v8368 = vmul.f32 %v7656, %v8303
        %v8369 = vmul.f32 %v7657, %v8307
        %v8370 = vmul.f32 %v7658, %v8303
        %v8371 = vmul.f32 %v7659, %v8307
        %v8373 = vlaneseq
        %v8374 = vshrl.u32 %v8373, 7
        %v8375 = vsub.s32 0, %v8374
        %v8376 = vrot.slane %v8299, %v8375
        %v8377 = vlaneseq
        %v8378 = vshrl.u32 %v8377, 7
        %v8379 = vsub.s32 1, %v8378
        %v8380 = vrot.slane %v8299, %v8379
        %v8383 = vadd.f32 %v8308, %v8376
        %v8384 = vadd.f32 %v8309, %v8380
        %v8385 = vadd.f32 %v8310, %v8376
        %v8386 = vadd.f32 %v8311, %v8380
        %v8387 = vadd.f32 %v8312, %v8376
        %v8388 = vadd.f32 %v8313, %v8380
        %v8389 = vadd.f32 %v8314, %v8376
        %v8390 = vadd.f32 %v8315, %v8380
        %v8391 = vadd.f32 %v8316, %v8376
        %v8392 = vadd.f32 %v8317, %v8380
        %v8393 = vadd.f32 %v8318, %v8376
        %v8394 = vadd.f32 %v8319, %v8380
        %v8395 = vadd.f32 %v8320, %v8376
        %v8396 = vadd.f32 %v8321, %v8380
        %v8397 = vadd.f32 %v8322, %v8376
        %v8398 = vadd.f32 %v8323, %v8380
        %v8399 = vadd.f32 %v8324, %v8376
        %v8400 = vadd.f32 %v8325, %v8380
        %v8401 = vadd.f32 %v8326, %v8376
        %v8402 = vadd.f32 %v8327, %v8380
        %v8403 = vadd.f32 %v8328, %v8376
        %v8404 = vadd.f32 %v8329, %v8380
        %v8405 = vadd.f32 %v8330, %v8376
        %v8406 = vadd.f32 %v8331, %v8380
        %v8407 = vadd.f32 %v8332, %v8376
        %v8408 = vadd.f32 %v8333, %v8380
        %v8409 = vadd.f32 %v8334, %v8376
        %v8410 = vadd.f32 %v8335, %v8380
        %v8411 = vadd.f32 %v8336, %v8376
        %v8412 = vadd.f32 %v8337, %v8380
        %v8413 = vadd.f32 %v8338, %v8376
        %v8414 = vadd.f32 %v8339, %v8380
        %v8415 = vadd.f32 %v8340, %v8376
        %v8416 = vadd.f32 %v8341, %v8380
        %v8417 = vadd.f32 %v8342, %v8376
        %v8418 = vadd.f32 %v8343, %v8380
        %v8419 = vadd.f32 %v8344, %v8376
        %v8420 = vadd.f32 %v8345, %v8380
        %v8421 = vadd.f32 %v8346, %v8376
        %v8422 = vadd.f32 %v8347, %v8380
        %v8423 = vadd.f32 %v8348, %v8376
        %v8424 = vadd.f32 %v8349, %v8380
        %v8425 = vadd.f32 %v8350, %v8376
        %v8426 = vadd.f32 %v8351, %v8380
        %v8427 = vadd.f32 %v8352, %v8376
        %v8428 = vadd.f32 %v8353, %v8380
        %v8429 = vadd.f32 %v8354, %v8376
        %v8430 = vadd.f32 %v8355, %v8380
        %v8431 = vadd.f32 %v8356, %v8376
        %v8432 = vadd.f32 %v8357, %v8380
        %v8433 = vadd.f32 %v8358, %v8376
        %v8434 = vadd.f32 %v8359, %v8380
        %v8435 = vadd.f32 %v8360, %v8376
        %v8436 = vadd.f32 %v8361, %v8380
        %v8437 = vadd.f32 %v8362, %v8376
        %v8438 = vadd.f32 %v8363, %v8380
        %v8439 = vadd.f32 %v8364, %v8376
        %v8440 = vadd.f32 %v8365, %v8380
        %v8441 = vadd.f32 %v8366, %v8376
        %v8442 = vadd.f32 %v8367, %v8380
        %v8443 = vadd.f32 %v8368, %v8376
        %v8444 = vadd.f32 %v8369, %v8380
        %v8445 = vadd.f32 %v8370, %v8376
        %v8446 = vadd.f32 %v8371, %v8380
        %8447 = vst [vmem:[%s998] sm:$0xff] %v8383
        %8448 = vst [vmem:[%s998 + $0x8] sm:$0xff] %v8384
        %8449 = vst [vmem:[%s998 + $0x10] sm:$0xff] %v8385
        %8450 = vst [vmem:[%s998 + $0x18] sm:$0xff] %v8386
        %8451 = vst [vmem:[%s998 + $0x20] sm:$0xff] %v8387
        %8452 = vst [vmem:[%s998 + $0x28] sm:$0xff] %v8388
        %8453 = vst [vmem:[%s998 + $0x30] sm:$0xff] %v8389
        %8454 = vst [vmem:[%s998 + $0x38] sm:$0xff] %v8390
        %8455 = vst [vmem:[%s998 + $0x40] sm:$0xff] %v8391
        %8456 = vst [vmem:[%s998 + $0x48] sm:$0xff] %v8392
        %8457 = vst [vmem:[%s998 + $0x50] sm:$0xff] %v8393
        %8458 = vst [vmem:[%s998 + $0x58] sm:$0xff] %v8394
        %8459 = vst [vmem:[%s998 + $0x60] sm:$0xff] %v8395
        %8460 = vst [vmem:[%s998 + $0x68] sm:$0xff] %v8396
        %8461 = vst [vmem:[%s998 + $0x70] sm:$0xff] %v8397
        %8462 = vst [vmem:[%s998 + $0x78] sm:$0xff] %v8398
        %8463 = vst [vmem:[%s998 + $0x80] sm:$0xff] %v8399
        %8464 = vst [vmem:[%s998 + $0x88] sm:$0xff] %v8400
        %8465 = vst [vmem:[%s998 + $0x90] sm:$0xff] %v8401
        %8466 = vst [vmem:[%s998 + $0x98] sm:$0xff] %v8402
        %8467 = vst [vmem:[%s998 + $0xa0] sm:$0xff] %v8403
        %8468 = vst [vmem:[%s998 + $0xa8] sm:$0xff] %v8404
        %8469 = vst [vmem:[%s998 + $0xb0] sm:$0xff] %v8405
        %8470 = vst [vmem:[%s998 + $0xb8] sm:$0xff] %v8406
        %8471 = vst [vmem:[%s998 + $0xc0] sm:$0xff] %v8407
        %8472 = vst [vmem:[%s998 + $0xc8] sm:$0xff] %v8408
        %8473 = vst [vmem:[%s998 + $0xd0] sm:$0xff] %v8409
        %8474 = vst [vmem:[%s998 + $0xd8] sm:$0xff] %v8410
        %8475 = vst [vmem:[%s998 + $0xe0] sm:$0xff] %v8411
        %8476 = vst [vmem:[%s998 + $0xe8] sm:$0xff] %v8412
        %8477 = vst [vmem:[%s998 + $0xf0] sm:$0xff] %v8413
        %8478 = vst [vmem:[%s998 + $0xf8] sm:$0xff] %v8414
        %8479 = vst [vmem:[%s998 + $0x100] sm:$0xff] %v8415
        %8480 = vst [vmem:[%s998 + $0x108] sm:$0xff] %v8416
        %8481 = vst [vmem:[%s998 + $0x110] sm:$0xff] %v8417
        %8482 = vst [vmem:[%s998 + $0x118] sm:$0xff] %v8418
        %8483 = vst [vmem:[%s998 + $0x120] sm:$0xff] %v8419
        %8484 = vst [vmem:[%s998 + $0x128] sm:$0xff] %v8420
        %8485 = vst [vmem:[%s998 + $0x130] sm:$0xff] %v8421
        %8486 = vst [vmem:[%s998 + $0x138] sm:$0xff] %v8422
        %8487 = vst [vmem:[%s998 + $0x140] sm:$0xff] %v8423
        %8488 = vst [vmem:[%s998 + $0x148] sm:$0xff] %v8424
        %8489 = vst [vmem:[%s998 + $0x150] sm:$0xff] %v8425
        %8490 = vst [vmem:[%s998 + $0x158] sm:$0xff] %v8426
        %8491 = vst [vmem:[%s998 + $0x160] sm:$0xff] %v8427
        %8492 = vst [vmem:[%s998 + $0x168] sm:$0xff] %v8428
        %8493 = vst [vmem:[%s998 + $0x170] sm:$0xff] %v8429
        %8494 = vst [vmem:[%s998 + $0x178] sm:$0xff] %v8430
        %8495 = vst [vmem:[%s998 + $0x180] sm:$0xff] %v8431
        %8496 = vst [vmem:[%s998 + $0x188] sm:$0xff] %v8432
        %8497 = vst [vmem:[%s998 + $0x190] sm:$0xff] %v8433
        %8498 = vst [vmem:[%s998 + $0x198] sm:$0xff] %v8434
        %8499 = vst [vmem:[%s998 + $0x1a0] sm:$0xff] %v8435
        %8500 = vst [vmem:[%s998 + $0x1a8] sm:$0xff] %v8436
        %8501 = vst [vmem:[%s998 + $0x1b0] sm:$0xff] %v8437
        %8502 = vst [vmem:[%s998 + $0x1b8] sm:$0xff] %v8438
        %8503 = vst [vmem:[%s998 + $0x1c0] sm:$0xff] %v8439
        %8504 = vst [vmem:[%s998 + $0x1c8] sm:$0xff] %v8440
        %8505 = vst [vmem:[%s998 + $0x1d0] sm:$0xff] %v8441
        %8506 = vst [vmem:[%s998 + $0x1d8] sm:$0xff] %v8442
        %8507 = vst [vmem:[%s998 + $0x1e0] sm:$0xff] %v8443
        %8508 = vst [vmem:[%s998 + $0x1e8] sm:$0xff] %v8444
        %8509 = vst [vmem:[%s998 + $0x1f0] sm:$0xff] %v8445
        %8510 = vst [vmem:[%s998 + $0x1f8] sm:$0xff] %v8446
        %s8511 = sand.u32 %s144, 1
        %s8512 = sand.u32 %s144, 1
        %s8513 = smul.addr %s8512, 512
        %s8514 = scalar_lea.vmem [#allocation3], %s8513
        // Predicated region
        $region79: #{_conv2d_bn_impl.1} parent=73 // pred_check
          %p8515 = pneg %p154
        $region80: #{_conv2d_bn_impl.1} parent=73 // pred_check_branch
          %8517 = sbr.rel (%p8515) target = $region82
        $region81: #{_conv2d_bn_impl.1} parent=73 // pred_region
          %s8518 = smul.u32 2, %s16
          %s8519 = smul.addr %s8518, 8
          %s8520 = scalar_lea.vmem %s5, %s8519
          // Predicated region
          $region83: #{_conv2d_bn_impl.1} parent=81 // pred_check
            _
          $region84: #{_conv2d_bn_impl.1} parent=81 // pred_check_branch
            %8522 = sbr.rel (0) target = $region86
          $region85: #{_conv2d_bn_impl.1} parent=81 // pred_region
            // Predicated region
            $region87: #{_conv2d_bn_impl.1} parent=85 // pred_check
              _
            $region88: #{_conv2d_bn_impl.1} parent=85 // pred_check_branch
              %8524 = sbr.rel (0) target = $region90
            $region89: #{_conv2d_bn_impl.1} parent=85 // pred_region
              loop: start=0, step=1, limit=1
              $region91: #{_conv2d_bn_impl.1} parent=89 // loop_pre_header
                _
              $region92: #{_conv2d_bn_impl.1} parent=89 // loop_header
                %s8526 = sphi 0, %s8530
                %p8527 = scmp.ge.s32.totalorder %s8526, 1
                %s8531 = sphi %s8514, %s8514
                %s8532 = sphi %s8520, %s8520
              $region93: #{_conv2d_bn_impl.1} parent=89 // loop_header_branch
                %8529 = sbr.rel (%p8527) target = $region97
              $region94: #{_conv2d_bn_impl.1} parent=89 // loop_body
                %v8533 = vld [vmem:[%s8531] sm:$0xff]
                %8534 = vst [vmem:[%s8532] sm:$0xff] %v8533
                %v8535 = vld [vmem:[%s8531 + $0x8] sm:$0xff]
                %8536 = vst [vmem:[%s8532 + $0x8] sm:$0xff] %v8535
                %v8537 = vld [vmem:[%s8531 + $0x10] sm:$0xff]
                %8538 = vst [vmem:[%s8532 + $0x20] sm:$0xff] %v8537
                %v8539 = vld [vmem:[%s8531 + $0x18] sm:$0xff]
                %8540 = vst [vmem:[%s8532 + $0x28] sm:$0xff] %v8539
                %v8541 = vld [vmem:[%s8531 + $0x20] sm:$0xff]
                %8542 = vst [vmem:[%s8532 + $0x40] sm:$0xff] %v8541
                %v8543 = vld [vmem:[%s8531 + $0x28] sm:$0xff]
                %8544 = vst [vmem:[%s8532 + $0x48] sm:$0xff] %v8543
                %v8545 = vld [vmem:[%s8531 + $0x30] sm:$0xff]
                %8546 = vst [vmem:[%s8532 + $0x60] sm:$0xff] %v8545
                %v8547 = vld [vmem:[%s8531 + $0x38] sm:$0xff]
                %8548 = vst [vmem:[%s8532 + $0x68] sm:$0xff] %v8547
                %v8549 = vld [vmem:[%s8531 + $0x40] sm:$0xff]
                %8550 = vst [vmem:[%s8532 + $0x80] sm:$0xff] %v8549
                %v8551 = vld [vmem:[%s8531 + $0x48] sm:$0xff]
                %8552 = vst [vmem:[%s8532 + $0x88] sm:$0xff] %v8551
                %v8553 = vld [vmem:[%s8531 + $0x50] sm:$0xff]
                %8554 = vst [vmem:[%s8532 + $0xa0] sm:$0xff] %v8553
                %v8555 = vld [vmem:[%s8531 + $0x58] sm:$0xff]
                %8556 = vst [vmem:[%s8532 + $0xa8] sm:$0xff] %v8555
                %v8557 = vld [vmem:[%s8531 + $0x60] sm:$0xff]
                %8558 = vst [vmem:[%s8532 + $0xc0] sm:$0xff] %v8557
                %v8559 = vld [vmem:[%s8531 + $0x68] sm:$0xff]
                %8560 = vst [vmem:[%s8532 + $0xc8] sm:$0xff] %v8559
                %v8561 = vld [vmem:[%s8531 + $0x70] sm:$0xff]
                %8562 = vst [vmem:[%s8532 + $0xe0] sm:$0xff] %v8561
                %v8563 = vld [vmem:[%s8531 + $0x78] sm:$0xff]
                %8564 = vst [vmem:[%s8532 + $0xe8] sm:$0xff] %v8563
                %v8565 = vld [vmem:[%s8531 + $0x80] sm:$0xff]
                %8566 = vst [vmem:[%s8532 + $0x100] sm:$0xff] %v8565
                %v8567 = vld [vmem:[%s8531 + $0x88] sm:$0xff]
                %8568 = vst [vmem:[%s8532 + $0x108] sm:$0xff] %v8567
                %v8569 = vld [vmem:[%s8531 + $0x90] sm:$0xff]
                %8570 = vst [vmem:[%s8532 + $0x120] sm:$0xff] %v8569
                %v8571 = vld [vmem:[%s8531 + $0x98] sm:$0xff]
                %8572 = vst [vmem:[%s8532 + $0x128] sm:$0xff] %v8571
                %v8573 = vld [vmem:[%s8531 + $0xa0] sm:$0xff]
                %8574 = vst [vmem:[%s8532 + $0x140] sm:$0xff] %v8573
                %v8575 = vld [vmem:[%s8531 + $0xa8] sm:$0xff]
                %8576 = vst [vmem:[%s8532 + $0x148] sm:$0xff] %v8575
                %v8577 = vld [vmem:[%s8531 + $0xb0] sm:$0xff]
                %8578 = vst [vmem:[%s8532 + $0x160] sm:$0xff] %v8577
                %v8579 = vld [vmem:[%s8531 + $0xb8] sm:$0xff]
                %8580 = vst [vmem:[%s8532 + $0x168] sm:$0xff] %v8579
                %v8581 = vld [vmem:[%s8531 + $0xc0] sm:$0xff]
                %8582 = vst [vmem:[%s8532 + $0x180] sm:$0xff] %v8581
                %v8583 = vld [vmem:[%s8531 + $0xc8] sm:$0xff]
                %8584 = vst [vmem:[%s8532 + $0x188] sm:$0xff] %v8583
                %v8585 = vld [vmem:[%s8531 + $0xd0] sm:$0xff]
                %8586 = vst [vmem:[%s8532 + $0x1a0] sm:$0xff] %v8585
                %v8587 = vld [vmem:[%s8531 + $0xd8] sm:$0xff]
                %8588 = vst [vmem:[%s8532 + $0x1a8] sm:$0xff] %v8587
                %v8589 = vld [vmem:[%s8531 + $0xe0] sm:$0xff]
                %8590 = vst [vmem:[%s8532 + $0x1c0] sm:$0xff] %v8589
                %v8591 = vld [vmem:[%s8531 + $0xe8] sm:$0xff]
                %8592 = vst [vmem:[%s8532 + $0x1c8] sm:$0xff] %v8591
                %v8593 = vld [vmem:[%s8531 + $0xf0] sm:$0xff]
                %8594 = vst [vmem:[%s8532 + $0x1e0] sm:$0xff] %v8593
                %v8595 = vld [vmem:[%s8531 + $0xf8] sm:$0xff]
                %8596 = vst [vmem:[%s8532 + $0x1e8] sm:$0xff] %v8595
                %v8597 = vld [vmem:[%s8531 + $0x100] sm:$0xff]
                %8598 = vst [vmem:[%s8532 + $0x200] sm:$0xff] %v8597
                %v8599 = vld [vmem:[%s8531 + $0x108] sm:$0xff]
                %8600 = vst [vmem:[%s8532 + $0x208] sm:$0xff] %v8599
                %v8601 = vld [vmem:[%s8531 + $0x110] sm:$0xff]
                %8602 = vst [vmem:[%s8532 + $0x220] sm:$0xff] %v8601
                %v8603 = vld [vmem:[%s8531 + $0x118] sm:$0xff]
                %8604 = vst [vmem:[%s8532 + $0x228] sm:$0xff] %v8603
                %v8605 = vld [vmem:[%s8531 + $0x120] sm:$0xff]
                %8606 = vst [vmem:[%s8532 + $0x240] sm:$0xff] %v8605
                %v8607 = vld [vmem:[%s8531 + $0x128] sm:$0xff]
                %8608 = vst [vmem:[%s8532 + $0x248] sm:$0xff] %v8607
                %v8609 = vld [vmem:[%s8531 + $0x130] sm:$0xff]
                %8610 = vst [vmem:[%s8532 + $0x260] sm:$0xff] %v8609
                %v8611 = vld [vmem:[%s8531 + $0x138] sm:$0xff]
                %8612 = vst [vmem:[%s8532 + $0x268] sm:$0xff] %v8611
                %v8613 = vld [vmem:[%s8531 + $0x140] sm:$0xff]
                %8614 = vst [vmem:[%s8532 + $0x280] sm:$0xff] %v8613
                %v8615 = vld [vmem:[%s8531 + $0x148] sm:$0xff]
                %8616 = vst [vmem:[%s8532 + $0x288] sm:$0xff] %v8615
                %v8617 = vld [vmem:[%s8531 + $0x150] sm:$0xff]
                %8618 = vst [vmem:[%s8532 + $0x2a0] sm:$0xff] %v8617
                %v8619 = vld [vmem:[%s8531 + $0x158] sm:$0xff]
                %8620 = vst [vmem:[%s8532 + $0x2a8] sm:$0xff] %v8619
                %v8621 = vld [vmem:[%s8531 + $0x160] sm:$0xff]
                %8622 = vst [vmem:[%s8532 + $0x2c0] sm:$0xff] %v8621
                %v8623 = vld [vmem:[%s8531 + $0x168] sm:$0xff]
                %8624 = vst [vmem:[%s8532 + $0x2c8] sm:$0xff] %v8623
                %v8625 = vld [vmem:[%s8531 + $0x170] sm:$0xff]
                %8626 = vst [vmem:[%s8532 + $0x2e0] sm:$0xff] %v8625
                %v8627 = vld [vmem:[%s8531 + $0x178] sm:$0xff]
                %8628 = vst [vmem:[%s8532 + $0x2e8] sm:$0xff] %v8627
                %v8629 = vld [vmem:[%s8531 + $0x180] sm:$0xff]
                %8630 = vst [vmem:[%s8532 + $0x300] sm:$0xff] %v8629
                %v8631 = vld [vmem:[%s8531 + $0x188] sm:$0xff]
                %8632 = vst [vmem:[%s8532 + $0x308] sm:$0xff] %v8631
                %v8633 = vld [vmem:[%s8531 + $0x190] sm:$0xff]
                %8634 = vst [vmem:[%s8532 + $0x320] sm:$0xff] %v8633
                %v8635 = vld [vmem:[%s8531 + $0x198] sm:$0xff]
                %8636 = vst [vmem:[%s8532 + $0x328] sm:$0xff] %v8635
                %v8637 = vld [vmem:[%s8531 + $0x1a0] sm:$0xff]
                %8638 = vst [vmem:[%s8532 + $0x340] sm:$0xff] %v8637
                %v8639 = vld [vmem:[%s8531 + $0x1a8] sm:$0xff]
                %8640 = vst [vmem:[%s8532 + $0x348] sm:$0xff] %v8639
                %v8641 = vld [vmem:[%s8531 + $0x1b0] sm:$0xff]
                %8642 = vst [vmem:[%s8532 + $0x360] sm:$0xff] %v8641
                %v8643 = vld [vmem:[%s8531 + $0x1b8] sm:$0xff]
                %8644 = vst [vmem:[%s8532 + $0x368] sm:$0xff] %v8643
                %v8645 = vld [vmem:[%s8531 + $0x1c0] sm:$0xff]
                %8646 = vst [vmem:[%s8532 + $0x380] sm:$0xff] %v8645
                %v8647 = vld [vmem:[%s8531 + $0x1c8] sm:$0xff]
                %8648 = vst [vmem:[%s8532 + $0x388] sm:$0xff] %v8647
                %v8649 = vld [vmem:[%s8531 + $0x1d0] sm:$0xff]
                %8650 = vst [vmem:[%s8532 + $0x3a0] sm:$0xff] %v8649
                %v8651 = vld [vmem:[%s8531 + $0x1d8] sm:$0xff]
                %8652 = vst [vmem:[%s8532 + $0x3a8] sm:$0xff] %v8651
                %v8653 = vld [vmem:[%s8531 + $0x1e0] sm:$0xff]
                %8654 = vst [vmem:[%s8532 + $0x3c0] sm:$0xff] %v8653
                %v8655 = vld [vmem:[%s8531 + $0x1e8] sm:$0xff]
                %8656 = vst [vmem:[%s8532 + $0x3c8] sm:$0xff] %v8655
                %v8657 = vld [vmem:[%s8531 + $0x1f0] sm:$0xff]
                %8658 = vst [vmem:[%s8532 + $0x3e0] sm:$0xff] %v8657
                %v8659 = vld [vmem:[%s8531 + $0x1f8] sm:$0xff]
                %8660 = vst [vmem:[%s8532 + $0x3e8] sm:$0xff] %v8659
              $region95: #{_conv2d_bn_impl.1} parent=89 // loop_footer
                %s8530 = sadd.s32 1, %s8526
              $region96: #{_conv2d_bn_impl.1} parent=89 // loop_footer_branch
                %8525 = sbr.rel target = $region92
              $region97: #{_conv2d_bn_impl.1} parent=89 // loop_exit
                _
            $region90: #{_conv2d_bn_impl.1} parent=85 // pred_fallthru
              _
            // Predicated region
            $region98: #{_conv2d_bn_impl.1} parent=85 // pred_check
              _
            $region99: #{_conv2d_bn_impl.1} parent=85 // pred_check_branch
              %8662 = sbr.rel target = $region101
            $region100: #{_conv2d_bn_impl.1} parent=85 // pred_region
              _
            $region101: #{_conv2d_bn_impl.1} parent=85 // pred_fallthru
              _
          $region86: #{_conv2d_bn_impl.1} parent=81 // pred_fallthru
            _
          %8663 = vnop
        $region82: #{_conv2d_bn_impl.1} parent=73 // pred_fallthru
          _
      $region74: #{_conv2d_bn_impl.1} parent=5 // pred_fallthru
        _
      %p8664 = scmp.le.s32.totalorder 2, %s11
      // Predicated region
      $region102: #{_conv2d_bn_impl.1} parent=5 // pred_check
        %p8665 = pneg %p8664
      $region103: #{_conv2d_bn_impl.1} parent=5 // pred_check_branch
        %8667 = sbr.rel (%p8665) target = $region105
      $region104: #{_conv2d_bn_impl.1} parent=5 // pred_region
        %s8668 = ssub.s32 %s11, 2
        // Predicated region
        $region106: #{_conv2d_bn_impl.1} parent=104 // pred_check
          %p8669 = pneg %p160
        $region107: #{_conv2d_bn_impl.1} parent=104 // pred_check_branch
          %8671 = sbr.rel (%p8669) target = $region109
        $region108: #{_conv2d_bn_impl.1} parent=104 // pred_region
          %s8672 = sand.u32 %s145, 1
          %s8673 = sand.u32 %s145, 1
          %s8674 = smul.addr %s8673, 512
          %s8675 = scalar_lea.vmem [#allocation3], %s8674
        $region109: #{_conv2d_bn_impl.1} parent=104 // pred_fallthru
          _
      $region105: #{_conv2d_bn_impl.1} parent=5 // pred_fallthru
        _
    $region6: #{_conv2d_bn_impl.1} parent=1 // loop_footer
      %s15 = sadd.s32 1, %s11
    $region7: #{_conv2d_bn_impl.1} parent=1 // loop_footer_branch
      %10 = sbr.rel target = $region3
    $region8: #{_conv2d_bn_impl.1} parent=1 // loop_exit
      _

</llo_original>
